<compile_context>
chip_gen: v5e
topology: v5e:2x2
jax: 0.10.0
libtpu: 0.0.40
codegen_flags: <defaults>
</compile_context>

<pallas_src>
import math

import jax
import jax.numpy as jnp
from jax import lax
from jax.experimental import pallas as pl
from jax.experimental.pallas import tpu as pltpu

H = W = 28
FEAT = 512


# ----------------------------------------------------------------------------
# Conv 3x3 (pad 1, stride 1) + bias + ReLU as ONE im2col GEMM per layer:
#   (rows, 9*cin) @ (9*cin, cout)
# A single K=9*cin contraction replaces the previous 9 accumulated dots (no
# repeated read-modify-write passes over a VMEM accumulator).  Rows are tiled
# so the grid is pipelined and can be sharded across TensorCores (v7x).
# ----------------------------------------------------------------------------
def _conv_gemm_kernel(xs_ref, w_ref, b_ref, o_ref):
    o_ref[...] = jnp.maximum(
        jnp.dot(xs_ref[...], w_ref[...], preferred_element_type=jnp.float32)
        + b_ref[...],
        0.0,
    )


def conv3x3_relu(x_nhwc, w, b):
    """x_nhwc: (B,H,W,cin) f32, w: (3,3,cin,cout) f32, b: (1,cout) f32."""
    B, Hh, Ww, cin = x_nhwc.shape
    cout = w.shape[-1]
    xp = jnp.pad(x_nhwc, ((0, 0), (1, 1), (1, 1), (0, 0)))
    # im2col, tap-major then channel: column index = (dy*3+dx)*cin + ci, which
    # matches w.reshape(9*cin, cout) row order (HWIO).
    cols = jnp.concatenate(
        [xp[:, dy:dy + Hh, dx:dx + Ww, :] for dy in range(3) for dx in range(3)],
        axis=-1,
    ).reshape(B * Hh * Ww, 9 * cin)
    wk = w.reshape(9 * cin, cout)

    k = 9 * cin
    k_pad = ((k + 7) // 8) * 8          # keep the contraction sublane-aligned
    if k_pad != k:
        cols = jnp.pad(cols, ((0, 0), (0, k_pad - k)))
        wk = jnp.pad(wk, ((0, k_pad - k), (0, 0)))

    rows = B * Hh * Ww
    tm = Hh * Ww                        # one image worth of rows per block (784)
    grid = (rows // tm,)

    out = pl.pallas_call(
        _conv_gemm_kernel,
        out_shape=jax.ShapeDtypeStruct((rows, cout), jnp.float32),
        grid=grid,
        in_specs=[
            pl.BlockSpec((tm, k_pad), lambda i: (i, 0)),
            pl.BlockSpec((k_pad, cout), lambda i: (0, 0)),
            pl.BlockSpec((1, cout), lambda i: (0, 0)),
        ],
        out_specs=pl.BlockSpec((tm, cout), lambda i: (i, 0)),
        compiler_params=pltpu.CompilerParams(
            dimension_semantics=("parallel",),
        ),
    )(cols, wk, b)
    return out.reshape(B, Hh, Ww, cout)


# ----------------------------------------------------------------------------
# Big Linear (64*28*28 -> 512) + bias + ReLU.
# bf16 weights / activations, f32 VMEM accumulator.  Grid = (N tiles, K tiles):
# the N axis is "parallel" so on v7x each TensorCore streams half of the
# weight; the K axis is the "arbitrary" reduction with init/finalize.
# ----------------------------------------------------------------------------
def _linear_relu_kernel(x_ref, w_ref, b_ref, o_ref, acc_ref):
    k = pl.program_id(1)

    @pl.when(k == 0)
    def _():
        acc_ref[...] = jnp.zeros_like(acc_ref)

    acc_ref[...] += jnp.dot(x_ref[...], w_ref[...],
                            preferred_element_type=jnp.float32)

    @pl.when(k == pl.num_programs(1) - 1)
    def _():
        o_ref[...] = jnp.maximum(acc_ref[...] + b_ref[...], 0.0)


def linear_relu_big(x, w, b, *, tk=7168, tn=256):
    """x: (B,K) bf16, w: (K,N) bf16, b: (1,N) f32 -> (B,N) f32."""
    B, K = x.shape
    N = w.shape[1]
    assert K % tk == 0 and tk % 128 == 0
    assert N % tn == 0 and tn % 128 == 0
    return pl.pallas_call(
        _linear_relu_kernel,
        out_shape=jax.ShapeDtypeStruct((B, N), jnp.float32),
        grid=(N // tn, K // tk),
        in_specs=[
            pl.BlockSpec((B, tk), lambda j, k: (0, k)),
            pl.BlockSpec((tk, tn), lambda j, k: (k, j)),
            pl.BlockSpec((1, tn), lambda j, k: (0, j)),
        ],
        out_specs=pl.BlockSpec((B, tn), lambda j, k: (0, j)),
        scratch_shapes=[pltpu.VMEM((B, tn), jnp.float32)],
        compiler_params=pltpu.CompilerParams(
            dimension_semantics=("parallel", "arbitrary"),
            vmem_limit_bytes=32 * 1024 * 1024,   # ~7.5 MB working set; safe on v7x (64 MiB)
        ),
    )(x, w, b)


# ----------------------------------------------------------------------------
# Three heads fused into ONE (512, 7) matmul:
#   columns [0:3]=mean, [3:6]=std (softplus, threshold=20), [6:7]=value.
# Softplus is applied in-kernel via a column mask; the trivial column split is
# done by the wrapper on the (B, 7) result.
# ----------------------------------------------------------------------------
def _heads_kernel(h_ref, w_ref, b_ref, o_ref):
    o = (jnp.dot(h_ref[...], w_ref[...], preferred_element_type=jnp.float32)
         + b_ref[...])
    col = lax.broadcasted_iota(jnp.int32, o.shape, 1)
    is_std = (col >= 3) & (col < 6)
    softplus = jnp.where(o > 20.0, o, jnp.log1p(jnp.exp(jnp.minimum(o, 20.0))))
    o_ref[...] = jnp.where(is_std, softplus, o)


def heads(h, w_heads, b_heads):
    B, D = h.shape
    full = lambda shape: pl.BlockSpec(shape, lambda i: (0,) * len(shape))
    o = pl.pallas_call(
        _heads_kernel,
        out_shape=jax.ShapeDtypeStruct((B, 7), jnp.float32),
        grid=(1,),
        in_specs=[full((B, D)), full((D, 7)), full((1, 7))],
        out_specs=full((B, 7)),
    )(h, w_heads, b_heads)
    return o[:, 0:3], o[:, 3:6], o[:, 6:7]


# ----------------------------------------------------------------------------
# Parameters + forward wrapper (equivalent of PPO_Generator.forward -> model(x))
# ----------------------------------------------------------------------------
def _uniform(key, shape, fan_in):
    bound = 1.0 / math.sqrt(fan_in)
    return jax.random.uniform(key, shape, jnp.float32, -bound, bound)


def init_params(key):
    ks = jax.random.split(key, 8)
    p = {}
    # conv1: 1 -> 32, 3x3  (stored HWIO); biases stored as (1, cout) rows.
    p["w1"] = _uniform(ks[0], (3, 3, 1, 32), 1 * 9)
    p["b1"] = _uniform(ks[1], (1, 32), 1 * 9)
    # conv2: 32 -> 64, 3x3
    p["w2"] = _uniform(ks[2], (3, 3, 32, 64), 32 * 9)
    p["b2"] = _uniform(ks[3], (1, 64), 32 * 9)
    # fc: 64*28*28 -> 512, stored (in, out) with rows in NHWC flatten order
    # (h, w, c).  A PyTorch weight wt of shape (512, C*H*W) (NCHW flatten) maps
    # to:  wf = wt.T.reshape(C, H, W, 512).transpose(1, 2, 0, 3).reshape(-1, 512)
    # Stored in bfloat16: this weight stream dominates HBM traffic.
    p["wf"] = _uniform(ks[4], (H * W * 64, FEAT), 64 * H * W).astype(jnp.bfloat16)
    p["bf"] = _uniform(ks[5], (1, FEAT), 64 * H * W)
    # heads fused into one (512, 7) weight: [mean(3) | std(3) | value(1)]
    p["wh"] = _uniform(ks[6], (FEAT, 7), FEAT)
    p["bh"] = _uniform(ks[7], (1, 7), FEAT)
    return p


@jax.jit
def ppo_generator_forward(params, states_nchw):
    """states_nchw: [B, 1, 28, 28] float32 -> (action_mean, action_std, value)."""
    x = jnp.transpose(states_nchw, (0, 2, 3, 1))           # NCHW -> NHWC
    h1 = conv3x3_relu(x, params["w1"], params["b1"])        # (B, 28, 28, 32)
    h2 = conv3x3_relu(h1, params["w2"], params["b2"])       # (B, 28, 28, 64)
    B = h2.shape[0]
    # NHWC flatten matches wf's row order -> no runtime transpose.
    flat = h2.reshape(B, H * W * 64).astype(jnp.bfloat16)
    feat = linear_relu_big(flat, params["wf"], params["bf"])  # (B, 512) f32
    return heads(feat, params["wh"], params["bh"])
# TODO(synk): optimizer / PPO training loop (Adam, clipped surrogate loss) is
# host-side training logic, not part of the forward hot path; not implemented here.


if __name__ == "__main__":
    key = jax.random.PRNGKey(0)
    pkey, xkey = jax.random.split(key)
    params = init_params(pkey)
    # The module's Linear(64*28*28, 512) fixes spatial size to 28x28, channels to 1.
    states = jax.random.normal(xkey, (2, 1, 28, 28), jnp.float32)

    action_mean, action_std, value = ppo_generator_forward(params, states)
    jax.block_until_ready((action_mean, action_std, value))

    assert action_mean.shape == (2, 3)
    assert action_std.shape == (2, 3)
    assert value.shape == (2, 1)
    assert bool(jnp.all(action_std > 0.0))   # softplus output is positive
    print("KERNEL_OK")
</pallas_src>

<mosaic_0001>
module attributes {stable_mosaic.version = 11 : i64} {
  func.func @_conv_gemm_kernel(%arg0: i32, %arg1: memref<784x16xf32, #tpu.memory_space<vmem>>, %arg2: memref<16x32xf32, #tpu.memory_space<vmem>>, %arg3: memref<1x32xf32, #tpu.memory_space<vmem>>, %arg4: memref<784x32xf32, #tpu.memory_space<vmem>>) attributes {dimension_semantics = [#tpu.dimension_semantics<parallel>], iteration_bounds = array<i64: 2>, scalar_prefetch = 0 : i64, scratch_operands = 0 : i64, tpu.core_type = #tpu.core_type<tc>, window_params = [{transform_indices = @transform_0, window_bounds = array<i64: 784, 16>}, {pipeline_mode = #tpu.pipeline_mode<synchronous>, transform_indices = @transform_1, window_bounds = array<i64: 16, 32>}, {pipeline_mode = #tpu.pipeline_mode<synchronous>, transform_indices = @transform_2, window_bounds = array<i64: 1, 32>}, {transform_indices = @transform_3, window_bounds = array<i64: 784, 32>}]} {
    %c0 = arith.constant 0 : index
    %c0_0 = arith.constant 0 : index
    %0 = vector.load %arg1[%c0, %c0_0] : memref<784x16xf32, #tpu.memory_space<vmem>>, vector<784x16xf32>
    %c0_1 = arith.constant 0 : index
    %c0_2 = arith.constant 0 : index
    %1 = vector.load %arg2[%c0_1, %c0_2] : memref<16x32xf32, #tpu.memory_space<vmem>>, vector<16x32xf32>
    %cst = arith.constant dense<0.000000e+00> : vector<784x32xf32>
    %2 = tpu.matmul %0, %1, %cst {dimension_numbers = #tpu.dot_dimension_numbers<[1], [0], [0], [1], [0, 0, 1, 1], [], []>} : vector<784x16xf32>, vector<16x32xf32>, vector<784x32xf32> -> vector<784x32xf32>
    %c0_3 = arith.constant 0 : index
    %c0_4 = arith.constant 0 : index
    %3 = vector.load %arg3[%c0_3, %c0_4] : memref<1x32xf32, #tpu.memory_space<vmem>>, vector<1x32xf32>
    %4 = vector.broadcast %3 : vector<1x32xf32> to vector<784x32xf32>
    %5 = arith.addf %2, %4 : vector<784x32xf32>
    %cst_5 = arith.constant 0.000000e+00 : f32
    %6 = vector.broadcast %cst_5 : f32 to vector<784x32xf32>
    %7 = arith.maximumf %5, %6 : vector<784x32xf32>
    %c0_6 = arith.constant 0 : index
    %c0_7 = arith.constant 0 : index
    %8 = vector.load %arg4[%c0_6, %c0_7] : memref<784x32xf32, #tpu.memory_space<vmem>>, vector<784x32xf32>
    tpu.vector_store %arg4[%c0_6, %c0_7], %7 {strides = array<i32>} : memref<784x32xf32, #tpu.memory_space<vmem>>, vector<784x32xf32>,
    return
  }
  func.func @transform_0(%arg0: i32) -> (i32, i32) {
    %c0_i32 = arith.constant 0 : i32
    %c0_i32_0 = arith.constant 0 : i32
    return %arg0, %c0_i32 : i32, i32
  }
  func.func @transform_1(%arg0: i32) -> (i32, i32) {
    %c0_i32 = arith.constant 0 : i32
    %c0_i32_0 = arith.constant 0 : i32
    %c0_i32_1 = arith.constant 0 : i32
    return %c0_i32, %c0_i32_0 : i32, i32
  }
  func.func @transform_2(%arg0: i32) -> (i32, i32) {
    %c0_i32 = arith.constant 0 : i32
    %c0_i32_0 = arith.constant 0 : i32
    %c0_i32_1 = arith.constant 0 : i32
    return %c0_i32, %c0_i32_0 : i32, i32
  }
  func.func @transform_3(%arg0: i32) -> (i32, i32) {
    %c0_i32 = arith.constant 0 : i32
    %c0_i32_0 = arith.constant 0 : i32
    return %arg0, %c0_i32 : i32, i32
  }
}

module attributes {stable_mosaic.version = 11 : i64} {
  func.func @_conv_gemm_kernel(%arg0: i32, %arg1: memref<784x288xf32, #tpu.memory_space<vmem>>, %arg2: memref<288x64xf32, #tpu.memory_space<vmem>>, %arg3: memref<1x64xf32, #tpu.memory_space<vmem>>, %arg4: memref<784x64xf32, #tpu.memory_space<vmem>>) attributes {dimension_semantics = [#tpu.dimension_semantics<parallel>], iteration_bounds = array<i64: 2>, scalar_prefetch = 0 : i64, scratch_operands = 0 : i64, tpu.core_type = #tpu.core_type<tc>, window_params = [{transform_indices = @transform_0, window_bounds = array<i64: 784, 288>}, {pipeline_mode = #tpu.pipeline_mode<synchronous>, transform_indices = @transform_1, window_bounds = array<i64: 288, 64>}, {pipeline_mode = #tpu.pipeline_mode<synchronous>, transform_indices = @transform_2, window_bounds = array<i64: 1, 64>}, {transform_indices = @transform_3, window_bounds = array<i64: 784, 64>}]} {
    %c0 = arith.constant 0 : index
    %c0_0 = arith.constant 0 : index
    %0 = vector.load %arg1[%c0, %c0_0] : memref<784x288xf32, #tpu.memory_space<vmem>>, vector<784x288xf32>
    %c0_1 = arith.constant 0 : index
    %c0_2 = arith.constant 0 : index
    %1 = vector.load %arg2[%c0_1, %c0_2] : memref<288x64xf32, #tpu.memory_space<vmem>>, vector<288x64xf32>
    %cst = arith.constant dense<0.000000e+00> : vector<784x64xf32>
    %2 = tpu.matmul %0, %1, %cst {dimension_numbers = #tpu.dot_dimension_numbers<[1], [0], [0], [1], [0, 0, 1, 1], [], []>} : vector<784x288xf32>, vector<288x64xf32>, vector<784x64xf32> -> vector<784x64xf32>
    %c0_3 = arith.constant 0 : index
    %c0_4 = arith.constant 0 : index
    %3 = vector.load %arg3[%c0_3, %c0_4] : memref<1x64xf32, #tpu.memory_space<vmem>>, vector<1x64xf32>
    %4 = vector.broadcast %3 : vector<1x64xf32> to vector<784x64xf32>
    %5 = arith.addf %2, %4 : vector<784x64xf32>
    %cst_5 = arith.constant 0.000000e+00 : f32
    %6 = vector.broadcast %cst_5 : f32 to vector<784x64xf32>
    %7 = arith.maximumf %5, %6 : vector<784x64xf32>
    %c0_6 = arith.constant 0 : index
    %c0_7 = arith.constant 0 : index
    %8 = vector.load %arg4[%c0_6, %c0_7] : memref<784x64xf32, #tpu.memory_space<vmem>>, vector<784x64xf32>
    tpu.vector_store %arg4[%c0_6, %c0_7], %7 {strides = array<i32>} : memref<784x64xf32, #tpu.memory_space<vmem>>, vector<784x64xf32>,
    return
  }
  func.func @transform_0(%arg0: i32) -> (i32, i32) {
    %c0_i32 = arith.constant 0 : i32
    %c0_i32_0 = arith.constant 0 : i32
    return %arg0, %c0_i32 : i32, i32
  }
  func.func @transform_1(%arg0: i32) -> (i32, i32) {
    %c0_i32 = arith.constant 0 : i32
    %c0_i32_0 = arith.constant 0 : i32
    %c0_i32_1 = arith.constant 0 : i32
    return %c0_i32, %c0_i32_0 : i32, i32
  }
  func.func @transform_2(%arg0: i32) -> (i32, i32) {
    %c0_i32 = arith.constant 0 : i32
    %c0_i32_0 = arith.constant 0 : i32
    %c0_i32_1 = arith.constant 0 : i32
    return %c0_i32, %c0_i32_0 : i32, i32
  }
  func.func @transform_3(%arg0: i32) -> (i32, i32) {
    %c0_i32 = arith.constant 0 : i32
    %c0_i32_0 = arith.constant 0 : i32
    return %arg0, %c0_i32 : i32, i32
  }
}

module attributes {stable_mosaic.version = 11 : i64} {
  func.func @_linear_relu_kernel(%arg0: i32, %arg1: i32, %arg2: memref<2x7168xbf16, #tpu.memory_space<vmem>>, %arg3: memref<7168x256xbf16, #tpu.memory_space<vmem>>, %arg4: memref<1x256xf32, #tpu.memory_space<vmem>>, %arg5: memref<2x256xf32, #tpu.memory_space<vmem>>, %arg6: memref<2x256xf32, #tpu.memory_space<vmem>>) attributes {dimension_semantics = [#tpu.dimension_semantics<parallel>, #tpu.dimension_semantics<arbitrary>], iteration_bounds = array<i64: 2, 7>, scalar_prefetch = 0 : i64, scratch_operands = 1 : i64, tpu.core_type = #tpu.core_type<tc>, window_params = [{transform_indices = @transform_0, window_bounds = array<i64: 2, 7168>}, {transform_indices = @transform_1, window_bounds = array<i64: 7168, 256>}, {transform_indices = @transform_2, window_bounds = array<i64: 1, 256>}, {transform_indices = @transform_3, window_bounds = array<i64: 2, 256>}]} {
    %c0_i32 = arith.constant 0 : i32
    %0 = arith.cmpi eq, %arg1, %c0_i32 : i32
    %1 = arith.extui %0 : i1 to i32
    %c0_i32_0 = arith.constant 0 : i32
    %2 = arith.cmpi ne, %1, %c0_i32_0 : i32
    scf.if %2 {
      %cst_9 = arith.constant 0.000000e+00 : f32
      %12 = vector.broadcast %cst_9 : f32 to vector<2x256xf32>
      %c0_10 = arith.constant 0 : index
      %c0_11 = arith.constant 0 : index
      %13 = vector.load %arg6[%c0_10, %c0_11] : memref<2x256xf32, #tpu.memory_space<vmem>>, vector<2x256xf32>
      tpu.vector_store %arg6[%c0_10, %c0_11], %12 {strides = array<i32>} : memref<2x256xf32, #tpu.memory_space<vmem>>, vector<2x256xf32>,
    } else {
    }
    %c0 = arith.constant 0 : index
    %c0_1 = arith.constant 0 : index
    %3 = vector.load %arg6[%c0, %c0_1] : memref<2x256xf32, #tpu.memory_space<vmem>>, vector<2x256xf32>
    %c0_2 = arith.constant 0 : index
    %c0_3 = arith.constant 0 : index
    %4 = vector.load %arg2[%c0_2, %c0_3] : memref<2x7168xbf16, #tpu.memory_space<vmem>>, vector<2x7168xbf16>
    %c0_4 = arith.constant 0 : index
    %c0_5 = arith.constant 0 : index
    %5 = vector.load %arg3[%c0_4, %c0_5] : memref<7168x256xbf16, #tpu.memory_space<vmem>>, vector<7168x256xbf16>
    %cst = arith.constant dense<0.000000e+00> : vector<2x256xf32>
    %6 = tpu.matmul %4, %5, %cst {dimension_numbers = #tpu.dot_dimension_numbers<[1], [0], [0], [1], [0, 0, 1, 1], [], []>} : vector<2x7168xbf16>, vector<7168x256xbf16>, vector<2x256xf32> -> vector<2x256xf32>
    %7 = arith.addf %3, %6 : vector<2x256xf32>
    %c0_6 = arith.constant 0 : index
    %c0_7 = arith.constant 0 : index
    %8 = vector.load %arg6[%c0_6, %c0_7] : memref<2x256xf32, #tpu.memory_space<vmem>>, vector<2x256xf32>
    tpu.vector_store %arg6[%c0_6, %c0_7], %7 {strides = array<i32>} : memref<2x256xf32, #tpu.memory_space<vmem>>, vector<2x256xf32>,
    %c6_i32 = arith.constant 6 : i32
    %9 = arith.cmpi eq, %arg1, %c6_i32 : i32
    %10 = arith.extui %9 : i1 to i32
    %c0_i32_8 = arith.constant 0 : i32
    %11 = arith.cmpi ne, %10, %c0_i32_8 : i32
    scf.if %11 {
      %c0_9 = arith.constant 0 : index
      %c0_10 = arith.constant 0 : index
      %12 = vector.load %arg6[%c0_9, %c0_10] : memref<2x256xf32, #tpu.memory_space<vmem>>, vector<2x256xf32>
      %c0_11 = arith.constant 0 : index
      %c0_12 = arith.constant 0 : index
      %13 = vector.load %arg4[%c0_11, %c0_12] : memref<1x256xf32, #tpu.memory_space<vmem>>, vector<1x256xf32>
      %14 = vector.broadcast %13 : vector<1x256xf32> to vector<2x256xf32>
      %15 = arith.addf %12, %14 : vector<2x256xf32>
      %cst_13 = arith.constant 0.000000e+00 : f32
      %16 = vector.broadcast %cst_13 : f32 to vector<2x256xf32>
      %17 = arith.maximumf %15, %16 : vector<2x256xf32>
      %c0_14 = arith.constant 0 : index
      %c0_15 = arith.constant 0 : index
      %18 = vector.load %arg5[%c0_14, %c0_15] : memref<2x256xf32, #tpu.memory_space<vmem>>, vector<2x256xf32>
      tpu.vector_store %arg5[%c0_14, %c0_15], %17 {strides = array<i32>} : memref<2x256xf32, #tpu.memory_space<vmem>>, vector<2x256xf32>,
    } else {
    }
    return
  }
  func.func @transform_0(%arg0: i32, %arg1: i32) -> (i32, i32) {
    %c0_i32 = arith.constant 0 : i32
    %c0_i32_0 = arith.constant 0 : i32
    return %c0_i32, %arg1 : i32, i32
  }
  func.func @transform_1(%arg0: i32, %arg1: i32) -> (i32, i32) {
    %c0_i32 = arith.constant 0 : i32
    return %arg1, %arg0 : i32, i32
  }
  func.func @transform_2(%arg0: i32, %arg1: i32) -> (i32, i32) {
    %c0_i32 = arith.constant 0 : i32
    %c0_i32_0 = arith.constant 0 : i32
    return %c0_i32, %arg0 : i32, i32
  }
  func.func @transform_3(%arg0: i32, %arg1: i32) -> (i32, i32) {
    %c0_i32 = arith.constant 0 : i32
    %c0_i32_0 = arith.constant 0 : i32
    return %c0_i32, %arg0 : i32, i32
  }
}

module attributes {stable_mosaic.version = 11 : i64} {
  func.func @_heads_kernel(%arg0: i32, %arg1: memref<2x512xf32, #tpu.memory_space<vmem>>, %arg2: memref<512x7xf32, #tpu.memory_space<vmem>>, %arg3: memref<1x7xf32, #tpu.memory_space<vmem>>, %arg4: memref<2x7xf32, #tpu.memory_space<vmem>>) attributes {dimension_semantics = [#tpu.dimension_semantics<arbitrary>], iteration_bounds = array<i64: 1>, scalar_prefetch = 0 : i64, scratch_operands = 0 : i64, tpu.core_type = #tpu.core_type<tc>, window_params = [{pipeline_mode = #tpu.pipeline_mode<synchronous>, transform_indices = @transform_0, window_bounds = array<i64: 2, 512>}, {pipeline_mode = #tpu.pipeline_mode<synchronous>, transform_indices = @transform_1, window_bounds = array<i64: 512, 7>}, {pipeline_mode = #tpu.pipeline_mode<synchronous>, transform_indices = @transform_2, window_bounds = array<i64: 1, 7>}, {pipeline_mode = #tpu.pipeline_mode<synchronous>, transform_indices = @transform_3, window_bounds = array<i64: 2, 7>}]} {
    %c0 = arith.constant 0 : index
    %c0_0 = arith.constant 0 : index
    %0 = vector.load %arg1[%c0, %c0_0] : memref<2x512xf32, #tpu.memory_space<vmem>>, vector<2x512xf32>
    %c0_1 = arith.constant 0 : index
    %c0_2 = arith.constant 0 : index
    %1 = vector.load %arg2[%c0_1, %c0_2] : memref<512x7xf32, #tpu.memory_space<vmem>>, vector<512x7xf32>
    %cst = arith.constant dense<0.000000e+00> : vector<2x7xf32>
    %2 = tpu.matmul %0, %1, %cst {dimension_numbers = #tpu.dot_dimension_numbers<[1], [0], [0], [1], [0, 0, 1, 1], [], []>} : vector<2x512xf32>, vector<512x7xf32>, vector<2x7xf32> -> vector<2x7xf32>
    %c0_3 = arith.constant 0 : index
    %c0_4 = arith.constant 0 : index
    %3 = vector.load %arg3[%c0_3, %c0_4] : memref<1x7xf32, #tpu.memory_space<vmem>>, vector<1x7xf32>
    %4 = vector.broadcast %3 : vector<1x7xf32> to vector<2x7xf32>
    %5 = arith.addf %2, %4 : vector<2x7xf32>
    %6 = tpu.iota {dimensions = array<i32: 1>} : vector<2x7xi32>
    %c3_i32 = arith.constant 3 : i32
    %7 = vector.broadcast %c3_i32 : i32 to vector<2x7xi32>
    %8 = arith.cmpi sge, %6, %7 : vector<2x7xi32>
    %c6_i32 = arith.constant 6 : i32
    %9 = vector.broadcast %c6_i32 : i32 to vector<2x7xi32>
    %10 = arith.cmpi slt, %6, %9 : vector<2x7xi32>
    %11 = arith.andi %8, %10 : vector<2x7xi1>
    %cst_5 = arith.constant 2.000000e+01 : f32
    %12 = vector.broadcast %cst_5 : f32 to vector<2x7xf32>
    %13 = arith.cmpf ogt, %5, %12 : vector<2x7xf32>
    %cst_6 = arith.constant 2.000000e+01 : f32
    %14 = vector.broadcast %cst_6 : f32 to vector<2x7xf32>
    %15 = arith.minimumf %5, %14 : vector<2x7xf32>
    %16 = math.exp %15 : vector<2x7xf32>
    %17 = math.log1p %16 : vector<2x7xf32>
    %18 = arith.select %13, %5, %17 : vector<2x7xi1>, vector<2x7xf32>
    %19 = arith.select %11, %18, %5 : vector<2x7xi1>, vector<2x7xf32>
    %c0_7 = arith.constant 0 : index
    %c0_8 = arith.constant 0 : index
    %20 = vector.load %arg4[%c0_7, %c0_8] : memref<2x7xf32, #tpu.memory_space<vmem>>, vector<2x7xf32>
    tpu.vector_store %arg4[%c0_7, %c0_8], %19 {strides = array<i32>} : memref<2x7xf32, #tpu.memory_space<vmem>>, vector<2x7xf32>,
    return
  }
  func.func @transform_0(%arg0: i32) -> (i32, i32) {
    %c0_i32 = arith.constant 0 : i32
    %c0_i32_0 = arith.constant 0 : i32
    %c0_i32_1 = arith.constant 0 : i32
    return %c0_i32, %c0_i32_0 : i32, i32
  }
  func.func @transform_1(%arg0: i32) -> (i32, i32) {
    %c0_i32 = arith.constant 0 : i32
    %c0_i32_0 = arith.constant 0 : i32
    %c0_i32_1 = arith.constant 0 : i32
    return %c0_i32, %c0_i32_0 : i32, i32
  }
  func.func @transform_2(%arg0: i32) -> (i32, i32) {
    %c0_i32 = arith.constant 0 : i32
    %c0_i32_0 = arith.constant 0 : i32
    %c0_i32_1 = arith.constant 0 : i32
    return %c0_i32, %c0_i32_0 : i32, i32
  }
  func.func @transform_3(%arg0: i32) -> (i32, i32) {
    %c0_i32 = arith.constant 0 : i32
    %c0_i32_0 = arith.constant 0 : i32
    %c0_i32_1 = arith.constant 0 : i32
    return %c0_i32, %c0_i32_0 : i32, i32
  }
}

</mosaic_0001>

<llo_original>
// kernel: ppo_generator_forward.4
$region0: #{ppo_generator_forward.4}
  #allocation0 [shape = 'u32[]', space=smem, size = 0x4, offset = 0x4, fixed_abs, tag = 'smem constant byte address 0x4 - core index']
  #allocation1 [shape = 'u32[72,128]{1,0:T(1,128)}', space=vmem, size = 0x9000, scoped, tag = 'internal scratch']
  %s0 = inlined_call_operand.vmem [shape: f32[1568,16], index: 0, kind: input, shape index: {}]
  %s1 = inlined_call_operand.vmem [shape: f32[16,32], index: 1, kind: input, shape index: {}]
  %s2 = inlined_call_operand.hbm [shape: f32[1,32], index: 2, kind: input, shape index: {}]
  %s3 = inlined_call_operand.vmem [shape: f32[1568,32], index: 3, kind: output, shape index: {}]
  %s4 = sld [smem:[#allocation0]]
  $region49: #{ppo_generator_forward.4} parent=0
    _
  %s6 = ssub.s32 1, %s4
  %s7 = scalar_select 0, %s6, %s4
  $region1: #{ppo_generator_forward.4} parent=0
    #allocation2 [shape = 'u8[512]{0}', space=vmem, size = 0x400, scoped, tag = 'input window, operand 2, single buffered']
    #allocation3 [shape = 's32[2]{0}', space=sflag, size = 0x8, scoped, tag = 'scoped memory for ppo_generator_forward.4']
    %8 = vsyncpa [#allocation3], 0
    loop: start=0, step=1, limit=4
    $region2: #{ppo_generator_forward.4} parent=1 // loop_pre_header
      _
    $region3: #{ppo_generator_forward.4} parent=1 // loop_header
      %s10 = sphi 0, %s14
      %p11 = scmp.ge.s32.totalorder %s10, 4
      %s20 = sphi 0, %s22
      %s23 = sphi 0, %s20
      %s24 = sphi 0, %s23
      %s40 = sphi 0, %s24
      %s44 = sphi 0, %s44
      %s46 = sphi 0, %s44
      %s47 = sphi 0, %s46
      %s61 = sphi 0, %s47
      %s65 = sphi 0, %s65
      %s67 = sphi 0, %s65
      %s68 = sphi 0, %s67
      %s82 = sphi 0, %s68
      %s88 = sphi 0, %s90
      %s91 = sphi 0, %s88
      %s92 = sphi 0, %s91
      %s108 = sphi 0, %s92
    $region4: #{ppo_generator_forward.4} parent=1 // loop_header_branch
      %13 = sbr.rel (%p11) target = $region8
    $region5: #{ppo_generator_forward.4} parent=1 // loop_body
      %s15 = ssub.s32 %s10, 1
      %s16 = ssub.s32 %s10, 2
      %s17 = sadd.s32 %s10, 1
      %s18 = ssub.s32 %s10, %s17
      %p19 = scmp.eq.s32.totalorder %s18, 0
      %s21 = sadd.s32 %s20, 1
      %s22 = scalar_select %p19, %s20, %s21
      %p25 = pneg %p19
      %p26 = scmp.eq.s32.totalorder %s10, 1
      %p27 = por %p25, %p26
      %p28 = scmp.ne.s32.totalorder %s20, %s23
      %p29 = scmp.eq.s32.totalorder %s10, 0
      %p30 = por %p28, %p29
      %p31 = scmp.ne.s32.totalorder %s20, %s23
      %p32 = scmp.eq.s32.totalorder %s15, 1
      %p33 = por %p31, %p32
      %p34 = scmp.ne.s32.totalorder %s23, %s24
      %p35 = scmp.eq.s32.totalorder %s15, 0
      %p36 = por %p34, %p35
      %p37 = scmp.ne.s32.totalorder %s23, %s24
      %p38 = scmp.eq.s32.totalorder %s16, 1
      %p39 = por %p37, %p38
      %p41 = scmp.ne.s32.totalorder %s24, %s40
      %p42 = scmp.eq.s32.totalorder %s16, 0
      %p43 = por %p41, %p42
      %s45 = sadd.s32 %s44, 1
      %p48 = scmp.eq.s32.totalorder %s10, 1
      %p49 = scmp.ne.s32.totalorder %s44, %s46
      %p50 = scmp.eq.s32.totalorder %s10, 0
      %p51 = por %p49, %p50
      %p52 = scmp.ne.s32.totalorder %s44, %s46
      %p53 = scmp.eq.s32.totalorder %s15, 1
      %p54 = por %p52, %p53
      %p55 = scmp.ne.s32.totalorder %s46, %s47
      %p56 = scmp.eq.s32.totalorder %s15, 0
      %p57 = por %p55, %p56
      %p58 = scmp.ne.s32.totalorder %s46, %s47
      %p59 = scmp.eq.s32.totalorder %s16, 1
      %p60 = por %p58, %p59
      %p62 = scmp.ne.s32.totalorder %s47, %s61
      %p63 = scmp.eq.s32.totalorder %s16, 0
      %p64 = por %p62, %p63
      %s66 = sadd.s32 %s65, 1
      %p69 = scmp.eq.s32.totalorder %s10, 1
      %p70 = scmp.ne.s32.totalorder %s65, %s67
      %p71 = scmp.eq.s32.totalorder %s10, 0
      %p72 = por %p70, %p71
      %p73 = scmp.ne.s32.totalorder %s65, %s67
      %p74 = scmp.eq.s32.totalorder %s15, 1
      %p75 = por %p73, %p74
      %p76 = scmp.ne.s32.totalorder %s67, %s68
      %p77 = scmp.eq.s32.totalorder %s15, 0
      %p78 = por %p76, %p77
      %p79 = scmp.ne.s32.totalorder %s67, %s68
      %p80 = scmp.eq.s32.totalorder %s16, 1
      %p81 = por %p79, %p80
      %p83 = scmp.ne.s32.totalorder %s68, %s82
      %p84 = scmp.eq.s32.totalorder %s16, 0
      %p85 = por %p83, %p84
      %s86 = ssub.s32 %s10, %s17
      %p87 = scmp.eq.s32.totalorder %s86, 0
      %s89 = sadd.s32 %s88, 1
      %s90 = scalar_select %p87, %s88, %s89
      %p93 = pneg %p87
      %p94 = scmp.eq.s32.totalorder %s10, 1
      %p95 = por %p93, %p94
      %p96 = scmp.ne.s32.totalorder %s88, %s91
      %p97 = scmp.eq.s32.totalorder %s10, 0
      %p98 = por %p96, %p97
      %p99 = scmp.ne.s32.totalorder %s88, %s91
      %p100 = scmp.eq.s32.totalorder %s15, 1
      %p101 = por %p99, %p100
      %p102 = scmp.ne.s32.totalorder %s91, %s92
      %p103 = scmp.eq.s32.totalorder %s15, 0
      %p104 = por %p102, %p103
      %p105 = scmp.ne.s32.totalorder %s91, %s92
      %p106 = scmp.eq.s32.totalorder %s16, 1
      %p107 = por %p105, %p106
      %p109 = scmp.ne.s32.totalorder %s92, %s108
      %p110 = scmp.eq.s32.totalorder %s16, 0
      %p111 = por %p109, %p110
      %p112 = scmp.le.s32.totalorder 1, %s10
      %p113 = scmp.lt.s32.totalorder %s10, 3
      %p114 = pnand %p112, %p113
      %p115 = pneg %p114
      // Predicated region
      $region9: #{ppo_generator_forward.4} parent=5 // pred_check
        _
      $region10: #{ppo_generator_forward.4} parent=5 // pred_check_branch
        %117 = sbr.rel (%p114) target = $region12
      $region11: #{ppo_generator_forward.4} parent=5 // pred_region
        %s118 = ssub.s32 %s10, 1
        // Predicated region
        $region13: #{ppo_generator_forward.4} parent=11 // pred_check
          %p119 = pneg %p57
        $region14: #{ppo_generator_forward.4} parent=11 // pred_check_branch
          %121 = sbr.rel (%p119) target = $region16
        $region15: #{ppo_generator_forward.4} parent=11 // pred_region
          _
        $region16: #{ppo_generator_forward.4} parent=11 // pred_fallthru
          _
        // Predicated region
        $region17: #{ppo_generator_forward.4} parent=11 // pred_check
          %p122 = pneg %p78
        $region18: #{ppo_generator_forward.4} parent=11 // pred_check_branch
          %124 = sbr.rel (%p122) target = $region20
        $region19: #{ppo_generator_forward.4} parent=11 // pred_region
          %126 = vsyncadd [#allocation3], 0
          %s128 = sshll.u32 %s2, 4
          %s129 = int_to_ptr.hbm [resolvable:$true] %s128
          %s130 = sshll.u32 [#allocation2], 4
          %s131 = int_to_ptr.vmem [resolvable:$true] %s130
          %133 = dma.hbm_to_vmem [thread:$0]  %s129, 16, %s131, [#allocation3]
        $region20: #{ppo_generator_forward.4} parent=11 // pred_fallthru
          _
      $region12: #{ppo_generator_forward.4} parent=5 // pred_fallthru
        _
      %p134 = scmp.lt.s32.totalorder %s10, 2
      // Predicated region
      $region21: #{ppo_generator_forward.4} parent=5 // pred_check
        %p135 = pneg %p134
      $region22: #{ppo_generator_forward.4} parent=5 // pred_check_branch
        %137 = sbr.rel (%p135) target = $region24
      $region23: #{ppo_generator_forward.4} parent=5 // pred_region
        // Predicated region
        $region25: #{ppo_generator_forward.4} parent=23 // pred_check
          %p138 = pneg %p30
        $region26: #{ppo_generator_forward.4} parent=23 // pred_check_branch
          %140 = sbr.rel (%p138) target = $region28
        $region27: #{ppo_generator_forward.4} parent=23 // pred_region
          %s141 = smul.u32 98, %s10
          %p142 = scmp.lt.s32.totalorder %s141, 195
          %s143 = scalar_select %p142, %s141, 195
          %s144 = smul.addr %s143, 8
          %s145 = scalar_lea.vmem %s0, %s144
          %s146 = smul.u32 98, %s10
        $region28: #{ppo_generator_forward.4} parent=23 // pred_fallthru
          _
      $region24: #{ppo_generator_forward.4} parent=5 // pred_fallthru
        _
      %p147 = scmp.le.s32.totalorder 1, %s10
      %p148 = scmp.lt.s32.totalorder %s10, 3
      %p149 = pnand %p147, %p148
      %p150 = pneg %p149
      // Predicated region
      $region29: #{ppo_generator_forward.4} parent=5 // pred_check
        _
      $region30: #{ppo_generator_forward.4} parent=5 // pred_check_branch
        %152 = sbr.rel (%p149) target = $region32
      $region31: #{ppo_generator_forward.4} parent=5 // pred_region
        %s153 = ssub.s32 %s10, 1
        // Predicated region
        $region33: #{ppo_generator_forward.4} parent=31 // pred_check
          %p154 = pneg %p78
        $region34: #{ppo_generator_forward.4} parent=31 // pred_check_branch
          %156 = sbr.rel (%p154) target = $region36
        $region35: #{ppo_generator_forward.4} parent=31 // pred_region
          %158 = dma.done [#allocation3], 16
        $region36: #{ppo_generator_forward.4} parent=31 // pred_fallthru
          _
        %s159 = smul.u32 98, %s15
        %p160 = scmp.lt.s32.totalorder %s159, 195
        %s161 = scalar_select %p160, %s159, 195
        %s162 = smul.addr %s161, 8
        %s163 = scalar_lea.vmem %s0, %s162
        %p164 = pneg %p36
        %p165 = pneg %p33
        %p166 = pneg %p57
        %p167 = pneg %p54
        %p168 = pneg %p78
        %p169 = pneg %p75
        %p170 = pneg %p104
        %p171 = pneg %p101
        %s172 = smul.u32 98, %s15
        %p173 = scmp.lt.s32.totalorder %s172, 195
        %s174 = scalar_select %p173, %s172, 195
        %s175 = smul.addr %s174, 8
        %s176 = scalar_lea.vmem %s3, %s175
        %s177 = smul.u32 98, %s15
        %p178 = scmp.lt.s32.totalorder %s177, 195
        %s179 = scalar_select %p178, %s177, 195
        %s180 = smul.addr %s179, 8
        %s181 = scalar_lea.vmem %s0, %s180
        %s182 = smul.u32 98, %s15
        %s183 = smul.u32 98, %s15
        %p184 = scmp.lt.s32.totalorder %s183, 195
        %s185 = scalar_select %p184, %s183, 195
        %s186 = smul.addr %s185, 8
        %s187 = scalar_lea.vmem %s3, %s186
        %s188 = smul.u32 98, %s15
        %v189 = vld [vmem:[%s181] sm:$0xff]
        %v190 = vld [vmem:[%s181 + $0x8] sm:$0xff]
        %v191 = vld [vmem:[%s181 + $0x10] sm:$0xff]
        %v192 = vld [vmem:[%s181 + $0x18] sm:$0xff]
        %v193 = vld [vmem:[%s181 + $0x20] sm:$0xff]
        %v194 = vld [vmem:[%s181 + $0x28] sm:$0xff]
        %v195 = vld [vmem:[%s181 + $0x30] sm:$0xff]
        %v196 = vld [vmem:[%s181 + $0x38] sm:$0xff]
        %v197 = vld [vmem:[%s181 + $0x40] sm:$0xff]
        %v198 = vld [vmem:[%s181 + $0x48] sm:$0xff]
        %v199 = vld [vmem:[%s181 + $0x50] sm:$0xff]
        %v200 = vld [vmem:[%s181 + $0x58] sm:$0xff]
        %v201 = vld [vmem:[%s181 + $0x60] sm:$0xff]
        %v202 = vld [vmem:[%s181 + $0x68] sm:$0xff]
        %v203 = vld [vmem:[%s181 + $0x70] sm:$0xff]
        %v204 = vld [vmem:[%s181 + $0x78] sm:$0xff]
        %v205 = vld [vmem:[%s181 + $0x80] sm:$0xff]
        %v206 = vld [vmem:[%s181 + $0x88] sm:$0xff]
        %v207 = vld [vmem:[%s181 + $0x90] sm:$0xff]
        %v208 = vld [vmem:[%s181 + $0x98] sm:$0xff]
        %v209 = vld [vmem:[%s181 + $0xa0] sm:$0xff]
        %v210 = vld [vmem:[%s181 + $0xa8] sm:$0xff]
        %v211 = vld [vmem:[%s181 + $0xb0] sm:$0xff]
        %v212 = vld [vmem:[%s181 + $0xb8] sm:$0xff]
        %v213 = vld [vmem:[%s181 + $0xc0] sm:$0xff]
        %v214 = vld [vmem:[%s181 + $0xc8] sm:$0xff]
        %v215 = vld [vmem:[%s181 + $0xd0] sm:$0xff]
        %v216 = vld [vmem:[%s181 + $0xd8] sm:$0xff]
        %v217 = vld [vmem:[%s181 + $0xe0] sm:$0xff]
        %v218 = vld [vmem:[%s181 + $0xe8] sm:$0xff]
        %v219 = vld [vmem:[%s181 + $0xf0] sm:$0xff]
        %v220 = vld [vmem:[%s181 + $0xf8] sm:$0xff]
        %v221 = vld [vmem:[%s181 + $0x100] sm:$0xff]
        %v222 = vld [vmem:[%s181 + $0x108] sm:$0xff]
        %v223 = vld [vmem:[%s181 + $0x110] sm:$0xff]
        %v224 = vld [vmem:[%s181 + $0x118] sm:$0xff]
        %v225 = vld [vmem:[%s181 + $0x120] sm:$0xff]
        %v226 = vld [vmem:[%s181 + $0x128] sm:$0xff]
        %v227 = vld [vmem:[%s181 + $0x130] sm:$0xff]
        %v228 = vld [vmem:[%s181 + $0x138] sm:$0xff]
        %v229 = vld [vmem:[%s181 + $0x140] sm:$0xff]
        %v230 = vld [vmem:[%s181 + $0x148] sm:$0xff]
        %v231 = vld [vmem:[%s181 + $0x150] sm:$0xff]
        %v232 = vld [vmem:[%s181 + $0x158] sm:$0xff]
        %v233 = vld [vmem:[%s181 + $0x160] sm:$0xff]
        %v234 = vld [vmem:[%s181 + $0x168] sm:$0xff]
        %v235 = vld [vmem:[%s181 + $0x170] sm:$0xff]
        %v236 = vld [vmem:[%s181 + $0x178] sm:$0xff]
        %v237 = vld [vmem:[%s181 + $0x180] sm:$0xff]
        %v238 = vld [vmem:[%s181 + $0x188] sm:$0xff]
        %v239 = vld [vmem:[%s181 + $0x190] sm:$0xff]
        %v240 = vld [vmem:[%s181 + $0x198] sm:$0xff]
        %v241 = vld [vmem:[%s181 + $0x1a0] sm:$0xff]
        %v242 = vld [vmem:[%s181 + $0x1a8] sm:$0xff]
        %v243 = vld [vmem:[%s181 + $0x1b0] sm:$0xff]
        %v244 = vld [vmem:[%s181 + $0x1b8] sm:$0xff]
        %v245 = vld [vmem:[%s181 + $0x1c0] sm:$0xff]
        %v246 = vld [vmem:[%s181 + $0x1c8] sm:$0xff]
        %v247 = vld [vmem:[%s181 + $0x1d0] sm:$0xff]
        %v248 = vld [vmem:[%s181 + $0x1d8] sm:$0xff]
        %v249 = vld [vmem:[%s181 + $0x1e0] sm:$0xff]
        %v250 = vld [vmem:[%s181 + $0x1e8] sm:$0xff]
        %v251 = vld [vmem:[%s181 + $0x1f0] sm:$0xff]
        %v252 = vld [vmem:[%s181 + $0x1f8] sm:$0xff]
        %v253 = vld [vmem:[%s181 + $0x200] sm:$0xff]
        %v254 = vld [vmem:[%s181 + $0x208] sm:$0xff]
        %v255 = vld [vmem:[%s181 + $0x210] sm:$0xff]
        %v256 = vld [vmem:[%s181 + $0x218] sm:$0xff]
        %v257 = vld [vmem:[%s181 + $0x220] sm:$0xff]
        %v258 = vld [vmem:[%s181 + $0x228] sm:$0xff]
        %v259 = vld [vmem:[%s181 + $0x230] sm:$0xff]
        %v260 = vld [vmem:[%s181 + $0x238] sm:$0xff]
        %v261 = vld [vmem:[%s181 + $0x240] sm:$0xff]
        %v262 = vld [vmem:[%s181 + $0x248] sm:$0xff]
        %v263 = vld [vmem:[%s181 + $0x250] sm:$0xff]
        %v264 = vld [vmem:[%s181 + $0x258] sm:$0xff]
        %v265 = vld [vmem:[%s181 + $0x260] sm:$0xff]
        %v266 = vld [vmem:[%s181 + $0x268] sm:$0xff]
        %v267 = vld [vmem:[%s181 + $0x270] sm:$0xff]
        %v268 = vld [vmem:[%s181 + $0x278] sm:$0xff]
        %v269 = vld [vmem:[%s181 + $0x280] sm:$0xff]
        %v270 = vld [vmem:[%s181 + $0x288] sm:$0xff]
        %v271 = vld [vmem:[%s181 + $0x290] sm:$0xff]
        %v272 = vld [vmem:[%s181 + $0x298] sm:$0xff]
        %v273 = vld [vmem:[%s181 + $0x2a0] sm:$0xff]
        %v274 = vld [vmem:[%s181 + $0x2a8] sm:$0xff]
        %v275 = vld [vmem:[%s181 + $0x2b0] sm:$0xff]
        %v276 = vld [vmem:[%s181 + $0x2b8] sm:$0xff]
        %v277 = vld [vmem:[%s181 + $0x2c0] sm:$0xff]
        %v278 = vld [vmem:[%s181 + $0x2c8] sm:$0xff]
        %v279 = vld [vmem:[%s181 + $0x2d0] sm:$0xff]
        %v280 = vld [vmem:[%s181 + $0x2d8] sm:$0xff]
        %v281 = vld [vmem:[%s181 + $0x2e0] sm:$0xff]
        %v282 = vld [vmem:[%s181 + $0x2e8] sm:$0xff]
        %v283 = vld [vmem:[%s181 + $0x2f0] sm:$0xff]
        %v284 = vld [vmem:[%s181 + $0x2f8] sm:$0xff]
        %v285 = vld [vmem:[%s181 + $0x300] sm:$0xff]
        %v286 = vld [vmem:[%s181 + $0x308] sm:$0xff]
        %v287 = vld [vmem:[%s1] sm:$0xff]
        %v288 = vld [vmem:[%s1 + $0x8] sm:$0xff]
        %v289 = vld [vmem:[#allocation2] sm:$0x1]
        %v291 = vperm.slane %v289, 0
        %vm293 = vcmask 130048
        %v295 = vsel %vm293, %v189, 0
        %v298 = vsel %vm293, %v190, 0
        %v301 = vsel %vm293, %v191, 0
        %v304 = vsel %vm293, %v192, 0
        %v307 = vsel %vm293, %v193, 0
        %v310 = vsel %vm293, %v194, 0
        %v313 = vsel %vm293, %v195, 0
        %v316 = vsel %vm293, %v196, 0
        %v319 = vsel %vm293, %v197, 0
        %v322 = vsel %vm293, %v198, 0
        %v325 = vsel %vm293, %v199, 0
        %v328 = vsel %vm293, %v200, 0
        %v331 = vsel %vm293, %v201, 0
        %v334 = vsel %vm293, %v202, 0
        %v337 = vsel %vm293, %v203, 0
        %v340 = vsel %vm293, %v204, 0
        %v343 = vsel %vm293, %v205, 0
        %v346 = vsel %vm293, %v206, 0
        %v349 = vsel %vm293, %v207, 0
        %v352 = vsel %vm293, %v208, 0
        %v355 = vsel %vm293, %v209, 0
        %v358 = vsel %vm293, %v210, 0
        %v361 = vsel %vm293, %v211, 0
        %v364 = vsel %vm293, %v212, 0
        %v367 = vsel %vm293, %v213, 0
        %v370 = vsel %vm293, %v214, 0
        %v373 = vsel %vm293, %v215, 0
        %v376 = vsel %vm293, %v216, 0
        %v379 = vsel %vm293, %v217, 0
        %v382 = vsel %vm293, %v218, 0
        %v385 = vsel %vm293, %v219, 0
        %v388 = vsel %vm293, %v220, 0
        %v391 = vsel %vm293, %v221, 0
        %v394 = vsel %vm293, %v222, 0
        %v397 = vsel %vm293, %v223, 0
        %v400 = vsel %vm293, %v224, 0
        %v403 = vsel %vm293, %v225, 0
        %v406 = vsel %vm293, %v226, 0
        %v409 = vsel %vm293, %v227, 0
        %v412 = vsel %vm293, %v228, 0
        %v415 = vsel %vm293, %v229, 0
        %v418 = vsel %vm293, %v230, 0
        %v421 = vsel %vm293, %v231, 0
        %v424 = vsel %vm293, %v232, 0
        %v427 = vsel %vm293, %v233, 0
        %v430 = vsel %vm293, %v234, 0
        %v433 = vsel %vm293, %v235, 0
        %v436 = vsel %vm293, %v236, 0
        %v439 = vsel %vm293, %v237, 0
        %v442 = vsel %vm293, %v238, 0
        %v445 = vsel %vm293, %v239, 0
        %v448 = vsel %vm293, %v240, 0
        %v451 = vsel %vm293, %v241, 0
        %v454 = vsel %vm293, %v242, 0
        %v457 = vsel %vm293, %v243, 0
        %v460 = vsel %vm293, %v244, 0
        %v463 = vsel %vm293, %v245, 0
        %v466 = vsel %vm293, %v246, 0
        %v469 = vsel %vm293, %v247, 0
        %v472 = vsel %vm293, %v248, 0
        %v475 = vsel %vm293, %v249, 0
        %v478 = vsel %vm293, %v250, 0
        %v481 = vsel %vm293, %v251, 0
        %v484 = vsel %vm293, %v252, 0
        %v487 = vsel %vm293, %v253, 0
        %v490 = vsel %vm293, %v254, 0
        %v493 = vsel %vm293, %v255, 0
        %v496 = vsel %vm293, %v256, 0
        %v499 = vsel %vm293, %v257, 0
        %v502 = vsel %vm293, %v258, 0
        %v505 = vsel %vm293, %v259, 0
        %v508 = vsel %vm293, %v260, 0
        %v511 = vsel %vm293, %v261, 0
        %v514 = vsel %vm293, %v262, 0
        %v517 = vsel %vm293, %v263, 0
        %v520 = vsel %vm293, %v264, 0
        %v523 = vsel %vm293, %v265, 0
        %v526 = vsel %vm293, %v266, 0
        %v529 = vsel %vm293, %v267, 0
        %v532 = vsel %vm293, %v268, 0
        %v535 = vsel %vm293, %v269, 0
        %v538 = vsel %vm293, %v270, 0
        %v541 = vsel %vm293, %v271, 0
        %v544 = vsel %vm293, %v272, 0
        %v547 = vsel %vm293, %v273, 0
        %v550 = vsel %vm293, %v274, 0
        %v553 = vsel %vm293, %v275, 0
        %v556 = vsel %vm293, %v276, 0
        %v559 = vsel %vm293, %v277, 0
        %v562 = vsel %vm293, %v278, 0
        %v565 = vsel %vm293, %v279, 0
        %v568 = vsel %vm293, %v280, 0
        %v571 = vsel %vm293, %v281, 0
        %v574 = vsel %vm293, %v282, 0
        %v577 = vsel %vm293, %v283, 0
        %v580 = vsel %vm293, %v284, 0
        %v583 = vsel %vm293, %v285, 0
        %v586 = vsel %vm293, %v286, 0
        %588 = vmatpush.msra.mxu0 0.0
        %589 = vmatpush.msra.mxu0 0.0
        %590 = vmatpush.msra.mxu0 0.0
        %591 = vmatpush.msra.mxu0 0.0
        %592 = vmatpush.msra.mxu0 0.0
        %593 = vmatpush.msra.mxu0 0.0
        %594 = vmatpush.msra.mxu0 0.0
        %595 = vmatpush.msra.mxu0 0.0
        %596 = vmatpush.msra.mxu0 0.0
        %597 = vmatpush.msra.mxu0 0.0
        %598 = vmatpush.msra.mxu0 0.0
        %599 = vmatpush.msra.mxu0 0.0
        %600 = vmatpush.msra.mxu0 0.0
        %601 = vmatpush.msra.mxu0 0.0
        %602 = vmatpush.msra.mxu0 %v288
        %603 = vmatpush.msra.mxu0 %v287
        %604 = vmatmul.f32.gmra.mxu0 %v295
        %v605 = vpop.f32.mrf.mxu0
        %v606 = vadd.f32 %v291, %v605
        %607 = vmatmul.f32.gmra.mxu0 %v298
        %v608 = vpop.f32.mrf.mxu0
        %v609 = vadd.f32 %v291, %v608
        %610 = vmatmul.f32.gmra.mxu0 %v301
        %v611 = vpop.f32.mrf.mxu0
        %v612 = vadd.f32 %v291, %v611
        %613 = vmatmul.f32.gmra.mxu0 %v304
        %v614 = vpop.f32.mrf.mxu0
        %v615 = vadd.f32 %v291, %v614
        %616 = vmatmul.f32.gmra.mxu0 %v307
        %v617 = vpop.f32.mrf.mxu0
        %v618 = vadd.f32 %v291, %v617
        %619 = vmatmul.f32.gmra.mxu0 %v310
        %v620 = vpop.f32.mrf.mxu0
        %v621 = vadd.f32 %v291, %v620
        %622 = vmatmul.f32.gmra.mxu0 %v313
        %v623 = vpop.f32.mrf.mxu0
        %v624 = vadd.f32 %v291, %v623
        %625 = vmatmul.f32.gmra.mxu0 %v316
        %v626 = vpop.f32.mrf.mxu0
        %v627 = vadd.f32 %v291, %v626
        %628 = vmatmul.f32.gmra.mxu0 %v319
        %v629 = vpop.f32.mrf.mxu0
        %v630 = vadd.f32 %v291, %v629
        %631 = vmatmul.f32.gmra.mxu0 %v322
        %v632 = vpop.f32.mrf.mxu0
        %v633 = vadd.f32 %v291, %v632
        %634 = vmatmul.f32.gmra.mxu0 %v325
        %v635 = vpop.f32.mrf.mxu0
        %v636 = vadd.f32 %v291, %v635
        %637 = vmatmul.f32.gmra.mxu0 %v328
        %v638 = vpop.f32.mrf.mxu0
        %v639 = vadd.f32 %v291, %v638
        %640 = vmatmul.f32.gmra.mxu0 %v331
        %v641 = vpop.f32.mrf.mxu0
        %v642 = vadd.f32 %v291, %v641
        %643 = vmatmul.f32.gmra.mxu0 %v334
        %v644 = vpop.f32.mrf.mxu0
        %v645 = vadd.f32 %v291, %v644
        %646 = vmatmul.f32.gmra.mxu0 %v337
        %v647 = vpop.f32.mrf.mxu0
        %v648 = vadd.f32 %v291, %v647
        %649 = vmatmul.f32.gmra.mxu0 %v340
        %v650 = vpop.f32.mrf.mxu0
        %v651 = vadd.f32 %v291, %v650
        %652 = vmatmul.f32.gmra.mxu0 %v343
        %v653 = vpop.f32.mrf.mxu0
        %v654 = vadd.f32 %v291, %v653
        %655 = vmatmul.f32.gmra.mxu0 %v346
        %v656 = vpop.f32.mrf.mxu0
        %v657 = vadd.f32 %v291, %v656
        %658 = vmatmul.f32.gmra.mxu0 %v349
        %v659 = vpop.f32.mrf.mxu0
        %v660 = vadd.f32 %v291, %v659
        %661 = vmatmul.f32.gmra.mxu0 %v352
        %v662 = vpop.f32.mrf.mxu0
        %v663 = vadd.f32 %v291, %v662
        %664 = vmatmul.f32.gmra.mxu0 %v355
        %v665 = vpop.f32.mrf.mxu0
        %v666 = vadd.f32 %v291, %v665
        %667 = vmatmul.f32.gmra.mxu0 %v358
        %v668 = vpop.f32.mrf.mxu0
        %v669 = vadd.f32 %v291, %v668
        %670 = vmatmul.f32.gmra.mxu0 %v361
        %v671 = vpop.f32.mrf.mxu0
        %v672 = vadd.f32 %v291, %v671
        %673 = vmatmul.f32.gmra.mxu0 %v364
        %v674 = vpop.f32.mrf.mxu0
        %v675 = vadd.f32 %v291, %v674
        %676 = vmatmul.f32.gmra.mxu0 %v367
        %v677 = vpop.f32.mrf.mxu0
        %v678 = vadd.f32 %v291, %v677
        %679 = vmatmul.f32.gmra.mxu0 %v370
        %v680 = vpop.f32.mrf.mxu0
        %v681 = vadd.f32 %v291, %v680
        %682 = vmatmul.f32.gmra.mxu0 %v373
        %v683 = vpop.f32.mrf.mxu0
        %v684 = vadd.f32 %v291, %v683
        %685 = vmatmul.f32.gmra.mxu0 %v376
        %v686 = vpop.f32.mrf.mxu0
        %v687 = vadd.f32 %v291, %v686
        %688 = vmatmul.f32.gmra.mxu0 %v379
        %v689 = vpop.f32.mrf.mxu0
        %v690 = vadd.f32 %v291, %v689
        %691 = vmatmul.f32.gmra.mxu0 %v382
        %v692 = vpop.f32.mrf.mxu0
        %v693 = vadd.f32 %v291, %v692
        %694 = vmatmul.f32.gmra.mxu0 %v385
        %v695 = vpop.f32.mrf.mxu0
        %v696 = vadd.f32 %v291, %v695
        %697 = vmatmul.f32.gmra.mxu0 %v388
        %v698 = vpop.f32.mrf.mxu0
        %v699 = vadd.f32 %v291, %v698
        %700 = vmatmul.f32.gmra.mxu0 %v391
        %v701 = vpop.f32.mrf.mxu0
        %v702 = vadd.f32 %v291, %v701
        %703 = vmatmul.f32.gmra.mxu0 %v394
        %v704 = vpop.f32.mrf.mxu0
        %v705 = vadd.f32 %v291, %v704
        %706 = vmatmul.f32.gmra.mxu0 %v397
        %v707 = vpop.f32.mrf.mxu0
        %v708 = vadd.f32 %v291, %v707
        %709 = vmatmul.f32.gmra.mxu0 %v400
        %v710 = vpop.f32.mrf.mxu0
        %v711 = vadd.f32 %v291, %v710
        %712 = vmatmul.f32.gmra.mxu0 %v403
        %v713 = vpop.f32.mrf.mxu0
        %v714 = vadd.f32 %v291, %v713
        %715 = vmatmul.f32.gmra.mxu0 %v406
        %v716 = vpop.f32.mrf.mxu0
        %v717 = vadd.f32 %v291, %v716
        %718 = vmatmul.f32.gmra.mxu0 %v409
        %v719 = vpop.f32.mrf.mxu0
        %v720 = vadd.f32 %v291, %v719
        %721 = vmatmul.f32.gmra.mxu0 %v412
        %v722 = vpop.f32.mrf.mxu0
        %v723 = vadd.f32 %v291, %v722
        %724 = vmatmul.f32.gmra.mxu0 %v415
        %v725 = vpop.f32.mrf.mxu0
        %v726 = vadd.f32 %v291, %v725
        %727 = vmatmul.f32.gmra.mxu0 %v418
        %v728 = vpop.f32.mrf.mxu0
        %v729 = vadd.f32 %v291, %v728
        %730 = vmatmul.f32.gmra.mxu0 %v421
        %v731 = vpop.f32.mrf.mxu0
        %v732 = vadd.f32 %v291, %v731
        %733 = vmatmul.f32.gmra.mxu0 %v424
        %v734 = vpop.f32.mrf.mxu0
        %v735 = vadd.f32 %v291, %v734
        %736 = vmatmul.f32.gmra.mxu0 %v427
        %v737 = vpop.f32.mrf.mxu0
        %v738 = vadd.f32 %v291, %v737
        %739 = vmatmul.f32.gmra.mxu0 %v430
        %v740 = vpop.f32.mrf.mxu0
        %v741 = vadd.f32 %v291, %v740
        %742 = vmatmul.f32.gmra.mxu0 %v433
        %v743 = vpop.f32.mrf.mxu0
        %v744 = vadd.f32 %v291, %v743
        %745 = vmatmul.f32.gmra.mxu0 %v436
        %v746 = vpop.f32.mrf.mxu0
        %v747 = vadd.f32 %v291, %v746
        %748 = vmatmul.f32.gmra.mxu0 %v439
        %v749 = vpop.f32.mrf.mxu0
        %v750 = vadd.f32 %v291, %v749
        %751 = vmatmul.f32.gmra.mxu0 %v442
        %v752 = vpop.f32.mrf.mxu0
        %v753 = vadd.f32 %v291, %v752
        %754 = vmatmul.f32.gmra.mxu0 %v445
        %v755 = vpop.f32.mrf.mxu0
        %v756 = vadd.f32 %v291, %v755
        %757 = vmatmul.f32.gmra.mxu0 %v448
        %v758 = vpop.f32.mrf.mxu0
        %v759 = vadd.f32 %v291, %v758
        %760 = vmatmul.f32.gmra.mxu0 %v451
        %v761 = vpop.f32.mrf.mxu0
        %v762 = vadd.f32 %v291, %v761
        %763 = vmatmul.f32.gmra.mxu0 %v454
        %v764 = vpop.f32.mrf.mxu0
        %v765 = vadd.f32 %v291, %v764
        %766 = vmatmul.f32.gmra.mxu0 %v457
        %v767 = vpop.f32.mrf.mxu0
        %v768 = vadd.f32 %v291, %v767
        %769 = vmatmul.f32.gmra.mxu0 %v460
        %v770 = vpop.f32.mrf.mxu0
        %v771 = vadd.f32 %v291, %v770
        %772 = vmatmul.f32.gmra.mxu0 %v463
        %v773 = vpop.f32.mrf.mxu0
        %v774 = vadd.f32 %v291, %v773
        %775 = vmatmul.f32.gmra.mxu0 %v466
        %v776 = vpop.f32.mrf.mxu0
        %v777 = vadd.f32 %v291, %v776
        %778 = vmatmul.f32.gmra.mxu0 %v469
        %v779 = vpop.f32.mrf.mxu0
        %v780 = vadd.f32 %v291, %v779
        %781 = vmatmul.f32.gmra.mxu0 %v472
        %v782 = vpop.f32.mrf.mxu0
        %v783 = vadd.f32 %v291, %v782
        %784 = vmatmul.f32.gmra.mxu0 %v475
        %v785 = vpop.f32.mrf.mxu0
        %v786 = vadd.f32 %v291, %v785
        %787 = vmatmul.f32.gmra.mxu0 %v478
        %v788 = vpop.f32.mrf.mxu0
        %v789 = vadd.f32 %v291, %v788
        %790 = vmatmul.f32.gmra.mxu0 %v481
        %v791 = vpop.f32.mrf.mxu0
        %v792 = vadd.f32 %v291, %v791
        %793 = vmatmul.f32.gmra.mxu0 %v484
        %v794 = vpop.f32.mrf.mxu0
        %v795 = vadd.f32 %v291, %v794
        %796 = vmatmul.f32.gmra.mxu0 %v487
        %v797 = vpop.f32.mrf.mxu0
        %v798 = vadd.f32 %v291, %v797
        %799 = vmatmul.f32.gmra.mxu0 %v490
        %v800 = vpop.f32.mrf.mxu0
        %v801 = vadd.f32 %v291, %v800
        %802 = vmatmul.f32.gmra.mxu0 %v493
        %v803 = vpop.f32.mrf.mxu0
        %v804 = vadd.f32 %v291, %v803
        %805 = vmatmul.f32.gmra.mxu0 %v496
        %v806 = vpop.f32.mrf.mxu0
        %v807 = vadd.f32 %v291, %v806
        %808 = vmatmul.f32.gmra.mxu0 %v499
        %v809 = vpop.f32.mrf.mxu0
        %v810 = vadd.f32 %v291, %v809
        %811 = vmatmul.f32.gmra.mxu0 %v502
        %v812 = vpop.f32.mrf.mxu0
        %v813 = vadd.f32 %v291, %v812
        %814 = vmatmul.f32.gmra.mxu0 %v505
        %v815 = vpop.f32.mrf.mxu0
        %v816 = vadd.f32 %v291, %v815
        %817 = vmatmul.f32.gmra.mxu0 %v508
        %v818 = vpop.f32.mrf.mxu0
        %v819 = vadd.f32 %v291, %v818
        %820 = vmatmul.f32.gmra.mxu0 %v511
        %v821 = vpop.f32.mrf.mxu0
        %v822 = vadd.f32 %v291, %v821
        %823 = vmatmul.f32.gmra.mxu0 %v514
        %v824 = vpop.f32.mrf.mxu0
        %v825 = vadd.f32 %v291, %v824
        %826 = vmatmul.f32.gmra.mxu0 %v517
        %v827 = vpop.f32.mrf.mxu0
        %v828 = vadd.f32 %v291, %v827
        %829 = vmatmul.f32.gmra.mxu0 %v520
        %v830 = vpop.f32.mrf.mxu0
        %v831 = vadd.f32 %v291, %v830
        %832 = vmatmul.f32.gmra.mxu0 %v523
        %v833 = vpop.f32.mrf.mxu0
        %v834 = vadd.f32 %v291, %v833
        %835 = vmatmul.f32.gmra.mxu0 %v526
        %v836 = vpop.f32.mrf.mxu0
        %v837 = vadd.f32 %v291, %v836
        %838 = vmatmul.f32.gmra.mxu0 %v529
        %v839 = vpop.f32.mrf.mxu0
        %v840 = vadd.f32 %v291, %v839
        %841 = vmatmul.f32.gmra.mxu0 %v532
        %v842 = vpop.f32.mrf.mxu0
        %v843 = vadd.f32 %v291, %v842
        %844 = vmatmul.f32.gmra.mxu0 %v535
        %v845 = vpop.f32.mrf.mxu0
        %v846 = vadd.f32 %v291, %v845
        %847 = vmatmul.f32.gmra.mxu0 %v538
        %v848 = vpop.f32.mrf.mxu0
        %v849 = vadd.f32 %v291, %v848
        %850 = vmatmul.f32.gmra.mxu0 %v541
        %v851 = vpop.f32.mrf.mxu0
        %v852 = vadd.f32 %v291, %v851
        %853 = vmatmul.f32.gmra.mxu0 %v544
        %v854 = vpop.f32.mrf.mxu0
        %v855 = vadd.f32 %v291, %v854
        %856 = vmatmul.f32.gmra.mxu0 %v547
        %v857 = vpop.f32.mrf.mxu0
        %v858 = vadd.f32 %v291, %v857
        %859 = vmatmul.f32.gmra.mxu0 %v550
        %v860 = vpop.f32.mrf.mxu0
        %v861 = vadd.f32 %v291, %v860
        %862 = vmatmul.f32.gmra.mxu0 %v553
        %v863 = vpop.f32.mrf.mxu0
        %v864 = vadd.f32 %v291, %v863
        %865 = vmatmul.f32.gmra.mxu0 %v556
        %v866 = vpop.f32.mrf.mxu0
        %v867 = vadd.f32 %v291, %v866
        %868 = vmatmul.f32.gmra.mxu0 %v559
        %v869 = vpop.f32.mrf.mxu0
        %v870 = vadd.f32 %v291, %v869
        %871 = vmatmul.f32.gmra.mxu0 %v562
        %v872 = vpop.f32.mrf.mxu0
        %v873 = vadd.f32 %v291, %v872
        %874 = vmatmul.f32.gmra.mxu0 %v565
        %v875 = vpop.f32.mrf.mxu0
        %v876 = vadd.f32 %v291, %v875
        %877 = vmatmul.f32.gmra.mxu0 %v568
        %v878 = vpop.f32.mrf.mxu0
        %v879 = vadd.f32 %v291, %v878
        %880 = vmatmul.f32.gmra.mxu0 %v571
        %v881 = vpop.f32.mrf.mxu0
        %v882 = vadd.f32 %v291, %v881
        %883 = vmatmul.f32.gmra.mxu0 %v574
        %v884 = vpop.f32.mrf.mxu0
        %v885 = vadd.f32 %v291, %v884
        %886 = vmatmul.f32.gmra.mxu0 %v577
        %v887 = vpop.f32.mrf.mxu0
        %v888 = vadd.f32 %v291, %v887
        %889 = vmatmul.f32.gmra.mxu0 %v580
        %v890 = vpop.f32.mrf.mxu0
        %v891 = vadd.f32 %v291, %v890
        %892 = vmatmul.f32.gmra.mxu0 %v583
        %v893 = vpop.f32.mrf.mxu0
        %v894 = vadd.f32 %v291, %v893
        %895 = vmatmul.f32.gmra.mxu0 %v586
        %v896 = vpop.f32.mrf.mxu0
        %v897 = vadd.f32 %v291, %v896
        %898 = vdwg.mxu0
        %v899 = vmax.f32 %v606, 0.0
        %v900 = vmax.f32 %v609, 0.0
        %v901 = vmax.f32 %v612, 0.0
        %v902 = vmax.f32 %v615, 0.0
        %v903 = vmax.f32 %v618, 0.0
        %v904 = vmax.f32 %v621, 0.0
        %v905 = vmax.f32 %v624, 0.0
        %v906 = vmax.f32 %v627, 0.0
        %v907 = vmax.f32 %v630, 0.0
        %v908 = vmax.f32 %v633, 0.0
        %v909 = vmax.f32 %v636, 0.0
        %v910 = vmax.f32 %v639, 0.0
        %v911 = vmax.f32 %v642, 0.0
        %v912 = vmax.f32 %v645, 0.0
        %v913 = vmax.f32 %v648, 0.0
        %v914 = vmax.f32 %v651, 0.0
        %v915 = vmax.f32 %v654, 0.0
        %v916 = vmax.f32 %v657, 0.0
        %v917 = vmax.f32 %v660, 0.0
        %v918 = vmax.f32 %v663, 0.0
        %v919 = vmax.f32 %v666, 0.0
        %v920 = vmax.f32 %v669, 0.0
        %v921 = vmax.f32 %v672, 0.0
        %v922 = vmax.f32 %v675, 0.0
        %v923 = vmax.f32 %v678, 0.0
        %v924 = vmax.f32 %v681, 0.0
        %v925 = vmax.f32 %v684, 0.0
        %v926 = vmax.f32 %v687, 0.0
        %v927 = vmax.f32 %v690, 0.0
        %v928 = vmax.f32 %v693, 0.0
        %v929 = vmax.f32 %v696, 0.0
        %v930 = vmax.f32 %v699, 0.0
        %v931 = vmax.f32 %v702, 0.0
        %v932 = vmax.f32 %v705, 0.0
        %v933 = vmax.f32 %v708, 0.0
        %v934 = vmax.f32 %v711, 0.0
        %v935 = vmax.f32 %v714, 0.0
        %v936 = vmax.f32 %v717, 0.0
        %v937 = vmax.f32 %v720, 0.0
        %v938 = vmax.f32 %v723, 0.0
        %v939 = vmax.f32 %v726, 0.0
        %v940 = vmax.f32 %v729, 0.0
        %v941 = vmax.f32 %v732, 0.0
        %v942 = vmax.f32 %v735, 0.0
        %v943 = vmax.f32 %v738, 0.0
        %v944 = vmax.f32 %v741, 0.0
        %v945 = vmax.f32 %v744, 0.0
        %v946 = vmax.f32 %v747, 0.0
        %v947 = vmax.f32 %v750, 0.0
        %v948 = vmax.f32 %v753, 0.0
        %v949 = vmax.f32 %v756, 0.0
        %v950 = vmax.f32 %v759, 0.0
        %v951 = vmax.f32 %v762, 0.0
        %v952 = vmax.f32 %v765, 0.0
        %v953 = vmax.f32 %v768, 0.0
        %v954 = vmax.f32 %v771, 0.0
        %v955 = vmax.f32 %v774, 0.0
        %v956 = vmax.f32 %v777, 0.0
        %v957 = vmax.f32 %v780, 0.0
        %v958 = vmax.f32 %v783, 0.0
        %v959 = vmax.f32 %v786, 0.0
        %v960 = vmax.f32 %v789, 0.0
        %v961 = vmax.f32 %v792, 0.0
        %v962 = vmax.f32 %v795, 0.0
        %v963 = vmax.f32 %v798, 0.0
        %v964 = vmax.f32 %v801, 0.0
        %v965 = vmax.f32 %v804, 0.0
        %v966 = vmax.f32 %v807, 0.0
        %v967 = vmax.f32 %v810, 0.0
        %v968 = vmax.f32 %v813, 0.0
        %v969 = vmax.f32 %v816, 0.0
        %v970 = vmax.f32 %v819, 0.0
        %v971 = vmax.f32 %v822, 0.0
        %v972 = vmax.f32 %v825, 0.0
        %v973 = vmax.f32 %v828, 0.0
        %v974 = vmax.f32 %v831, 0.0
        %v975 = vmax.f32 %v834, 0.0
        %v976 = vmax.f32 %v837, 0.0
        %v977 = vmax.f32 %v840, 0.0
        %v978 = vmax.f32 %v843, 0.0
        %v979 = vmax.f32 %v846, 0.0
        %v980 = vmax.f32 %v849, 0.0
        %v981 = vmax.f32 %v852, 0.0
        %v982 = vmax.f32 %v855, 0.0
        %v983 = vmax.f32 %v858, 0.0
        %v984 = vmax.f32 %v861, 0.0
        %v985 = vmax.f32 %v864, 0.0
        %v986 = vmax.f32 %v867, 0.0
        %v987 = vmax.f32 %v870, 0.0
        %v988 = vmax.f32 %v873, 0.0
        %v989 = vmax.f32 %v876, 0.0
        %v990 = vmax.f32 %v879, 0.0
        %v991 = vmax.f32 %v882, 0.0
        %v992 = vmax.f32 %v885, 0.0
        %v993 = vmax.f32 %v888, 0.0
        %v994 = vmax.f32 %v891, 0.0
        %v995 = vmax.f32 %v894, 0.0
        %v996 = vmax.f32 %v897, 0.0
        %vm997 = vcmask 261120
        %998 = vst.msk [vmem:[%s187] sm:$0xff] %vm997, %v899
        %999 = vst.msk [vmem:[%s187 + $0x8] sm:$0xff] %vm997, %v900
        %1000 = vst.msk [vmem:[%s187 + $0x10] sm:$0xff] %vm997, %v901
        %1001 = vst.msk [vmem:[%s187 + $0x18] sm:$0xff] %vm997, %v902
        %1002 = vst.msk [vmem:[%s187 + $0x20] sm:$0xff] %vm997, %v903
        %1003 = vst.msk [vmem:[%s187 + $0x28] sm:$0xff] %vm997, %v904
        %1004 = vst.msk [vmem:[%s187 + $0x30] sm:$0xff] %vm997, %v905
        %1005 = vst.msk [vmem:[%s187 + $0x38] sm:$0xff] %vm997, %v906
        %1006 = vst.msk [vmem:[%s187 + $0x40] sm:$0xff] %vm997, %v907
        %1007 = vst.msk [vmem:[%s187 + $0x48] sm:$0xff] %vm997, %v908
        %1008 = vst.msk [vmem:[%s187 + $0x50] sm:$0xff] %vm997, %v909
        %1009 = vst.msk [vmem:[%s187 + $0x58] sm:$0xff] %vm997, %v910
        %1010 = vst.msk [vmem:[%s187 + $0x60] sm:$0xff] %vm997, %v911
        %1011 = vst.msk [vmem:[%s187 + $0x68] sm:$0xff] %vm997, %v912
        %1012 = vst.msk [vmem:[%s187 + $0x70] sm:$0xff] %vm997, %v913
        %1013 = vst.msk [vmem:[%s187 + $0x78] sm:$0xff] %vm997, %v914
        %1014 = vst.msk [vmem:[%s187 + $0x80] sm:$0xff] %vm997, %v915
        %1015 = vst.msk [vmem:[%s187 + $0x88] sm:$0xff] %vm997, %v916
        %1016 = vst.msk [vmem:[%s187 + $0x90] sm:$0xff] %vm997, %v917
        %1017 = vst.msk [vmem:[%s187 + $0x98] sm:$0xff] %vm997, %v918
        %1018 = vst.msk [vmem:[%s187 + $0xa0] sm:$0xff] %vm997, %v919
        %1019 = vst.msk [vmem:[%s187 + $0xa8] sm:$0xff] %vm997, %v920
        %1020 = vst.msk [vmem:[%s187 + $0xb0] sm:$0xff] %vm997, %v921
        %1021 = vst.msk [vmem:[%s187 + $0xb8] sm:$0xff] %vm997, %v922
        %1022 = vst.msk [vmem:[%s187 + $0xc0] sm:$0xff] %vm997, %v923
        %1023 = vst.msk [vmem:[%s187 + $0xc8] sm:$0xff] %vm997, %v924
        %1024 = vst.msk [vmem:[%s187 + $0xd0] sm:$0xff] %vm997, %v925
        %1025 = vst.msk [vmem:[%s187 + $0xd8] sm:$0xff] %vm997, %v926
        %1026 = vst.msk [vmem:[%s187 + $0xe0] sm:$0xff] %vm997, %v927
        %1027 = vst.msk [vmem:[%s187 + $0xe8] sm:$0xff] %vm997, %v928
        %1028 = vst.msk [vmem:[%s187 + $0xf0] sm:$0xff] %vm997, %v929
        %1029 = vst.msk [vmem:[%s187 + $0xf8] sm:$0xff] %vm997, %v930
        %1030 = vst.msk [vmem:[%s187 + $0x100] sm:$0xff] %vm997, %v931
        %1031 = vst.msk [vmem:[%s187 + $0x108] sm:$0xff] %vm997, %v932
        %1032 = vst.msk [vmem:[%s187 + $0x110] sm:$0xff] %vm997, %v933
        %1033 = vst.msk [vmem:[%s187 + $0x118] sm:$0xff] %vm997, %v934
        %1034 = vst.msk [vmem:[%s187 + $0x120] sm:$0xff] %vm997, %v935
        %1035 = vst.msk [vmem:[%s187 + $0x128] sm:$0xff] %vm997, %v936
        %1036 = vst.msk [vmem:[%s187 + $0x130] sm:$0xff] %vm997, %v937
        %1037 = vst.msk [vmem:[%s187 + $0x138] sm:$0xff] %vm997, %v938
        %1038 = vst.msk [vmem:[%s187 + $0x140] sm:$0xff] %vm997, %v939
        %1039 = vst.msk [vmem:[%s187 + $0x148] sm:$0xff] %vm997, %v940
        %1040 = vst.msk [vmem:[%s187 + $0x150] sm:$0xff] %vm997, %v941
        %1041 = vst.msk [vmem:[%s187 + $0x158] sm:$0xff] %vm997, %v942
        %1042 = vst.msk [vmem:[%s187 + $0x160] sm:$0xff] %vm997, %v943
        %1043 = vst.msk [vmem:[%s187 + $0x168] sm:$0xff] %vm997, %v944
        %1044 = vst.msk [vmem:[%s187 + $0x170] sm:$0xff] %vm997, %v945
        %1045 = vst.msk [vmem:[%s187 + $0x178] sm:$0xff] %vm997, %v946
        %1046 = vst.msk [vmem:[%s187 + $0x180] sm:$0xff] %vm997, %v947
        %1047 = vst.msk [vmem:[%s187 + $0x188] sm:$0xff] %vm997, %v948
        %1048 = vst.msk [vmem:[%s187 + $0x190] sm:$0xff] %vm997, %v949
        %1049 = vst.msk [vmem:[%s187 + $0x198] sm:$0xff] %vm997, %v950
        %1050 = vst.msk [vmem:[%s187 + $0x1a0] sm:$0xff] %vm997, %v951
        %1051 = vst.msk [vmem:[%s187 + $0x1a8] sm:$0xff] %vm997, %v952
        %1052 = vst.msk [vmem:[%s187 + $0x1b0] sm:$0xff] %vm997, %v953
        %1053 = vst.msk [vmem:[%s187 + $0x1b8] sm:$0xff] %vm997, %v954
        %1054 = vst.msk [vmem:[%s187 + $0x1c0] sm:$0xff] %vm997, %v955
        %1055 = vst.msk [vmem:[%s187 + $0x1c8] sm:$0xff] %vm997, %v956
        %1056 = vst.msk [vmem:[%s187 + $0x1d0] sm:$0xff] %vm997, %v957
        %1057 = vst.msk [vmem:[%s187 + $0x1d8] sm:$0xff] %vm997, %v958
        %1058 = vst.msk [vmem:[%s187 + $0x1e0] sm:$0xff] %vm997, %v959
        %1059 = vst.msk [vmem:[%s187 + $0x1e8] sm:$0xff] %vm997, %v960
        %1060 = vst.msk [vmem:[%s187 + $0x1f0] sm:$0xff] %vm997, %v961
        %1061 = vst.msk [vmem:[%s187 + $0x1f8] sm:$0xff] %vm997, %v962
        %1062 = vst.msk [vmem:[%s187 + $0x200] sm:$0xff] %vm997, %v963
        %1063 = vst.msk [vmem:[%s187 + $0x208] sm:$0xff] %vm997, %v964
        %1064 = vst.msk [vmem:[%s187 + $0x210] sm:$0xff] %vm997, %v965
        %1065 = vst.msk [vmem:[%s187 + $0x218] sm:$0xff] %vm997, %v966
        %1066 = vst.msk [vmem:[%s187 + $0x220] sm:$0xff] %vm997, %v967
        %1067 = vst.msk [vmem:[%s187 + $0x228] sm:$0xff] %vm997, %v968
        %1068 = vst.msk [vmem:[%s187 + $0x230] sm:$0xff] %vm997, %v969
        %1069 = vst.msk [vmem:[%s187 + $0x238] sm:$0xff] %vm997, %v970
        %1070 = vst.msk [vmem:[%s187 + $0x240] sm:$0xff] %vm997, %v971
        %1071 = vst.msk [vmem:[%s187 + $0x248] sm:$0xff] %vm997, %v972
        %1072 = vst.msk [vmem:[%s187 + $0x250] sm:$0xff] %vm997, %v973
        %1073 = vst.msk [vmem:[%s187 + $0x258] sm:$0xff] %vm997, %v974
        %1074 = vst.msk [vmem:[%s187 + $0x260] sm:$0xff] %vm997, %v975
        %1075 = vst.msk [vmem:[%s187 + $0x268] sm:$0xff] %vm997, %v976
        %1076 = vst.msk [vmem:[%s187 + $0x270] sm:$0xff] %vm997, %v977
        %1077 = vst.msk [vmem:[%s187 + $0x278] sm:$0xff] %vm997, %v978
        %1078 = vst.msk [vmem:[%s187 + $0x280] sm:$0xff] %vm997, %v979
        %1079 = vst.msk [vmem:[%s187 + $0x288] sm:$0xff] %vm997, %v980
        %1080 = vst.msk [vmem:[%s187 + $0x290] sm:$0xff] %vm997, %v981
        %1081 = vst.msk [vmem:[%s187 + $0x298] sm:$0xff] %vm997, %v982
        %1082 = vst.msk [vmem:[%s187 + $0x2a0] sm:$0xff] %vm997, %v983
        %1083 = vst.msk [vmem:[%s187 + $0x2a8] sm:$0xff] %vm997, %v984
        %1084 = vst.msk [vmem:[%s187 + $0x2b0] sm:$0xff] %vm997, %v985
        %1085 = vst.msk [vmem:[%s187 + $0x2b8] sm:$0xff] %vm997, %v986
        %1086 = vst.msk [vmem:[%s187 + $0x2c0] sm:$0xff] %vm997, %v987
        %1087 = vst.msk [vmem:[%s187 + $0x2c8] sm:$0xff] %vm997, %v988
        %1088 = vst.msk [vmem:[%s187 + $0x2d0] sm:$0xff] %vm997, %v989
        %1089 = vst.msk [vmem:[%s187 + $0x2d8] sm:$0xff] %vm997, %v990
        %1090 = vst.msk [vmem:[%s187 + $0x2e0] sm:$0xff] %vm997, %v991
        %1091 = vst.msk [vmem:[%s187 + $0x2e8] sm:$0xff] %vm997, %v992
        %1092 = vst.msk [vmem:[%s187 + $0x2f0] sm:$0xff] %vm997, %v993
        %1093 = vst.msk [vmem:[%s187 + $0x2f8] sm:$0xff] %vm997, %v994
        %1094 = vst.msk [vmem:[%s187 + $0x300] sm:$0xff] %vm997, %v995
        %1095 = vst.msk [vmem:[%s187 + $0x308] sm:$0xff] %vm997, %v996
        %s1096 = smul.u32 98, %s15
        %p1097 = scmp.lt.s32.totalorder %s1096, 195
        %s1098 = scalar_select %p1097, %s1096, 195
        %s1099 = smul.addr %s1098, 8
        %s1100 = scalar_lea.vmem %s3, %s1099
        // Predicated region
        $region37: #{ppo_generator_forward.4} parent=31 // pred_check
          %p1101 = pneg %p101
        $region38: #{ppo_generator_forward.4} parent=31 // pred_check_branch
          %1103 = sbr.rel (%p1101) target = $region40
        $region39: #{ppo_generator_forward.4} parent=31 // pred_region
          %s1104 = smul.u32 98, %s15
        $region40: #{ppo_generator_forward.4} parent=31 // pred_fallthru
          _
      $region32: #{ppo_generator_forward.4} parent=5 // pred_fallthru
        _
      %p1105 = scmp.le.s32.totalorder 2, %s10
      // Predicated region
      $region41: #{ppo_generator_forward.4} parent=5 // pred_check
        %p1106 = pneg %p1105
      $region42: #{ppo_generator_forward.4} parent=5 // pred_check_branch
        %1108 = sbr.rel (%p1106) target = $region44
      $region43: #{ppo_generator_forward.4} parent=5 // pred_region
        %s1109 = ssub.s32 %s10, 2
        // Predicated region
        $region45: #{ppo_generator_forward.4} parent=43 // pred_check
          %p1110 = pneg %p107
        $region46: #{ppo_generator_forward.4} parent=43 // pred_check_branch
          %1112 = sbr.rel (%p1110) target = $region48
        $region47: #{ppo_generator_forward.4} parent=43 // pred_region
          %s1113 = smul.u32 98, %s16
          %p1114 = scmp.lt.s32.totalorder %s1113, 195
          %s1115 = scalar_select %p1114, %s1113, 195
          %s1116 = smul.addr %s1115, 8
          %s1117 = scalar_lea.vmem %s3, %s1116
        $region48: #{ppo_generator_forward.4} parent=43 // pred_fallthru
          _
      $region44: #{ppo_generator_forward.4} parent=5 // pred_fallthru
        _
    $region6: #{ppo_generator_forward.4} parent=1 // loop_footer
      %s14 = sadd.s32 1, %s10
    $region7: #{ppo_generator_forward.4} parent=1 // loop_footer_branch
      %9 = sbr.rel target = $region3
    $region8: #{ppo_generator_forward.4} parent=1 // loop_exit
      _
    %1118 = vsyncpa [#allocation3], 1
    %s1119 = scalar_lea.sflag [#allocation3], 1
    %1120 = vsyncpa %s1119, 1

// kernel: ppo_generator_forward.5
$region0: #{ppo_generator_forward.5}
  #allocation0 [shape = 'u32[]', space=smem, size = 0x4, offset = 0x4, fixed_abs, tag = 'smem constant byte address 0x4 - core index']
  #allocation1 [shape = 'u32[72,128]{1,0:T(1,128)}', space=vmem, size = 0x9000, scoped, tag = 'internal scratch']
  %s0 = inlined_call_operand.vmem [shape: f32[1568,288], index: 0, kind: input, shape index: {}]
  %s1 = inlined_call_operand.hbm [shape: f32[288,64], index: 1, kind: input, shape index: {}]
  %s2 = inlined_call_operand.hbm [shape: f32[1,64], index: 2, kind: input, shape index: {}]
  %s3 = inlined_call_operand.vmem [shape: f32[1568,64], index: 3, kind: output, shape index: {}]
  %s4 = sld [smem:[#allocation0]]
  $region53: #{ppo_generator_forward.5} parent=0
    _
  %s6 = ssub.s32 1, %s4
  %s7 = scalar_select 0, %s6, %s4
  $region1: #{ppo_generator_forward.5} parent=0
    #allocation2 [shape = 'u8[147456]{0}', space=vmem, size = 0x24000, scoped, tag = 'input window, operand 1, single buffered']
    #allocation3 [shape = 's32[2]{0}', space=sflag, size = 0x8, scoped, tag = 'scoped memory for ppo_generator_forward.5']
    #allocation4 [shape = 'u8[512]{0}', space=vmem, size = 0x400, scoped, tag = 'input window, operand 2, single buffered']
    #allocation5 [shape = 's32[1]{0}', space=sflag, size = 0x4, scoped, tag = 'scoped memory for ppo_generator_forward.5']
    %8 = vsyncpa [#allocation3], 0
    %9 = vsyncpa [#allocation5], 0
    loop: start=0, step=1, limit=4
    $region2: #{ppo_generator_forward.5} parent=1 // loop_pre_header
      _
    $region3: #{ppo_generator_forward.5} parent=1 // loop_header
      %s11 = sphi 0, %s15
      %p12 = scmp.ge.s32.totalorder %s11, 4
      %s21 = sphi 0, %s23
      %s24 = sphi 0, %s21
      %s25 = sphi 0, %s24
      %s41 = sphi 0, %s25
      %s45 = sphi 0, %s45
      %s47 = sphi 0, %s45
      %s48 = sphi 0, %s47
      %s62 = sphi 0, %s48
      %s66 = sphi 0, %s66
      %s68 = sphi 0, %s66
      %s69 = sphi 0, %s68
      %s83 = sphi 0, %s69
      %s89 = sphi 0, %s91
      %s92 = sphi 0, %s89
      %s93 = sphi 0, %s92
      %s109 = sphi 0, %s93
    $region4: #{ppo_generator_forward.5} parent=1 // loop_header_branch
      %14 = sbr.rel (%p12) target = $region8
    $region5: #{ppo_generator_forward.5} parent=1 // loop_body
      %s16 = ssub.s32 %s11, 1
      %s17 = ssub.s32 %s11, 2
      %s18 = sadd.s32 %s11, 1
      %s19 = ssub.s32 %s11, %s18
      %p20 = scmp.eq.s32.totalorder %s19, 0
      %s22 = sadd.s32 %s21, 1
      %s23 = scalar_select %p20, %s21, %s22
      %p26 = pneg %p20
      %p27 = scmp.eq.s32.totalorder %s11, 1
      %p28 = por %p26, %p27
      %p29 = scmp.ne.s32.totalorder %s21, %s24
      %p30 = scmp.eq.s32.totalorder %s11, 0
      %p31 = por %p29, %p30
      %p32 = scmp.ne.s32.totalorder %s21, %s24
      %p33 = scmp.eq.s32.totalorder %s16, 1
      %p34 = por %p32, %p33
      %p35 = scmp.ne.s32.totalorder %s24, %s25
      %p36 = scmp.eq.s32.totalorder %s16, 0
      %p37 = por %p35, %p36
      %p38 = scmp.ne.s32.totalorder %s24, %s25
      %p39 = scmp.eq.s32.totalorder %s17, 1
      %p40 = por %p38, %p39
      %p42 = scmp.ne.s32.totalorder %s25, %s41
      %p43 = scmp.eq.s32.totalorder %s17, 0
      %p44 = por %p42, %p43
      %s46 = sadd.s32 %s45, 1
      %p49 = scmp.eq.s32.totalorder %s11, 1
      %p50 = scmp.ne.s32.totalorder %s45, %s47
      %p51 = scmp.eq.s32.totalorder %s11, 0
      %p52 = por %p50, %p51
      %p53 = scmp.ne.s32.totalorder %s45, %s47
      %p54 = scmp.eq.s32.totalorder %s16, 1
      %p55 = por %p53, %p54
      %p56 = scmp.ne.s32.totalorder %s47, %s48
      %p57 = scmp.eq.s32.totalorder %s16, 0
      %p58 = por %p56, %p57
      %p59 = scmp.ne.s32.totalorder %s47, %s48
      %p60 = scmp.eq.s32.totalorder %s17, 1
      %p61 = por %p59, %p60
      %p63 = scmp.ne.s32.totalorder %s48, %s62
      %p64 = scmp.eq.s32.totalorder %s17, 0
      %p65 = por %p63, %p64
      %s67 = sadd.s32 %s66, 1
      %p70 = scmp.eq.s32.totalorder %s11, 1
      %p71 = scmp.ne.s32.totalorder %s66, %s68
      %p72 = scmp.eq.s32.totalorder %s11, 0
      %p73 = por %p71, %p72
      %p74 = scmp.ne.s32.totalorder %s66, %s68
      %p75 = scmp.eq.s32.totalorder %s16, 1
      %p76 = por %p74, %p75
      %p77 = scmp.ne.s32.totalorder %s68, %s69
      %p78 = scmp.eq.s32.totalorder %s16, 0
      %p79 = por %p77, %p78
      %p80 = scmp.ne.s32.totalorder %s68, %s69
      %p81 = scmp.eq.s32.totalorder %s17, 1
      %p82 = por %p80, %p81
      %p84 = scmp.ne.s32.totalorder %s69, %s83
      %p85 = scmp.eq.s32.totalorder %s17, 0
      %p86 = por %p84, %p85
      %s87 = ssub.s32 %s11, %s18
      %p88 = scmp.eq.s32.totalorder %s87, 0
      %s90 = sadd.s32 %s89, 1
      %s91 = scalar_select %p88, %s89, %s90
      %p94 = pneg %p88
      %p95 = scmp.eq.s32.totalorder %s11, 1
      %p96 = por %p94, %p95
      %p97 = scmp.ne.s32.totalorder %s89, %s92
      %p98 = scmp.eq.s32.totalorder %s11, 0
      %p99 = por %p97, %p98
      %p100 = scmp.ne.s32.totalorder %s89, %s92
      %p101 = scmp.eq.s32.totalorder %s16, 1
      %p102 = por %p100, %p101
      %p103 = scmp.ne.s32.totalorder %s92, %s93
      %p104 = scmp.eq.s32.totalorder %s16, 0
      %p105 = por %p103, %p104
      %p106 = scmp.ne.s32.totalorder %s92, %s93
      %p107 = scmp.eq.s32.totalorder %s17, 1
      %p108 = por %p106, %p107
      %p110 = scmp.ne.s32.totalorder %s93, %s109
      %p111 = scmp.eq.s32.totalorder %s17, 0
      %p112 = por %p110, %p111
      %p113 = scmp.le.s32.totalorder 1, %s11
      %p114 = scmp.lt.s32.totalorder %s11, 3
      %p115 = pnand %p113, %p114
      %p116 = pneg %p115
      // Predicated region
      $region9: #{ppo_generator_forward.5} parent=5 // pred_check
        _
      $region10: #{ppo_generator_forward.5} parent=5 // pred_check_branch
        %118 = sbr.rel (%p115) target = $region12
      $region11: #{ppo_generator_forward.5} parent=5 // pred_region
        %s119 = ssub.s32 %s11, 1
        // Predicated region
        $region13: #{ppo_generator_forward.5} parent=11 // pred_check
          %p120 = pneg %p58
        $region14: #{ppo_generator_forward.5} parent=11 // pred_check_branch
          %122 = sbr.rel (%p120) target = $region16
        $region15: #{ppo_generator_forward.5} parent=11 // pred_region
          %124 = vsyncadd [#allocation3], 0
          %s125 = sshll.u32 %s1, 4
          %s126 = int_to_ptr.hbm [resolvable:$true] %s125
          %s127 = sshll.u32 [#allocation2], 4
          %s128 = int_to_ptr.vmem [resolvable:$true] %s127
          %133 = dma.hbm_to_vmem [thread:$0]  %s126, 4608, %s128, [#allocation3], 128, 128, 8
        $region16: #{ppo_generator_forward.5} parent=11 // pred_fallthru
          _
        // Predicated region
        $region17: #{ppo_generator_forward.5} parent=11 // pred_check
          %p134 = pneg %p79
        $region18: #{ppo_generator_forward.5} parent=11 // pred_check_branch
          %136 = sbr.rel (%p134) target = $region20
        $region19: #{ppo_generator_forward.5} parent=11 // pred_region
          %138 = vsyncadd [#allocation5], 0
          %s140 = sshll.u32 %s2, 4
          %s141 = int_to_ptr.hbm [resolvable:$true] %s140
          %s142 = sshll.u32 [#allocation4], 4
          %s143 = int_to_ptr.vmem [resolvable:$true] %s142
          %145 = dma.hbm_to_vmem [thread:$0]  %s141, 16, %s143, [#allocation5]
        $region20: #{ppo_generator_forward.5} parent=11 // pred_fallthru
          _
      $region12: #{ppo_generator_forward.5} parent=5 // pred_fallthru
        _
      %p146 = scmp.lt.s32.totalorder %s11, 2
      // Predicated region
      $region21: #{ppo_generator_forward.5} parent=5 // pred_check
        %p147 = pneg %p146
      $region22: #{ppo_generator_forward.5} parent=5 // pred_check_branch
        %149 = sbr.rel (%p147) target = $region24
      $region23: #{ppo_generator_forward.5} parent=5 // pred_region
        // Predicated region
        $region25: #{ppo_generator_forward.5} parent=23 // pred_check
          %p150 = pneg %p31
        $region26: #{ppo_generator_forward.5} parent=23 // pred_check_branch
          %152 = sbr.rel (%p150) target = $region28
        $region27: #{ppo_generator_forward.5} parent=23 // pred_region
          %s153 = smul.u32 98, %s11
          %p154 = scmp.lt.s32.totalorder %s153, 195
          %s155 = scalar_select %p154, %s153, 195
          %s156 = smul.addr %s155, 3
          %s157 = smul.addr %s156, 8
          %s158 = scalar_lea.vmem %s0, %s157
          %s159 = smul.u32 98, %s11
        $region28: #{ppo_generator_forward.5} parent=23 // pred_fallthru
          _
      $region24: #{ppo_generator_forward.5} parent=5 // pred_fallthru
        _
      %p160 = scmp.le.s32.totalorder 1, %s11
      %p161 = scmp.lt.s32.totalorder %s11, 3
      %p162 = pnand %p160, %p161
      %p163 = pneg %p162
      // Predicated region
      $region29: #{ppo_generator_forward.5} parent=5 // pred_check
        _
      $region30: #{ppo_generator_forward.5} parent=5 // pred_check_branch
        %165 = sbr.rel (%p162) target = $region32
      $region31: #{ppo_generator_forward.5} parent=5 // pred_region
        %s166 = ssub.s32 %s11, 1
        // Predicated region
        $region33: #{ppo_generator_forward.5} parent=31 // pred_check
          %p167 = pneg %p58
        $region34: #{ppo_generator_forward.5} parent=31 // pred_check_branch
          %169 = sbr.rel (%p167) target = $region36
        $region35: #{ppo_generator_forward.5} parent=31 // pred_region
          %171 = dma.done [#allocation3], 4608
        $region36: #{ppo_generator_forward.5} parent=31 // pred_fallthru
          _
        // Predicated region
        $region37: #{ppo_generator_forward.5} parent=31 // pred_check
          %p172 = pneg %p79
        $region38: #{ppo_generator_forward.5} parent=31 // pred_check_branch
          %174 = sbr.rel (%p172) target = $region40
        $region39: #{ppo_generator_forward.5} parent=31 // pred_region
          %176 = dma.done [#allocation5], 16
        $region40: #{ppo_generator_forward.5} parent=31 // pred_fallthru
          _
        %s177 = smul.u32 98, %s16
        %p178 = scmp.lt.s32.totalorder %s177, 195
        %s179 = scalar_select %p178, %s177, 195
        %s180 = smul.addr %s179, 3
        %s181 = smul.addr %s180, 8
        %s182 = scalar_lea.vmem %s0, %s181
        %p183 = pneg %p37
        %p184 = pneg %p34
        %p185 = pneg %p58
        %p186 = pneg %p55
        %p187 = pneg %p79
        %p188 = pneg %p76
        %p189 = pneg %p105
        %p190 = pneg %p102
        %s191 = smul.u32 98, %s16
        %p192 = scmp.lt.s32.totalorder %s191, 195
        %s193 = scalar_select %p192, %s191, 195
        %s194 = smul.addr %s193, 8
        %s195 = scalar_lea.vmem %s3, %s194
        %s196 = smul.u32 98, %s16
        %p197 = scmp.lt.s32.totalorder %s196, 195
        %s198 = scalar_select %p197, %s196, 195
        %s199 = smul.addr %s198, 3
        %s200 = smul.addr %s199, 8
        %s201 = scalar_lea.vmem %s0, %s200
        %s202 = smul.u32 98, %s16
        %s203 = smul.u32 98, %s16
        %p204 = scmp.lt.s32.totalorder %s203, 195
        %s205 = scalar_select %p204, %s203, 195
        %s206 = smul.addr %s205, 8
        %s207 = scalar_lea.vmem %s3, %s206
        %s208 = smul.u32 98, %s16
        %v209 = vld [vmem:[%s201] sm:$0xff]
        %v210 = vld [vmem:[%s201 + $0x8] sm:$0xff]
        %v211 = vld [vmem:[%s201 + $0x10] sm:$0xff]
        %v212 = vld [vmem:[%s201 + $0x18] sm:$0xff]
        %v213 = vld [vmem:[%s201 + $0x20] sm:$0xff]
        %v214 = vld [vmem:[%s201 + $0x28] sm:$0xff]
        %v215 = vld [vmem:[%s201 + $0x30] sm:$0xff]
        %v216 = vld [vmem:[%s201 + $0x38] sm:$0xff]
        %v217 = vld [vmem:[%s201 + $0x40] sm:$0xff]
        %v218 = vld [vmem:[%s201 + $0x48] sm:$0xff]
        %v219 = vld [vmem:[%s201 + $0x50] sm:$0xff]
        %v220 = vld [vmem:[%s201 + $0x58] sm:$0xff]
        %v221 = vld [vmem:[%s201 + $0x60] sm:$0xff]
        %v222 = vld [vmem:[%s201 + $0x68] sm:$0xff]
        %v223 = vld [vmem:[%s201 + $0x70] sm:$0xff]
        %v224 = vld [vmem:[%s201 + $0x78] sm:$0xff]
        %v225 = vld [vmem:[%s201 + $0x80] sm:$0xff]
        %v226 = vld [vmem:[%s201 + $0x88] sm:$0xff]
        %v227 = vld [vmem:[%s201 + $0x90] sm:$0xff]
        %v228 = vld [vmem:[%s201 + $0x98] sm:$0xff]
        %v229 = vld [vmem:[%s201 + $0xa0] sm:$0xff]
        %v230 = vld [vmem:[%s201 + $0xa8] sm:$0xff]
        %v231 = vld [vmem:[%s201 + $0xb0] sm:$0xff]
        %v232 = vld [vmem:[%s201 + $0xb8] sm:$0xff]
        %v233 = vld [vmem:[%s201 + $0xc0] sm:$0xff]
        %v234 = vld [vmem:[%s201 + $0xc8] sm:$0xff]
        %v235 = vld [vmem:[%s201 + $0xd0] sm:$0xff]
        %v236 = vld [vmem:[%s201 + $0xd8] sm:$0xff]
        %v237 = vld [vmem:[%s201 + $0xe0] sm:$0xff]
        %v238 = vld [vmem:[%s201 + $0xe8] sm:$0xff]
        %v239 = vld [vmem:[%s201 + $0xf0] sm:$0xff]
        %v240 = vld [vmem:[%s201 + $0xf8] sm:$0xff]
        %v241 = vld [vmem:[%s201 + $0x100] sm:$0xff]
        %v242 = vld [vmem:[%s201 + $0x108] sm:$0xff]
        %v243 = vld [vmem:[%s201 + $0x110] sm:$0xff]
        %v244 = vld [vmem:[%s201 + $0x118] sm:$0xff]
        %v245 = vld [vmem:[%s201 + $0x120] sm:$0xff]
        %v246 = vld [vmem:[%s201 + $0x128] sm:$0xff]
        %v247 = vld [vmem:[%s201 + $0x130] sm:$0xff]
        %v248 = vld [vmem:[%s201 + $0x138] sm:$0xff]
        %v249 = vld [vmem:[%s201 + $0x140] sm:$0xff]
        %v250 = vld [vmem:[%s201 + $0x148] sm:$0xff]
        %v251 = vld [vmem:[%s201 + $0x150] sm:$0xff]
        %v252 = vld [vmem:[%s201 + $0x158] sm:$0xff]
        %v253 = vld [vmem:[%s201 + $0x160] sm:$0xff]
        %v254 = vld [vmem:[%s201 + $0x168] sm:$0xff]
        %v255 = vld [vmem:[%s201 + $0x170] sm:$0xff]
        %v256 = vld [vmem:[%s201 + $0x178] sm:$0xff]
        %v257 = vld [vmem:[%s201 + $0x180] sm:$0xff]
        %v258 = vld [vmem:[%s201 + $0x188] sm:$0xff]
        %v259 = vld [vmem:[%s201 + $0x190] sm:$0xff]
        %v260 = vld [vmem:[%s201 + $0x198] sm:$0xff]
        %v261 = vld [vmem:[%s201 + $0x1a0] sm:$0xff]
        %v262 = vld [vmem:[%s201 + $0x1a8] sm:$0xff]
        %v263 = vld [vmem:[%s201 + $0x1b0] sm:$0xff]
        %v264 = vld [vmem:[%s201 + $0x1b8] sm:$0xff]
        %v265 = vld [vmem:[%s201 + $0x1c0] sm:$0xff]
        %v266 = vld [vmem:[%s201 + $0x1c8] sm:$0xff]
        %v267 = vld [vmem:[%s201 + $0x1d0] sm:$0xff]
        %v268 = vld [vmem:[%s201 + $0x1d8] sm:$0xff]
        %v269 = vld [vmem:[%s201 + $0x1e0] sm:$0xff]
        %v270 = vld [vmem:[%s201 + $0x1e8] sm:$0xff]
        %v271 = vld [vmem:[%s201 + $0x1f0] sm:$0xff]
        %v272 = vld [vmem:[%s201 + $0x1f8] sm:$0xff]
        %v273 = vld [vmem:[%s201 + $0x200] sm:$0xff]
        %v274 = vld [vmem:[%s201 + $0x208] sm:$0xff]
        %v275 = vld [vmem:[%s201 + $0x210] sm:$0xff]
        %v276 = vld [vmem:[%s201 + $0x218] sm:$0xff]
        %v277 = vld [vmem:[%s201 + $0x220] sm:$0xff]
        %v278 = vld [vmem:[%s201 + $0x228] sm:$0xff]
        %v279 = vld [vmem:[%s201 + $0x230] sm:$0xff]
        %v280 = vld [vmem:[%s201 + $0x238] sm:$0xff]
        %v281 = vld [vmem:[%s201 + $0x240] sm:$0xff]
        %v282 = vld [vmem:[%s201 + $0x248] sm:$0xff]
        %v283 = vld [vmem:[%s201 + $0x250] sm:$0xff]
        %v284 = vld [vmem:[%s201 + $0x258] sm:$0xff]
        %v285 = vld [vmem:[%s201 + $0x260] sm:$0xff]
        %v286 = vld [vmem:[%s201 + $0x268] sm:$0xff]
        %v287 = vld [vmem:[%s201 + $0x270] sm:$0xff]
        %v288 = vld [vmem:[%s201 + $0x278] sm:$0xff]
        %v289 = vld [vmem:[%s201 + $0x280] sm:$0xff]
        %v290 = vld [vmem:[%s201 + $0x288] sm:$0xff]
        %v291 = vld [vmem:[%s201 + $0x290] sm:$0xff]
        %v292 = vld [vmem:[%s201 + $0x298] sm:$0xff]
        %v293 = vld [vmem:[%s201 + $0x2a0] sm:$0xff]
        %v294 = vld [vmem:[%s201 + $0x2a8] sm:$0xff]
        %v295 = vld [vmem:[%s201 + $0x2b0] sm:$0xff]
        %v296 = vld [vmem:[%s201 + $0x2b8] sm:$0xff]
        %v297 = vld [vmem:[%s201 + $0x2c0] sm:$0xff]
        %v298 = vld [vmem:[%s201 + $0x2c8] sm:$0xff]
        %v299 = vld [vmem:[%s201 + $0x2d0] sm:$0xff]
        %v300 = vld [vmem:[%s201 + $0x2d8] sm:$0xff]
        %v301 = vld [vmem:[%s201 + $0x2e0] sm:$0xff]
        %v302 = vld [vmem:[%s201 + $0x2e8] sm:$0xff]
        %v303 = vld [vmem:[%s201 + $0x2f0] sm:$0xff]
        %v304 = vld [vmem:[%s201 + $0x2f8] sm:$0xff]
        %v305 = vld [vmem:[%s201 + $0x300] sm:$0xff]
        %v306 = vld [vmem:[%s201 + $0x308] sm:$0xff]
        %v307 = vld [vmem:[%s201 + $0x310] sm:$0xff]
        %v308 = vld [vmem:[%s201 + $0x318] sm:$0xff]
        %v309 = vld [vmem:[%s201 + $0x320] sm:$0xff]
        %v310 = vld [vmem:[%s201 + $0x328] sm:$0xff]
        %v311 = vld [vmem:[%s201 + $0x330] sm:$0xff]
        %v312 = vld [vmem:[%s201 + $0x338] sm:$0xff]
        %v313 = vld [vmem:[%s201 + $0x340] sm:$0xff]
        %v314 = vld [vmem:[%s201 + $0x348] sm:$0xff]
        %v315 = vld [vmem:[%s201 + $0x350] sm:$0xff]
        %v316 = vld [vmem:[%s201 + $0x358] sm:$0xff]
        %v317 = vld [vmem:[%s201 + $0x360] sm:$0xff]
        %v318 = vld [vmem:[%s201 + $0x368] sm:$0xff]
        %v319 = vld [vmem:[%s201 + $0x370] sm:$0xff]
        %v320 = vld [vmem:[%s201 + $0x378] sm:$0xff]
        %v321 = vld [vmem:[%s201 + $0x380] sm:$0xff]
        %v322 = vld [vmem:[%s201 + $0x388] sm:$0xff]
        %v323 = vld [vmem:[%s201 + $0x390] sm:$0xff]
        %v324 = vld [vmem:[%s201 + $0x398] sm:$0xff]
        %v325 = vld [vmem:[%s201 + $0x3a0] sm:$0xff]
        %v326 = vld [vmem:[%s201 + $0x3a8] sm:$0xff]
        %v327 = vld [vmem:[%s201 + $0x3b0] sm:$0xff]
        %v328 = vld [vmem:[%s201 + $0x3b8] sm:$0xff]
        %v329 = vld [vmem:[%s201 + $0x3c0] sm:$0xff]
        %v330 = vld [vmem:[%s201 + $0x3c8] sm:$0xff]
        %v331 = vld [vmem:[%s201 + $0x3d0] sm:$0xff]
        %v332 = vld [vmem:[%s201 + $0x3d8] sm:$0xff]
        %v333 = vld [vmem:[%s201 + $0x3e0] sm:$0xff]
        %v334 = vld [vmem:[%s201 + $0x3e8] sm:$0xff]
        %v335 = vld [vmem:[%s201 + $0x3f0] sm:$0xff]
        %v336 = vld [vmem:[%s201 + $0x3f8] sm:$0xff]
        %v337 = vld [vmem:[%s201 + $0x400] sm:$0xff]
        %v338 = vld [vmem:[%s201 + $0x408] sm:$0xff]
        %v339 = vld [vmem:[%s201 + $0x410] sm:$0xff]
        %v340 = vld [vmem:[%s201 + $0x418] sm:$0xff]
        %v341 = vld [vmem:[%s201 + $0x420] sm:$0xff]
        %v342 = vld [vmem:[%s201 + $0x428] sm:$0xff]
        %v343 = vld [vmem:[%s201 + $0x430] sm:$0xff]
        %v344 = vld [vmem:[%s201 + $0x438] sm:$0xff]
        %v345 = vld [vmem:[%s201 + $0x440] sm:$0xff]
        %v346 = vld [vmem:[%s201 + $0x448] sm:$0xff]
        %v347 = vld [vmem:[%s201 + $0x450] sm:$0xff]
        %v348 = vld [vmem:[%s201 + $0x458] sm:$0xff]
        %v349 = vld [vmem:[%s201 + $0x460] sm:$0xff]
        %v350 = vld [vmem:[%s201 + $0x468] sm:$0xff]
        %v351 = vld [vmem:[%s201 + $0x470] sm:$0xff]
        %v352 = vld [vmem:[%s201 + $0x478] sm:$0xff]
        %v353 = vld [vmem:[%s201 + $0x480] sm:$0xff]
        %v354 = vld [vmem:[%s201 + $0x488] sm:$0xff]
        %v355 = vld [vmem:[%s201 + $0x490] sm:$0xff]
        %v356 = vld [vmem:[%s201 + $0x498] sm:$0xff]
        %v357 = vld [vmem:[%s201 + $0x4a0] sm:$0xff]
        %v358 = vld [vmem:[%s201 + $0x4a8] sm:$0xff]
        %v359 = vld [vmem:[%s201 + $0x4b0] sm:$0xff]
        %v360 = vld [vmem:[%s201 + $0x4b8] sm:$0xff]
        %v361 = vld [vmem:[%s201 + $0x4c0] sm:$0xff]
        %v362 = vld [vmem:[%s201 + $0x4c8] sm:$0xff]
        %v363 = vld [vmem:[%s201 + $0x4d0] sm:$0xff]
        %v364 = vld [vmem:[%s201 + $0x4d8] sm:$0xff]
        %v365 = vld [vmem:[%s201 + $0x4e0] sm:$0xff]
        %v366 = vld [vmem:[%s201 + $0x4e8] sm:$0xff]
        %v367 = vld [vmem:[%s201 + $0x4f0] sm:$0xff]
        %v368 = vld [vmem:[%s201 + $0x4f8] sm:$0xff]
        %v369 = vld [vmem:[%s201 + $0x500] sm:$0xff]
        %v370 = vld [vmem:[%s201 + $0x508] sm:$0xff]
        %v371 = vld [vmem:[%s201 + $0x510] sm:$0xff]
        %v372 = vld [vmem:[%s201 + $0x518] sm:$0xff]
        %v373 = vld [vmem:[%s201 + $0x520] sm:$0xff]
        %v374 = vld [vmem:[%s201 + $0x528] sm:$0xff]
        %v375 = vld [vmem:[%s201 + $0x530] sm:$0xff]
        %v376 = vld [vmem:[%s201 + $0x538] sm:$0xff]
        %v377 = vld [vmem:[%s201 + $0x540] sm:$0xff]
        %v378 = vld [vmem:[%s201 + $0x548] sm:$0xff]
        %v379 = vld [vmem:[%s201 + $0x550] sm:$0xff]
        %v380 = vld [vmem:[%s201 + $0x558] sm:$0xff]
        %v381 = vld [vmem:[%s201 + $0x560] sm:$0xff]
        %v382 = vld [vmem:[%s201 + $0x568] sm:$0xff]
        %v383 = vld [vmem:[%s201 + $0x570] sm:$0xff]
        %v384 = vld [vmem:[%s201 + $0x578] sm:$0xff]
        %v385 = vld [vmem:[%s201 + $0x580] sm:$0xff]
        %v386 = vld [vmem:[%s201 + $0x588] sm:$0xff]
        %v387 = vld [vmem:[%s201 + $0x590] sm:$0xff]
        %v388 = vld [vmem:[%s201 + $0x598] sm:$0xff]
        %v389 = vld [vmem:[%s201 + $0x5a0] sm:$0xff]
        %v390 = vld [vmem:[%s201 + $0x5a8] sm:$0xff]
        %v391 = vld [vmem:[%s201 + $0x5b0] sm:$0xff]
        %v392 = vld [vmem:[%s201 + $0x5b8] sm:$0xff]
        %v393 = vld [vmem:[%s201 + $0x5c0] sm:$0xff]
        %v394 = vld [vmem:[%s201 + $0x5c8] sm:$0xff]
        %v395 = vld [vmem:[%s201 + $0x5d0] sm:$0xff]
        %v396 = vld [vmem:[%s201 + $0x5d8] sm:$0xff]
        %v397 = vld [vmem:[%s201 + $0x5e0] sm:$0xff]
        %v398 = vld [vmem:[%s201 + $0x5e8] sm:$0xff]
        %v399 = vld [vmem:[%s201 + $0x5f0] sm:$0xff]
        %v400 = vld [vmem:[%s201 + $0x5f8] sm:$0xff]
        %v401 = vld [vmem:[%s201 + $0x600] sm:$0xff]
        %v402 = vld [vmem:[%s201 + $0x608] sm:$0xff]
        %v403 = vld [vmem:[%s201 + $0x610] sm:$0xff]
        %v404 = vld [vmem:[%s201 + $0x618] sm:$0xff]
        %v405 = vld [vmem:[%s201 + $0x620] sm:$0xff]
        %v406 = vld [vmem:[%s201 + $0x628] sm:$0xff]
        %v407 = vld [vmem:[%s201 + $0x630] sm:$0xff]
        %v408 = vld [vmem:[%s201 + $0x638] sm:$0xff]
        %v409 = vld [vmem:[%s201 + $0x640] sm:$0xff]
        %v410 = vld [vmem:[%s201 + $0x648] sm:$0xff]
        %v411 = vld [vmem:[%s201 + $0x650] sm:$0xff]
        %v412 = vld [vmem:[%s201 + $0x658] sm:$0xff]
        %v413 = vld [vmem:[%s201 + $0x660] sm:$0xff]
        %v414 = vld [vmem:[%s201 + $0x668] sm:$0xff]
        %v415 = vld [vmem:[%s201 + $0x670] sm:$0xff]
        %v416 = vld [vmem:[%s201 + $0x678] sm:$0xff]
        %v417 = vld [vmem:[%s201 + $0x680] sm:$0xff]
        %v418 = vld [vmem:[%s201 + $0x688] sm:$0xff]
        %v419 = vld [vmem:[%s201 + $0x690] sm:$0xff]
        %v420 = vld [vmem:[%s201 + $0x698] sm:$0xff]
        %v421 = vld [vmem:[%s201 + $0x6a0] sm:$0xff]
        %v422 = vld [vmem:[%s201 + $0x6a8] sm:$0xff]
        %v423 = vld [vmem:[%s201 + $0x6b0] sm:$0xff]
        %v424 = vld [vmem:[%s201 + $0x6b8] sm:$0xff]
        %v425 = vld [vmem:[%s201 + $0x6c0] sm:$0xff]
        %v426 = vld [vmem:[%s201 + $0x6c8] sm:$0xff]
        %v427 = vld [vmem:[%s201 + $0x6d0] sm:$0xff]
        %v428 = vld [vmem:[%s201 + $0x6d8] sm:$0xff]
        %v429 = vld [vmem:[%s201 + $0x6e0] sm:$0xff]
        %v430 = vld [vmem:[%s201 + $0x6e8] sm:$0xff]
        %v431 = vld [vmem:[%s201 + $0x6f0] sm:$0xff]
        %v432 = vld [vmem:[%s201 + $0x6f8] sm:$0xff]
        %v433 = vld [vmem:[%s201 + $0x700] sm:$0xff]
        %v434 = vld [vmem:[%s201 + $0x708] sm:$0xff]
        %v435 = vld [vmem:[%s201 + $0x710] sm:$0xff]
        %v436 = vld [vmem:[%s201 + $0x718] sm:$0xff]
        %v437 = vld [vmem:[%s201 + $0x720] sm:$0xff]
        %v438 = vld [vmem:[%s201 + $0x728] sm:$0xff]
        %v439 = vld [vmem:[%s201 + $0x730] sm:$0xff]
        %v440 = vld [vmem:[%s201 + $0x738] sm:$0xff]
        %v441 = vld [vmem:[%s201 + $0x740] sm:$0xff]
        %v442 = vld [vmem:[%s201 + $0x748] sm:$0xff]
        %v443 = vld [vmem:[%s201 + $0x750] sm:$0xff]
        %v444 = vld [vmem:[%s201 + $0x758] sm:$0xff]
        %v445 = vld [vmem:[%s201 + $0x760] sm:$0xff]
        %v446 = vld [vmem:[%s201 + $0x768] sm:$0xff]
        %v447 = vld [vmem:[%s201 + $0x770] sm:$0xff]
        %v448 = vld [vmem:[%s201 + $0x778] sm:$0xff]
        %v449 = vld [vmem:[%s201 + $0x780] sm:$0xff]
        %v450 = vld [vmem:[%s201 + $0x788] sm:$0xff]
        %v451 = vld [vmem:[%s201 + $0x790] sm:$0xff]
        %v452 = vld [vmem:[%s201 + $0x798] sm:$0xff]
        %v453 = vld [vmem:[%s201 + $0x7a0] sm:$0xff]
        %v454 = vld [vmem:[%s201 + $0x7a8] sm:$0xff]
        %v455 = vld [vmem:[%s201 + $0x7b0] sm:$0xff]
        %v456 = vld [vmem:[%s201 + $0x7b8] sm:$0xff]
        %v457 = vld [vmem:[%s201 + $0x7c0] sm:$0xff]
        %v458 = vld [vmem:[%s201 + $0x7c8] sm:$0xff]
        %v459 = vld [vmem:[%s201 + $0x7d0] sm:$0xff]
        %v460 = vld [vmem:[%s201 + $0x7d8] sm:$0xff]
        %v461 = vld [vmem:[%s201 + $0x7e0] sm:$0xff]
        %v462 = vld [vmem:[%s201 + $0x7e8] sm:$0xff]
        %v463 = vld [vmem:[%s201 + $0x7f0] sm:$0xff]
        %v464 = vld [vmem:[%s201 + $0x7f8] sm:$0xff]
        %v465 = vld [vmem:[%s201 + $0x800] sm:$0xff]
        %v466 = vld [vmem:[%s201 + $0x808] sm:$0xff]
        %v467 = vld [vmem:[%s201 + $0x810] sm:$0xff]
        %v468 = vld [vmem:[%s201 + $0x818] sm:$0xff]
        %v469 = vld [vmem:[%s201 + $0x820] sm:$0xff]
        %v470 = vld [vmem:[%s201 + $0x828] sm:$0xff]
        %v471 = vld [vmem:[%s201 + $0x830] sm:$0xff]
        %v472 = vld [vmem:[%s201 + $0x838] sm:$0xff]
        %v473 = vld [vmem:[%s201 + $0x840] sm:$0xff]
        %v474 = vld [vmem:[%s201 + $0x848] sm:$0xff]
        %v475 = vld [vmem:[%s201 + $0x850] sm:$0xff]
        %v476 = vld [vmem:[%s201 + $0x858] sm:$0xff]
        %v477 = vld [vmem:[%s201 + $0x860] sm:$0xff]
        %v478 = vld [vmem:[%s201 + $0x868] sm:$0xff]
        %v479 = vld [vmem:[%s201 + $0x870] sm:$0xff]
        %v480 = vld [vmem:[%s201 + $0x878] sm:$0xff]
        %v481 = vld [vmem:[%s201 + $0x880] sm:$0xff]
        %v482 = vld [vmem:[%s201 + $0x888] sm:$0xff]
        %v483 = vld [vmem:[%s201 + $0x890] sm:$0xff]
        %v484 = vld [vmem:[%s201 + $0x898] sm:$0xff]
        %v485 = vld [vmem:[%s201 + $0x8a0] sm:$0xff]
        %v486 = vld [vmem:[%s201 + $0x8a8] sm:$0xff]
        %v487 = vld [vmem:[%s201 + $0x8b0] sm:$0xff]
        %v488 = vld [vmem:[%s201 + $0x8b8] sm:$0xff]
        %v489 = vld [vmem:[%s201 + $0x8c0] sm:$0xff]
        %v490 = vld [vmem:[%s201 + $0x8c8] sm:$0xff]
        %v491 = vld [vmem:[%s201 + $0x8d0] sm:$0xff]
        %v492 = vld [vmem:[%s201 + $0x8d8] sm:$0xff]
        %v493 = vld [vmem:[%s201 + $0x8e0] sm:$0xff]
        %v494 = vld [vmem:[%s201 + $0x8e8] sm:$0xff]
        %v495 = vld [vmem:[%s201 + $0x8f0] sm:$0xff]
        %v496 = vld [vmem:[%s201 + $0x8f8] sm:$0xff]
        %v497 = vld [vmem:[%s201 + $0x900] sm:$0xff]
        %v498 = vld [vmem:[%s201 + $0x908] sm:$0xff]
        %v499 = vld [vmem:[%s201 + $0x910] sm:$0xff]
        %v500 = vld [vmem:[%s201 + $0x918] sm:$0xff]
        %v501 = vld [vmem:[%s201 + $0x920] sm:$0xff]
        %v502 = vld [vmem:[%s201 + $0x928] sm:$0xff]
        %v503 = vld [vmem:[#allocation2] sm:$0xff]
        %v504 = vld [vmem:[#allocation2 + $0x8] sm:$0xff]
        %v505 = vld [vmem:[#allocation2 + $0x10] sm:$0xff]
        %v506 = vld [vmem:[#allocation2 + $0x18] sm:$0xff]
        %v507 = vld [vmem:[#allocation2 + $0x20] sm:$0xff]
        %v508 = vld [vmem:[#allocation2 + $0x28] sm:$0xff]
        %v509 = vld [vmem:[#allocation2 + $0x30] sm:$0xff]
        %v510 = vld [vmem:[#allocation2 + $0x38] sm:$0xff]
        %v511 = vld [vmem:[#allocation2 + $0x40] sm:$0xff]
        %v512 = vld [vmem:[#allocation2 + $0x48] sm:$0xff]
        %v513 = vld [vmem:[#allocation2 + $0x50] sm:$0xff]
        %v514 = vld [vmem:[#allocation2 + $0x58] sm:$0xff]
        %v515 = vld [vmem:[#allocation2 + $0x60] sm:$0xff]
        %v516 = vld [vmem:[#allocation2 + $0x68] sm:$0xff]
        %v517 = vld [vmem:[#allocation2 + $0x70] sm:$0xff]
        %v518 = vld [vmem:[#allocation2 + $0x78] sm:$0xff]
        %v519 = vld [vmem:[#allocation2 + $0x80] sm:$0xff]
        %v520 = vld [vmem:[#allocation2 + $0x88] sm:$0xff]
        %v521 = vld [vmem:[#allocation2 + $0x90] sm:$0xff]
        %v522 = vld [vmem:[#allocation2 + $0x98] sm:$0xff]
        %v523 = vld [vmem:[#allocation2 + $0xa0] sm:$0xff]
        %v524 = vld [vmem:[#allocation2 + $0xa8] sm:$0xff]
        %v525 = vld [vmem:[#allocation2 + $0xb0] sm:$0xff]
        %v526 = vld [vmem:[#allocation2 + $0xb8] sm:$0xff]
        %v527 = vld [vmem:[#allocation2 + $0xc0] sm:$0xff]
        %v528 = vld [vmem:[#allocation2 + $0xc8] sm:$0xff]
        %v529 = vld [vmem:[#allocation2 + $0xd0] sm:$0xff]
        %v530 = vld [vmem:[#allocation2 + $0xd8] sm:$0xff]
        %v531 = vld [vmem:[#allocation2 + $0xe0] sm:$0xff]
        %v532 = vld [vmem:[#allocation2 + $0xe8] sm:$0xff]
        %v533 = vld [vmem:[#allocation2 + $0xf0] sm:$0xff]
        %v534 = vld [vmem:[#allocation2 + $0xf8] sm:$0xff]
        %v535 = vld [vmem:[#allocation2 + $0x100] sm:$0xff]
        %v536 = vld [vmem:[#allocation2 + $0x108] sm:$0xff]
        %v537 = vld [vmem:[#allocation2 + $0x110] sm:$0xff]
        %v538 = vld [vmem:[#allocation2 + $0x118] sm:$0xff]
        %v539 = vld [vmem:[#allocation4] sm:$0x1]
        %v541 = vperm.slane %v539, 0
        %vm543 = vcmask 261120
        %v545 = vsel %vm543, %v211, 0
        %v548 = vsel %vm543, %v214, 0
        %v551 = vsel %vm543, %v217, 0
        %v554 = vsel %vm543, %v220, 0
        %v557 = vsel %vm543, %v223, 0
        %v560 = vsel %vm543, %v226, 0
        %v563 = vsel %vm543, %v229, 0
        %v566 = vsel %vm543, %v232, 0
        %v569 = vsel %vm543, %v235, 0
        %v572 = vsel %vm543, %v238, 0
        %v575 = vsel %vm543, %v241, 0
        %v578 = vsel %vm543, %v244, 0
        %v581 = vsel %vm543, %v247, 0
        %v584 = vsel %vm543, %v250, 0
        %v587 = vsel %vm543, %v253, 0
        %v590 = vsel %vm543, %v256, 0
        %v593 = vsel %vm543, %v259, 0
        %v596 = vsel %vm543, %v262, 0
        %v599 = vsel %vm543, %v265, 0
        %v602 = vsel %vm543, %v268, 0
        %v605 = vsel %vm543, %v271, 0
        %v608 = vsel %vm543, %v274, 0
        %v611 = vsel %vm543, %v277, 0
        %v614 = vsel %vm543, %v280, 0
        %v617 = vsel %vm543, %v283, 0
        %v620 = vsel %vm543, %v286, 0
        %v623 = vsel %vm543, %v289, 0
        %v626 = vsel %vm543, %v292, 0
        %v629 = vsel %vm543, %v295, 0
        %v632 = vsel %vm543, %v298, 0
        %v635 = vsel %vm543, %v301, 0
        %v638 = vsel %vm543, %v304, 0
        %v641 = vsel %vm543, %v307, 0
        %v644 = vsel %vm543, %v310, 0
        %v647 = vsel %vm543, %v313, 0
        %v650 = vsel %vm543, %v316, 0
        %v653 = vsel %vm543, %v319, 0
        %v656 = vsel %vm543, %v322, 0
        %v659 = vsel %vm543, %v325, 0
        %v662 = vsel %vm543, %v328, 0
        %v665 = vsel %vm543, %v331, 0
        %v668 = vsel %vm543, %v334, 0
        %v671 = vsel %vm543, %v337, 0
        %v674 = vsel %vm543, %v340, 0
        %v677 = vsel %vm543, %v343, 0
        %v680 = vsel %vm543, %v346, 0
        %v683 = vsel %vm543, %v349, 0
        %v686 = vsel %vm543, %v352, 0
        %v689 = vsel %vm543, %v355, 0
        %v692 = vsel %vm543, %v358, 0
        %v695 = vsel %vm543, %v361, 0
        %v698 = vsel %vm543, %v364, 0
        %v701 = vsel %vm543, %v367, 0
        %v704 = vsel %vm543, %v370, 0
        %v707 = vsel %vm543, %v373, 0
        %v710 = vsel %vm543, %v376, 0
        %v713 = vsel %vm543, %v379, 0
        %v716 = vsel %vm543, %v382, 0
        %v719 = vsel %vm543, %v385, 0
        %v722 = vsel %vm543, %v388, 0
        %v725 = vsel %vm543, %v391, 0
        %v728 = vsel %vm543, %v394, 0
        %v731 = vsel %vm543, %v397, 0
        %v734 = vsel %vm543, %v400, 0
        %v737 = vsel %vm543, %v403, 0
        %v740 = vsel %vm543, %v406, 0
        %v743 = vsel %vm543, %v409, 0
        %v746 = vsel %vm543, %v412, 0
        %v749 = vsel %vm543, %v415, 0
        %v752 = vsel %vm543, %v418, 0
        %v755 = vsel %vm543, %v421, 0
        %v758 = vsel %vm543, %v424, 0
        %v761 = vsel %vm543, %v427, 0
        %v764 = vsel %vm543, %v430, 0
        %v767 = vsel %vm543, %v433, 0
        %v770 = vsel %vm543, %v436, 0
        %v773 = vsel %vm543, %v439, 0
        %v776 = vsel %vm543, %v442, 0
        %v779 = vsel %vm543, %v445, 0
        %v782 = vsel %vm543, %v448, 0
        %v785 = vsel %vm543, %v451, 0
        %v788 = vsel %vm543, %v454, 0
        %v791 = vsel %vm543, %v457, 0
        %v794 = vsel %vm543, %v460, 0
        %v797 = vsel %vm543, %v463, 0
        %v800 = vsel %vm543, %v466, 0
        %v803 = vsel %vm543, %v469, 0
        %v806 = vsel %vm543, %v472, 0
        %v809 = vsel %vm543, %v475, 0
        %v812 = vsel %vm543, %v478, 0
        %v815 = vsel %vm543, %v481, 0
        %v818 = vsel %vm543, %v484, 0
        %v821 = vsel %vm543, %v487, 0
        %v824 = vsel %vm543, %v490, 0
        %v827 = vsel %vm543, %v493, 0
        %v830 = vsel %vm543, %v496, 0
        %v833 = vsel %vm543, %v499, 0
        %v836 = vsel %vm543, %v502, 0
        %838 = vmatpush.msra.mxu0 %v518
        %839 = vmatpush.msra.mxu0 %v517
        %840 = vmatpush.msra.mxu0 %v516
        %841 = vmatpush.msra.mxu0 %v515
        %842 = vmatpush.msra.mxu0 %v514
        %843 = vmatpush.msra.mxu0 %v513
        %844 = vmatpush.msra.mxu0 %v512
        %845 = vmatpush.msra.mxu0 %v511
        %846 = vmatpush.msra.mxu0 %v510
        %847 = vmatpush.msra.mxu0 %v509
        %848 = vmatpush.msra.mxu0 %v508
        %849 = vmatpush.msra.mxu0 %v507
        %850 = vmatpush.msra.mxu0 %v506
        %851 = vmatpush.msra.mxu0 %v505
        %852 = vmatpush.msra.mxu0 %v504
        %853 = vmatpush.msra.mxu0 %v503
        %854 = vmatmul.f32.gmra.mxu0 %v209
        %v855 = vpop.f32.mrf.mxu0
        %v856 = vadd.f32 %v541, %v855
        %857 = vmatmul.f32.gmra.mxu0 %v212
        %v858 = vpop.f32.mrf.mxu0
        %v859 = vadd.f32 %v541, %v858
        %860 = vmatmul.f32.gmra.mxu0 %v215
        %v861 = vpop.f32.mrf.mxu0
        %v862 = vadd.f32 %v541, %v861
        %863 = vmatmul.f32.gmra.mxu0 %v218
        %v864 = vpop.f32.mrf.mxu0
        %v865 = vadd.f32 %v541, %v864
        %866 = vmatmul.f32.gmra.mxu0 %v221
        %v867 = vpop.f32.mrf.mxu0
        %v868 = vadd.f32 %v541, %v867
        %869 = vmatmul.f32.gmra.mxu0 %v224
        %v870 = vpop.f32.mrf.mxu0
        %v871 = vadd.f32 %v541, %v870
        %872 = vmatmul.f32.gmra.mxu0 %v227
        %v873 = vpop.f32.mrf.mxu0
        %v874 = vadd.f32 %v541, %v873
        %875 = vmatmul.f32.gmra.mxu0 %v230
        %v876 = vpop.f32.mrf.mxu0
        %v877 = vadd.f32 %v541, %v876
        %878 = vmatmul.f32.gmra.mxu0 %v233
        %v879 = vpop.f32.mrf.mxu0
        %v880 = vadd.f32 %v541, %v879
        %881 = vmatmul.f32.gmra.mxu0 %v236
        %v882 = vpop.f32.mrf.mxu0
        %v883 = vadd.f32 %v541, %v882
        %884 = vmatmul.f32.gmra.mxu0 %v239
        %v885 = vpop.f32.mrf.mxu0
        %v886 = vadd.f32 %v541, %v885
        %887 = vmatmul.f32.gmra.mxu0 %v242
        %v888 = vpop.f32.mrf.mxu0
        %v889 = vadd.f32 %v541, %v888
        %890 = vmatmul.f32.gmra.mxu0 %v245
        %v891 = vpop.f32.mrf.mxu0
        %v892 = vadd.f32 %v541, %v891
        %893 = vmatmul.f32.gmra.mxu0 %v248
        %v894 = vpop.f32.mrf.mxu0
        %v895 = vadd.f32 %v541, %v894
        %896 = vmatmul.f32.gmra.mxu0 %v251
        %v897 = vpop.f32.mrf.mxu0
        %v898 = vadd.f32 %v541, %v897
        %899 = vmatmul.f32.gmra.mxu0 %v254
        %v900 = vpop.f32.mrf.mxu0
        %v901 = vadd.f32 %v541, %v900
        %902 = vmatmul.f32.gmra.mxu0 %v257
        %v903 = vpop.f32.mrf.mxu0
        %v904 = vadd.f32 %v541, %v903
        %905 = vmatmul.f32.gmra.mxu0 %v260
        %v906 = vpop.f32.mrf.mxu0
        %v907 = vadd.f32 %v541, %v906
        %908 = vmatmul.f32.gmra.mxu0 %v263
        %v909 = vpop.f32.mrf.mxu0
        %v910 = vadd.f32 %v541, %v909
        %911 = vmatmul.f32.gmra.mxu0 %v266
        %v912 = vpop.f32.mrf.mxu0
        %v913 = vadd.f32 %v541, %v912
        %914 = vmatmul.f32.gmra.mxu0 %v269
        %v915 = vpop.f32.mrf.mxu0
        %v916 = vadd.f32 %v541, %v915
        %917 = vmatmul.f32.gmra.mxu0 %v272
        %v918 = vpop.f32.mrf.mxu0
        %v919 = vadd.f32 %v541, %v918
        %920 = vmatmul.f32.gmra.mxu0 %v275
        %v921 = vpop.f32.mrf.mxu0
        %v922 = vadd.f32 %v541, %v921
        %923 = vmatmul.f32.gmra.mxu0 %v278
        %v924 = vpop.f32.mrf.mxu0
        %v925 = vadd.f32 %v541, %v924
        %926 = vmatmul.f32.gmra.mxu0 %v281
        %v927 = vpop.f32.mrf.mxu0
        %v928 = vadd.f32 %v541, %v927
        %929 = vmatmul.f32.gmra.mxu0 %v284
        %v930 = vpop.f32.mrf.mxu0
        %v931 = vadd.f32 %v541, %v930
        %932 = vmatmul.f32.gmra.mxu0 %v287
        %v933 = vpop.f32.mrf.mxu0
        %v934 = vadd.f32 %v541, %v933
        %935 = vmatmul.f32.gmra.mxu0 %v290
        %v936 = vpop.f32.mrf.mxu0
        %v937 = vadd.f32 %v541, %v936
        %938 = vmatmul.f32.gmra.mxu0 %v293
        %v939 = vpop.f32.mrf.mxu0
        %v940 = vadd.f32 %v541, %v939
        %941 = vmatmul.f32.gmra.mxu0 %v296
        %v942 = vpop.f32.mrf.mxu0
        %v943 = vadd.f32 %v541, %v942
        %944 = vmatmul.f32.gmra.mxu0 %v299
        %v945 = vpop.f32.mrf.mxu0
        %v946 = vadd.f32 %v541, %v945
        %947 = vmatmul.f32.gmra.mxu0 %v302
        %v948 = vpop.f32.mrf.mxu0
        %v949 = vadd.f32 %v541, %v948
        %950 = vmatmul.f32.gmra.mxu0 %v305
        %v951 = vpop.f32.mrf.mxu0
        %v952 = vadd.f32 %v541, %v951
        %953 = vmatmul.f32.gmra.mxu0 %v308
        %v954 = vpop.f32.mrf.mxu0
        %v955 = vadd.f32 %v541, %v954
        %956 = vmatmul.f32.gmra.mxu0 %v311
        %v957 = vpop.f32.mrf.mxu0
        %v958 = vadd.f32 %v541, %v957
        %959 = vmatmul.f32.gmra.mxu0 %v314
        %v960 = vpop.f32.mrf.mxu0
        %v961 = vadd.f32 %v541, %v960
        %962 = vmatmul.f32.gmra.mxu0 %v317
        %v963 = vpop.f32.mrf.mxu0
        %v964 = vadd.f32 %v541, %v963
        %965 = vmatmul.f32.gmra.mxu0 %v320
        %v966 = vpop.f32.mrf.mxu0
        %v967 = vadd.f32 %v541, %v966
        %968 = vmatmul.f32.gmra.mxu0 %v323
        %v969 = vpop.f32.mrf.mxu0
        %v970 = vadd.f32 %v541, %v969
        %971 = vmatmul.f32.gmra.mxu0 %v326
        %v972 = vpop.f32.mrf.mxu0
        %v973 = vadd.f32 %v541, %v972
        %974 = vmatmul.f32.gmra.mxu0 %v329
        %v975 = vpop.f32.mrf.mxu0
        %v976 = vadd.f32 %v541, %v975
        %977 = vmatmul.f32.gmra.mxu0 %v332
        %v978 = vpop.f32.mrf.mxu0
        %v979 = vadd.f32 %v541, %v978
        %980 = vmatmul.f32.gmra.mxu0 %v335
        %v981 = vpop.f32.mrf.mxu0
        %v982 = vadd.f32 %v541, %v981
        %983 = vmatmul.f32.gmra.mxu0 %v338
        %v984 = vpop.f32.mrf.mxu0
        %v985 = vadd.f32 %v541, %v984
        %986 = vmatmul.f32.gmra.mxu0 %v341
        %v987 = vpop.f32.mrf.mxu0
        %v988 = vadd.f32 %v541, %v987
        %989 = vmatmul.f32.gmra.mxu0 %v344
        %v990 = vpop.f32.mrf.mxu0
        %v991 = vadd.f32 %v541, %v990
        %992 = vmatmul.f32.gmra.mxu0 %v347
        %v993 = vpop.f32.mrf.mxu0
        %v994 = vadd.f32 %v541, %v993
        %995 = vmatmul.f32.gmra.mxu0 %v350
        %v996 = vpop.f32.mrf.mxu0
        %v997 = vadd.f32 %v541, %v996
        %998 = vmatmul.f32.gmra.mxu0 %v353
        %v999 = vpop.f32.mrf.mxu0
        %v1000 = vadd.f32 %v541, %v999
        %1001 = vmatmul.f32.gmra.mxu0 %v356
        %v1002 = vpop.f32.mrf.mxu0
        %v1003 = vadd.f32 %v541, %v1002
        %1004 = vmatmul.f32.gmra.mxu0 %v359
        %v1005 = vpop.f32.mrf.mxu0
        %v1006 = vadd.f32 %v541, %v1005
        %1007 = vmatmul.f32.gmra.mxu0 %v362
        %v1008 = vpop.f32.mrf.mxu0
        %v1009 = vadd.f32 %v541, %v1008
        %1010 = vmatmul.f32.gmra.mxu0 %v365
        %v1011 = vpop.f32.mrf.mxu0
        %v1012 = vadd.f32 %v541, %v1011
        %1013 = vmatmul.f32.gmra.mxu0 %v368
        %v1014 = vpop.f32.mrf.mxu0
        %v1015 = vadd.f32 %v541, %v1014
        %1016 = vmatmul.f32.gmra.mxu0 %v371
        %v1017 = vpop.f32.mrf.mxu0
        %v1018 = vadd.f32 %v541, %v1017
        %1019 = vmatmul.f32.gmra.mxu0 %v374
        %v1020 = vpop.f32.mrf.mxu0
        %v1021 = vadd.f32 %v541, %v1020
        %1022 = vmatmul.f32.gmra.mxu0 %v377
        %v1023 = vpop.f32.mrf.mxu0
        %v1024 = vadd.f32 %v541, %v1023
        %1025 = vmatmul.f32.gmra.mxu0 %v380
        %v1026 = vpop.f32.mrf.mxu0
        %v1027 = vadd.f32 %v541, %v1026
        %1028 = vmatmul.f32.gmra.mxu0 %v383
        %v1029 = vpop.f32.mrf.mxu0
        %v1030 = vadd.f32 %v541, %v1029
        %1031 = vmatmul.f32.gmra.mxu0 %v386
        %v1032 = vpop.f32.mrf.mxu0
        %v1033 = vadd.f32 %v541, %v1032
        %1034 = vmatmul.f32.gmra.mxu0 %v389
        %v1035 = vpop.f32.mrf.mxu0
        %v1036 = vadd.f32 %v541, %v1035
        %1037 = vmatmul.f32.gmra.mxu0 %v392
        %v1038 = vpop.f32.mrf.mxu0
        %v1039 = vadd.f32 %v541, %v1038
        %1040 = vmatmul.f32.gmra.mxu0 %v395
        %v1041 = vpop.f32.mrf.mxu0
        %v1042 = vadd.f32 %v541, %v1041
        %1043 = vmatmul.f32.gmra.mxu0 %v398
        %v1044 = vpop.f32.mrf.mxu0
        %v1045 = vadd.f32 %v541, %v1044
        %1046 = vmatmul.f32.gmra.mxu0 %v401
        %v1047 = vpop.f32.mrf.mxu0
        %v1048 = vadd.f32 %v541, %v1047
        %1049 = vmatmul.f32.gmra.mxu0 %v404
        %v1050 = vpop.f32.mrf.mxu0
        %v1051 = vadd.f32 %v541, %v1050
        %1052 = vmatmul.f32.gmra.mxu0 %v407
        %v1053 = vpop.f32.mrf.mxu0
        %v1054 = vadd.f32 %v541, %v1053
        %1055 = vmatmul.f32.gmra.mxu0 %v410
        %v1056 = vpop.f32.mrf.mxu0
        %v1057 = vadd.f32 %v541, %v1056
        %1058 = vmatmul.f32.gmra.mxu0 %v413
        %v1059 = vpop.f32.mrf.mxu0
        %v1060 = vadd.f32 %v541, %v1059
        %1061 = vmatmul.f32.gmra.mxu0 %v416
        %v1062 = vpop.f32.mrf.mxu0
        %v1063 = vadd.f32 %v541, %v1062
        %1064 = vmatmul.f32.gmra.mxu0 %v419
        %v1065 = vpop.f32.mrf.mxu0
        %v1066 = vadd.f32 %v541, %v1065
        %1067 = vmatmul.f32.gmra.mxu0 %v422
        %v1068 = vpop.f32.mrf.mxu0
        %v1069 = vadd.f32 %v541, %v1068
        %1070 = vmatmul.f32.gmra.mxu0 %v425
        %v1071 = vpop.f32.mrf.mxu0
        %v1072 = vadd.f32 %v541, %v1071
        %1073 = vmatmul.f32.gmra.mxu0 %v428
        %v1074 = vpop.f32.mrf.mxu0
        %v1075 = vadd.f32 %v541, %v1074
        %1076 = vmatmul.f32.gmra.mxu0 %v431
        %v1077 = vpop.f32.mrf.mxu0
        %v1078 = vadd.f32 %v541, %v1077
        %1079 = vmatmul.f32.gmra.mxu0 %v434
        %v1080 = vpop.f32.mrf.mxu0
        %v1081 = vadd.f32 %v541, %v1080
        %1082 = vmatmul.f32.gmra.mxu0 %v437
        %v1083 = vpop.f32.mrf.mxu0
        %v1084 = vadd.f32 %v541, %v1083
        %1085 = vmatmul.f32.gmra.mxu0 %v440
        %v1086 = vpop.f32.mrf.mxu0
        %v1087 = vadd.f32 %v541, %v1086
        %1088 = vmatmul.f32.gmra.mxu0 %v443
        %v1089 = vpop.f32.mrf.mxu0
        %v1090 = vadd.f32 %v541, %v1089
        %1091 = vmatmul.f32.gmra.mxu0 %v446
        %v1092 = vpop.f32.mrf.mxu0
        %v1093 = vadd.f32 %v541, %v1092
        %1094 = vmatmul.f32.gmra.mxu0 %v449
        %v1095 = vpop.f32.mrf.mxu0
        %v1096 = vadd.f32 %v541, %v1095
        %1097 = vmatmul.f32.gmra.mxu0 %v452
        %v1098 = vpop.f32.mrf.mxu0
        %v1099 = vadd.f32 %v541, %v1098
        %1100 = vmatmul.f32.gmra.mxu0 %v455
        %v1101 = vpop.f32.mrf.mxu0
        %v1102 = vadd.f32 %v541, %v1101
        %1103 = vmatmul.f32.gmra.mxu0 %v458
        %v1104 = vpop.f32.mrf.mxu0
        %v1105 = vadd.f32 %v541, %v1104
        %1106 = vmatmul.f32.gmra.mxu0 %v461
        %v1107 = vpop.f32.mrf.mxu0
        %v1108 = vadd.f32 %v541, %v1107
        %1109 = vmatmul.f32.gmra.mxu0 %v464
        %v1110 = vpop.f32.mrf.mxu0
        %v1111 = vadd.f32 %v541, %v1110
        %1112 = vmatmul.f32.gmra.mxu0 %v467
        %v1113 = vpop.f32.mrf.mxu0
        %v1114 = vadd.f32 %v541, %v1113
        %1115 = vmatmul.f32.gmra.mxu0 %v470
        %v1116 = vpop.f32.mrf.mxu0
        %v1117 = vadd.f32 %v541, %v1116
        %1118 = vmatmul.f32.gmra.mxu0 %v473
        %v1119 = vpop.f32.mrf.mxu0
        %v1120 = vadd.f32 %v541, %v1119
        %1121 = vmatmul.f32.gmra.mxu0 %v476
        %v1122 = vpop.f32.mrf.mxu0
        %v1123 = vadd.f32 %v541, %v1122
        %1124 = vmatmul.f32.gmra.mxu0 %v479
        %v1125 = vpop.f32.mrf.mxu0
        %v1126 = vadd.f32 %v541, %v1125
        %1127 = vmatmul.f32.gmra.mxu0 %v482
        %v1128 = vpop.f32.mrf.mxu0
        %v1129 = vadd.f32 %v541, %v1128
        %1130 = vmatmul.f32.gmra.mxu0 %v485
        %v1131 = vpop.f32.mrf.mxu0
        %v1132 = vadd.f32 %v541, %v1131
        %1133 = vmatmul.f32.gmra.mxu0 %v488
        %v1134 = vpop.f32.mrf.mxu0
        %v1135 = vadd.f32 %v541, %v1134
        %1136 = vmatmul.f32.gmra.mxu0 %v491
        %v1137 = vpop.f32.mrf.mxu0
        %v1138 = vadd.f32 %v541, %v1137
        %1139 = vmatmul.f32.gmra.mxu0 %v494
        %v1140 = vpop.f32.mrf.mxu0
        %v1141 = vadd.f32 %v541, %v1140
        %1142 = vmatmul.f32.gmra.mxu0 %v497
        %v1143 = vpop.f32.mrf.mxu0
        %v1144 = vadd.f32 %v541, %v1143
        %1145 = vmatmul.f32.gmra.mxu0 %v500
        %v1146 = vpop.f32.mrf.mxu0
        %v1147 = vadd.f32 %v541, %v1146
        %1148 = vdwg.mxu0
        %1149 = vmatpush.msra.mxu0 %v534
        %1150 = vmatpush.msra.mxu0 %v533
        %1151 = vmatpush.msra.mxu0 %v532
        %1152 = vmatpush.msra.mxu0 %v531
        %1153 = vmatpush.msra.mxu0 %v530
        %1154 = vmatpush.msra.mxu0 %v529
        %1155 = vmatpush.msra.mxu0 %v528
        %1156 = vmatpush.msra.mxu0 %v527
        %1157 = vmatpush.msra.mxu0 %v526
        %1158 = vmatpush.msra.mxu0 %v525
        %1159 = vmatpush.msra.mxu0 %v524
        %1160 = vmatpush.msra.mxu0 %v523
        %1161 = vmatpush.msra.mxu0 %v522
        %1162 = vmatpush.msra.mxu0 %v521
        %1163 = vmatpush.msra.mxu0 %v520
        %1164 = vmatpush.msra.mxu0 %v519
        %1165 = vmatmul.f32.gmra.mxu0 %v210
        %v1166 = vpop.f32.mrf.mxu0
        %v1167 = vadd.f32 %v856, %v1166
        %1168 = vmatmul.f32.gmra.mxu0 %v213
        %v1169 = vpop.f32.mrf.mxu0
        %v1170 = vadd.f32 %v859, %v1169
        %1171 = vmatmul.f32.gmra.mxu0 %v216
        %v1172 = vpop.f32.mrf.mxu0
        %v1173 = vadd.f32 %v862, %v1172
        %1174 = vmatmul.f32.gmra.mxu0 %v219
        %v1175 = vpop.f32.mrf.mxu0
        %v1176 = vadd.f32 %v865, %v1175
        %1177 = vmatmul.f32.gmra.mxu0 %v222
        %v1178 = vpop.f32.mrf.mxu0
        %v1179 = vadd.f32 %v868, %v1178
        %1180 = vmatmul.f32.gmra.mxu0 %v225
        %v1181 = vpop.f32.mrf.mxu0
        %v1182 = vadd.f32 %v871, %v1181
        %1183 = vmatmul.f32.gmra.mxu0 %v228
        %v1184 = vpop.f32.mrf.mxu0
        %v1185 = vadd.f32 %v874, %v1184
        %1186 = vmatmul.f32.gmra.mxu0 %v231
        %v1187 = vpop.f32.mrf.mxu0
        %v1188 = vadd.f32 %v877, %v1187
        %1189 = vmatmul.f32.gmra.mxu0 %v234
        %v1190 = vpop.f32.mrf.mxu0
        %v1191 = vadd.f32 %v880, %v1190
        %1192 = vmatmul.f32.gmra.mxu0 %v237
        %v1193 = vpop.f32.mrf.mxu0
        %v1194 = vadd.f32 %v883, %v1193
        %1195 = vmatmul.f32.gmra.mxu0 %v240
        %v1196 = vpop.f32.mrf.mxu0
        %v1197 = vadd.f32 %v886, %v1196
        %1198 = vmatmul.f32.gmra.mxu0 %v243
        %v1199 = vpop.f32.mrf.mxu0
        %v1200 = vadd.f32 %v889, %v1199
        %1201 = vmatmul.f32.gmra.mxu0 %v246
        %v1202 = vpop.f32.mrf.mxu0
        %v1203 = vadd.f32 %v892, %v1202
        %1204 = vmatmul.f32.gmra.mxu0 %v249
        %v1205 = vpop.f32.mrf.mxu0
        %v1206 = vadd.f32 %v895, %v1205
        %1207 = vmatmul.f32.gmra.mxu0 %v252
        %v1208 = vpop.f32.mrf.mxu0
        %v1209 = vadd.f32 %v898, %v1208
        %1210 = vmatmul.f32.gmra.mxu0 %v255
        %v1211 = vpop.f32.mrf.mxu0
        %v1212 = vadd.f32 %v901, %v1211
        %1213 = vmatmul.f32.gmra.mxu0 %v258
        %v1214 = vpop.f32.mrf.mxu0
        %v1215 = vadd.f32 %v904, %v1214
        %1216 = vmatmul.f32.gmra.mxu0 %v261
        %v1217 = vpop.f32.mrf.mxu0
        %v1218 = vadd.f32 %v907, %v1217
        %1219 = vmatmul.f32.gmra.mxu0 %v264
        %v1220 = vpop.f32.mrf.mxu0
        %v1221 = vadd.f32 %v910, %v1220
        %1222 = vmatmul.f32.gmra.mxu0 %v267
        %v1223 = vpop.f32.mrf.mxu0
        %v1224 = vadd.f32 %v913, %v1223
        %1225 = vmatmul.f32.gmra.mxu0 %v270
        %v1226 = vpop.f32.mrf.mxu0
        %v1227 = vadd.f32 %v916, %v1226
        %1228 = vmatmul.f32.gmra.mxu0 %v273
        %v1229 = vpop.f32.mrf.mxu0
        %v1230 = vadd.f32 %v919, %v1229
        %1231 = vmatmul.f32.gmra.mxu0 %v276
        %v1232 = vpop.f32.mrf.mxu0
        %v1233 = vadd.f32 %v922, %v1232
        %1234 = vmatmul.f32.gmra.mxu0 %v279
        %v1235 = vpop.f32.mrf.mxu0
        %v1236 = vadd.f32 %v925, %v1235
        %1237 = vmatmul.f32.gmra.mxu0 %v282
        %v1238 = vpop.f32.mrf.mxu0
        %v1239 = vadd.f32 %v928, %v1238
        %1240 = vmatmul.f32.gmra.mxu0 %v285
        %v1241 = vpop.f32.mrf.mxu0
        %v1242 = vadd.f32 %v931, %v1241
        %1243 = vmatmul.f32.gmra.mxu0 %v288
        %v1244 = vpop.f32.mrf.mxu0
        %v1245 = vadd.f32 %v934, %v1244
        %1246 = vmatmul.f32.gmra.mxu0 %v291
        %v1247 = vpop.f32.mrf.mxu0
        %v1248 = vadd.f32 %v937, %v1247
        %1249 = vmatmul.f32.gmra.mxu0 %v294
        %v1250 = vpop.f32.mrf.mxu0
        %v1251 = vadd.f32 %v940, %v1250
        %1252 = vmatmul.f32.gmra.mxu0 %v297
        %v1253 = vpop.f32.mrf.mxu0
        %v1254 = vadd.f32 %v943, %v1253
        %1255 = vmatmul.f32.gmra.mxu0 %v300
        %v1256 = vpop.f32.mrf.mxu0
        %v1257 = vadd.f32 %v946, %v1256
        %1258 = vmatmul.f32.gmra.mxu0 %v303
        %v1259 = vpop.f32.mrf.mxu0
        %v1260 = vadd.f32 %v949, %v1259
        %1261 = vmatmul.f32.gmra.mxu0 %v306
        %v1262 = vpop.f32.mrf.mxu0
        %v1263 = vadd.f32 %v952, %v1262
        %1264 = vmatmul.f32.gmra.mxu0 %v309
        %v1265 = vpop.f32.mrf.mxu0
        %v1266 = vadd.f32 %v955, %v1265
        %1267 = vmatmul.f32.gmra.mxu0 %v312
        %v1268 = vpop.f32.mrf.mxu0
        %v1269 = vadd.f32 %v958, %v1268
        %1270 = vmatmul.f32.gmra.mxu0 %v315
        %v1271 = vpop.f32.mrf.mxu0
        %v1272 = vadd.f32 %v961, %v1271
        %1273 = vmatmul.f32.gmra.mxu0 %v318
        %v1274 = vpop.f32.mrf.mxu0
        %v1275 = vadd.f32 %v964, %v1274
        %1276 = vmatmul.f32.gmra.mxu0 %v321
        %v1277 = vpop.f32.mrf.mxu0
        %v1278 = vadd.f32 %v967, %v1277
        %1279 = vmatmul.f32.gmra.mxu0 %v324
        %v1280 = vpop.f32.mrf.mxu0
        %v1281 = vadd.f32 %v970, %v1280
        %1282 = vmatmul.f32.gmra.mxu0 %v327
        %v1283 = vpop.f32.mrf.mxu0
        %v1284 = vadd.f32 %v973, %v1283
        %1285 = vmatmul.f32.gmra.mxu0 %v330
        %v1286 = vpop.f32.mrf.mxu0
        %v1287 = vadd.f32 %v976, %v1286
        %1288 = vmatmul.f32.gmra.mxu0 %v333
        %v1289 = vpop.f32.mrf.mxu0
        %v1290 = vadd.f32 %v979, %v1289
        %1291 = vmatmul.f32.gmra.mxu0 %v336
        %v1292 = vpop.f32.mrf.mxu0
        %v1293 = vadd.f32 %v982, %v1292
        %1294 = vmatmul.f32.gmra.mxu0 %v339
        %v1295 = vpop.f32.mrf.mxu0
        %v1296 = vadd.f32 %v985, %v1295
        %1297 = vmatmul.f32.gmra.mxu0 %v342
        %v1298 = vpop.f32.mrf.mxu0
        %v1299 = vadd.f32 %v988, %v1298
        %1300 = vmatmul.f32.gmra.mxu0 %v345
        %v1301 = vpop.f32.mrf.mxu0
        %v1302 = vadd.f32 %v991, %v1301
        %1303 = vmatmul.f32.gmra.mxu0 %v348
        %v1304 = vpop.f32.mrf.mxu0
        %v1305 = vadd.f32 %v994, %v1304
        %1306 = vmatmul.f32.gmra.mxu0 %v351
        %v1307 = vpop.f32.mrf.mxu0
        %v1308 = vadd.f32 %v997, %v1307
        %1309 = vmatmul.f32.gmra.mxu0 %v354
        %v1310 = vpop.f32.mrf.mxu0
        %v1311 = vadd.f32 %v1000, %v1310
        %1312 = vmatmul.f32.gmra.mxu0 %v357
        %v1313 = vpop.f32.mrf.mxu0
        %v1314 = vadd.f32 %v1003, %v1313
        %1315 = vmatmul.f32.gmra.mxu0 %v360
        %v1316 = vpop.f32.mrf.mxu0
        %v1317 = vadd.f32 %v1006, %v1316
        %1318 = vmatmul.f32.gmra.mxu0 %v363
        %v1319 = vpop.f32.mrf.mxu0
        %v1320 = vadd.f32 %v1009, %v1319
        %1321 = vmatmul.f32.gmra.mxu0 %v366
        %v1322 = vpop.f32.mrf.mxu0
        %v1323 = vadd.f32 %v1012, %v1322
        %1324 = vmatmul.f32.gmra.mxu0 %v369
        %v1325 = vpop.f32.mrf.mxu0
        %v1326 = vadd.f32 %v1015, %v1325
        %1327 = vmatmul.f32.gmra.mxu0 %v372
        %v1328 = vpop.f32.mrf.mxu0
        %v1329 = vadd.f32 %v1018, %v1328
        %1330 = vmatmul.f32.gmra.mxu0 %v375
        %v1331 = vpop.f32.mrf.mxu0
        %v1332 = vadd.f32 %v1021, %v1331
        %1333 = vmatmul.f32.gmra.mxu0 %v378
        %v1334 = vpop.f32.mrf.mxu0
        %v1335 = vadd.f32 %v1024, %v1334
        %1336 = vmatmul.f32.gmra.mxu0 %v381
        %v1337 = vpop.f32.mrf.mxu0
        %v1338 = vadd.f32 %v1027, %v1337
        %1339 = vmatmul.f32.gmra.mxu0 %v384
        %v1340 = vpop.f32.mrf.mxu0
        %v1341 = vadd.f32 %v1030, %v1340
        %1342 = vmatmul.f32.gmra.mxu0 %v387
        %v1343 = vpop.f32.mrf.mxu0
        %v1344 = vadd.f32 %v1033, %v1343
        %1345 = vmatmul.f32.gmra.mxu0 %v390
        %v1346 = vpop.f32.mrf.mxu0
        %v1347 = vadd.f32 %v1036, %v1346
        %1348 = vmatmul.f32.gmra.mxu0 %v393
        %v1349 = vpop.f32.mrf.mxu0
        %v1350 = vadd.f32 %v1039, %v1349
        %1351 = vmatmul.f32.gmra.mxu0 %v396
        %v1352 = vpop.f32.mrf.mxu0
        %v1353 = vadd.f32 %v1042, %v1352
        %1354 = vmatmul.f32.gmra.mxu0 %v399
        %v1355 = vpop.f32.mrf.mxu0
        %v1356 = vadd.f32 %v1045, %v1355
        %1357 = vmatmul.f32.gmra.mxu0 %v402
        %v1358 = vpop.f32.mrf.mxu0
        %v1359 = vadd.f32 %v1048, %v1358
        %1360 = vmatmul.f32.gmra.mxu0 %v405
        %v1361 = vpop.f32.mrf.mxu0
        %v1362 = vadd.f32 %v1051, %v1361
        %1363 = vmatmul.f32.gmra.mxu0 %v408
        %v1364 = vpop.f32.mrf.mxu0
        %v1365 = vadd.f32 %v1054, %v1364
        %1366 = vmatmul.f32.gmra.mxu0 %v411
        %v1367 = vpop.f32.mrf.mxu0
        %v1368 = vadd.f32 %v1057, %v1367
        %1369 = vmatmul.f32.gmra.mxu0 %v414
        %v1370 = vpop.f32.mrf.mxu0
        %v1371 = vadd.f32 %v1060, %v1370
        %1372 = vmatmul.f32.gmra.mxu0 %v417
        %v1373 = vpop.f32.mrf.mxu0
        %v1374 = vadd.f32 %v1063, %v1373
        %1375 = vmatmul.f32.gmra.mxu0 %v420
        %v1376 = vpop.f32.mrf.mxu0
        %v1377 = vadd.f32 %v1066, %v1376
        %1378 = vmatmul.f32.gmra.mxu0 %v423
        %v1379 = vpop.f32.mrf.mxu0
        %v1380 = vadd.f32 %v1069, %v1379
        %1381 = vmatmul.f32.gmra.mxu0 %v426
        %v1382 = vpop.f32.mrf.mxu0
        %v1383 = vadd.f32 %v1072, %v1382
        %1384 = vmatmul.f32.gmra.mxu0 %v429
        %v1385 = vpop.f32.mrf.mxu0
        %v1386 = vadd.f32 %v1075, %v1385
        %1387 = vmatmul.f32.gmra.mxu0 %v432
        %v1388 = vpop.f32.mrf.mxu0
        %v1389 = vadd.f32 %v1078, %v1388
        %1390 = vmatmul.f32.gmra.mxu0 %v435
        %v1391 = vpop.f32.mrf.mxu0
        %v1392 = vadd.f32 %v1081, %v1391
        %1393 = vmatmul.f32.gmra.mxu0 %v438
        %v1394 = vpop.f32.mrf.mxu0
        %v1395 = vadd.f32 %v1084, %v1394
        %1396 = vmatmul.f32.gmra.mxu0 %v441
        %v1397 = vpop.f32.mrf.mxu0
        %v1398 = vadd.f32 %v1087, %v1397
        %1399 = vmatmul.f32.gmra.mxu0 %v444
        %v1400 = vpop.f32.mrf.mxu0
        %v1401 = vadd.f32 %v1090, %v1400
        %1402 = vmatmul.f32.gmra.mxu0 %v447
        %v1403 = vpop.f32.mrf.mxu0
        %v1404 = vadd.f32 %v1093, %v1403
        %1405 = vmatmul.f32.gmra.mxu0 %v450
        %v1406 = vpop.f32.mrf.mxu0
        %v1407 = vadd.f32 %v1096, %v1406
        %1408 = vmatmul.f32.gmra.mxu0 %v453
        %v1409 = vpop.f32.mrf.mxu0
        %v1410 = vadd.f32 %v1099, %v1409
        %1411 = vmatmul.f32.gmra.mxu0 %v456
        %v1412 = vpop.f32.mrf.mxu0
        %v1413 = vadd.f32 %v1102, %v1412
        %1414 = vmatmul.f32.gmra.mxu0 %v459
        %v1415 = vpop.f32.mrf.mxu0
        %v1416 = vadd.f32 %v1105, %v1415
        %1417 = vmatmul.f32.gmra.mxu0 %v462
        %v1418 = vpop.f32.mrf.mxu0
        %v1419 = vadd.f32 %v1108, %v1418
        %1420 = vmatmul.f32.gmra.mxu0 %v465
        %v1421 = vpop.f32.mrf.mxu0
        %v1422 = vadd.f32 %v1111, %v1421
        %1423 = vmatmul.f32.gmra.mxu0 %v468
        %v1424 = vpop.f32.mrf.mxu0
        %v1425 = vadd.f32 %v1114, %v1424
        %1426 = vmatmul.f32.gmra.mxu0 %v471
        %v1427 = vpop.f32.mrf.mxu0
        %v1428 = vadd.f32 %v1117, %v1427
        %1429 = vmatmul.f32.gmra.mxu0 %v474
        %v1430 = vpop.f32.mrf.mxu0
        %v1431 = vadd.f32 %v1120, %v1430
        %1432 = vmatmul.f32.gmra.mxu0 %v477
        %v1433 = vpop.f32.mrf.mxu0
        %v1434 = vadd.f32 %v1123, %v1433
        %1435 = vmatmul.f32.gmra.mxu0 %v480
        %v1436 = vpop.f32.mrf.mxu0
        %v1437 = vadd.f32 %v1126, %v1436
        %1438 = vmatmul.f32.gmra.mxu0 %v483
        %v1439 = vpop.f32.mrf.mxu0
        %v1440 = vadd.f32 %v1129, %v1439
        %1441 = vmatmul.f32.gmra.mxu0 %v486
        %v1442 = vpop.f32.mrf.mxu0
        %v1443 = vadd.f32 %v1132, %v1442
        %1444 = vmatmul.f32.gmra.mxu0 %v489
        %v1445 = vpop.f32.mrf.mxu0
        %v1446 = vadd.f32 %v1135, %v1445
        %1447 = vmatmul.f32.gmra.mxu0 %v492
        %v1448 = vpop.f32.mrf.mxu0
        %v1449 = vadd.f32 %v1138, %v1448
        %1450 = vmatmul.f32.gmra.mxu0 %v495
        %v1451 = vpop.f32.mrf.mxu0
        %v1452 = vadd.f32 %v1141, %v1451
        %1453 = vmatmul.f32.gmra.mxu0 %v498
        %v1454 = vpop.f32.mrf.mxu0
        %v1455 = vadd.f32 %v1144, %v1454
        %1456 = vmatmul.f32.gmra.mxu0 %v501
        %v1457 = vpop.f32.mrf.mxu0
        %v1458 = vadd.f32 %v1147, %v1457
        %1459 = vdwg.mxu0
        %1460 = vmatpush.msra.mxu0 0.0
        %1461 = vmatpush.msra.mxu0 0.0
        %1462 = vmatpush.msra.mxu0 0.0
        %1463 = vmatpush.msra.mxu0 0.0
        %1464 = vmatpush.msra.mxu0 0.0
        %1465 = vmatpush.msra.mxu0 0.0
        %1466 = vmatpush.msra.mxu0 0.0
        %1467 = vmatpush.msra.mxu0 0.0
        %1468 = vmatpush.msra.mxu0 0.0
        %1469 = vmatpush.msra.mxu0 0.0
        %1470 = vmatpush.msra.mxu0 0.0
        %1471 = vmatpush.msra.mxu0 0.0
        %1472 = vmatpush.msra.mxu0 %v538
        %1473 = vmatpush.msra.mxu0 %v537
        %1474 = vmatpush.msra.mxu0 %v536
        %1475 = vmatpush.msra.mxu0 %v535
        %1476 = vmatmul.f32.gmra.mxu0 %v545
        %v1477 = vpop.f32.mrf.mxu0
        %v1478 = vadd.f32 %v1167, %v1477
        %1479 = vmatmul.f32.gmra.mxu0 %v548
        %v1480 = vpop.f32.mrf.mxu0
        %v1481 = vadd.f32 %v1170, %v1480
        %1482 = vmatmul.f32.gmra.mxu0 %v551
        %v1483 = vpop.f32.mrf.mxu0
        %v1484 = vadd.f32 %v1173, %v1483
        %1485 = vmatmul.f32.gmra.mxu0 %v554
        %v1486 = vpop.f32.mrf.mxu0
        %v1487 = vadd.f32 %v1176, %v1486
        %1488 = vmatmul.f32.gmra.mxu0 %v557
        %v1489 = vpop.f32.mrf.mxu0
        %v1490 = vadd.f32 %v1179, %v1489
        %1491 = vmatmul.f32.gmra.mxu0 %v560
        %v1492 = vpop.f32.mrf.mxu0
        %v1493 = vadd.f32 %v1182, %v1492
        %1494 = vmatmul.f32.gmra.mxu0 %v563
        %v1495 = vpop.f32.mrf.mxu0
        %v1496 = vadd.f32 %v1185, %v1495
        %1497 = vmatmul.f32.gmra.mxu0 %v566
        %v1498 = vpop.f32.mrf.mxu0
        %v1499 = vadd.f32 %v1188, %v1498
        %1500 = vmatmul.f32.gmra.mxu0 %v569
        %v1501 = vpop.f32.mrf.mxu0
        %v1502 = vadd.f32 %v1191, %v1501
        %1503 = vmatmul.f32.gmra.mxu0 %v572
        %v1504 = vpop.f32.mrf.mxu0
        %v1505 = vadd.f32 %v1194, %v1504
        %1506 = vmatmul.f32.gmra.mxu0 %v575
        %v1507 = vpop.f32.mrf.mxu0
        %v1508 = vadd.f32 %v1197, %v1507
        %1509 = vmatmul.f32.gmra.mxu0 %v578
        %v1510 = vpop.f32.mrf.mxu0
        %v1511 = vadd.f32 %v1200, %v1510
        %1512 = vmatmul.f32.gmra.mxu0 %v581
        %v1513 = vpop.f32.mrf.mxu0
        %v1514 = vadd.f32 %v1203, %v1513
        %1515 = vmatmul.f32.gmra.mxu0 %v584
        %v1516 = vpop.f32.mrf.mxu0
        %v1517 = vadd.f32 %v1206, %v1516
        %1518 = vmatmul.f32.gmra.mxu0 %v587
        %v1519 = vpop.f32.mrf.mxu0
        %v1520 = vadd.f32 %v1209, %v1519
        %1521 = vmatmul.f32.gmra.mxu0 %v590
        %v1522 = vpop.f32.mrf.mxu0
        %v1523 = vadd.f32 %v1212, %v1522
        %1524 = vmatmul.f32.gmra.mxu0 %v593
        %v1525 = vpop.f32.mrf.mxu0
        %v1526 = vadd.f32 %v1215, %v1525
        %1527 = vmatmul.f32.gmra.mxu0 %v596
        %v1528 = vpop.f32.mrf.mxu0
        %v1529 = vadd.f32 %v1218, %v1528
        %1530 = vmatmul.f32.gmra.mxu0 %v599
        %v1531 = vpop.f32.mrf.mxu0
        %v1532 = vadd.f32 %v1221, %v1531
        %1533 = vmatmul.f32.gmra.mxu0 %v602
        %v1534 = vpop.f32.mrf.mxu0
        %v1535 = vadd.f32 %v1224, %v1534
        %1536 = vmatmul.f32.gmra.mxu0 %v605
        %v1537 = vpop.f32.mrf.mxu0
        %v1538 = vadd.f32 %v1227, %v1537
        %1539 = vmatmul.f32.gmra.mxu0 %v608
        %v1540 = vpop.f32.mrf.mxu0
        %v1541 = vadd.f32 %v1230, %v1540
        %1542 = vmatmul.f32.gmra.mxu0 %v611
        %v1543 = vpop.f32.mrf.mxu0
        %v1544 = vadd.f32 %v1233, %v1543
        %1545 = vmatmul.f32.gmra.mxu0 %v614
        %v1546 = vpop.f32.mrf.mxu0
        %v1547 = vadd.f32 %v1236, %v1546
        %1548 = vmatmul.f32.gmra.mxu0 %v617
        %v1549 = vpop.f32.mrf.mxu0
        %v1550 = vadd.f32 %v1239, %v1549
        %1551 = vmatmul.f32.gmra.mxu0 %v620
        %v1552 = vpop.f32.mrf.mxu0
        %v1553 = vadd.f32 %v1242, %v1552
        %1554 = vmatmul.f32.gmra.mxu0 %v623
        %v1555 = vpop.f32.mrf.mxu0
        %v1556 = vadd.f32 %v1245, %v1555
        %1557 = vmatmul.f32.gmra.mxu0 %v626
        %v1558 = vpop.f32.mrf.mxu0
        %v1559 = vadd.f32 %v1248, %v1558
        %1560 = vmatmul.f32.gmra.mxu0 %v629
        %v1561 = vpop.f32.mrf.mxu0
        %v1562 = vadd.f32 %v1251, %v1561
        %1563 = vmatmul.f32.gmra.mxu0 %v632
        %v1564 = vpop.f32.mrf.mxu0
        %v1565 = vadd.f32 %v1254, %v1564
        %1566 = vmatmul.f32.gmra.mxu0 %v635
        %v1567 = vpop.f32.mrf.mxu0
        %v1568 = vadd.f32 %v1257, %v1567
        %1569 = vmatmul.f32.gmra.mxu0 %v638
        %v1570 = vpop.f32.mrf.mxu0
        %v1571 = vadd.f32 %v1260, %v1570
        %1572 = vmatmul.f32.gmra.mxu0 %v641
        %v1573 = vpop.f32.mrf.mxu0
        %v1574 = vadd.f32 %v1263, %v1573
        %1575 = vmatmul.f32.gmra.mxu0 %v644
        %v1576 = vpop.f32.mrf.mxu0
        %v1577 = vadd.f32 %v1266, %v1576
        %1578 = vmatmul.f32.gmra.mxu0 %v647
        %v1579 = vpop.f32.mrf.mxu0
        %v1580 = vadd.f32 %v1269, %v1579
        %1581 = vmatmul.f32.gmra.mxu0 %v650
        %v1582 = vpop.f32.mrf.mxu0
        %v1583 = vadd.f32 %v1272, %v1582
        %1584 = vmatmul.f32.gmra.mxu0 %v653
        %v1585 = vpop.f32.mrf.mxu0
        %v1586 = vadd.f32 %v1275, %v1585
        %1587 = vmatmul.f32.gmra.mxu0 %v656
        %v1588 = vpop.f32.mrf.mxu0
        %v1589 = vadd.f32 %v1278, %v1588
        %1590 = vmatmul.f32.gmra.mxu0 %v659
        %v1591 = vpop.f32.mrf.mxu0
        %v1592 = vadd.f32 %v1281, %v1591
        %1593 = vmatmul.f32.gmra.mxu0 %v662
        %v1594 = vpop.f32.mrf.mxu0
        %v1595 = vadd.f32 %v1284, %v1594
        %1596 = vmatmul.f32.gmra.mxu0 %v665
        %v1597 = vpop.f32.mrf.mxu0
        %v1598 = vadd.f32 %v1287, %v1597
        %1599 = vmatmul.f32.gmra.mxu0 %v668
        %v1600 = vpop.f32.mrf.mxu0
        %v1601 = vadd.f32 %v1290, %v1600
        %1602 = vmatmul.f32.gmra.mxu0 %v671
        %v1603 = vpop.f32.mrf.mxu0
        %v1604 = vadd.f32 %v1293, %v1603
        %1605 = vmatmul.f32.gmra.mxu0 %v674
        %v1606 = vpop.f32.mrf.mxu0
        %v1607 = vadd.f32 %v1296, %v1606
        %1608 = vmatmul.f32.gmra.mxu0 %v677
        %v1609 = vpop.f32.mrf.mxu0
        %v1610 = vadd.f32 %v1299, %v1609
        %1611 = vmatmul.f32.gmra.mxu0 %v680
        %v1612 = vpop.f32.mrf.mxu0
        %v1613 = vadd.f32 %v1302, %v1612
        %1614 = vmatmul.f32.gmra.mxu0 %v683
        %v1615 = vpop.f32.mrf.mxu0
        %v1616 = vadd.f32 %v1305, %v1615
        %1617 = vmatmul.f32.gmra.mxu0 %v686
        %v1618 = vpop.f32.mrf.mxu0
        %v1619 = vadd.f32 %v1308, %v1618
        %1620 = vmatmul.f32.gmra.mxu0 %v689
        %v1621 = vpop.f32.mrf.mxu0
        %v1622 = vadd.f32 %v1311, %v1621
        %1623 = vmatmul.f32.gmra.mxu0 %v692
        %v1624 = vpop.f32.mrf.mxu0
        %v1625 = vadd.f32 %v1314, %v1624
        %1626 = vmatmul.f32.gmra.mxu0 %v695
        %v1627 = vpop.f32.mrf.mxu0
        %v1628 = vadd.f32 %v1317, %v1627
        %1629 = vmatmul.f32.gmra.mxu0 %v698
        %v1630 = vpop.f32.mrf.mxu0
        %v1631 = vadd.f32 %v1320, %v1630
        %1632 = vmatmul.f32.gmra.mxu0 %v701
        %v1633 = vpop.f32.mrf.mxu0
        %v1634 = vadd.f32 %v1323, %v1633
        %1635 = vmatmul.f32.gmra.mxu0 %v704
        %v1636 = vpop.f32.mrf.mxu0
        %v1637 = vadd.f32 %v1326, %v1636
        %1638 = vmatmul.f32.gmra.mxu0 %v707
        %v1639 = vpop.f32.mrf.mxu0
        %v1640 = vadd.f32 %v1329, %v1639
        %1641 = vmatmul.f32.gmra.mxu0 %v710
        %v1642 = vpop.f32.mrf.mxu0
        %v1643 = vadd.f32 %v1332, %v1642
        %1644 = vmatmul.f32.gmra.mxu0 %v713
        %v1645 = vpop.f32.mrf.mxu0
        %v1646 = vadd.f32 %v1335, %v1645
        %1647 = vmatmul.f32.gmra.mxu0 %v716
        %v1648 = vpop.f32.mrf.mxu0
        %v1649 = vadd.f32 %v1338, %v1648
        %1650 = vmatmul.f32.gmra.mxu0 %v719
        %v1651 = vpop.f32.mrf.mxu0
        %v1652 = vadd.f32 %v1341, %v1651
        %1653 = vmatmul.f32.gmra.mxu0 %v722
        %v1654 = vpop.f32.mrf.mxu0
        %v1655 = vadd.f32 %v1344, %v1654
        %1656 = vmatmul.f32.gmra.mxu0 %v725
        %v1657 = vpop.f32.mrf.mxu0
        %v1658 = vadd.f32 %v1347, %v1657
        %1659 = vmatmul.f32.gmra.mxu0 %v728
        %v1660 = vpop.f32.mrf.mxu0
        %v1661 = vadd.f32 %v1350, %v1660
        %1662 = vmatmul.f32.gmra.mxu0 %v731
        %v1663 = vpop.f32.mrf.mxu0
        %v1664 = vadd.f32 %v1353, %v1663
        %1665 = vmatmul.f32.gmra.mxu0 %v734
        %v1666 = vpop.f32.mrf.mxu0
        %v1667 = vadd.f32 %v1356, %v1666
        %1668 = vmatmul.f32.gmra.mxu0 %v737
        %v1669 = vpop.f32.mrf.mxu0
        %v1670 = vadd.f32 %v1359, %v1669
        %1671 = vmatmul.f32.gmra.mxu0 %v740
        %v1672 = vpop.f32.mrf.mxu0
        %v1673 = vadd.f32 %v1362, %v1672
        %1674 = vmatmul.f32.gmra.mxu0 %v743
        %v1675 = vpop.f32.mrf.mxu0
        %v1676 = vadd.f32 %v1365, %v1675
        %1677 = vmatmul.f32.gmra.mxu0 %v746
        %v1678 = vpop.f32.mrf.mxu0
        %v1679 = vadd.f32 %v1368, %v1678
        %1680 = vmatmul.f32.gmra.mxu0 %v749
        %v1681 = vpop.f32.mrf.mxu0
        %v1682 = vadd.f32 %v1371, %v1681
        %1683 = vmatmul.f32.gmra.mxu0 %v752
        %v1684 = vpop.f32.mrf.mxu0
        %v1685 = vadd.f32 %v1374, %v1684
        %1686 = vmatmul.f32.gmra.mxu0 %v755
        %v1687 = vpop.f32.mrf.mxu0
        %v1688 = vadd.f32 %v1377, %v1687
        %1689 = vmatmul.f32.gmra.mxu0 %v758
        %v1690 = vpop.f32.mrf.mxu0
        %v1691 = vadd.f32 %v1380, %v1690
        %1692 = vmatmul.f32.gmra.mxu0 %v761
        %v1693 = vpop.f32.mrf.mxu0
        %v1694 = vadd.f32 %v1383, %v1693
        %1695 = vmatmul.f32.gmra.mxu0 %v764
        %v1696 = vpop.f32.mrf.mxu0
        %v1697 = vadd.f32 %v1386, %v1696
        %1698 = vmatmul.f32.gmra.mxu0 %v767
        %v1699 = vpop.f32.mrf.mxu0
        %v1700 = vadd.f32 %v1389, %v1699
        %1701 = vmatmul.f32.gmra.mxu0 %v770
        %v1702 = vpop.f32.mrf.mxu0
        %v1703 = vadd.f32 %v1392, %v1702
        %1704 = vmatmul.f32.gmra.mxu0 %v773
        %v1705 = vpop.f32.mrf.mxu0
        %v1706 = vadd.f32 %v1395, %v1705
        %1707 = vmatmul.f32.gmra.mxu0 %v776
        %v1708 = vpop.f32.mrf.mxu0
        %v1709 = vadd.f32 %v1398, %v1708
        %1710 = vmatmul.f32.gmra.mxu0 %v779
        %v1711 = vpop.f32.mrf.mxu0
        %v1712 = vadd.f32 %v1401, %v1711
        %1713 = vmatmul.f32.gmra.mxu0 %v782
        %v1714 = vpop.f32.mrf.mxu0
        %v1715 = vadd.f32 %v1404, %v1714
        %1716 = vmatmul.f32.gmra.mxu0 %v785
        %v1717 = vpop.f32.mrf.mxu0
        %v1718 = vadd.f32 %v1407, %v1717
        %1719 = vmatmul.f32.gmra.mxu0 %v788
        %v1720 = vpop.f32.mrf.mxu0
        %v1721 = vadd.f32 %v1410, %v1720
        %1722 = vmatmul.f32.gmra.mxu0 %v791
        %v1723 = vpop.f32.mrf.mxu0
        %v1724 = vadd.f32 %v1413, %v1723
        %1725 = vmatmul.f32.gmra.mxu0 %v794
        %v1726 = vpop.f32.mrf.mxu0
        %v1727 = vadd.f32 %v1416, %v1726
        %1728 = vmatmul.f32.gmra.mxu0 %v797
        %v1729 = vpop.f32.mrf.mxu0
        %v1730 = vadd.f32 %v1419, %v1729
        %1731 = vmatmul.f32.gmra.mxu0 %v800
        %v1732 = vpop.f32.mrf.mxu0
        %v1733 = vadd.f32 %v1422, %v1732
        %1734 = vmatmul.f32.gmra.mxu0 %v803
        %v1735 = vpop.f32.mrf.mxu0
        %v1736 = vadd.f32 %v1425, %v1735
        %1737 = vmatmul.f32.gmra.mxu0 %v806
        %v1738 = vpop.f32.mrf.mxu0
        %v1739 = vadd.f32 %v1428, %v1738
        %1740 = vmatmul.f32.gmra.mxu0 %v809
        %v1741 = vpop.f32.mrf.mxu0
        %v1742 = vadd.f32 %v1431, %v1741
        %1743 = vmatmul.f32.gmra.mxu0 %v812
        %v1744 = vpop.f32.mrf.mxu0
        %v1745 = vadd.f32 %v1434, %v1744
        %1746 = vmatmul.f32.gmra.mxu0 %v815
        %v1747 = vpop.f32.mrf.mxu0
        %v1748 = vadd.f32 %v1437, %v1747
        %1749 = vmatmul.f32.gmra.mxu0 %v818
        %v1750 = vpop.f32.mrf.mxu0
        %v1751 = vadd.f32 %v1440, %v1750
        %1752 = vmatmul.f32.gmra.mxu0 %v821
        %v1753 = vpop.f32.mrf.mxu0
        %v1754 = vadd.f32 %v1443, %v1753
        %1755 = vmatmul.f32.gmra.mxu0 %v824
        %v1756 = vpop.f32.mrf.mxu0
        %v1757 = vadd.f32 %v1446, %v1756
        %1758 = vmatmul.f32.gmra.mxu0 %v827
        %v1759 = vpop.f32.mrf.mxu0
        %v1760 = vadd.f32 %v1449, %v1759
        %1761 = vmatmul.f32.gmra.mxu0 %v830
        %v1762 = vpop.f32.mrf.mxu0
        %v1763 = vadd.f32 %v1452, %v1762
        %1764 = vmatmul.f32.gmra.mxu0 %v833
        %v1765 = vpop.f32.mrf.mxu0
        %v1766 = vadd.f32 %v1455, %v1765
        %1767 = vmatmul.f32.gmra.mxu0 %v836
        %v1768 = vpop.f32.mrf.mxu0
        %v1769 = vadd.f32 %v1458, %v1768
        %1770 = vdwg.mxu0
        %v1771 = vmax.f32 %v1478, 0.0
        %v1772 = vmax.f32 %v1481, 0.0
        %v1773 = vmax.f32 %v1484, 0.0
        %v1774 = vmax.f32 %v1487, 0.0
        %v1775 = vmax.f32 %v1490, 0.0
        %v1776 = vmax.f32 %v1493, 0.0
        %v1777 = vmax.f32 %v1496, 0.0
        %v1778 = vmax.f32 %v1499, 0.0
        %v1779 = vmax.f32 %v1502, 0.0
        %v1780 = vmax.f32 %v1505, 0.0
        %v1781 = vmax.f32 %v1508, 0.0
        %v1782 = vmax.f32 %v1511, 0.0
        %v1783 = vmax.f32 %v1514, 0.0
        %v1784 = vmax.f32 %v1517, 0.0
        %v1785 = vmax.f32 %v1520, 0.0
        %v1786 = vmax.f32 %v1523, 0.0
        %v1787 = vmax.f32 %v1526, 0.0
        %v1788 = vmax.f32 %v1529, 0.0
        %v1789 = vmax.f32 %v1532, 0.0
        %v1790 = vmax.f32 %v1535, 0.0
        %v1791 = vmax.f32 %v1538, 0.0
        %v1792 = vmax.f32 %v1541, 0.0
        %v1793 = vmax.f32 %v1544, 0.0
        %v1794 = vmax.f32 %v1547, 0.0
        %v1795 = vmax.f32 %v1550, 0.0
        %v1796 = vmax.f32 %v1553, 0.0
        %v1797 = vmax.f32 %v1556, 0.0
        %v1798 = vmax.f32 %v1559, 0.0
        %v1799 = vmax.f32 %v1562, 0.0
        %v1800 = vmax.f32 %v1565, 0.0
        %v1801 = vmax.f32 %v1568, 0.0
        %v1802 = vmax.f32 %v1571, 0.0
        %v1803 = vmax.f32 %v1574, 0.0
        %v1804 = vmax.f32 %v1577, 0.0
        %v1805 = vmax.f32 %v1580, 0.0
        %v1806 = vmax.f32 %v1583, 0.0
        %v1807 = vmax.f32 %v1586, 0.0
        %v1808 = vmax.f32 %v1589, 0.0
        %v1809 = vmax.f32 %v1592, 0.0
        %v1810 = vmax.f32 %v1595, 0.0
        %v1811 = vmax.f32 %v1598, 0.0
        %v1812 = vmax.f32 %v1601, 0.0
        %v1813 = vmax.f32 %v1604, 0.0
        %v1814 = vmax.f32 %v1607, 0.0
        %v1815 = vmax.f32 %v1610, 0.0
        %v1816 = vmax.f32 %v1613, 0.0
        %v1817 = vmax.f32 %v1616, 0.0
        %v1818 = vmax.f32 %v1619, 0.0
        %v1819 = vmax.f32 %v1622, 0.0
        %v1820 = vmax.f32 %v1625, 0.0
        %v1821 = vmax.f32 %v1628, 0.0
        %v1822 = vmax.f32 %v1631, 0.0
        %v1823 = vmax.f32 %v1634, 0.0
        %v1824 = vmax.f32 %v1637, 0.0
        %v1825 = vmax.f32 %v1640, 0.0
        %v1826 = vmax.f32 %v1643, 0.0
        %v1827 = vmax.f32 %v1646, 0.0
        %v1828 = vmax.f32 %v1649, 0.0
        %v1829 = vmax.f32 %v1652, 0.0
        %v1830 = vmax.f32 %v1655, 0.0
        %v1831 = vmax.f32 %v1658, 0.0
        %v1832 = vmax.f32 %v1661, 0.0
        %v1833 = vmax.f32 %v1664, 0.0
        %v1834 = vmax.f32 %v1667, 0.0
        %v1835 = vmax.f32 %v1670, 0.0
        %v1836 = vmax.f32 %v1673, 0.0
        %v1837 = vmax.f32 %v1676, 0.0
        %v1838 = vmax.f32 %v1679, 0.0
        %v1839 = vmax.f32 %v1682, 0.0
        %v1840 = vmax.f32 %v1685, 0.0
        %v1841 = vmax.f32 %v1688, 0.0
        %v1842 = vmax.f32 %v1691, 0.0
        %v1843 = vmax.f32 %v1694, 0.0
        %v1844 = vmax.f32 %v1697, 0.0
        %v1845 = vmax.f32 %v1700, 0.0
        %v1846 = vmax.f32 %v1703, 0.0
        %v1847 = vmax.f32 %v1706, 0.0
        %v1848 = vmax.f32 %v1709, 0.0
        %v1849 = vmax.f32 %v1712, 0.0
        %v1850 = vmax.f32 %v1715, 0.0
        %v1851 = vmax.f32 %v1718, 0.0
        %v1852 = vmax.f32 %v1721, 0.0
        %v1853 = vmax.f32 %v1724, 0.0
        %v1854 = vmax.f32 %v1727, 0.0
        %v1855 = vmax.f32 %v1730, 0.0
        %v1856 = vmax.f32 %v1733, 0.0
        %v1857 = vmax.f32 %v1736, 0.0
        %v1858 = vmax.f32 %v1739, 0.0
        %v1859 = vmax.f32 %v1742, 0.0
        %v1860 = vmax.f32 %v1745, 0.0
        %v1861 = vmax.f32 %v1748, 0.0
        %v1862 = vmax.f32 %v1751, 0.0
        %v1863 = vmax.f32 %v1754, 0.0
        %v1864 = vmax.f32 %v1757, 0.0
        %v1865 = vmax.f32 %v1760, 0.0
        %v1866 = vmax.f32 %v1763, 0.0
        %v1867 = vmax.f32 %v1766, 0.0
        %v1868 = vmax.f32 %v1769, 0.0
        %vm1869 = vcmask 523264
        %1870 = vst.msk [vmem:[%s207] sm:$0xff] %vm1869, %v1771
        %1871 = vst.msk [vmem:[%s207 + $0x8] sm:$0xff] %vm1869, %v1772
        %1872 = vst.msk [vmem:[%s207 + $0x10] sm:$0xff] %vm1869, %v1773
        %1873 = vst.msk [vmem:[%s207 + $0x18] sm:$0xff] %vm1869, %v1774
        %1874 = vst.msk [vmem:[%s207 + $0x20] sm:$0xff] %vm1869, %v1775
        %1875 = vst.msk [vmem:[%s207 + $0x28] sm:$0xff] %vm1869, %v1776
        %1876 = vst.msk [vmem:[%s207 + $0x30] sm:$0xff] %vm1869, %v1777
        %1877 = vst.msk [vmem:[%s207 + $0x38] sm:$0xff] %vm1869, %v1778
        %1878 = vst.msk [vmem:[%s207 + $0x40] sm:$0xff] %vm1869, %v1779
        %1879 = vst.msk [vmem:[%s207 + $0x48] sm:$0xff] %vm1869, %v1780
        %1880 = vst.msk [vmem:[%s207 + $0x50] sm:$0xff] %vm1869, %v1781
        %1881 = vst.msk [vmem:[%s207 + $0x58] sm:$0xff] %vm1869, %v1782
        %1882 = vst.msk [vmem:[%s207 + $0x60] sm:$0xff] %vm1869, %v1783
        %1883 = vst.msk [vmem:[%s207 + $0x68] sm:$0xff] %vm1869, %v1784
        %1884 = vst.msk [vmem:[%s207 + $0x70] sm:$0xff] %vm1869, %v1785
        %1885 = vst.msk [vmem:[%s207 + $0x78] sm:$0xff] %vm1869, %v1786
        %1886 = vst.msk [vmem:[%s207 + $0x80] sm:$0xff] %vm1869, %v1787
        %1887 = vst.msk [vmem:[%s207 + $0x88] sm:$0xff] %vm1869, %v1788
        %1888 = vst.msk [vmem:[%s207 + $0x90] sm:$0xff] %vm1869, %v1789
        %1889 = vst.msk [vmem:[%s207 + $0x98] sm:$0xff] %vm1869, %v1790
        %1890 = vst.msk [vmem:[%s207 + $0xa0] sm:$0xff] %vm1869, %v1791
        %1891 = vst.msk [vmem:[%s207 + $0xa8] sm:$0xff] %vm1869, %v1792
        %1892 = vst.msk [vmem:[%s207 + $0xb0] sm:$0xff] %vm1869, %v1793
        %1893 = vst.msk [vmem:[%s207 + $0xb8] sm:$0xff] %vm1869, %v1794
        %1894 = vst.msk [vmem:[%s207 + $0xc0] sm:$0xff] %vm1869, %v1795
        %1895 = vst.msk [vmem:[%s207 + $0xc8] sm:$0xff] %vm1869, %v1796
        %1896 = vst.msk [vmem:[%s207 + $0xd0] sm:$0xff] %vm1869, %v1797
        %1897 = vst.msk [vmem:[%s207 + $0xd8] sm:$0xff] %vm1869, %v1798
        %1898 = vst.msk [vmem:[%s207 + $0xe0] sm:$0xff] %vm1869, %v1799
        %1899 = vst.msk [vmem:[%s207 + $0xe8] sm:$0xff] %vm1869, %v1800
        %1900 = vst.msk [vmem:[%s207 + $0xf0] sm:$0xff] %vm1869, %v1801
        %1901 = vst.msk [vmem:[%s207 + $0xf8] sm:$0xff] %vm1869, %v1802
        %1902 = vst.msk [vmem:[%s207 + $0x100] sm:$0xff] %vm1869, %v1803
        %1903 = vst.msk [vmem:[%s207 + $0x108] sm:$0xff] %vm1869, %v1804
        %1904 = vst.msk [vmem:[%s207 + $0x110] sm:$0xff] %vm1869, %v1805
        %1905 = vst.msk [vmem:[%s207 + $0x118] sm:$0xff] %vm1869, %v1806
        %1906 = vst.msk [vmem:[%s207 + $0x120] sm:$0xff] %vm1869, %v1807
        %1907 = vst.msk [vmem:[%s207 + $0x128] sm:$0xff] %vm1869, %v1808
        %1908 = vst.msk [vmem:[%s207 + $0x130] sm:$0xff] %vm1869, %v1809
        %1909 = vst.msk [vmem:[%s207 + $0x138] sm:$0xff] %vm1869, %v1810
        %1910 = vst.msk [vmem:[%s207 + $0x140] sm:$0xff] %vm1869, %v1811
        %1911 = vst.msk [vmem:[%s207 + $0x148] sm:$0xff] %vm1869, %v1812
        %1912 = vst.msk [vmem:[%s207 + $0x150] sm:$0xff] %vm1869, %v1813
        %1913 = vst.msk [vmem:[%s207 + $0x158] sm:$0xff] %vm1869, %v1814
        %1914 = vst.msk [vmem:[%s207 + $0x160] sm:$0xff] %vm1869, %v1815
        %1915 = vst.msk [vmem:[%s207 + $0x168] sm:$0xff] %vm1869, %v1816
        %1916 = vst.msk [vmem:[%s207 + $0x170] sm:$0xff] %vm1869, %v1817
        %1917 = vst.msk [vmem:[%s207 + $0x178] sm:$0xff] %vm1869, %v1818
        %1918 = vst.msk [vmem:[%s207 + $0x180] sm:$0xff] %vm1869, %v1819
        %1919 = vst.msk [vmem:[%s207 + $0x188] sm:$0xff] %vm1869, %v1820
        %1920 = vst.msk [vmem:[%s207 + $0x190] sm:$0xff] %vm1869, %v1821
        %1921 = vst.msk [vmem:[%s207 + $0x198] sm:$0xff] %vm1869, %v1822
        %1922 = vst.msk [vmem:[%s207 + $0x1a0] sm:$0xff] %vm1869, %v1823
        %1923 = vst.msk [vmem:[%s207 + $0x1a8] sm:$0xff] %vm1869, %v1824
        %1924 = vst.msk [vmem:[%s207 + $0x1b0] sm:$0xff] %vm1869, %v1825
        %1925 = vst.msk [vmem:[%s207 + $0x1b8] sm:$0xff] %vm1869, %v1826
        %1926 = vst.msk [vmem:[%s207 + $0x1c0] sm:$0xff] %vm1869, %v1827
        %1927 = vst.msk [vmem:[%s207 + $0x1c8] sm:$0xff] %vm1869, %v1828
        %1928 = vst.msk [vmem:[%s207 + $0x1d0] sm:$0xff] %vm1869, %v1829
        %1929 = vst.msk [vmem:[%s207 + $0x1d8] sm:$0xff] %vm1869, %v1830
        %1930 = vst.msk [vmem:[%s207 + $0x1e0] sm:$0xff] %vm1869, %v1831
        %1931 = vst.msk [vmem:[%s207 + $0x1e8] sm:$0xff] %vm1869, %v1832
        %1932 = vst.msk [vmem:[%s207 + $0x1f0] sm:$0xff] %vm1869, %v1833
        %1933 = vst.msk [vmem:[%s207 + $0x1f8] sm:$0xff] %vm1869, %v1834
        %1934 = vst.msk [vmem:[%s207 + $0x200] sm:$0xff] %vm1869, %v1835
        %1935 = vst.msk [vmem:[%s207 + $0x208] sm:$0xff] %vm1869, %v1836
        %1936 = vst.msk [vmem:[%s207 + $0x210] sm:$0xff] %vm1869, %v1837
        %1937 = vst.msk [vmem:[%s207 + $0x218] sm:$0xff] %vm1869, %v1838
        %1938 = vst.msk [vmem:[%s207 + $0x220] sm:$0xff] %vm1869, %v1839
        %1939 = vst.msk [vmem:[%s207 + $0x228] sm:$0xff] %vm1869, %v1840
        %1940 = vst.msk [vmem:[%s207 + $0x230] sm:$0xff] %vm1869, %v1841
        %1941 = vst.msk [vmem:[%s207 + $0x238] sm:$0xff] %vm1869, %v1842
        %1942 = vst.msk [vmem:[%s207 + $0x240] sm:$0xff] %vm1869, %v1843
        %1943 = vst.msk [vmem:[%s207 + $0x248] sm:$0xff] %vm1869, %v1844
        %1944 = vst.msk [vmem:[%s207 + $0x250] sm:$0xff] %vm1869, %v1845
        %1945 = vst.msk [vmem:[%s207 + $0x258] sm:$0xff] %vm1869, %v1846
        %1946 = vst.msk [vmem:[%s207 + $0x260] sm:$0xff] %vm1869, %v1847
        %1947 = vst.msk [vmem:[%s207 + $0x268] sm:$0xff] %vm1869, %v1848
        %1948 = vst.msk [vmem:[%s207 + $0x270] sm:$0xff] %vm1869, %v1849
        %1949 = vst.msk [vmem:[%s207 + $0x278] sm:$0xff] %vm1869, %v1850
        %1950 = vst.msk [vmem:[%s207 + $0x280] sm:$0xff] %vm1869, %v1851
        %1951 = vst.msk [vmem:[%s207 + $0x288] sm:$0xff] %vm1869, %v1852
        %1952 = vst.msk [vmem:[%s207 + $0x290] sm:$0xff] %vm1869, %v1853
        %1953 = vst.msk [vmem:[%s207 + $0x298] sm:$0xff] %vm1869, %v1854
        %1954 = vst.msk [vmem:[%s207 + $0x2a0] sm:$0xff] %vm1869, %v1855
        %1955 = vst.msk [vmem:[%s207 + $0x2a8] sm:$0xff] %vm1869, %v1856
        %1956 = vst.msk [vmem:[%s207 + $0x2b0] sm:$0xff] %vm1869, %v1857
        %1957 = vst.msk [vmem:[%s207 + $0x2b8] sm:$0xff] %vm1869, %v1858
        %1958 = vst.msk [vmem:[%s207 + $0x2c0] sm:$0xff] %vm1869, %v1859
        %1959 = vst.msk [vmem:[%s207 + $0x2c8] sm:$0xff] %vm1869, %v1860
        %1960 = vst.msk [vmem:[%s207 + $0x2d0] sm:$0xff] %vm1869, %v1861
        %1961 = vst.msk [vmem:[%s207 + $0x2d8] sm:$0xff] %vm1869, %v1862
        %1962 = vst.msk [vmem:[%s207 + $0x2e0] sm:$0xff] %vm1869, %v1863
        %1963 = vst.msk [vmem:[%s207 + $0x2e8] sm:$0xff] %vm1869, %v1864
        %1964 = vst.msk [vmem:[%s207 + $0x2f0] sm:$0xff] %vm1869, %v1865
        %1965 = vst.msk [vmem:[%s207 + $0x2f8] sm:$0xff] %vm1869, %v1866
        %1966 = vst.msk [vmem:[%s207 + $0x300] sm:$0xff] %vm1869, %v1867
        %1967 = vst.msk [vmem:[%s207 + $0x308] sm:$0xff] %vm1869, %v1868
        %s1968 = smul.u32 98, %s16
        %p1969 = scmp.lt.s32.totalorder %s1968, 195
        %s1970 = scalar_select %p1969, %s1968, 195
        %s1971 = smul.addr %s1970, 8
        %s1972 = scalar_lea.vmem %s3, %s1971
        // Predicated region
        $region41: #{ppo_generator_forward.5} parent=31 // pred_check
          %p1973 = pneg %p102
        $region42: #{ppo_generator_forward.5} parent=31 // pred_check_branch
          %1975 = sbr.rel (%p1973) target = $region44
        $region43: #{ppo_generator_forward.5} parent=31 // pred_region
          %s1976 = smul.u32 98, %s16
        $region44: #{ppo_generator_forward.5} parent=31 // pred_fallthru
          _
      $region32: #{ppo_generator_forward.5} parent=5 // pred_fallthru
        _
      %p1977 = scmp.le.s32.totalorder 2, %s11
      // Predicated region
      $region45: #{ppo_generator_forward.5} parent=5 // pred_check
        %p1978 = pneg %p1977
      $region46: #{ppo_generator_forward.5} parent=5 // pred_check_branch
        %1980 = sbr.rel (%p1978) target = $region48
      $region47: #{ppo_generator_forward.5} parent=5 // pred_region
        %s1981 = ssub.s32 %s11, 2
        // Predicated region
        $region49: #{ppo_generator_forward.5} parent=47 // pred_check
          %p1982 = pneg %p108
        $region50: #{ppo_generator_forward.5} parent=47 // pred_check_branch
          %1984 = sbr.rel (%p1982) target = $region52
        $region51: #{ppo_generator_forward.5} parent=47 // pred_region
          %s1985 = smul.u32 98, %s17
          %p1986 = scmp.lt.s32.totalorder %s1985, 195
          %s1987 = scalar_select %p1986, %s1985, 195
          %s1988 = smul.addr %s1987, 8
          %s1989 = scalar_lea.vmem %s3, %s1988
        $region52: #{ppo_generator_forward.5} parent=47 // pred_fallthru
          _
      $region48: #{ppo_generator_forward.5} parent=5 // pred_fallthru
        _
    $region6: #{ppo_generator_forward.5} parent=1 // loop_footer
      %s15 = sadd.s32 1, %s11
    $region7: #{ppo_generator_forward.5} parent=1 // loop_footer_branch
      %10 = sbr.rel target = $region3
    $region8: #{ppo_generator_forward.5} parent=1 // loop_exit
      _
    %1990 = vsyncpa [#allocation3], 1
    %s1991 = scalar_lea.sflag [#allocation3], 1
    %1992 = vsyncpa %s1991, 1
    %1993 = vsyncpa [#allocation5], 1

// kernel: ppo_generator_forward.7
$region0: #{ppo_generator_forward.7}
  #allocation0 [shape = 'u32[]', space=smem, size = 0x4, offset = 0x4, fixed_abs, tag = 'smem constant byte address 0x4 - core index']
  #allocation1 [shape = 'u32[72,128]{1,0:T(1,128)}', space=vmem, size = 0x9000, scoped, tag = 'internal scratch']
  %s0 = inlined_call_operand.vmem [shape: f32[2,512], index: 0, kind: input, shape index: {}]
  %s1 = inlined_call_operand.vmem [shape: f32[512,7], index: 1, kind: input, shape index: {}]
  %s2 = inlined_call_operand.hbm [shape: f32[1,7], index: 2, kind: input, shape index: {}]
  %s3 = inlined_call_operand.vmem [shape: f32[2,7], index: 3, kind: output, shape index: {}]
  %s4 = sld [smem:[#allocation0]]
  $region26: #{ppo_generator_forward.7} parent=0
    _
  %s6 = ssub.s32 1, %s4
  %s7 = scalar_select 0, %s6, %s4
  $region1: #{ppo_generator_forward.7} parent=0
    #allocation2 [shape = 'u8[512]{0}', space=vmem, size = 0x400, scoped, tag = 'input window, operand 2, single buffered']
    #allocation3 [shape = 's32[1]{0}', space=sflag, size = 0x4, scoped, tag = 'scoped memory for ppo_generator_forward.7']
    %8 = vsyncpa [#allocation3], 0
    // Predicated region
    $region2: #{ppo_generator_forward.7} parent=1 // pred_check
      _
    $region3: #{ppo_generator_forward.7} parent=1 // pred_check_branch
      %10 = sbr.rel (0) target = $region5
    $region4: #{ppo_generator_forward.7} parent=1 // pred_region
      _
    $region5: #{ppo_generator_forward.7} parent=1 // pred_fallthru
      _
    // Predicated region
    $region6: #{ppo_generator_forward.7} parent=1 // pred_check
      _
    $region7: #{ppo_generator_forward.7} parent=1 // pred_check_branch
      %12 = sbr.rel (0) target = $region9
    $region8: #{ppo_generator_forward.7} parent=1 // pred_region
      _
    $region9: #{ppo_generator_forward.7} parent=1 // pred_fallthru
      _
    // Predicated region
    $region10: #{ppo_generator_forward.7} parent=1 // pred_check
      _
    $region11: #{ppo_generator_forward.7} parent=1 // pred_check_branch
      %14 = sbr.rel (0) target = $region13
    $region12: #{ppo_generator_forward.7} parent=1 // pred_region
      %16 = vsyncadd [#allocation3], 0
      %s18 = sshll.u32 %s2, 4
      %s19 = int_to_ptr.hbm [resolvable:$true] %s18
      %s20 = sshll.u32 [#allocation2], 4
      %s21 = int_to_ptr.vmem [resolvable:$true] %s20
      %23 = dma.hbm_to_vmem [thread:$0]  %s19, 16, %s21, [#allocation3]
    $region13: #{ppo_generator_forward.7} parent=1 // pred_fallthru
      _
    // Predicated region
    $region14: #{ppo_generator_forward.7} parent=1 // pred_check
      _
    $region15: #{ppo_generator_forward.7} parent=1 // pred_check_branch
      %25 = sbr.rel (0) target = $region17
    $region16: #{ppo_generator_forward.7} parent=1 // pred_region
      %27 = dma.done [#allocation3], 16
    $region17: #{ppo_generator_forward.7} parent=1 // pred_fallthru
      _
    %v28 = vld [vmem:[%s0] sm:$0xff]
    %v29 = vld [vmem:[%s1] sm:$0xff]
    %v30 = vld [vmem:[%s1 + $0x8] sm:$0xff]
    %v31 = vld [vmem:[%s1 + $0x10] sm:$0xff]
    %v32 = vld [vmem:[%s1 + $0x18] sm:$0xff]
    %v33 = vld [vmem:[%s1 + $0x20] sm:$0xff]
    %v34 = vld [vmem:[%s1 + $0x28] sm:$0xff]
    %v35 = vld [vmem:[%s1 + $0x30] sm:$0xff]
    %v36 = vld [vmem:[%s1 + $0x38] sm:$0xff]
    %v37 = vld [vmem:[%s1 + $0x40] sm:$0xff]
    %v38 = vld [vmem:[%s1 + $0x48] sm:$0xff]
    %v39 = vld [vmem:[%s1 + $0x50] sm:$0xff]
    %v40 = vld [vmem:[%s1 + $0x58] sm:$0xff]
    %v41 = vld [vmem:[%s1 + $0x60] sm:$0xff]
    %v42 = vld [vmem:[%s1 + $0x68] sm:$0xff]
    %v43 = vld [vmem:[%s1 + $0x70] sm:$0xff]
    %v44 = vld [vmem:[%s1 + $0x78] sm:$0xff]
    %v45 = vld [vmem:[%s1 + $0x80] sm:$0xff]
    %v46 = vld [vmem:[%s1 + $0x88] sm:$0xff]
    %v47 = vld [vmem:[%s1 + $0x90] sm:$0xff]
    %v48 = vld [vmem:[%s1 + $0x98] sm:$0xff]
    %v49 = vld [vmem:[%s1 + $0xa0] sm:$0xff]
    %v50 = vld [vmem:[%s1 + $0xa8] sm:$0xff]
    %v51 = vld [vmem:[%s1 + $0xb0] sm:$0xff]
    %v52 = vld [vmem:[%s1 + $0xb8] sm:$0xff]
    %v53 = vld [vmem:[%s1 + $0xc0] sm:$0xff]
    %v54 = vld [vmem:[%s1 + $0xc8] sm:$0xff]
    %v55 = vld [vmem:[%s1 + $0xd0] sm:$0xff]
    %v56 = vld [vmem:[%s1 + $0xd8] sm:$0xff]
    %v57 = vld [vmem:[%s1 + $0xe0] sm:$0xff]
    %v58 = vld [vmem:[%s1 + $0xe8] sm:$0xff]
    %v59 = vld [vmem:[%s1 + $0xf0] sm:$0xff]
    %v60 = vld [vmem:[%s1 + $0xf8] sm:$0xff]
    %v61 = vld [vmem:[%s1 + $0x100] sm:$0xff]
    %v62 = vld [vmem:[%s1 + $0x108] sm:$0xff]
    %v63 = vld [vmem:[%s1 + $0x110] sm:$0xff]
    %v64 = vld [vmem:[%s1 + $0x118] sm:$0xff]
    %v65 = vld [vmem:[%s1 + $0x120] sm:$0xff]
    %v66 = vld [vmem:[%s1 + $0x128] sm:$0xff]
    %v67 = vld [vmem:[%s1 + $0x130] sm:$0xff]
    %v68 = vld [vmem:[%s1 + $0x138] sm:$0xff]
    %v69 = vld [vmem:[%s1 + $0x140] sm:$0xff]
    %v70 = vld [vmem:[%s1 + $0x148] sm:$0xff]
    %v71 = vld [vmem:[%s1 + $0x150] sm:$0xff]
    %v72 = vld [vmem:[%s1 + $0x158] sm:$0xff]
    %v73 = vld [vmem:[%s1 + $0x160] sm:$0xff]
    %v74 = vld [vmem:[%s1 + $0x168] sm:$0xff]
    %v75 = vld [vmem:[%s1 + $0x170] sm:$0xff]
    %v76 = vld [vmem:[%s1 + $0x178] sm:$0xff]
    %v77 = vld [vmem:[%s1 + $0x180] sm:$0xff]
    %v78 = vld [vmem:[%s1 + $0x188] sm:$0xff]
    %v79 = vld [vmem:[%s1 + $0x190] sm:$0xff]
    %v80 = vld [vmem:[%s1 + $0x198] sm:$0xff]
    %v81 = vld [vmem:[%s1 + $0x1a0] sm:$0xff]
    %v82 = vld [vmem:[%s1 + $0x1a8] sm:$0xff]
    %v83 = vld [vmem:[%s1 + $0x1b0] sm:$0xff]
    %v84 = vld [vmem:[%s1 + $0x1b8] sm:$0xff]
    %v85 = vld [vmem:[%s1 + $0x1c0] sm:$0xff]
    %v86 = vld [vmem:[%s1 + $0x1c8] sm:$0xff]
    %v87 = vld [vmem:[%s1 + $0x1d0] sm:$0xff]
    %v88 = vld [vmem:[%s1 + $0x1d8] sm:$0xff]
    %v89 = vld [vmem:[%s1 + $0x1e0] sm:$0xff]
    %v90 = vld [vmem:[%s1 + $0x1e8] sm:$0xff]
    %v91 = vld [vmem:[%s1 + $0x1f0] sm:$0xff]
    %v92 = vld [vmem:[%s1 + $0x1f8] sm:$0xff]
    %v93 = vld [vmem:[#allocation2] sm:$0x1]
    %v95 = vperm.slane %v93, 0
    %98 = vst [vmem:[#allocation1] ss:$4 sm:$0xff] %v28
    %v99 = vld.sshfl [vmem:[#allocation1] sm:$0xff pattern:$0x73625140]
    %v100 = vld.sshfl [vmem:[#allocation1 + $0x8] sm:$0xff pattern:$0x73625140]
    %v101 = vld.sshfl [vmem:[#allocation1 + $0x10] sm:$0xff pattern:$0x73625140]
    %v102 = vld.sshfl [vmem:[#allocation1 + $0x18] sm:$0xff pattern:$0x73625140]
    %107 = vmatpush.msra.mxu0 %v44
    %108 = vmatpush.msra.mxu0 %v43
    %109 = vmatpush.msra.mxu0 %v42
    %110 = vmatpush.msra.mxu0 %v41
    %111 = vmatpush.msra.mxu0 %v40
    %112 = vmatpush.msra.mxu0 %v39
    %113 = vmatpush.msra.mxu0 %v38
    %114 = vmatpush.msra.mxu0 %v37
    %115 = vmatpush.msra.mxu0 %v36
    %116 = vmatpush.msra.mxu0 %v35
    %117 = vmatpush.msra.mxu0 %v34
    %118 = vmatpush.msra.mxu0 %v33
    %119 = vmatpush.msra.mxu0 %v32
    %120 = vmatpush.msra.mxu0 %v31
    %121 = vmatpush.msra.mxu0 %v30
    %122 = vmatpush.msra.mxu0 %v29
    %123 = vmatmul.f32.gmra.mxu0 %v99
    %v124 = vpop.f32.mrf.mxu0
    %v125 = vadd.f32 %v95, %v124
    %126 = vdwg.mxu0
    %127 = vmatpush.msra.mxu0 %v60
    %128 = vmatpush.msra.mxu0 %v59
    %129 = vmatpush.msra.mxu0 %v58
    %130 = vmatpush.msra.mxu0 %v57
    %131 = vmatpush.msra.mxu0 %v56
    %132 = vmatpush.msra.mxu0 %v55
    %133 = vmatpush.msra.mxu0 %v54
    %134 = vmatpush.msra.mxu0 %v53
    %135 = vmatpush.msra.mxu0 %v52
    %136 = vmatpush.msra.mxu0 %v51
    %137 = vmatpush.msra.mxu0 %v50
    %138 = vmatpush.msra.mxu0 %v49
    %139 = vmatpush.msra.mxu0 %v48
    %140 = vmatpush.msra.mxu0 %v47
    %141 = vmatpush.msra.mxu0 %v46
    %142 = vmatpush.msra.mxu0 %v45
    %143 = vmatmul.f32.gmra.mxu0 %v100
    %v144 = vpop.f32.mrf.mxu0
    %v145 = vadd.f32 %v125, %v144
    %146 = vdwg.mxu0
    %147 = vmatpush.msra.mxu0 %v76
    %148 = vmatpush.msra.mxu0 %v75
    %149 = vmatpush.msra.mxu0 %v74
    %150 = vmatpush.msra.mxu0 %v73
    %151 = vmatpush.msra.mxu0 %v72
    %152 = vmatpush.msra.mxu0 %v71
    %153 = vmatpush.msra.mxu0 %v70
    %154 = vmatpush.msra.mxu0 %v69
    %155 = vmatpush.msra.mxu0 %v68
    %156 = vmatpush.msra.mxu0 %v67
    %157 = vmatpush.msra.mxu0 %v66
    %158 = vmatpush.msra.mxu0 %v65
    %159 = vmatpush.msra.mxu0 %v64
    %160 = vmatpush.msra.mxu0 %v63
    %161 = vmatpush.msra.mxu0 %v62
    %162 = vmatpush.msra.mxu0 %v61
    %163 = vmatmul.f32.gmra.mxu0 %v101
    %v164 = vpop.f32.mrf.mxu0
    %v165 = vadd.f32 %v145, %v164
    %166 = vdwg.mxu0
    %167 = vmatpush.msra.mxu0 %v92
    %168 = vmatpush.msra.mxu0 %v91
    %169 = vmatpush.msra.mxu0 %v90
    %170 = vmatpush.msra.mxu0 %v89
    %171 = vmatpush.msra.mxu0 %v88
    %172 = vmatpush.msra.mxu0 %v87
    %173 = vmatpush.msra.mxu0 %v86
    %174 = vmatpush.msra.mxu0 %v85
    %175 = vmatpush.msra.mxu0 %v84
    %176 = vmatpush.msra.mxu0 %v83
    %177 = vmatpush.msra.mxu0 %v82
    %178 = vmatpush.msra.mxu0 %v81
    %179 = vmatpush.msra.mxu0 %v80
    %180 = vmatpush.msra.mxu0 %v79
    %181 = vmatpush.msra.mxu0 %v78
    %182 = vmatpush.msra.mxu0 %v77
    %183 = vmatmul.f32.gmra.mxu0 %v102
    %v184 = vpop.f32.mrf.mxu0
    %v185 = vadd.f32 %v165, %v184
    %186 = vdwg.mxu0
    %v187 = vlaneseq
    %v188 = vand.u32 %v187, 127
    %vm189 = vcmp.ge.s32.totalorder %v188, 3
    %vm190 = vcmp.lt.s32.totalorder %v188, 6
    %vm191 = vmand %vm189, %vm190
    %vm192 = vcmp.gt.f32.partialorder %v185, 20.0
    %v193 = vmin.f32 %v185, 20.0
    %v194 = vmul.f32 %v193, 1.442695
    %v195 = vpow.pop %v194
    %v196 = vadd.f32 %v195, 1.0
    %v197 = vlog2.pop %v196
    %v198 = vmul.f32 %v197, 0.6931472
    %v199 = vmul.f32 -0.5, %v195
    %v200 = vadd.f32 %v199, 1.0
    %v201 = vmul.f32 %v200, %v195
    %v202 = vand.u32 2147483647, %v195
    %vm203 = vcmp.lt.f32.partialorder %v202, 0.0004427343
    %v204 = vsel %vm203, %v201, %v198
    %v205 = vsel %vm192, %v185, %v204
    %v206 = vsel %vm191, %v205, %v185
    %vm207 = vcmask 50176
    %208 = vst.msk [vmem:[%s3] sm:$0x3] %vm207, %v206
    // Predicated region
    $region18: #{ppo_generator_forward.7} parent=1 // pred_check
      _
    $region19: #{ppo_generator_forward.7} parent=1 // pred_check_branch
      %210 = sbr.rel (0) target = $region21
    $region20: #{ppo_generator_forward.7} parent=1 // pred_region
      _
    $region21: #{ppo_generator_forward.7} parent=1 // pred_fallthru
      _
    // Predicated region
    $region22: #{ppo_generator_forward.7} parent=1 // pred_check
      _
    $region23: #{ppo_generator_forward.7} parent=1 // pred_check_branch
      %212 = sbr.rel (0) target = $region25
    $region24: #{ppo_generator_forward.7} parent=1 // pred_region
      _
    $region25: #{ppo_generator_forward.7} parent=1 // pred_fallthru
      _
    %213 = vsyncpa [#allocation3], 1

// kernel: ppo_generator_forward.6
$region0: #{ppo_generator_forward.6}
  #allocation0 [shape = 'u32[]', space=smem, size = 0x4, offset = 0x4, fixed_abs, tag = 'smem constant byte address 0x4 - core index']
  #allocation1 [shape = 'u32[72,128]{1,0:T(1,128)}', space=vmem, size = 0x9000, scoped, tag = 'internal scratch']
  #allocation2 [shape = 'f32[2,256]{1,0:T(2,128)}', space=vmem, size = 0x800, scoped, tag = 'scratch operand']
  %s0 = inlined_call_operand.vmem [shape: bf16[2,50176], index: 0, kind: input, shape index: {}]
  %s1 = inlined_call_operand.hbm [shape: bf16[50176,512], index: 1, kind: input, shape index: {}]
  %s2 = inlined_call_operand.hbm [shape: f32[1,512], index: 2, kind: input, shape index: {}]
  %s3 = inlined_call_operand.vmem [shape: f32[2,512], index: 3, kind: output, shape index: {}]
  %s4 = sld [smem:[#allocation0]]
  $region61: #{ppo_generator_forward.6} parent=0
    _
  %s6 = ssub.s32 1, %s4
  %s7 = scalar_select 0, %s6, %s4
  $region1: #{ppo_generator_forward.6} parent=0
    #allocation3 [shape = 'u8[7340032]{0}', space=vmem, size = 0x700000, scoped, tag = 'input window, operand 1']
    #allocation4 [shape = 's32[2]{0}', space=sflag, size = 0x8, scoped, tag = 'scoped memory for ppo_generator_forward.6']
    #allocation5 [shape = 'u8[2048]{0}', space=vmem, size = 0x800, scoped, tag = 'input window, operand 2']
    #allocation6 [shape = 's32[2]{0}', space=sflag, size = 0x8, scoped, tag = 'scoped memory for ppo_generator_forward.6']
    %8 = vsyncpa [#allocation4], 0
    %s9 = scalar_lea.sflag [#allocation4], 1
    %10 = vsyncpa %s9, 0
    %11 = vsyncpa [#allocation6], 0
    %s12 = scalar_lea.sflag [#allocation6], 1
    %13 = vsyncpa %s12, 0
    loop: start=0, step=1, limit=16
    $region2: #{ppo_generator_forward.6} parent=1 // loop_pre_header
      _
    $region3: #{ppo_generator_forward.6} parent=1 // loop_header
      %s15 = sphi 0, %s19
      %p16 = scmp.ge.s32.totalorder %s15, 16
      %s22 = sphi 0, %s34
      %s23 = sphi 0, %s30
      %s24 = sphi 0, %s22
      %s25 = sphi 0, %s23
      %s26 = sphi 0, %s24
      %s27 = sphi 0, %s25
      %s37 = sphi 0, %s39
      %s40 = sphi 0, %s37
      %s41 = sphi 0, %s40
      %s57 = sphi 0, %s41
      %s65 = sphi 0, %s67
      %s68 = sphi 0, %s65
      %s69 = sphi 0, %s68
      %s85 = sphi 0, %s69
      %s91 = sphi 0, %s93
      %s94 = sphi 0, %s91
      %s95 = sphi 0, %s94
      %s111 = sphi 0, %s95
      %s117 = sphi 0, %s119
      %s120 = sphi 0, %s117
      %s121 = sphi 0, %s120
      %s137 = sphi 0, %s121
    $region4: #{ppo_generator_forward.6} parent=1 // loop_header_branch
      %18 = sbr.rel (%p16) target = $region8
    $region5: #{ppo_generator_forward.6} parent=1 // loop_body
      %s20 = ssub.s32 %s15, 1
      %s21 = ssub.s32 %s15, 2
      %s28 = sadd.s32 1, %s23
      %p29 = scmp.ge.s32.totalorder %s28, 7
      %s30 = scalar_select %p29, 0, %s28
      %s31 = sadd.s32 1, %s22
      %s32 = scalar_select %p29, %s31, %s22
      %p33 = scmp.ge.s32.totalorder %s32, 2
      %s34 = scalar_select %p33, 0, %s32
      %s35 = ssub.s32 %s23, %s30
      %p36 = scmp.eq.s32.totalorder %s35, 0
      %s38 = sadd.s32 %s37, 1
      %s39 = scalar_select %p36, %s37, %s38
      %p42 = pneg %p36
      %p43 = scmp.eq.s32.totalorder %s15, 13
      %p44 = por %p42, %p43
      %p45 = scmp.ne.s32.totalorder %s37, %s40
      %p46 = scmp.eq.s32.totalorder %s15, 0
      %p47 = por %p45, %p46
      %p48 = scmp.ne.s32.totalorder %s37, %s40
      %p49 = scmp.eq.s32.totalorder %s20, 13
      %p50 = por %p48, %p49
      %p51 = scmp.ne.s32.totalorder %s40, %s41
      %p52 = scmp.eq.s32.totalorder %s20, 0
      %p53 = por %p51, %p52
      %p54 = scmp.ne.s32.totalorder %s40, %s41
      %p55 = scmp.eq.s32.totalorder %s21, 13
      %p56 = por %p54, %p55
      %p58 = scmp.ne.s32.totalorder %s41, %s57
      %p59 = scmp.eq.s32.totalorder %s21, 0
      %p60 = por %p58, %p59
      %s61 = ssub.s32 %s23, %s30
      %s62 = ssub.s32 %s22, %s34
      %s63 = sor.u32 %s61, %s62
      %p64 = scmp.eq.s32.totalorder %s63, 0
      %s66 = sadd.s32 %s65, 1
      %s67 = scalar_select %p64, %s65, %s66
      %p70 = pneg %p64
      %p71 = scmp.eq.s32.totalorder %s15, 13
      %p72 = por %p70, %p71
      %p73 = scmp.ne.s32.totalorder %s65, %s68
      %p74 = scmp.eq.s32.totalorder %s15, 0
      %p75 = por %p73, %p74
      %p76 = scmp.ne.s32.totalorder %s65, %s68
      %p77 = scmp.eq.s32.totalorder %s20, 13
      %p78 = por %p76, %p77
      %p79 = scmp.ne.s32.totalorder %s68, %s69
      %p80 = scmp.eq.s32.totalorder %s20, 0
      %p81 = por %p79, %p80
      %p82 = scmp.ne.s32.totalorder %s68, %s69
      %p83 = scmp.eq.s32.totalorder %s21, 13
      %p84 = por %p82, %p83
      %p86 = scmp.ne.s32.totalorder %s69, %s85
      %p87 = scmp.eq.s32.totalorder %s21, 0
      %p88 = por %p86, %p87
      %s89 = ssub.s32 %s22, %s34
      %p90 = scmp.eq.s32.totalorder %s89, 0
      %s92 = sadd.s32 %s91, 1
      %s93 = scalar_select %p90, %s91, %s92
      %p96 = pneg %p90
      %p97 = scmp.eq.s32.totalorder %s15, 13
      %p98 = por %p96, %p97
      %p99 = scmp.ne.s32.totalorder %s91, %s94
      %p100 = scmp.eq.s32.totalorder %s15, 0
      %p101 = por %p99, %p100
      %p102 = scmp.ne.s32.totalorder %s91, %s94
      %p103 = scmp.eq.s32.totalorder %s20, 13
      %p104 = por %p102, %p103
      %p105 = scmp.ne.s32.totalorder %s94, %s95
      %p106 = scmp.eq.s32.totalorder %s20, 0
      %p107 = por %p105, %p106
      %p108 = scmp.ne.s32.totalorder %s94, %s95
      %p109 = scmp.eq.s32.totalorder %s21, 13
      %p110 = por %p108, %p109
      %p112 = scmp.ne.s32.totalorder %s95, %s111
      %p113 = scmp.eq.s32.totalorder %s21, 0
      %p114 = por %p112, %p113
      %s115 = ssub.s32 %s22, %s34
      %p116 = scmp.eq.s32.totalorder %s115, 0
      %s118 = sadd.s32 %s117, 1
      %s119 = scalar_select %p116, %s117, %s118
      %p122 = pneg %p116
      %p123 = scmp.eq.s32.totalorder %s15, 13
      %p124 = por %p122, %p123
      %p125 = scmp.ne.s32.totalorder %s117, %s120
      %p126 = scmp.eq.s32.totalorder %s15, 0
      %p127 = por %p125, %p126
      %p128 = scmp.ne.s32.totalorder %s117, %s120
      %p129 = scmp.eq.s32.totalorder %s20, 13
      %p130 = por %p128, %p129
      %p131 = scmp.ne.s32.totalorder %s120, %s121
      %p132 = scmp.eq.s32.totalorder %s20, 0
      %p133 = por %p131, %p132
      %p134 = scmp.ne.s32.totalorder %s120, %s121
      %p135 = scmp.eq.s32.totalorder %s21, 13
      %p136 = por %p134, %p135
      %p138 = scmp.ne.s32.totalorder %s121, %s137
      %p139 = scmp.eq.s32.totalorder %s21, 0
      %p140 = por %p138, %p139
      %p141 = scmp.le.s32.totalorder 1, %s15
      %p142 = scmp.lt.s32.totalorder %s15, 15
      %p143 = pnand %p141, %p142
      %p144 = pneg %p143
      // Predicated region
      $region9: #{ppo_generator_forward.6} parent=5 // pred_check
        _
      $region10: #{ppo_generator_forward.6} parent=5 // pred_check_branch
        %146 = sbr.rel (%p143) target = $region12
      $region11: #{ppo_generator_forward.6} parent=5 // pred_region
        %s147 = ssub.s32 %s15, 1
      $region12: #{ppo_generator_forward.6} parent=5 // pred_fallthru
        _
      %p148 = scmp.lt.s32.totalorder %s15, 14
      // Predicated region
      $region13: #{ppo_generator_forward.6} parent=5 // pred_check
        %p149 = pneg %p148
      $region14: #{ppo_generator_forward.6} parent=5 // pred_check_branch
        %151 = sbr.rel (%p149) target = $region16
      $region15: #{ppo_generator_forward.6} parent=5 // pred_region
        // Predicated region
        $region17: #{ppo_generator_forward.6} parent=15 // pred_check
          %p152 = pneg %p47
        $region18: #{ppo_generator_forward.6} parent=15 // pred_check_branch
          %154 = sbr.rel (%p152) target = $region20
        $region19: #{ppo_generator_forward.6} parent=15 // pred_region
          %s155 = smul.u32 56, %s23
          %p156 = scmp.lt.s32.totalorder %s155, 391
          %s157 = scalar_select %p156, %s155, 391
          %s158 = scalar_lea.vmem %s0, %s157
          %s159 = smul.u32 56, %s23
        $region20: #{ppo_generator_forward.6} parent=15 // pred_fallthru
          _
        // Predicated region
        $region21: #{ppo_generator_forward.6} parent=15 // pred_check
          %p160 = pneg %p75
        $region22: #{ppo_generator_forward.6} parent=15 // pred_check_branch
          %162 = sbr.rel (%p160) target = $region24
        $region23: #{ppo_generator_forward.6} parent=15 // pred_region
          %s163 = sand.u32 %s65, 1
          %s164 = scalar_lea.sflag [#allocation4], %s163
          %s165 = sand.u32 %s65, 1
          %s166 = smul.addr %s165, 7168
          %s167 = scalar_lea.vmem [#allocation3], %s166
          %s168 = smul.u32 896, %s23
          %s169 = smul.u32 2, %s22
          %171 = vsyncadd %s164, 0
          %s172 = smul.addr %s168, 4
          %s173 = sadd.s32 %s169, %s172
          %s174 = smul.addr %s173, 4
          %s175 = scalar_lea.hbm %s1, %s174
          %s176 = sshll.u32 %s175, 4
          %s177 = int_to_ptr.hbm [resolvable:$true] %s176
          %s178 = sshll.u32 %s167, 4
          %s179 = int_to_ptr.vmem [resolvable:$true] %s178
          %184 = dma.hbm_to_vmem [thread:$0]  %s177, 114688, %s179, %s164, 256, 128, 8
        $region24: #{ppo_generator_forward.6} parent=15 // pred_fallthru
          _
        // Predicated region
        $region25: #{ppo_generator_forward.6} parent=15 // pred_check
          %p185 = pneg %p101
        $region26: #{ppo_generator_forward.6} parent=15 // pred_check_branch
          %187 = sbr.rel (%p185) target = $region28
        $region27: #{ppo_generator_forward.6} parent=15 // pred_region
          %s188 = sand.u32 %s91, 1
          %s189 = scalar_lea.sflag [#allocation6], %s188
          %s190 = sand.u32 %s91, 1
          %s191 = smul.addr %s190, 2
          %s192 = scalar_lea.vmem [#allocation5], %s191
          %s193 = smul.u32 2, %s22
          %195 = vsyncadd %s189, 0
          %s196 = scalar_lea.hbm %s2, %s193
          %s198 = sshll.u32 %s196, 4
          %s199 = int_to_ptr.hbm [resolvable:$true] %s198
          %s200 = sshll.u32 %s192, 4
          %s201 = int_to_ptr.vmem [resolvable:$true] %s200
          %203 = dma.hbm_to_vmem [thread:$0]  %s199, 32, %s201, %s189
        $region28: #{ppo_generator_forward.6} parent=15 // pred_fallthru
          _
      $region16: #{ppo_generator_forward.6} parent=5 // pred_fallthru
        _
      %p204 = scmp.le.s32.totalorder 1, %s15
      %p205 = scmp.lt.s32.totalorder %s15, 15
      %p206 = pnand %p204, %p205
      %p207 = pneg %p206
      // Predicated region
      $region29: #{ppo_generator_forward.6} parent=5 // pred_check
        _
      $region30: #{ppo_generator_forward.6} parent=5 // pred_check_branch
        %209 = sbr.rel (%p206) target = $region32
      $region31: #{ppo_generator_forward.6} parent=5 // pred_region
        %s210 = ssub.s32 %s15, 1
        %s211 = sand.u32 %s68, 1
        %s212 = scalar_lea.sflag [#allocation4], %s211
        %s213 = sand.u32 %s68, 1
        %s214 = smul.addr %s213, 7168
        %s215 = scalar_lea.vmem [#allocation3], %s214
        // Predicated region
        $region33: #{ppo_generator_forward.6} parent=31 // pred_check
          %p216 = pneg %p81
        $region34: #{ppo_generator_forward.6} parent=31 // pred_check_branch
          %218 = sbr.rel (%p216) target = $region36
        $region35: #{ppo_generator_forward.6} parent=31 // pred_region
          %220 = dma.done %s212, 114688
        $region36: #{ppo_generator_forward.6} parent=31 // pred_fallthru
          _
        %s221 = sand.u32 %s94, 1
        %s222 = scalar_lea.sflag [#allocation6], %s221
        %s223 = sand.u32 %s94, 1
        %s224 = smul.addr %s223, 2
        %s225 = scalar_lea.vmem [#allocation5], %s224
        // Predicated region
        $region37: #{ppo_generator_forward.6} parent=31 // pred_check
          %p226 = pneg %p107
        $region38: #{ppo_generator_forward.6} parent=31 // pred_check_branch
          %228 = sbr.rel (%p226) target = $region40
        $region39: #{ppo_generator_forward.6} parent=31 // pred_region
          %230 = dma.done %s222, 32
        $region40: #{ppo_generator_forward.6} parent=31 // pred_fallthru
          _
        %s231 = smul.u32 56, %s25
        %p232 = scmp.lt.s32.totalorder %s231, 391
        %s233 = scalar_select %p232, %s231, 391
        %s234 = scalar_lea.vmem %s0, %s233
        %p235 = pneg %p53
        %p236 = pneg %p50
        %s237 = sand.u32 %s68, 1
        %s238 = scalar_lea.sflag [#allocation4], %s237
        %s239 = sand.u32 %s68, 1
        %s240 = smul.addr %s239, 7168
        %s241 = scalar_lea.vmem [#allocation3], %s240
        %p242 = pneg %p81
        %p243 = pneg %p78
        %s244 = sand.u32 %s94, 1
        %s245 = scalar_lea.sflag [#allocation6], %s244
        %s246 = sand.u32 %s94, 1
        %s247 = smul.addr %s246, 2
        %s248 = scalar_lea.vmem [#allocation5], %s247
        %p249 = pneg %p107
        %p250 = pneg %p104
        %p251 = pneg %p133
        %p252 = pneg %p130
        %s253 = smul.u32 2, %s24
        %p254 = scmp.lt.s32.totalorder %s253, 3
        %s255 = scalar_select %p254, %s253, 3
        %s256 = smul.addr %s255, 2
        %s257 = scalar_lea.vmem %s3, %s256
        %s258 = smul.u32 56, %s25
        %p259 = scmp.lt.s32.totalorder %s258, 391
        %s260 = scalar_select %p259, %s258, 391
        %s261 = scalar_lea.vmem %s0, %s260
        %s262 = smul.u32 56, %s25
        %s263 = smul.u32 896, %s25
        %s264 = smul.u32 2, %s24
        %s265 = smul.u32 2, %s24
        %s266 = smul.u32 2, %s24
        %p267 = scmp.lt.s32.totalorder %s266, 3
        %s268 = scalar_select %p267, %s266, 3
        %s269 = smul.addr %s268, 2
        %s270 = scalar_lea.vmem %s3, %s269
        %s271 = smul.u32 2, %s24
        %p272 = scmp.eq.s32.totalorder %s25, 0
        // Predicated region
        $region41: #{ppo_generator_forward.6} parent=31 // pred_check
          %p273 = pneg %p272
        $region42: #{ppo_generator_forward.6} parent=31 // pred_check_branch
          %275 = sbr.rel (%p273) target = $region44
        $region43: #{ppo_generator_forward.6} parent=31 // pred_region
          %276 = vst [vmem:[#allocation2] sm:$0xf] 0.0
        $region44: #{ppo_generator_forward.6} parent=31 // pred_fallthru
          _
        %v277 = vld [vmem:[#allocation2] sm:$0xf]
        %v278 = vld [vmem:[%s261] sm:$0xff]
        %v279 = vld [vmem:[%s261 + $0x8] sm:$0xff]
        %v280 = vld [vmem:[%s261 + $0x10] sm:$0xff]
        %v281 = vld [vmem:[%s261 + $0x18] sm:$0xff]
        %v282 = vld [vmem:[%s261 + $0x20] sm:$0xff]
        %v283 = vld [vmem:[%s261 + $0x28] sm:$0xff]
        %v284 = vld [vmem:[%s261 + $0x30] sm:$0xff]
        %v285 = vld [vmem:[%s215] sm:$0xff]
        %v286 = vld [vmem:[%s215 + $0x8] sm:$0xff]
        %v287 = vld [vmem:[%s215 + $0x10] sm:$0xff]
        %v288 = vld [vmem:[%s215 + $0x18] sm:$0xff]
        %v289 = vld [vmem:[%s215 + $0x20] sm:$0xff]
        %v290 = vld [vmem:[%s215 + $0x28] sm:$0xff]
        %v291 = vld [vmem:[%s215 + $0x30] sm:$0xff]
        %v292 = vld [vmem:[%s215 + $0x38] sm:$0xff]
        %v293 = vld [vmem:[%s215 + $0x40] sm:$0xff]
        %v294 = vld [vmem:[%s215 + $0x48] sm:$0xff]
        %v295 = vld [vmem:[%s215 + $0x50] sm:$0xff]
        %v296 = vld [vmem:[%s215 + $0x58] sm:$0xff]
        %v297 = vld [vmem:[%s215 + $0x60] sm:$0xff]
        %v298 = vld [vmem:[%s215 + $0x68] sm:$0xff]
        %v299 = vld [vmem:[%s215 + $0x70] sm:$0xff]
        %v300 = vld [vmem:[%s215 + $0x78] sm:$0xff]
        %v301 = vld [vmem:[%s215 + $0x80] sm:$0xff]
        %v302 = vld [vmem:[%s215 + $0x88] sm:$0xff]
        %v303 = vld [vmem:[%s215 + $0x90] sm:$0xff]
        %v304 = vld [vmem:[%s215 + $0x98] sm:$0xff]
        %v305 = vld [vmem:[%s215 + $0xa0] sm:$0xff]
        %v306 = vld [vmem:[%s215 + $0xa8] sm:$0xff]
        %v307 = vld [vmem:[%s215 + $0xb0] sm:$0xff]
        %v308 = vld [vmem:[%s215 + $0xb8] sm:$0xff]
        %v309 = vld [vmem:[%s215 + $0xc0] sm:$0xff]
        %v310 = vld [vmem:[%s215 + $0xc8] sm:$0xff]
        %v311 = vld [vmem:[%s215 + $0xd0] sm:$0xff]
        %v312 = vld [vmem:[%s215 + $0xd8] sm:$0xff]
        %v313 = vld [vmem:[%s215 + $0xe0] sm:$0xff]
        %v314 = vld [vmem:[%s215 + $0xe8] sm:$0xff]
        %v315 = vld [vmem:[%s215 + $0xf0] sm:$0xff]
        %v316 = vld [vmem:[%s215 + $0xf8] sm:$0xff]
        %v317 = vld [vmem:[%s215 + $0x100] sm:$0xff]
        %v318 = vld [vmem:[%s215 + $0x108] sm:$0xff]
        %v319 = vld [vmem:[%s215 + $0x110] sm:$0xff]
        %v320 = vld [vmem:[%s215 + $0x118] sm:$0xff]
        %v321 = vld [vmem:[%s215 + $0x120] sm:$0xff]
        %v322 = vld [vmem:[%s215 + $0x128] sm:$0xff]
        %v323 = vld [vmem:[%s215 + $0x130] sm:$0xff]
        %v324 = vld [vmem:[%s215 + $0x138] sm:$0xff]
        %v325 = vld [vmem:[%s215 + $0x140] sm:$0xff]
        %v326 = vld [vmem:[%s215 + $0x148] sm:$0xff]
        %v327 = vld [vmem:[%s215 + $0x150] sm:$0xff]
        %v328 = vld [vmem:[%s215 + $0x158] sm:$0xff]
        %v329 = vld [vmem:[%s215 + $0x160] sm:$0xff]
        %v330 = vld [vmem:[%s215 + $0x168] sm:$0xff]
        %v331 = vld [vmem:[%s215 + $0x170] sm:$0xff]
        %v332 = vld [vmem:[%s215 + $0x178] sm:$0xff]
        %v333 = vld [vmem:[%s215 + $0x180] sm:$0xff]
        %v334 = vld [vmem:[%s215 + $0x188] sm:$0xff]
        %v335 = vld [vmem:[%s215 + $0x190] sm:$0xff]
        %v336 = vld [vmem:[%s215 + $0x198] sm:$0xff]
        %v337 = vld [vmem:[%s215 + $0x1a0] sm:$0xff]
        %v338 = vld [vmem:[%s215 + $0x1a8] sm:$0xff]
        %v339 = vld [vmem:[%s215 + $0x1b0] sm:$0xff]
        %v340 = vld [vmem:[%s215 + $0x1b8] sm:$0xff]
        %v341 = vld [vmem:[%s215 + $0x1c0] sm:$0xff]
        %v342 = vld [vmem:[%s215 + $0x1c8] sm:$0xff]
        %v343 = vld [vmem:[%s215 + $0x1d0] sm:$0xff]
        %v344 = vld [vmem:[%s215 + $0x1d8] sm:$0xff]
        %v345 = vld [vmem:[%s215 + $0x1e0] sm:$0xff]
        %v346 = vld [vmem:[%s215 + $0x1e8] sm:$0xff]
        %v347 = vld [vmem:[%s215 + $0x1f0] sm:$0xff]
        %v348 = vld [vmem:[%s215 + $0x1f8] sm:$0xff]
        %v349 = vld [vmem:[%s215 + $0x200] sm:$0xff]
        %v350 = vld [vmem:[%s215 + $0x208] sm:$0xff]
        %v351 = vld [vmem:[%s215 + $0x210] sm:$0xff]
        %v352 = vld [vmem:[%s215 + $0x218] sm:$0xff]
        %v353 = vld [vmem:[%s215 + $0x220] sm:$0xff]
        %v354 = vld [vmem:[%s215 + $0x228] sm:$0xff]
        %v355 = vld [vmem:[%s215 + $0x230] sm:$0xff]
        %v356 = vld [vmem:[%s215 + $0x238] sm:$0xff]
        %v357 = vld [vmem:[%s215 + $0x240] sm:$0xff]
        %v358 = vld [vmem:[%s215 + $0x248] sm:$0xff]
        %v359 = vld [vmem:[%s215 + $0x250] sm:$0xff]
        %v360 = vld [vmem:[%s215 + $0x258] sm:$0xff]
        %v361 = vld [vmem:[%s215 + $0x260] sm:$0xff]
        %v362 = vld [vmem:[%s215 + $0x268] sm:$0xff]
        %v363 = vld [vmem:[%s215 + $0x270] sm:$0xff]
        %v364 = vld [vmem:[%s215 + $0x278] sm:$0xff]
        %v365 = vld [vmem:[%s215 + $0x280] sm:$0xff]
        %v366 = vld [vmem:[%s215 + $0x288] sm:$0xff]
        %v367 = vld [vmem:[%s215 + $0x290] sm:$0xff]
        %v368 = vld [vmem:[%s215 + $0x298] sm:$0xff]
        %v369 = vld [vmem:[%s215 + $0x2a0] sm:$0xff]
        %v370 = vld [vmem:[%s215 + $0x2a8] sm:$0xff]
        %v371 = vld [vmem:[%s215 + $0x2b0] sm:$0xff]
        %v372 = vld [vmem:[%s215 + $0x2b8] sm:$0xff]
        %v373 = vld [vmem:[%s215 + $0x2c0] sm:$0xff]
        %v374 = vld [vmem:[%s215 + $0x2c8] sm:$0xff]
        %v375 = vld [vmem:[%s215 + $0x2d0] sm:$0xff]
        %v376 = vld [vmem:[%s215 + $0x2d8] sm:$0xff]
        %v377 = vld [vmem:[%s215 + $0x2e0] sm:$0xff]
        %v378 = vld [vmem:[%s215 + $0x2e8] sm:$0xff]
        %v379 = vld [vmem:[%s215 + $0x2f0] sm:$0xff]
        %v380 = vld [vmem:[%s215 + $0x2f8] sm:$0xff]
        %v381 = vld [vmem:[%s215 + $0x300] sm:$0xff]
        %v382 = vld [vmem:[%s215 + $0x308] sm:$0xff]
        %v383 = vld [vmem:[%s215 + $0x310] sm:$0xff]
        %v384 = vld [vmem:[%s215 + $0x318] sm:$0xff]
        %v385 = vld [vmem:[%s215 + $0x320] sm:$0xff]
        %v386 = vld [vmem:[%s215 + $0x328] sm:$0xff]
        %v387 = vld [vmem:[%s215 + $0x330] sm:$0xff]
        %v388 = vld [vmem:[%s215 + $0x338] sm:$0xff]
        %v389 = vld [vmem:[%s215 + $0x340] sm:$0xff]
        %v390 = vld [vmem:[%s215 + $0x348] sm:$0xff]
        %v391 = vld [vmem:[%s215 + $0x350] sm:$0xff]
        %v392 = vld [vmem:[%s215 + $0x358] sm:$0xff]
        %v393 = vld [vmem:[%s215 + $0x360] sm:$0xff]
        %v394 = vld [vmem:[%s215 + $0x368] sm:$0xff]
        %v395 = vld [vmem:[%s215 + $0x370] sm:$0xff]
        %v396 = vld [vmem:[%s215 + $0x378] sm:$0xff]
        %v397 = vld [vmem:[%s215 + $0x380] sm:$0xff]
        %v398 = vld [vmem:[%s215 + $0x388] sm:$0xff]
        %v399 = vld [vmem:[%s215 + $0x390] sm:$0xff]
        %v400 = vld [vmem:[%s215 + $0x398] sm:$0xff]
        %v401 = vld [vmem:[%s215 + $0x3a0] sm:$0xff]
        %v402 = vld [vmem:[%s215 + $0x3a8] sm:$0xff]
        %v403 = vld [vmem:[%s215 + $0x3b0] sm:$0xff]
        %v404 = vld [vmem:[%s215 + $0x3b8] sm:$0xff]
        %v405 = vld [vmem:[%s215 + $0x3c0] sm:$0xff]
        %v406 = vld [vmem:[%s215 + $0x3c8] sm:$0xff]
        %v407 = vld [vmem:[%s215 + $0x3d0] sm:$0xff]
        %v408 = vld [vmem:[%s215 + $0x3d8] sm:$0xff]
        %v409 = vld [vmem:[%s215 + $0x3e0] sm:$0xff]
        %v410 = vld [vmem:[%s215 + $0x3e8] sm:$0xff]
        %v411 = vld [vmem:[%s215 + $0x3f0] sm:$0xff]
        %v412 = vld [vmem:[%s215 + $0x3f8] sm:$0xff]
        %v413 = vld [vmem:[%s215 + $0x400] sm:$0xff]
        %v414 = vld [vmem:[%s215 + $0x408] sm:$0xff]
        %v415 = vld [vmem:[%s215 + $0x410] sm:$0xff]
        %v416 = vld [vmem:[%s215 + $0x418] sm:$0xff]
        %v417 = vld [vmem:[%s215 + $0x420] sm:$0xff]
        %v418 = vld [vmem:[%s215 + $0x428] sm:$0xff]
        %v419 = vld [vmem:[%s215 + $0x430] sm:$0xff]
        %v420 = vld [vmem:[%s215 + $0x438] sm:$0xff]
        %v421 = vld [vmem:[%s215 + $0x440] sm:$0xff]
        %v422 = vld [vmem:[%s215 + $0x448] sm:$0xff]
        %v423 = vld [vmem:[%s215 + $0x450] sm:$0xff]
        %v424 = vld [vmem:[%s215 + $0x458] sm:$0xff]
        %v425 = vld [vmem:[%s215 + $0x460] sm:$0xff]
        %v426 = vld [vmem:[%s215 + $0x468] sm:$0xff]
        %v427 = vld [vmem:[%s215 + $0x470] sm:$0xff]
        %v428 = vld [vmem:[%s215 + $0x478] sm:$0xff]
        %v429 = vld [vmem:[%s215 + $0x480] sm:$0xff]
        %v430 = vld [vmem:[%s215 + $0x488] sm:$0xff]
        %v431 = vld [vmem:[%s215 + $0x490] sm:$0xff]
        %v432 = vld [vmem:[%s215 + $0x498] sm:$0xff]
        %v433 = vld [vmem:[%s215 + $0x4a0] sm:$0xff]
        %v434 = vld [vmem:[%s215 + $0x4a8] sm:$0xff]
        %v435 = vld [vmem:[%s215 + $0x4b0] sm:$0xff]
        %v436 = vld [vmem:[%s215 + $0x4b8] sm:$0xff]
        %v437 = vld [vmem:[%s215 + $0x4c0] sm:$0xff]
        %v438 = vld [vmem:[%s215 + $0x4c8] sm:$0xff]
        %v439 = vld [vmem:[%s215 + $0x4d0] sm:$0xff]
        %v440 = vld [vmem:[%s215 + $0x4d8] sm:$0xff]
        %v441 = vld [vmem:[%s215 + $0x4e0] sm:$0xff]
        %v442 = vld [vmem:[%s215 + $0x4e8] sm:$0xff]
        %v443 = vld [vmem:[%s215 + $0x4f0] sm:$0xff]
        %v444 = vld [vmem:[%s215 + $0x4f8] sm:$0xff]
        %v445 = vld [vmem:[%s215 + $0x500] sm:$0xff]
        %v446 = vld [vmem:[%s215 + $0x508] sm:$0xff]
        %v447 = vld [vmem:[%s215 + $0x510] sm:$0xff]
        %v448 = vld [vmem:[%s215 + $0x518] sm:$0xff]
        %v449 = vld [vmem:[%s215 + $0x520] sm:$0xff]
        %v450 = vld [vmem:[%s215 + $0x528] sm:$0xff]
        %v451 = vld [vmem:[%s215 + $0x530] sm:$0xff]
        %v452 = vld [vmem:[%s215 + $0x538] sm:$0xff]
        %v453 = vld [vmem:[%s215 + $0x540] sm:$0xff]
        %v454 = vld [vmem:[%s215 + $0x548] sm:$0xff]
        %v455 = vld [vmem:[%s215 + $0x550] sm:$0xff]
        %v456 = vld [vmem:[%s215 + $0x558] sm:$0xff]
        %v457 = vld [vmem:[%s215 + $0x560] sm:$0xff]
        %v458 = vld [vmem:[%s215 + $0x568] sm:$0xff]
        %v459 = vld [vmem:[%s215 + $0x570] sm:$0xff]
        %v460 = vld [vmem:[%s215 + $0x578] sm:$0xff]
        %v461 = vld [vmem:[%s215 + $0x580] sm:$0xff]
        %v462 = vld [vmem:[%s215 + $0x588] sm:$0xff]
        %v463 = vld [vmem:[%s215 + $0x590] sm:$0xff]
        %v464 = vld [vmem:[%s215 + $0x598] sm:$0xff]
        %v465 = vld [vmem:[%s215 + $0x5a0] sm:$0xff]
        %v466 = vld [vmem:[%s215 + $0x5a8] sm:$0xff]
        %v467 = vld [vmem:[%s215 + $0x5b0] sm:$0xff]
        %v468 = vld [vmem:[%s215 + $0x5b8] sm:$0xff]
        %v469 = vld [vmem:[%s215 + $0x5c0] sm:$0xff]
        %v470 = vld [vmem:[%s215 + $0x5c8] sm:$0xff]
        %v471 = vld [vmem:[%s215 + $0x5d0] sm:$0xff]
        %v472 = vld [vmem:[%s215 + $0x5d8] sm:$0xff]
        %v473 = vld [vmem:[%s215 + $0x5e0] sm:$0xff]
        %v474 = vld [vmem:[%s215 + $0x5e8] sm:$0xff]
        %v475 = vld [vmem:[%s215 + $0x5f0] sm:$0xff]
        %v476 = vld [vmem:[%s215 + $0x5f8] sm:$0xff]
        %v477 = vld [vmem:[%s215 + $0x600] sm:$0xff]
        %v478 = vld [vmem:[%s215 + $0x608] sm:$0xff]
        %v479 = vld [vmem:[%s215 + $0x610] sm:$0xff]
        %v480 = vld [vmem:[%s215 + $0x618] sm:$0xff]
        %v481 = vld [vmem:[%s215 + $0x620] sm:$0xff]
        %v482 = vld [vmem:[%s215 + $0x628] sm:$0xff]
        %v483 = vld [vmem:[%s215 + $0x630] sm:$0xff]
        %v484 = vld [vmem:[%s215 + $0x638] sm:$0xff]
        %v485 = vld [vmem:[%s215 + $0x640] sm:$0xff]
        %v486 = vld [vmem:[%s215 + $0x648] sm:$0xff]
        %v487 = vld [vmem:[%s215 + $0x650] sm:$0xff]
        %v488 = vld [vmem:[%s215 + $0x658] sm:$0xff]
        %v489 = vld [vmem:[%s215 + $0x660] sm:$0xff]
        %v490 = vld [vmem:[%s215 + $0x668] sm:$0xff]
        %v491 = vld [vmem:[%s215 + $0x670] sm:$0xff]
        %v492 = vld [vmem:[%s215 + $0x678] sm:$0xff]
        %v493 = vld [vmem:[%s215 + $0x680] sm:$0xff]
        %v494 = vld [vmem:[%s215 + $0x688] sm:$0xff]
        %v495 = vld [vmem:[%s215 + $0x690] sm:$0xff]
        %v496 = vld [vmem:[%s215 + $0x698] sm:$0xff]
        %v497 = vld [vmem:[%s215 + $0x6a0] sm:$0xff]
        %v498 = vld [vmem:[%s215 + $0x6a8] sm:$0xff]
        %v499 = vld [vmem:[%s215 + $0x6b0] sm:$0xff]
        %v500 = vld [vmem:[%s215 + $0x6b8] sm:$0xff]
        %v501 = vld [vmem:[%s215 + $0x6c0] sm:$0xff]
        %v502 = vld [vmem:[%s215 + $0x6c8] sm:$0xff]
        %v503 = vld [vmem:[%s215 + $0x6d0] sm:$0xff]
        %v504 = vld [vmem:[%s215 + $0x6d8] sm:$0xff]
        %v505 = vld [vmem:[%s215 + $0x6e0] sm:$0xff]
        %v506 = vld [vmem:[%s215 + $0x6e8] sm:$0xff]
        %v507 = vld [vmem:[%s215 + $0x6f0] sm:$0xff]
        %v508 = vld [vmem:[%s215 + $0x6f8] sm:$0xff]
        %v509 = vld [vmem:[%s215 + $0x700] sm:$0xff]
        %v510 = vld [vmem:[%s215 + $0x708] sm:$0xff]
        %v511 = vld [vmem:[%s215 + $0x710] sm:$0xff]
        %v512 = vld [vmem:[%s215 + $0x718] sm:$0xff]
        %v513 = vld [vmem:[%s215 + $0x720] sm:$0xff]
        %v514 = vld [vmem:[%s215 + $0x728] sm:$0xff]
        %v515 = vld [vmem:[%s215 + $0x730] sm:$0xff]
        %v516 = vld [vmem:[%s215 + $0x738] sm:$0xff]
        %v517 = vld [vmem:[%s215 + $0x740] sm:$0xff]
        %v518 = vld [vmem:[%s215 + $0x748] sm:$0xff]
        %v519 = vld [vmem:[%s215 + $0x750] sm:$0xff]
        %v520 = vld [vmem:[%s215 + $0x758] sm:$0xff]
        %v521 = vld [vmem:[%s215 + $0x760] sm:$0xff]
        %v522 = vld [vmem:[%s215 + $0x768] sm:$0xff]
        %v523 = vld [vmem:[%s215 + $0x770] sm:$0xff]
        %v524 = vld [vmem:[%s215 + $0x778] sm:$0xff]
        %v525 = vld [vmem:[%s215 + $0x780] sm:$0xff]
        %v526 = vld [vmem:[%s215 + $0x788] sm:$0xff]
        %v527 = vld [vmem:[%s215 + $0x790] sm:$0xff]
        %v528 = vld [vmem:[%s215 + $0x798] sm:$0xff]
        %v529 = vld [vmem:[%s215 + $0x7a0] sm:$0xff]
        %v530 = vld [vmem:[%s215 + $0x7a8] sm:$0xff]
        %v531 = vld [vmem:[%s215 + $0x7b0] sm:$0xff]
        %v532 = vld [vmem:[%s215 + $0x7b8] sm:$0xff]
        %v533 = vld [vmem:[%s215 + $0x7c0] sm:$0xff]
        %v534 = vld [vmem:[%s215 + $0x7c8] sm:$0xff]
        %v535 = vld [vmem:[%s215 + $0x7d0] sm:$0xff]
        %v536 = vld [vmem:[%s215 + $0x7d8] sm:$0xff]
        %v537 = vld [vmem:[%s215 + $0x7e0] sm:$0xff]
        %v538 = vld [vmem:[%s215 + $0x7e8] sm:$0xff]
        %v539 = vld [vmem:[%s215 + $0x7f0] sm:$0xff]
        %v540 = vld [vmem:[%s215 + $0x7f8] sm:$0xff]
        %v541 = vld [vmem:[%s215 + $0x800] sm:$0xff]
        %v542 = vld [vmem:[%s215 + $0x808] sm:$0xff]
        %v543 = vld [vmem:[%s215 + $0x810] sm:$0xff]
        %v544 = vld [vmem:[%s215 + $0x818] sm:$0xff]
        %v545 = vld [vmem:[%s215 + $0x820] sm:$0xff]
        %v546 = vld [vmem:[%s215 + $0x828] sm:$0xff]
        %v547 = vld [vmem:[%s215 + $0x830] sm:$0xff]
        %v548 = vld [vmem:[%s215 + $0x838] sm:$0xff]
        %v549 = vld [vmem:[%s215 + $0x840] sm:$0xff]
        %v550 = vld [vmem:[%s215 + $0x848] sm:$0xff]
        %v551 = vld [vmem:[%s215 + $0x850] sm:$0xff]
        %v552 = vld [vmem:[%s215 + $0x858] sm:$0xff]
        %v553 = vld [vmem:[%s215 + $0x860] sm:$0xff]
        %v554 = vld [vmem:[%s215 + $0x868] sm:$0xff]
        %v555 = vld [vmem:[%s215 + $0x870] sm:$0xff]
        %v556 = vld [vmem:[%s215 + $0x878] sm:$0xff]
        %v557 = vld [vmem:[%s215 + $0x880] sm:$0xff]
        %v558 = vld [vmem:[%s215 + $0x888] sm:$0xff]
        %v559 = vld [vmem:[%s215 + $0x890] sm:$0xff]
        %v560 = vld [vmem:[%s215 + $0x898] sm:$0xff]
        %v561 = vld [vmem:[%s215 + $0x8a0] sm:$0xff]
        %v562 = vld [vmem:[%s215 + $0x8a8] sm:$0xff]
        %v563 = vld [vmem:[%s215 + $0x8b0] sm:$0xff]
        %v564 = vld [vmem:[%s215 + $0x8b8] sm:$0xff]
        %v565 = vld [vmem:[%s215 + $0x8c0] sm:$0xff]
        %v566 = vld [vmem:[%s215 + $0x8c8] sm:$0xff]
        %v567 = vld [vmem:[%s215 + $0x8d0] sm:$0xff]
        %v568 = vld [vmem:[%s215 + $0x8d8] sm:$0xff]
        %v569 = vld [vmem:[%s215 + $0x8e0] sm:$0xff]
        %v570 = vld [vmem:[%s215 + $0x8e8] sm:$0xff]
        %v571 = vld [vmem:[%s215 + $0x8f0] sm:$0xff]
        %v572 = vld [vmem:[%s215 + $0x8f8] sm:$0xff]
        %v573 = vld [vmem:[%s215 + $0x900] sm:$0xff]
        %v574 = vld [vmem:[%s215 + $0x908] sm:$0xff]
        %v575 = vld [vmem:[%s215 + $0x910] sm:$0xff]
        %v576 = vld [vmem:[%s215 + $0x918] sm:$0xff]
        %v577 = vld [vmem:[%s215 + $0x920] sm:$0xff]
        %v578 = vld [vmem:[%s215 + $0x928] sm:$0xff]
        %v579 = vld [vmem:[%s215 + $0x930] sm:$0xff]
        %v580 = vld [vmem:[%s215 + $0x938] sm:$0xff]
        %v581 = vld [vmem:[%s215 + $0x940] sm:$0xff]
        %v582 = vld [vmem:[%s215 + $0x948] sm:$0xff]
        %v583 = vld [vmem:[%s215 + $0x950] sm:$0xff]
        %v584 = vld [vmem:[%s215 + $0x958] sm:$0xff]
        %v585 = vld [vmem:[%s215 + $0x960] sm:$0xff]
        %v586 = vld [vmem:[%s215 + $0x968] sm:$0xff]
        %v587 = vld [vmem:[%s215 + $0x970] sm:$0xff]
        %v588 = vld [vmem:[%s215 + $0x978] sm:$0xff]
        %v589 = vld [vmem:[%s215 + $0x980] sm:$0xff]
        %v590 = vld [vmem:[%s215 + $0x988] sm:$0xff]
        %v591 = vld [vmem:[%s215 + $0x990] sm:$0xff]
        %v592 = vld [vmem:[%s215 + $0x998] sm:$0xff]
        %v593 = vld [vmem:[%s215 + $0x9a0] sm:$0xff]
        %v594 = vld [vmem:[%s215 + $0x9a8] sm:$0xff]
        %v595 = vld [vmem:[%s215 + $0x9b0] sm:$0xff]
        %v596 = vld [vmem:[%s215 + $0x9b8] sm:$0xff]
        %v597 = vld [vmem:[%s215 + $0x9c0] sm:$0xff]
        %v598 = vld [vmem:[%s215 + $0x9c8] sm:$0xff]
        %v599 = vld [vmem:[%s215 + $0x9d0] sm:$0xff]
        %v600 = vld [vmem:[%s215 + $0x9d8] sm:$0xff]
        %v601 = vld [vmem:[%s215 + $0x9e0] sm:$0xff]
        %v602 = vld [vmem:[%s215 + $0x9e8] sm:$0xff]
        %v603 = vld [vmem:[%s215 + $0x9f0] sm:$0xff]
        %v604 = vld [vmem:[%s215 + $0x9f8] sm:$0xff]
        %v605 = vld [vmem:[%s215 + $0xa00] sm:$0xff]
        %v606 = vld [vmem:[%s215 + $0xa08] sm:$0xff]
        %v607 = vld [vmem:[%s215 + $0xa10] sm:$0xff]
        %v608 = vld [vmem:[%s215 + $0xa18] sm:$0xff]
        %v609 = vld [vmem:[%s215 + $0xa20] sm:$0xff]
        %v610 = vld [vmem:[%s215 + $0xa28] sm:$0xff]
        %v611 = vld [vmem:[%s215 + $0xa30] sm:$0xff]
        %v612 = vld [vmem:[%s215 + $0xa38] sm:$0xff]
        %v613 = vld [vmem:[%s215 + $0xa40] sm:$0xff]
        %v614 = vld [vmem:[%s215 + $0xa48] sm:$0xff]
        %v615 = vld [vmem:[%s215 + $0xa50] sm:$0xff]
        %v616 = vld [vmem:[%s215 + $0xa58] sm:$0xff]
        %v617 = vld [vmem:[%s215 + $0xa60] sm:$0xff]
        %v618 = vld [vmem:[%s215 + $0xa68] sm:$0xff]
        %v619 = vld [vmem:[%s215 + $0xa70] sm:$0xff]
        %v620 = vld [vmem:[%s215 + $0xa78] sm:$0xff]
        %v621 = vld [vmem:[%s215 + $0xa80] sm:$0xff]
        %v622 = vld [vmem:[%s215 + $0xa88] sm:$0xff]
        %v623 = vld [vmem:[%s215 + $0xa90] sm:$0xff]
        %v624 = vld [vmem:[%s215 + $0xa98] sm:$0xff]
        %v625 = vld [vmem:[%s215 + $0xaa0] sm:$0xff]
        %v626 = vld [vmem:[%s215 + $0xaa8] sm:$0xff]
        %v627 = vld [vmem:[%s215 + $0xab0] sm:$0xff]
        %v628 = vld [vmem:[%s215 + $0xab8] sm:$0xff]
        %v629 = vld [vmem:[%s215 + $0xac0] sm:$0xff]
        %v630 = vld [vmem:[%s215 + $0xac8] sm:$0xff]
        %v631 = vld [vmem:[%s215 + $0xad0] sm:$0xff]
        %v632 = vld [vmem:[%s215 + $0xad8] sm:$0xff]
        %v633 = vld [vmem:[%s215 + $0xae0] sm:$0xff]
        %v634 = vld [vmem:[%s215 + $0xae8] sm:$0xff]
        %v635 = vld [vmem:[%s215 + $0xaf0] sm:$0xff]
        %v636 = vld [vmem:[%s215 + $0xaf8] sm:$0xff]
        %v637 = vld [vmem:[%s215 + $0xb00] sm:$0xff]
        %v638 = vld [vmem:[%s215 + $0xb08] sm:$0xff]
        %v639 = vld [vmem:[%s215 + $0xb10] sm:$0xff]
        %v640 = vld [vmem:[%s215 + $0xb18] sm:$0xff]
        %v641 = vld [vmem:[%s215 + $0xb20] sm:$0xff]
        %v642 = vld [vmem:[%s215 + $0xb28] sm:$0xff]
        %v643 = vld [vmem:[%s215 + $0xb30] sm:$0xff]
        %v644 = vld [vmem:[%s215 + $0xb38] sm:$0xff]
        %v645 = vld [vmem:[%s215 + $0xb40] sm:$0xff]
        %v646 = vld [vmem:[%s215 + $0xb48] sm:$0xff]
        %v647 = vld [vmem:[%s215 + $0xb50] sm:$0xff]
        %v648 = vld [vmem:[%s215 + $0xb58] sm:$0xff]
        %v649 = vld [vmem:[%s215 + $0xb60] sm:$0xff]
        %v650 = vld [vmem:[%s215 + $0xb68] sm:$0xff]
        %v651 = vld [vmem:[%s215 + $0xb70] sm:$0xff]
        %v652 = vld [vmem:[%s215 + $0xb78] sm:$0xff]
        %v653 = vld [vmem:[%s215 + $0xb80] sm:$0xff]
        %v654 = vld [vmem:[%s215 + $0xb88] sm:$0xff]
        %v655 = vld [vmem:[%s215 + $0xb90] sm:$0xff]
        %v656 = vld [vmem:[%s215 + $0xb98] sm:$0xff]
        %v657 = vld [vmem:[%s215 + $0xba0] sm:$0xff]
        %v658 = vld [vmem:[%s215 + $0xba8] sm:$0xff]
        %v659 = vld [vmem:[%s215 + $0xbb0] sm:$0xff]
        %v660 = vld [vmem:[%s215 + $0xbb8] sm:$0xff]
        %v661 = vld [vmem:[%s215 + $0xbc0] sm:$0xff]
        %v662 = vld [vmem:[%s215 + $0xbc8] sm:$0xff]
        %v663 = vld [vmem:[%s215 + $0xbd0] sm:$0xff]
        %v664 = vld [vmem:[%s215 + $0xbd8] sm:$0xff]
        %v665 = vld [vmem:[%s215 + $0xbe0] sm:$0xff]
        %v666 = vld [vmem:[%s215 + $0xbe8] sm:$0xff]
        %v667 = vld [vmem:[%s215 + $0xbf0] sm:$0xff]
        %v668 = vld [vmem:[%s215 + $0xbf8] sm:$0xff]
        %v669 = vld [vmem:[%s215 + $0xc00] sm:$0xff]
        %v670 = vld [vmem:[%s215 + $0xc08] sm:$0xff]
        %v671 = vld [vmem:[%s215 + $0xc10] sm:$0xff]
        %v672 = vld [vmem:[%s215 + $0xc18] sm:$0xff]
        %v673 = vld [vmem:[%s215 + $0xc20] sm:$0xff]
        %v674 = vld [vmem:[%s215 + $0xc28] sm:$0xff]
        %v675 = vld [vmem:[%s215 + $0xc30] sm:$0xff]
        %v676 = vld [vmem:[%s215 + $0xc38] sm:$0xff]
        %v677 = vld [vmem:[%s215 + $0xc40] sm:$0xff]
        %v678 = vld [vmem:[%s215 + $0xc48] sm:$0xff]
        %v679 = vld [vmem:[%s215 + $0xc50] sm:$0xff]
        %v680 = vld [vmem:[%s215 + $0xc58] sm:$0xff]
        %v681 = vld [vmem:[%s215 + $0xc60] sm:$0xff]
        %v682 = vld [vmem:[%s215 + $0xc68] sm:$0xff]
        %v683 = vld [vmem:[%s215 + $0xc70] sm:$0xff]
        %v684 = vld [vmem:[%s215 + $0xc78] sm:$0xff]
        %v685 = vld [vmem:[%s215 + $0xc80] sm:$0xff]
        %v686 = vld [vmem:[%s215 + $0xc88] sm:$0xff]
        %v687 = vld [vmem:[%s215 + $0xc90] sm:$0xff]
        %v688 = vld [vmem:[%s215 + $0xc98] sm:$0xff]
        %v689 = vld [vmem:[%s215 + $0xca0] sm:$0xff]
        %v690 = vld [vmem:[%s215 + $0xca8] sm:$0xff]
        %v691 = vld [vmem:[%s215 + $0xcb0] sm:$0xff]
        %v692 = vld [vmem:[%s215 + $0xcb8] sm:$0xff]
        %v693 = vld [vmem:[%s215 + $0xcc0] sm:$0xff]
        %v694 = vld [vmem:[%s215 + $0xcc8] sm:$0xff]
        %v695 = vld [vmem:[%s215 + $0xcd0] sm:$0xff]
        %v696 = vld [vmem:[%s215 + $0xcd8] sm:$0xff]
        %v697 = vld [vmem:[%s215 + $0xce0] sm:$0xff]
        %v698 = vld [vmem:[%s215 + $0xce8] sm:$0xff]
        %v699 = vld [vmem:[%s215 + $0xcf0] sm:$0xff]
        %v700 = vld [vmem:[%s215 + $0xcf8] sm:$0xff]
        %v701 = vld [vmem:[%s215 + $0xd00] sm:$0xff]
        %v702 = vld [vmem:[%s215 + $0xd08] sm:$0xff]
        %v703 = vld [vmem:[%s215 + $0xd10] sm:$0xff]
        %v704 = vld [vmem:[%s215 + $0xd18] sm:$0xff]
        %v705 = vld [vmem:[%s215 + $0xd20] sm:$0xff]
        %v706 = vld [vmem:[%s215 + $0xd28] sm:$0xff]
        %v707 = vld [vmem:[%s215 + $0xd30] sm:$0xff]
        %v708 = vld [vmem:[%s215 + $0xd38] sm:$0xff]
        %v709 = vld [vmem:[%s215 + $0xd40] sm:$0xff]
        %v710 = vld [vmem:[%s215 + $0xd48] sm:$0xff]
        %v711 = vld [vmem:[%s215 + $0xd50] sm:$0xff]
        %v712 = vld [vmem:[%s215 + $0xd58] sm:$0xff]
        %v713 = vld [vmem:[%s215 + $0xd60] sm:$0xff]
        %v714 = vld [vmem:[%s215 + $0xd68] sm:$0xff]
        %v715 = vld [vmem:[%s215 + $0xd70] sm:$0xff]
        %v716 = vld [vmem:[%s215 + $0xd78] sm:$0xff]
        %v717 = vld [vmem:[%s215 + $0xd80] sm:$0xff]
        %v718 = vld [vmem:[%s215 + $0xd88] sm:$0xff]
        %v719 = vld [vmem:[%s215 + $0xd90] sm:$0xff]
        %v720 = vld [vmem:[%s215 + $0xd98] sm:$0xff]
        %v721 = vld [vmem:[%s215 + $0xda0] sm:$0xff]
        %v722 = vld [vmem:[%s215 + $0xda8] sm:$0xff]
        %v723 = vld [vmem:[%s215 + $0xdb0] sm:$0xff]
        %v724 = vld [vmem:[%s215 + $0xdb8] sm:$0xff]
        %v725 = vld [vmem:[%s215 + $0xdc0] sm:$0xff]
        %v726 = vld [vmem:[%s215 + $0xdc8] sm:$0xff]
        %v727 = vld [vmem:[%s215 + $0xdd0] sm:$0xff]
        %v728 = vld [vmem:[%s215 + $0xdd8] sm:$0xff]
        %v729 = vld [vmem:[%s215 + $0xde0] sm:$0xff]
        %v730 = vld [vmem:[%s215 + $0xde8] sm:$0xff]
        %v731 = vld [vmem:[%s215 + $0xdf0] sm:$0xff]
        %v732 = vld [vmem:[%s215 + $0xdf8] sm:$0xff]
        %v733 = vld [vmem:[%s215 + $0xe00] sm:$0xff]
        %v734 = vld [vmem:[%s215 + $0xe08] sm:$0xff]
        %v735 = vld [vmem:[%s215 + $0xe10] sm:$0xff]
        %v736 = vld [vmem:[%s215 + $0xe18] sm:$0xff]
        %v737 = vld [vmem:[%s215 + $0xe20] sm:$0xff]
        %v738 = vld [vmem:[%s215 + $0xe28] sm:$0xff]
        %v739 = vld [vmem:[%s215 + $0xe30] sm:$0xff]
        %v740 = vld [vmem:[%s215 + $0xe38] sm:$0xff]
        %v741 = vld [vmem:[%s215 + $0xe40] sm:$0xff]
        %v742 = vld [vmem:[%s215 + $0xe48] sm:$0xff]
        %v743 = vld [vmem:[%s215 + $0xe50] sm:$0xff]
        %v744 = vld [vmem:[%s215 + $0xe58] sm:$0xff]
        %v745 = vld [vmem:[%s215 + $0xe60] sm:$0xff]
        %v746 = vld [vmem:[%s215 + $0xe68] sm:$0xff]
        %v747 = vld [vmem:[%s215 + $0xe70] sm:$0xff]
        %v748 = vld [vmem:[%s215 + $0xe78] sm:$0xff]
        %v749 = vld [vmem:[%s215 + $0xe80] sm:$0xff]
        %v750 = vld [vmem:[%s215 + $0xe88] sm:$0xff]
        %v751 = vld [vmem:[%s215 + $0xe90] sm:$0xff]
        %v752 = vld [vmem:[%s215 + $0xe98] sm:$0xff]
        %v753 = vld [vmem:[%s215 + $0xea0] sm:$0xff]
        %v754 = vld [vmem:[%s215 + $0xea8] sm:$0xff]
        %v755 = vld [vmem:[%s215 + $0xeb0] sm:$0xff]
        %v756 = vld [vmem:[%s215 + $0xeb8] sm:$0xff]
        %v757 = vld [vmem:[%s215 + $0xec0] sm:$0xff]
        %v758 = vld [vmem:[%s215 + $0xec8] sm:$0xff]
        %v759 = vld [vmem:[%s215 + $0xed0] sm:$0xff]
        %v760 = vld [vmem:[%s215 + $0xed8] sm:$0xff]
        %v761 = vld [vmem:[%s215 + $0xee0] sm:$0xff]
        %v762 = vld [vmem:[%s215 + $0xee8] sm:$0xff]
        %v763 = vld [vmem:[%s215 + $0xef0] sm:$0xff]
        %v764 = vld [vmem:[%s215 + $0xef8] sm:$0xff]
        %v765 = vld [vmem:[%s215 + $0xf00] sm:$0xff]
        %v766 = vld [vmem:[%s215 + $0xf08] sm:$0xff]
        %v767 = vld [vmem:[%s215 + $0xf10] sm:$0xff]
        %v768 = vld [vmem:[%s215 + $0xf18] sm:$0xff]
        %v769 = vld [vmem:[%s215 + $0xf20] sm:$0xff]
        %v770 = vld [vmem:[%s215 + $0xf28] sm:$0xff]
        %v771 = vld [vmem:[%s215 + $0xf30] sm:$0xff]
        %v772 = vld [vmem:[%s215 + $0xf38] sm:$0xff]
        %v773 = vld [vmem:[%s215 + $0xf40] sm:$0xff]
        %v774 = vld [vmem:[%s215 + $0xf48] sm:$0xff]
        %v775 = vld [vmem:[%s215 + $0xf50] sm:$0xff]
        %v776 = vld [vmem:[%s215 + $0xf58] sm:$0xff]
        %v777 = vld [vmem:[%s215 + $0xf60] sm:$0xff]
        %v778 = vld [vmem:[%s215 + $0xf68] sm:$0xff]
        %v779 = vld [vmem:[%s215 + $0xf70] sm:$0xff]
        %v780 = vld [vmem:[%s215 + $0xf78] sm:$0xff]
        %v781 = vld [vmem:[%s215 + $0xf80] sm:$0xff]
        %v782 = vld [vmem:[%s215 + $0xf88] sm:$0xff]
        %v783 = vld [vmem:[%s215 + $0xf90] sm:$0xff]
        %v784 = vld [vmem:[%s215 + $0xf98] sm:$0xff]
        %v785 = vld [vmem:[%s215 + $0xfa0] sm:$0xff]
        %v786 = vld [vmem:[%s215 + $0xfa8] sm:$0xff]
        %v787 = vld [vmem:[%s215 + $0xfb0] sm:$0xff]
        %v788 = vld [vmem:[%s215 + $0xfb8] sm:$0xff]
        %v789 = vld [vmem:[%s215 + $0xfc0] sm:$0xff]
        %v790 = vld [vmem:[%s215 + $0xfc8] sm:$0xff]
        %v791 = vld [vmem:[%s215 + $0xfd0] sm:$0xff]
        %v792 = vld [vmem:[%s215 + $0xfd8] sm:$0xff]
        %v793 = vld [vmem:[%s215 + $0xfe0] sm:$0xff]
        %v794 = vld [vmem:[%s215 + $0xfe8] sm:$0xff]
        %v795 = vld [vmem:[%s215 + $0xff0] sm:$0xff]
        %v796 = vld [vmem:[%s215 + $0xff8] sm:$0xff]
        %v797 = vld [vmem:[%s215 + $0x1000] sm:$0xff]
        %v798 = vld [vmem:[%s215 + $0x1008] sm:$0xff]
        %v799 = vld [vmem:[%s215 + $0x1010] sm:$0xff]
        %v800 = vld [vmem:[%s215 + $0x1018] sm:$0xff]
        %v801 = vld [vmem:[%s215 + $0x1020] sm:$0xff]
        %v802 = vld [vmem:[%s215 + $0x1028] sm:$0xff]
        %v803 = vld [vmem:[%s215 + $0x1030] sm:$0xff]
        %v804 = vld [vmem:[%s215 + $0x1038] sm:$0xff]
        %v805 = vld [vmem:[%s215 + $0x1040] sm:$0xff]
        %v806 = vld [vmem:[%s215 + $0x1048] sm:$0xff]
        %v807 = vld [vmem:[%s215 + $0x1050] sm:$0xff]
        %v808 = vld [vmem:[%s215 + $0x1058] sm:$0xff]
        %v809 = vld [vmem:[%s215 + $0x1060] sm:$0xff]
        %v810 = vld [vmem:[%s215 + $0x1068] sm:$0xff]
        %v811 = vld [vmem:[%s215 + $0x1070] sm:$0xff]
        %v812 = vld [vmem:[%s215 + $0x1078] sm:$0xff]
        %v813 = vld [vmem:[%s215 + $0x1080] sm:$0xff]
        %v814 = vld [vmem:[%s215 + $0x1088] sm:$0xff]
        %v815 = vld [vmem:[%s215 + $0x1090] sm:$0xff]
        %v816 = vld [vmem:[%s215 + $0x1098] sm:$0xff]
        %v817 = vld [vmem:[%s215 + $0x10a0] sm:$0xff]
        %v818 = vld [vmem:[%s215 + $0x10a8] sm:$0xff]
        %v819 = vld [vmem:[%s215 + $0x10b0] sm:$0xff]
        %v820 = vld [vmem:[%s215 + $0x10b8] sm:$0xff]
        %v821 = vld [vmem:[%s215 + $0x10c0] sm:$0xff]
        %v822 = vld [vmem:[%s215 + $0x10c8] sm:$0xff]
        %v823 = vld [vmem:[%s215 + $0x10d0] sm:$0xff]
        %v824 = vld [vmem:[%s215 + $0x10d8] sm:$0xff]
        %v825 = vld [vmem:[%s215 + $0x10e0] sm:$0xff]
        %v826 = vld [vmem:[%s215 + $0x10e8] sm:$0xff]
        %v827 = vld [vmem:[%s215 + $0x10f0] sm:$0xff]
        %v828 = vld [vmem:[%s215 + $0x10f8] sm:$0xff]
        %v829 = vld [vmem:[%s215 + $0x1100] sm:$0xff]
        %v830 = vld [vmem:[%s215 + $0x1108] sm:$0xff]
        %v831 = vld [vmem:[%s215 + $0x1110] sm:$0xff]
        %v832 = vld [vmem:[%s215 + $0x1118] sm:$0xff]
        %v833 = vld [vmem:[%s215 + $0x1120] sm:$0xff]
        %v834 = vld [vmem:[%s215 + $0x1128] sm:$0xff]
        %v835 = vld [vmem:[%s215 + $0x1130] sm:$0xff]
        %v836 = vld [vmem:[%s215 + $0x1138] sm:$0xff]
        %v837 = vld [vmem:[%s215 + $0x1140] sm:$0xff]
        %v838 = vld [vmem:[%s215 + $0x1148] sm:$0xff]
        %v839 = vld [vmem:[%s215 + $0x1150] sm:$0xff]
        %v840 = vld [vmem:[%s215 + $0x1158] sm:$0xff]
        %v841 = vld [vmem:[%s215 + $0x1160] sm:$0xff]
        %v842 = vld [vmem:[%s215 + $0x1168] sm:$0xff]
        %v843 = vld [vmem:[%s215 + $0x1170] sm:$0xff]
        %v844 = vld [vmem:[%s215 + $0x1178] sm:$0xff]
        %v845 = vld [vmem:[%s215 + $0x1180] sm:$0xff]
        %v846 = vld [vmem:[%s215 + $0x1188] sm:$0xff]
        %v847 = vld [vmem:[%s215 + $0x1190] sm:$0xff]
        %v848 = vld [vmem:[%s215 + $0x1198] sm:$0xff]
        %v849 = vld [vmem:[%s215 + $0x11a0] sm:$0xff]
        %v850 = vld [vmem:[%s215 + $0x11a8] sm:$0xff]
        %v851 = vld [vmem:[%s215 + $0x11b0] sm:$0xff]
        %v852 = vld [vmem:[%s215 + $0x11b8] sm:$0xff]
        %v853 = vld [vmem:[%s215 + $0x11c0] sm:$0xff]
        %v854 = vld [vmem:[%s215 + $0x11c8] sm:$0xff]
        %v855 = vld [vmem:[%s215 + $0x11d0] sm:$0xff]
        %v856 = vld [vmem:[%s215 + $0x11d8] sm:$0xff]
        %v857 = vld [vmem:[%s215 + $0x11e0] sm:$0xff]
        %v858 = vld [vmem:[%s215 + $0x11e8] sm:$0xff]
        %v859 = vld [vmem:[%s215 + $0x11f0] sm:$0xff]
        %v860 = vld [vmem:[%s215 + $0x11f8] sm:$0xff]
        %v861 = vld [vmem:[%s215 + $0x1200] sm:$0xff]
        %v862 = vld [vmem:[%s215 + $0x1208] sm:$0xff]
        %v863 = vld [vmem:[%s215 + $0x1210] sm:$0xff]
        %v864 = vld [vmem:[%s215 + $0x1218] sm:$0xff]
        %v865 = vld [vmem:[%s215 + $0x1220] sm:$0xff]
        %v866 = vld [vmem:[%s215 + $0x1228] sm:$0xff]
        %v867 = vld [vmem:[%s215 + $0x1230] sm:$0xff]
        %v868 = vld [vmem:[%s215 + $0x1238] sm:$0xff]
        %v869 = vld [vmem:[%s215 + $0x1240] sm:$0xff]
        %v870 = vld [vmem:[%s215 + $0x1248] sm:$0xff]
        %v871 = vld [vmem:[%s215 + $0x1250] sm:$0xff]
        %v872 = vld [vmem:[%s215 + $0x1258] sm:$0xff]
        %v873 = vld [vmem:[%s215 + $0x1260] sm:$0xff]
        %v874 = vld [vmem:[%s215 + $0x1268] sm:$0xff]
        %v875 = vld [vmem:[%s215 + $0x1270] sm:$0xff]
        %v876 = vld [vmem:[%s215 + $0x1278] sm:$0xff]
        %v877 = vld [vmem:[%s215 + $0x1280] sm:$0xff]
        %v878 = vld [vmem:[%s215 + $0x1288] sm:$0xff]
        %v879 = vld [vmem:[%s215 + $0x1290] sm:$0xff]
        %v880 = vld [vmem:[%s215 + $0x1298] sm:$0xff]
        %v881 = vld [vmem:[%s215 + $0x12a0] sm:$0xff]
        %v882 = vld [vmem:[%s215 + $0x12a8] sm:$0xff]
        %v883 = vld [vmem:[%s215 + $0x12b0] sm:$0xff]
        %v884 = vld [vmem:[%s215 + $0x12b8] sm:$0xff]
        %v885 = vld [vmem:[%s215 + $0x12c0] sm:$0xff]
        %v886 = vld [vmem:[%s215 + $0x12c8] sm:$0xff]
        %v887 = vld [vmem:[%s215 + $0x12d0] sm:$0xff]
        %v888 = vld [vmem:[%s215 + $0x12d8] sm:$0xff]
        %v889 = vld [vmem:[%s215 + $0x12e0] sm:$0xff]
        %v890 = vld [vmem:[%s215 + $0x12e8] sm:$0xff]
        %v891 = vld [vmem:[%s215 + $0x12f0] sm:$0xff]
        %v892 = vld [vmem:[%s215 + $0x12f8] sm:$0xff]
        %v893 = vld [vmem:[%s215 + $0x1300] sm:$0xff]
        %v894 = vld [vmem:[%s215 + $0x1308] sm:$0xff]
        %v895 = vld [vmem:[%s215 + $0x1310] sm:$0xff]
        %v896 = vld [vmem:[%s215 + $0x1318] sm:$0xff]
        %v897 = vld [vmem:[%s215 + $0x1320] sm:$0xff]
        %v898 = vld [vmem:[%s215 + $0x1328] sm:$0xff]
        %v899 = vld [vmem:[%s215 + $0x1330] sm:$0xff]
        %v900 = vld [vmem:[%s215 + $0x1338] sm:$0xff]
        %v901 = vld [vmem:[%s215 + $0x1340] sm:$0xff]
        %v902 = vld [vmem:[%s215 + $0x1348] sm:$0xff]
        %v903 = vld [vmem:[%s215 + $0x1350] sm:$0xff]
        %v904 = vld [vmem:[%s215 + $0x1358] sm:$0xff]
        %v905 = vld [vmem:[%s215 + $0x1360] sm:$0xff]
        %v906 = vld [vmem:[%s215 + $0x1368] sm:$0xff]
        %v907 = vld [vmem:[%s215 + $0x1370] sm:$0xff]
        %v908 = vld [vmem:[%s215 + $0x1378] sm:$0xff]
        %v909 = vld [vmem:[%s215 + $0x1380] sm:$0xff]
        %v910 = vld [vmem:[%s215 + $0x1388] sm:$0xff]
        %v911 = vld [vmem:[%s215 + $0x1390] sm:$0xff]
        %v912 = vld [vmem:[%s215 + $0x1398] sm:$0xff]
        %v913 = vld [vmem:[%s215 + $0x13a0] sm:$0xff]
        %v914 = vld [vmem:[%s215 + $0x13a8] sm:$0xff]
        %v915 = vld [vmem:[%s215 + $0x13b0] sm:$0xff]
        %v916 = vld [vmem:[%s215 + $0x13b8] sm:$0xff]
        %v917 = vld [vmem:[%s215 + $0x13c0] sm:$0xff]
        %v918 = vld [vmem:[%s215 + $0x13c8] sm:$0xff]
        %v919 = vld [vmem:[%s215 + $0x13d0] sm:$0xff]
        %v920 = vld [vmem:[%s215 + $0x13d8] sm:$0xff]
        %v921 = vld [vmem:[%s215 + $0x13e0] sm:$0xff]
        %v922 = vld [vmem:[%s215 + $0x13e8] sm:$0xff]
        %v923 = vld [vmem:[%s215 + $0x13f0] sm:$0xff]
        %v924 = vld [vmem:[%s215 + $0x13f8] sm:$0xff]
        %v925 = vld [vmem:[%s215 + $0x1400] sm:$0xff]
        %v926 = vld [vmem:[%s215 + $0x1408] sm:$0xff]
        %v927 = vld [vmem:[%s215 + $0x1410] sm:$0xff]
        %v928 = vld [vmem:[%s215 + $0x1418] sm:$0xff]
        %v929 = vld [vmem:[%s215 + $0x1420] sm:$0xff]
        %v930 = vld [vmem:[%s215 + $0x1428] sm:$0xff]
        %v931 = vld [vmem:[%s215 + $0x1430] sm:$0xff]
        %v932 = vld [vmem:[%s215 + $0x1438] sm:$0xff]
        %v933 = vld [vmem:[%s215 + $0x1440] sm:$0xff]
        %v934 = vld [vmem:[%s215 + $0x1448] sm:$0xff]
        %v935 = vld [vmem:[%s215 + $0x1450] sm:$0xff]
        %v936 = vld [vmem:[%s215 + $0x1458] sm:$0xff]
        %v937 = vld [vmem:[%s215 + $0x1460] sm:$0xff]
        %v938 = vld [vmem:[%s215 + $0x1468] sm:$0xff]
        %v939 = vld [vmem:[%s215 + $0x1470] sm:$0xff]
        %v940 = vld [vmem:[%s215 + $0x1478] sm:$0xff]
        %v941 = vld [vmem:[%s215 + $0x1480] sm:$0xff]
        %v942 = vld [vmem:[%s215 + $0x1488] sm:$0xff]
        %v943 = vld [vmem:[%s215 + $0x1490] sm:$0xff]
        %v944 = vld [vmem:[%s215 + $0x1498] sm:$0xff]
        %v945 = vld [vmem:[%s215 + $0x14a0] sm:$0xff]
        %v946 = vld [vmem:[%s215 + $0x14a8] sm:$0xff]
        %v947 = vld [vmem:[%s215 + $0x14b0] sm:$0xff]
        %v948 = vld [vmem:[%s215 + $0x14b8] sm:$0xff]
        %v949 = vld [vmem:[%s215 + $0x14c0] sm:$0xff]
        %v950 = vld [vmem:[%s215 + $0x14c8] sm:$0xff]
        %v951 = vld [vmem:[%s215 + $0x14d0] sm:$0xff]
        %v952 = vld [vmem:[%s215 + $0x14d8] sm:$0xff]
        %v953 = vld [vmem:[%s215 + $0x14e0] sm:$0xff]
        %v954 = vld [vmem:[%s215 + $0x14e8] sm:$0xff]
        %v955 = vld [vmem:[%s215 + $0x14f0] sm:$0xff]
        %v956 = vld [vmem:[%s215 + $0x14f8] sm:$0xff]
        %v957 = vld [vmem:[%s215 + $0x1500] sm:$0xff]
        %v958 = vld [vmem:[%s215 + $0x1508] sm:$0xff]
        %v959 = vld [vmem:[%s215 + $0x1510] sm:$0xff]
        %v960 = vld [vmem:[%s215 + $0x1518] sm:$0xff]
        %v961 = vld [vmem:[%s215 + $0x1520] sm:$0xff]
        %v962 = vld [vmem:[%s215 + $0x1528] sm:$0xff]
        %v963 = vld [vmem:[%s215 + $0x1530] sm:$0xff]
        %v964 = vld [vmem:[%s215 + $0x1538] sm:$0xff]
        %v965 = vld [vmem:[%s215 + $0x1540] sm:$0xff]
        %v966 = vld [vmem:[%s215 + $0x1548] sm:$0xff]
        %v967 = vld [vmem:[%s215 + $0x1550] sm:$0xff]
        %v968 = vld [vmem:[%s215 + $0x1558] sm:$0xff]
        %v969 = vld [vmem:[%s215 + $0x1560] sm:$0xff]
        %v970 = vld [vmem:[%s215 + $0x1568] sm:$0xff]
        %v971 = vld [vmem:[%s215 + $0x1570] sm:$0xff]
        %v972 = vld [vmem:[%s215 + $0x1578] sm:$0xff]
        %v973 = vld [vmem:[%s215 + $0x1580] sm:$0xff]
        %v974 = vld [vmem:[%s215 + $0x1588] sm:$0xff]
        %v975 = vld [vmem:[%s215 + $0x1590] sm:$0xff]
        %v976 = vld [vmem:[%s215 + $0x1598] sm:$0xff]
        %v977 = vld [vmem:[%s215 + $0x15a0] sm:$0xff]
        %v978 = vld [vmem:[%s215 + $0x15a8] sm:$0xff]
        %v979 = vld [vmem:[%s215 + $0x15b0] sm:$0xff]
        %v980 = vld [vmem:[%s215 + $0x15b8] sm:$0xff]
        %v981 = vld [vmem:[%s215 + $0x15c0] sm:$0xff]
        %v982 = vld [vmem:[%s215 + $0x15c8] sm:$0xff]
        %v983 = vld [vmem:[%s215 + $0x15d0] sm:$0xff]
        %v984 = vld [vmem:[%s215 + $0x15d8] sm:$0xff]
        %v985 = vld [vmem:[%s215 + $0x15e0] sm:$0xff]
        %v986 = vld [vmem:[%s215 + $0x15e8] sm:$0xff]
        %v987 = vld [vmem:[%s215 + $0x15f0] sm:$0xff]
        %v988 = vld [vmem:[%s215 + $0x15f8] sm:$0xff]
        %v989 = vld [vmem:[%s215 + $0x1600] sm:$0xff]
        %v990 = vld [vmem:[%s215 + $0x1608] sm:$0xff]
        %v991 = vld [vmem:[%s215 + $0x1610] sm:$0xff]
        %v992 = vld [vmem:[%s215 + $0x1618] sm:$0xff]
        %v993 = vld [vmem:[%s215 + $0x1620] sm:$0xff]
        %v994 = vld [vmem:[%s215 + $0x1628] sm:$0xff]
        %v995 = vld [vmem:[%s215 + $0x1630] sm:$0xff]
        %v996 = vld [vmem:[%s215 + $0x1638] sm:$0xff]
        %v997 = vld [vmem:[%s215 + $0x1640] sm:$0xff]
        %v998 = vld [vmem:[%s215 + $0x1648] sm:$0xff]
        %v999 = vld [vmem:[%s215 + $0x1650] sm:$0xff]
        %v1000 = vld [vmem:[%s215 + $0x1658] sm:$0xff]
        %v1001 = vld [vmem:[%s215 + $0x1660] sm:$0xff]
        %v1002 = vld [vmem:[%s215 + $0x1668] sm:$0xff]
        %v1003 = vld [vmem:[%s215 + $0x1670] sm:$0xff]
        %v1004 = vld [vmem:[%s215 + $0x1678] sm:$0xff]
        %v1005 = vld [vmem:[%s215 + $0x1680] sm:$0xff]
        %v1006 = vld [vmem:[%s215 + $0x1688] sm:$0xff]
        %v1007 = vld [vmem:[%s215 + $0x1690] sm:$0xff]
        %v1008 = vld [vmem:[%s215 + $0x1698] sm:$0xff]
        %v1009 = vld [vmem:[%s215 + $0x16a0] sm:$0xff]
        %v1010 = vld [vmem:[%s215 + $0x16a8] sm:$0xff]
        %v1011 = vld [vmem:[%s215 + $0x16b0] sm:$0xff]
        %v1012 = vld [vmem:[%s215 + $0x16b8] sm:$0xff]
        %v1013 = vld [vmem:[%s215 + $0x16c0] sm:$0xff]
        %v1014 = vld [vmem:[%s215 + $0x16c8] sm:$0xff]
        %v1015 = vld [vmem:[%s215 + $0x16d0] sm:$0xff]
        %v1016 = vld [vmem:[%s215 + $0x16d8] sm:$0xff]
        %v1017 = vld [vmem:[%s215 + $0x16e0] sm:$0xff]
        %v1018 = vld [vmem:[%s215 + $0x16e8] sm:$0xff]
        %v1019 = vld [vmem:[%s215 + $0x16f0] sm:$0xff]
        %v1020 = vld [vmem:[%s215 + $0x16f8] sm:$0xff]
        %v1021 = vld [vmem:[%s215 + $0x1700] sm:$0xff]
        %v1022 = vld [vmem:[%s215 + $0x1708] sm:$0xff]
        %v1023 = vld [vmem:[%s215 + $0x1710] sm:$0xff]
        %v1024 = vld [vmem:[%s215 + $0x1718] sm:$0xff]
        %v1025 = vld [vmem:[%s215 + $0x1720] sm:$0xff]
        %v1026 = vld [vmem:[%s215 + $0x1728] sm:$0xff]
        %v1027 = vld [vmem:[%s215 + $0x1730] sm:$0xff]
        %v1028 = vld [vmem:[%s215 + $0x1738] sm:$0xff]
        %v1029 = vld [vmem:[%s215 + $0x1740] sm:$0xff]
        %v1030 = vld [vmem:[%s215 + $0x1748] sm:$0xff]
        %v1031 = vld [vmem:[%s215 + $0x1750] sm:$0xff]
        %v1032 = vld [vmem:[%s215 + $0x1758] sm:$0xff]
        %v1033 = vld [vmem:[%s215 + $0x1760] sm:$0xff]
        %v1034 = vld [vmem:[%s215 + $0x1768] sm:$0xff]
        %v1035 = vld [vmem:[%s215 + $0x1770] sm:$0xff]
        %v1036 = vld [vmem:[%s215 + $0x1778] sm:$0xff]
        %v1037 = vld [vmem:[%s215 + $0x1780] sm:$0xff]
        %v1038 = vld [vmem:[%s215 + $0x1788] sm:$0xff]
        %v1039 = vld [vmem:[%s215 + $0x1790] sm:$0xff]
        %v1040 = vld [vmem:[%s215 + $0x1798] sm:$0xff]
        %v1041 = vld [vmem:[%s215 + $0x17a0] sm:$0xff]
        %v1042 = vld [vmem:[%s215 + $0x17a8] sm:$0xff]
        %v1043 = vld [vmem:[%s215 + $0x17b0] sm:$0xff]
        %v1044 = vld [vmem:[%s215 + $0x17b8] sm:$0xff]
        %v1045 = vld [vmem:[%s215 + $0x17c0] sm:$0xff]
        %v1046 = vld [vmem:[%s215 + $0x17c8] sm:$0xff]
        %v1047 = vld [vmem:[%s215 + $0x17d0] sm:$0xff]
        %v1048 = vld [vmem:[%s215 + $0x17d8] sm:$0xff]
        %v1049 = vld [vmem:[%s215 + $0x17e0] sm:$0xff]
        %v1050 = vld [vmem:[%s215 + $0x17e8] sm:$0xff]
        %v1051 = vld [vmem:[%s215 + $0x17f0] sm:$0xff]
        %v1052 = vld [vmem:[%s215 + $0x17f8] sm:$0xff]
        %v1053 = vld [vmem:[%s215 + $0x1800] sm:$0xff]
        %v1054 = vld [vmem:[%s215 + $0x1808] sm:$0xff]
        %v1055 = vld [vmem:[%s215 + $0x1810] sm:$0xff]
        %v1056 = vld [vmem:[%s215 + $0x1818] sm:$0xff]
        %v1057 = vld [vmem:[%s215 + $0x1820] sm:$0xff]
        %v1058 = vld [vmem:[%s215 + $0x1828] sm:$0xff]
        %v1059 = vld [vmem:[%s215 + $0x1830] sm:$0xff]
        %v1060 = vld [vmem:[%s215 + $0x1838] sm:$0xff]
        %v1061 = vld [vmem:[%s215 + $0x1840] sm:$0xff]
        %v1062 = vld [vmem:[%s215 + $0x1848] sm:$0xff]
        %v1063 = vld [vmem:[%s215 + $0x1850] sm:$0xff]
        %v1064 = vld [vmem:[%s215 + $0x1858] sm:$0xff]
        %v1065 = vld [vmem:[%s215 + $0x1860] sm:$0xff]
        %v1066 = vld [vmem:[%s215 + $0x1868] sm:$0xff]
        %v1067 = vld [vmem:[%s215 + $0x1870] sm:$0xff]
        %v1068 = vld [vmem:[%s215 + $0x1878] sm:$0xff]
        %v1069 = vld [vmem:[%s215 + $0x1880] sm:$0xff]
        %v1070 = vld [vmem:[%s215 + $0x1888] sm:$0xff]
        %v1071 = vld [vmem:[%s215 + $0x1890] sm:$0xff]
        %v1072 = vld [vmem:[%s215 + $0x1898] sm:$0xff]
        %v1073 = vld [vmem:[%s215 + $0x18a0] sm:$0xff]
        %v1074 = vld [vmem:[%s215 + $0x18a8] sm:$0xff]
        %v1075 = vld [vmem:[%s215 + $0x18b0] sm:$0xff]
        %v1076 = vld [vmem:[%s215 + $0x18b8] sm:$0xff]
        %v1077 = vld [vmem:[%s215 + $0x18c0] sm:$0xff]
        %v1078 = vld [vmem:[%s215 + $0x18c8] sm:$0xff]
        %v1079 = vld [vmem:[%s215 + $0x18d0] sm:$0xff]
        %v1080 = vld [vmem:[%s215 + $0x18d8] sm:$0xff]
        %v1081 = vld [vmem:[%s215 + $0x18e0] sm:$0xff]
        %v1082 = vld [vmem:[%s215 + $0x18e8] sm:$0xff]
        %v1083 = vld [vmem:[%s215 + $0x18f0] sm:$0xff]
        %v1084 = vld [vmem:[%s215 + $0x18f8] sm:$0xff]
        %v1085 = vld [vmem:[%s215 + $0x1900] sm:$0xff]
        %v1086 = vld [vmem:[%s215 + $0x1908] sm:$0xff]
        %v1087 = vld [vmem:[%s215 + $0x1910] sm:$0xff]
        %v1088 = vld [vmem:[%s215 + $0x1918] sm:$0xff]
        %v1089 = vld [vmem:[%s215 + $0x1920] sm:$0xff]
        %v1090 = vld [vmem:[%s215 + $0x1928] sm:$0xff]
        %v1091 = vld [vmem:[%s215 + $0x1930] sm:$0xff]
        %v1092 = vld [vmem:[%s215 + $0x1938] sm:$0xff]
        %v1093 = vld [vmem:[%s215 + $0x1940] sm:$0xff]
        %v1094 = vld [vmem:[%s215 + $0x1948] sm:$0xff]
        %v1095 = vld [vmem:[%s215 + $0x1950] sm:$0xff]
        %v1096 = vld [vmem:[%s215 + $0x1958] sm:$0xff]
        %v1097 = vld [vmem:[%s215 + $0x1960] sm:$0xff]
        %v1098 = vld [vmem:[%s215 + $0x1968] sm:$0xff]
        %v1099 = vld [vmem:[%s215 + $0x1970] sm:$0xff]
        %v1100 = vld [vmem:[%s215 + $0x1978] sm:$0xff]
        %v1101 = vld [vmem:[%s215 + $0x1980] sm:$0xff]
        %v1102 = vld [vmem:[%s215 + $0x1988] sm:$0xff]
        %v1103 = vld [vmem:[%s215 + $0x1990] sm:$0xff]
        %v1104 = vld [vmem:[%s215 + $0x1998] sm:$0xff]
        %v1105 = vld [vmem:[%s215 + $0x19a0] sm:$0xff]
        %v1106 = vld [vmem:[%s215 + $0x19a8] sm:$0xff]
        %v1107 = vld [vmem:[%s215 + $0x19b0] sm:$0xff]
        %v1108 = vld [vmem:[%s215 + $0x19b8] sm:$0xff]
        %v1109 = vld [vmem:[%s215 + $0x19c0] sm:$0xff]
        %v1110 = vld [vmem:[%s215 + $0x19c8] sm:$0xff]
        %v1111 = vld [vmem:[%s215 + $0x19d0] sm:$0xff]
        %v1112 = vld [vmem:[%s215 + $0x19d8] sm:$0xff]
        %v1113 = vld [vmem:[%s215 + $0x19e0] sm:$0xff]
        %v1114 = vld [vmem:[%s215 + $0x19e8] sm:$0xff]
        %v1115 = vld [vmem:[%s215 + $0x19f0] sm:$0xff]
        %v1116 = vld [vmem:[%s215 + $0x19f8] sm:$0xff]
        %v1117 = vld [vmem:[%s215 + $0x1a00] sm:$0xff]
        %v1118 = vld [vmem:[%s215 + $0x1a08] sm:$0xff]
        %v1119 = vld [vmem:[%s215 + $0x1a10] sm:$0xff]
        %v1120 = vld [vmem:[%s215 + $0x1a18] sm:$0xff]
        %v1121 = vld [vmem:[%s215 + $0x1a20] sm:$0xff]
        %v1122 = vld [vmem:[%s215 + $0x1a28] sm:$0xff]
        %v1123 = vld [vmem:[%s215 + $0x1a30] sm:$0xff]
        %v1124 = vld [vmem:[%s215 + $0x1a38] sm:$0xff]
        %v1125 = vld [vmem:[%s215 + $0x1a40] sm:$0xff]
        %v1126 = vld [vmem:[%s215 + $0x1a48] sm:$0xff]
        %v1127 = vld [vmem:[%s215 + $0x1a50] sm:$0xff]
        %v1128 = vld [vmem:[%s215 + $0x1a58] sm:$0xff]
        %v1129 = vld [vmem:[%s215 + $0x1a60] sm:$0xff]
        %v1130 = vld [vmem:[%s215 + $0x1a68] sm:$0xff]
        %v1131 = vld [vmem:[%s215 + $0x1a70] sm:$0xff]
        %v1132 = vld [vmem:[%s215 + $0x1a78] sm:$0xff]
        %v1133 = vld [vmem:[%s215 + $0x1a80] sm:$0xff]
        %v1134 = vld [vmem:[%s215 + $0x1a88] sm:$0xff]
        %v1135 = vld [vmem:[%s215 + $0x1a90] sm:$0xff]
        %v1136 = vld [vmem:[%s215 + $0x1a98] sm:$0xff]
        %v1137 = vld [vmem:[%s215 + $0x1aa0] sm:$0xff]
        %v1138 = vld [vmem:[%s215 + $0x1aa8] sm:$0xff]
        %v1139 = vld [vmem:[%s215 + $0x1ab0] sm:$0xff]
        %v1140 = vld [vmem:[%s215 + $0x1ab8] sm:$0xff]
        %v1141 = vld [vmem:[%s215 + $0x1ac0] sm:$0xff]
        %v1142 = vld [vmem:[%s215 + $0x1ac8] sm:$0xff]
        %v1143 = vld [vmem:[%s215 + $0x1ad0] sm:$0xff]
        %v1144 = vld [vmem:[%s215 + $0x1ad8] sm:$0xff]
        %v1145 = vld [vmem:[%s215 + $0x1ae0] sm:$0xff]
        %v1146 = vld [vmem:[%s215 + $0x1ae8] sm:$0xff]
        %v1147 = vld [vmem:[%s215 + $0x1af0] sm:$0xff]
        %v1148 = vld [vmem:[%s215 + $0x1af8] sm:$0xff]
        %v1149 = vld [vmem:[%s215 + $0x1b00] sm:$0xff]
        %v1150 = vld [vmem:[%s215 + $0x1b08] sm:$0xff]
        %v1151 = vld [vmem:[%s215 + $0x1b10] sm:$0xff]
        %v1152 = vld [vmem:[%s215 + $0x1b18] sm:$0xff]
        %v1153 = vld [vmem:[%s215 + $0x1b20] sm:$0xff]
        %v1154 = vld [vmem:[%s215 + $0x1b28] sm:$0xff]
        %v1155 = vld [vmem:[%s215 + $0x1b30] sm:$0xff]
        %v1156 = vld [vmem:[%s215 + $0x1b38] sm:$0xff]
        %v1157 = vld [vmem:[%s215 + $0x1b40] sm:$0xff]
        %v1158 = vld [vmem:[%s215 + $0x1b48] sm:$0xff]
        %v1159 = vld [vmem:[%s215 + $0x1b50] sm:$0xff]
        %v1160 = vld [vmem:[%s215 + $0x1b58] sm:$0xff]
        %v1161 = vld [vmem:[%s215 + $0x1b60] sm:$0xff]
        %v1162 = vld [vmem:[%s215 + $0x1b68] sm:$0xff]
        %v1163 = vld [vmem:[%s215 + $0x1b70] sm:$0xff]
        %v1164 = vld [vmem:[%s215 + $0x1b78] sm:$0xff]
        %v1165 = vld [vmem:[%s215 + $0x1b80] sm:$0xff]
        %v1166 = vld [vmem:[%s215 + $0x1b88] sm:$0xff]
        %v1167 = vld [vmem:[%s215 + $0x1b90] sm:$0xff]
        %v1168 = vld [vmem:[%s215 + $0x1b98] sm:$0xff]
        %v1169 = vld [vmem:[%s215 + $0x1ba0] sm:$0xff]
        %v1170 = vld [vmem:[%s215 + $0x1ba8] sm:$0xff]
        %v1171 = vld [vmem:[%s215 + $0x1bb0] sm:$0xff]
        %v1172 = vld [vmem:[%s215 + $0x1bb8] sm:$0xff]
        %v1173 = vld [vmem:[%s215 + $0x1bc0] sm:$0xff]
        %v1174 = vld [vmem:[%s215 + $0x1bc8] sm:$0xff]
        %v1175 = vld [vmem:[%s215 + $0x1bd0] sm:$0xff]
        %v1176 = vld [vmem:[%s215 + $0x1bd8] sm:$0xff]
        %v1177 = vld [vmem:[%s215 + $0x1be0] sm:$0xff]
        %v1178 = vld [vmem:[%s215 + $0x1be8] sm:$0xff]
        %v1179 = vld [vmem:[%s215 + $0x1bf0] sm:$0xff]
        %v1180 = vld [vmem:[%s215 + $0x1bf8] sm:$0xff]
        %1182 = vst [vmem:[#allocation1] ss:$9 sm:$0xff] %v278
        %v1183 = vld [vmem:[#allocation1] sm:$0xff]
        %v1184 = vld [vmem:[#allocation1 + $0x9] sm:$0xff]
        %v1185 = vld [vmem:[#allocation1 + $0x12] sm:$0xff]
        %v1186 = vld [vmem:[#allocation1 + $0x1b] sm:$0xff]
        %v1187 = vld [vmem:[#allocation1 + $0x24] sm:$0xff]
        %v1188 = vld [vmem:[#allocation1 + $0x2d] sm:$0xff]
        %v1189 = vld [vmem:[#allocation1 + $0x36] sm:$0xff]
        %v1190 = vld [vmem:[#allocation1 + $0x3f] sm:$0xff]
        %1192 = vst [vmem:[#allocation1] ss:$9 sm:$0xff] %v279
        %v1193 = vld [vmem:[#allocation1] sm:$0xff]
        %v1194 = vld [vmem:[#allocation1 + $0x9] sm:$0xff]
        %v1195 = vld [vmem:[#allocation1 + $0x12] sm:$0xff]
        %v1196 = vld [vmem:[#allocation1 + $0x1b] sm:$0xff]
        %v1197 = vld [vmem:[#allocation1 + $0x24] sm:$0xff]
        %v1198 = vld [vmem:[#allocation1 + $0x2d] sm:$0xff]
        %v1199 = vld [vmem:[#allocation1 + $0x36] sm:$0xff]
        %v1200 = vld [vmem:[#allocation1 + $0x3f] sm:$0xff]
        %1202 = vst [vmem:[#allocation1] ss:$9 sm:$0xff] %v280
        %v1203 = vld [vmem:[#allocation1] sm:$0xff]
        %v1204 = vld [vmem:[#allocation1 + $0x9] sm:$0xff]
        %v1205 = vld [vmem:[#allocation1 + $0x12] sm:$0xff]
        %v1206 = vld [vmem:[#allocation1 + $0x1b] sm:$0xff]
        %v1207 = vld [vmem:[#allocation1 + $0x24] sm:$0xff]
        %v1208 = vld [vmem:[#allocation1 + $0x2d] sm:$0xff]
        %v1209 = vld [vmem:[#allocation1 + $0x36] sm:$0xff]
        %v1210 = vld [vmem:[#allocation1 + $0x3f] sm:$0xff]
        %1212 = vst [vmem:[#allocation1] ss:$9 sm:$0xff] %v281
        %v1213 = vld [vmem:[#allocation1] sm:$0xff]
        %v1214 = vld [vmem:[#allocation1 + $0x9] sm:$0xff]
        %v1215 = vld [vmem:[#allocation1 + $0x12] sm:$0xff]
        %v1216 = vld [vmem:[#allocation1 + $0x1b] sm:$0xff]
        %v1217 = vld [vmem:[#allocation1 + $0x24] sm:$0xff]
        %v1218 = vld [vmem:[#allocation1 + $0x2d] sm:$0xff]
        %v1219 = vld [vmem:[#allocation1 + $0x36] sm:$0xff]
        %v1220 = vld [vmem:[#allocation1 + $0x3f] sm:$0xff]
        %1222 = vst [vmem:[#allocation1] ss:$9 sm:$0xff] %v282
        %v1223 = vld [vmem:[#allocation1] sm:$0xff]
        %v1224 = vld [vmem:[#allocation1 + $0x9] sm:$0xff]
        %v1225 = vld [vmem:[#allocation1 + $0x12] sm:$0xff]
        %v1226 = vld [vmem:[#allocation1 + $0x1b] sm:$0xff]
        %v1227 = vld [vmem:[#allocation1 + $0x24] sm:$0xff]
        %v1228 = vld [vmem:[#allocation1 + $0x2d] sm:$0xff]
        %v1229 = vld [vmem:[#allocation1 + $0x36] sm:$0xff]
        %v1230 = vld [vmem:[#allocation1 + $0x3f] sm:$0xff]
        %1232 = vst [vmem:[#allocation1] ss:$9 sm:$0xff] %v283
        %v1233 = vld [vmem:[#allocation1] sm:$0xff]
        %v1234 = vld [vmem:[#allocation1 + $0x9] sm:$0xff]
        %v1235 = vld [vmem:[#allocation1 + $0x12] sm:$0xff]
        %v1236 = vld [vmem:[#allocation1 + $0x1b] sm:$0xff]
        %v1237 = vld [vmem:[#allocation1 + $0x24] sm:$0xff]
        %v1238 = vld [vmem:[#allocation1 + $0x2d] sm:$0xff]
        %v1239 = vld [vmem:[#allocation1 + $0x36] sm:$0xff]
        %v1240 = vld [vmem:[#allocation1 + $0x3f] sm:$0xff]
        %1242 = vst [vmem:[#allocation1] ss:$9 sm:$0xff] %v284
        %v1243 = vld [vmem:[#allocation1] sm:$0xff]
        %v1244 = vld [vmem:[#allocation1 + $0x9] sm:$0xff]
        %v1245 = vld [vmem:[#allocation1 + $0x12] sm:$0xff]
        %v1246 = vld [vmem:[#allocation1 + $0x1b] sm:$0xff]
        %v1247 = vld [vmem:[#allocation1 + $0x24] sm:$0xff]
        %v1248 = vld [vmem:[#allocation1 + $0x2d] sm:$0xff]
        %v1249 = vld [vmem:[#allocation1 + $0x36] sm:$0xff]
        %v1250 = vld [vmem:[#allocation1 + $0x3f] sm:$0xff]
        %v2203 = vunpack.c.l.b16 %v285
        %v2204 = vunpack.c.h.b16 %v285
        %v2205 = vunpack.c.l.b16 %v286
        %v2206 = vunpack.c.h.b16 %v286
        %v2207 = vunpack.c.l.b16 %v287
        %v2208 = vunpack.c.h.b16 %v287
        %v2209 = vunpack.c.l.b16 %v288
        %v2210 = vunpack.c.h.b16 %v288
        %v2211 = vunpack.c.l.b16 %v289
        %v2212 = vunpack.c.h.b16 %v289
        %v2213 = vunpack.c.l.b16 %v290
        %v2214 = vunpack.c.h.b16 %v290
        %v2215 = vunpack.c.l.b16 %v291
        %v2216 = vunpack.c.h.b16 %v291
        %v2217 = vunpack.c.l.b16 %v292
        %v2218 = vunpack.c.h.b16 %v292
        %v2219 = vunpack.c.l.b16 %v293
        %v2220 = vunpack.c.h.b16 %v293
        %v2221 = vunpack.c.l.b16 %v294
        %v2222 = vunpack.c.h.b16 %v294
        %v2223 = vunpack.c.l.b16 %v295
        %v2224 = vunpack.c.h.b16 %v295
        %v2225 = vunpack.c.l.b16 %v296
        %v2226 = vunpack.c.h.b16 %v296
        %v2227 = vunpack.c.l.b16 %v297
        %v2228 = vunpack.c.h.b16 %v297
        %v2229 = vunpack.c.l.b16 %v298
        %v2230 = vunpack.c.h.b16 %v298
        %v2231 = vunpack.c.l.b16 %v299
        %v2232 = vunpack.c.h.b16 %v299
        %v2233 = vunpack.c.l.b16 %v300
        %v2234 = vunpack.c.h.b16 %v300
        %v2235 = vunpack.c.l.b16 %v301
        %v2236 = vunpack.c.h.b16 %v301
        %v2237 = vunpack.c.l.b16 %v302
        %v2238 = vunpack.c.h.b16 %v302
        %v2239 = vunpack.c.l.b16 %v303
        %v2240 = vunpack.c.h.b16 %v303
        %v2241 = vunpack.c.l.b16 %v304
        %v2242 = vunpack.c.h.b16 %v304
        %v2243 = vunpack.c.l.b16 %v305
        %v2244 = vunpack.c.h.b16 %v305
        %v2245 = vunpack.c.l.b16 %v306
        %v2246 = vunpack.c.h.b16 %v306
        %v2247 = vunpack.c.l.b16 %v307
        %v2248 = vunpack.c.h.b16 %v307
        %v2249 = vunpack.c.l.b16 %v308
        %v2250 = vunpack.c.h.b16 %v308
        %v2251 = vunpack.c.l.b16 %v309
        %v2252 = vunpack.c.h.b16 %v309
        %v2253 = vunpack.c.l.b16 %v310
        %v2254 = vunpack.c.h.b16 %v310
        %v2255 = vunpack.c.l.b16 %v311
        %v2256 = vunpack.c.h.b16 %v311
        %v2257 = vunpack.c.l.b16 %v312
        %v2258 = vunpack.c.h.b16 %v312
        %v2259 = vunpack.c.l.b16 %v313
        %v2260 = vunpack.c.h.b16 %v313
        %v2261 = vunpack.c.l.b16 %v314
        %v2262 = vunpack.c.h.b16 %v314
        %v2263 = vunpack.c.l.b16 %v315
        %v2264 = vunpack.c.h.b16 %v315
        %v2265 = vunpack.c.l.b16 %v316
        %v2266 = vunpack.c.h.b16 %v316
        %v2267 = vunpack.c.l.b16 %v317
        %v2268 = vunpack.c.h.b16 %v317
        %v2269 = vunpack.c.l.b16 %v318
        %v2270 = vunpack.c.h.b16 %v318
        %v2271 = vunpack.c.l.b16 %v319
        %v2272 = vunpack.c.h.b16 %v319
        %v2273 = vunpack.c.l.b16 %v320
        %v2274 = vunpack.c.h.b16 %v320
        %v2275 = vunpack.c.l.b16 %v321
        %v2276 = vunpack.c.h.b16 %v321
        %v2277 = vunpack.c.l.b16 %v322
        %v2278 = vunpack.c.h.b16 %v322
        %v2279 = vunpack.c.l.b16 %v323
        %v2280 = vunpack.c.h.b16 %v323
        %v2281 = vunpack.c.l.b16 %v324
        %v2282 = vunpack.c.h.b16 %v324
        %v2283 = vunpack.c.l.b16 %v325
        %v2284 = vunpack.c.h.b16 %v325
        %v2285 = vunpack.c.l.b16 %v326
        %v2286 = vunpack.c.h.b16 %v326
        %v2287 = vunpack.c.l.b16 %v327
        %v2288 = vunpack.c.h.b16 %v327
        %v2289 = vunpack.c.l.b16 %v328
        %v2290 = vunpack.c.h.b16 %v328
        %v2291 = vunpack.c.l.b16 %v329
        %v2292 = vunpack.c.h.b16 %v329
        %v2293 = vunpack.c.l.b16 %v330
        %v2294 = vunpack.c.h.b16 %v330
        %v2295 = vunpack.c.l.b16 %v331
        %v2296 = vunpack.c.h.b16 %v331
        %v2297 = vunpack.c.l.b16 %v332
        %v2298 = vunpack.c.h.b16 %v332
        %v2299 = vunpack.c.l.b16 %v333
        %v2300 = vunpack.c.h.b16 %v333
        %v2301 = vunpack.c.l.b16 %v334
        %v2302 = vunpack.c.h.b16 %v334
        %v2303 = vunpack.c.l.b16 %v335
        %v2304 = vunpack.c.h.b16 %v335
        %v2305 = vunpack.c.l.b16 %v336
        %v2306 = vunpack.c.h.b16 %v336
        %v2307 = vunpack.c.l.b16 %v337
        %v2308 = vunpack.c.h.b16 %v337
        %v2309 = vunpack.c.l.b16 %v338
        %v2310 = vunpack.c.h.b16 %v338
        %v2311 = vunpack.c.l.b16 %v339
        %v2312 = vunpack.c.h.b16 %v339
        %v2313 = vunpack.c.l.b16 %v340
        %v2314 = vunpack.c.h.b16 %v340
        %v2315 = vunpack.c.l.b16 %v341
        %v2316 = vunpack.c.h.b16 %v341
        %v2317 = vunpack.c.l.b16 %v342
        %v2318 = vunpack.c.h.b16 %v342
        %v2319 = vunpack.c.l.b16 %v343
        %v2320 = vunpack.c.h.b16 %v343
        %v2321 = vunpack.c.l.b16 %v344
        %v2322 = vunpack.c.h.b16 %v344
        %v2323 = vunpack.c.l.b16 %v345
        %v2324 = vunpack.c.h.b16 %v345
        %v2325 = vunpack.c.l.b16 %v346
        %v2326 = vunpack.c.h.b16 %v346
        %v2327 = vunpack.c.l.b16 %v347
        %v2328 = vunpack.c.h.b16 %v347
        %v2329 = vunpack.c.l.b16 %v348
        %v2330 = vunpack.c.h.b16 %v348
        %v2331 = vunpack.c.l.b16 %v349
        %v2332 = vunpack.c.h.b16 %v349
        %v2333 = vunpack.c.l.b16 %v350
        %v2334 = vunpack.c.h.b16 %v350
        %v2335 = vunpack.c.l.b16 %v351
        %v2336 = vunpack.c.h.b16 %v351
        %v2337 = vunpack.c.l.b16 %v352
        %v2338 = vunpack.c.h.b16 %v352
        %v2339 = vunpack.c.l.b16 %v353
        %v2340 = vunpack.c.h.b16 %v353
        %v2341 = vunpack.c.l.b16 %v354
        %v2342 = vunpack.c.h.b16 %v354
        %v2343 = vunpack.c.l.b16 %v355
        %v2344 = vunpack.c.h.b16 %v355
        %v2345 = vunpack.c.l.b16 %v356
        %v2346 = vunpack.c.h.b16 %v356
        %v2347 = vunpack.c.l.b16 %v357
        %v2348 = vunpack.c.h.b16 %v357
        %v2349 = vunpack.c.l.b16 %v358
        %v2350 = vunpack.c.h.b16 %v358
        %v2351 = vunpack.c.l.b16 %v359
        %v2352 = vunpack.c.h.b16 %v359
        %v2353 = vunpack.c.l.b16 %v360
        %v2354 = vunpack.c.h.b16 %v360
        %v2355 = vunpack.c.l.b16 %v361
        %v2356 = vunpack.c.h.b16 %v361
        %v2357 = vunpack.c.l.b16 %v362
        %v2358 = vunpack.c.h.b16 %v362
        %v2359 = vunpack.c.l.b16 %v363
        %v2360 = vunpack.c.h.b16 %v363
        %v2361 = vunpack.c.l.b16 %v364
        %v2362 = vunpack.c.h.b16 %v364
        %v2363 = vunpack.c.l.b16 %v365
        %v2364 = vunpack.c.h.b16 %v365
        %v2365 = vunpack.c.l.b16 %v366
        %v2366 = vunpack.c.h.b16 %v366
        %v2367 = vunpack.c.l.b16 %v367
        %v2368 = vunpack.c.h.b16 %v367
        %v2369 = vunpack.c.l.b16 %v368
        %v2370 = vunpack.c.h.b16 %v368
        %v2371 = vunpack.c.l.b16 %v369
        %v2372 = vunpack.c.h.b16 %v369
        %v2373 = vunpack.c.l.b16 %v370
        %v2374 = vunpack.c.h.b16 %v370
        %v2375 = vunpack.c.l.b16 %v371
        %v2376 = vunpack.c.h.b16 %v371
        %v2377 = vunpack.c.l.b16 %v372
        %v2378 = vunpack.c.h.b16 %v372
        %v2379 = vunpack.c.l.b16 %v373
        %v2380 = vunpack.c.h.b16 %v373
        %v2381 = vunpack.c.l.b16 %v374
        %v2382 = vunpack.c.h.b16 %v374
        %v2383 = vunpack.c.l.b16 %v375
        %v2384 = vunpack.c.h.b16 %v375
        %v2385 = vunpack.c.l.b16 %v376
        %v2386 = vunpack.c.h.b16 %v376
        %v2387 = vunpack.c.l.b16 %v377
        %v2388 = vunpack.c.h.b16 %v377
        %v2389 = vunpack.c.l.b16 %v378
        %v2390 = vunpack.c.h.b16 %v378
        %v2391 = vunpack.c.l.b16 %v379
        %v2392 = vunpack.c.h.b16 %v379
        %v2393 = vunpack.c.l.b16 %v380
        %v2394 = vunpack.c.h.b16 %v380
        %v2395 = vunpack.c.l.b16 %v381
        %v2396 = vunpack.c.h.b16 %v381
        %v2397 = vunpack.c.l.b16 %v382
        %v2398 = vunpack.c.h.b16 %v382
        %v2399 = vunpack.c.l.b16 %v383
        %v2400 = vunpack.c.h.b16 %v383
        %v2401 = vunpack.c.l.b16 %v384
        %v2402 = vunpack.c.h.b16 %v384
        %v2403 = vunpack.c.l.b16 %v385
        %v2404 = vunpack.c.h.b16 %v385
        %v2405 = vunpack.c.l.b16 %v386
        %v2406 = vunpack.c.h.b16 %v386
        %v2407 = vunpack.c.l.b16 %v387
        %v2408 = vunpack.c.h.b16 %v387
        %v2409 = vunpack.c.l.b16 %v388
        %v2410 = vunpack.c.h.b16 %v388
        %v2411 = vunpack.c.l.b16 %v389
        %v2412 = vunpack.c.h.b16 %v389
        %v2413 = vunpack.c.l.b16 %v390
        %v2414 = vunpack.c.h.b16 %v390
        %v2415 = vunpack.c.l.b16 %v391
        %v2416 = vunpack.c.h.b16 %v391
        %v2417 = vunpack.c.l.b16 %v392
        %v2418 = vunpack.c.h.b16 %v392
        %v2419 = vunpack.c.l.b16 %v393
        %v2420 = vunpack.c.h.b16 %v393
        %v2421 = vunpack.c.l.b16 %v394
        %v2422 = vunpack.c.h.b16 %v394
        %v2423 = vunpack.c.l.b16 %v395
        %v2424 = vunpack.c.h.b16 %v395
        %v2425 = vunpack.c.l.b16 %v396
        %v2426 = vunpack.c.h.b16 %v396
        %v2427 = vunpack.c.l.b16 %v397
        %v2428 = vunpack.c.h.b16 %v397
        %v2429 = vunpack.c.l.b16 %v398
        %v2430 = vunpack.c.h.b16 %v398
        %v2431 = vunpack.c.l.b16 %v399
        %v2432 = vunpack.c.h.b16 %v399
        %v2433 = vunpack.c.l.b16 %v400
        %v2434 = vunpack.c.h.b16 %v400
        %v2435 = vunpack.c.l.b16 %v401
        %v2436 = vunpack.c.h.b16 %v401
        %v2437 = vunpack.c.l.b16 %v402
        %v2438 = vunpack.c.h.b16 %v402
        %v2439 = vunpack.c.l.b16 %v403
        %v2440 = vunpack.c.h.b16 %v403
        %v2441 = vunpack.c.l.b16 %v404
        %v2442 = vunpack.c.h.b16 %v404
        %v2443 = vunpack.c.l.b16 %v405
        %v2444 = vunpack.c.h.b16 %v405
        %v2445 = vunpack.c.l.b16 %v406
        %v2446 = vunpack.c.h.b16 %v406
        %v2447 = vunpack.c.l.b16 %v407
        %v2448 = vunpack.c.h.b16 %v407
        %v2449 = vunpack.c.l.b16 %v408
        %v2450 = vunpack.c.h.b16 %v408
        %v2451 = vunpack.c.l.b16 %v409
        %v2452 = vunpack.c.h.b16 %v409
        %v2453 = vunpack.c.l.b16 %v410
        %v2454 = vunpack.c.h.b16 %v410
        %v2455 = vunpack.c.l.b16 %v411
        %v2456 = vunpack.c.h.b16 %v411
        %v2457 = vunpack.c.l.b16 %v412
        %v2458 = vunpack.c.h.b16 %v412
        %v2459 = vunpack.c.l.b16 %v413
        %v2460 = vunpack.c.h.b16 %v413
        %v2461 = vunpack.c.l.b16 %v414
        %v2462 = vunpack.c.h.b16 %v414
        %v2463 = vunpack.c.l.b16 %v415
        %v2464 = vunpack.c.h.b16 %v415
        %v2465 = vunpack.c.l.b16 %v416
        %v2466 = vunpack.c.h.b16 %v416
        %v2467 = vunpack.c.l.b16 %v417
        %v2468 = vunpack.c.h.b16 %v417
        %v2469 = vunpack.c.l.b16 %v418
        %v2470 = vunpack.c.h.b16 %v418
        %v2471 = vunpack.c.l.b16 %v419
        %v2472 = vunpack.c.h.b16 %v419
        %v2473 = vunpack.c.l.b16 %v420
        %v2474 = vunpack.c.h.b16 %v420
        %v2475 = vunpack.c.l.b16 %v421
        %v2476 = vunpack.c.h.b16 %v421
        %v2477 = vunpack.c.l.b16 %v422
        %v2478 = vunpack.c.h.b16 %v422
        %v2479 = vunpack.c.l.b16 %v423
        %v2480 = vunpack.c.h.b16 %v423
        %v2481 = vunpack.c.l.b16 %v424
        %v2482 = vunpack.c.h.b16 %v424
        %v2483 = vunpack.c.l.b16 %v425
        %v2484 = vunpack.c.h.b16 %v425
        %v2485 = vunpack.c.l.b16 %v426
        %v2486 = vunpack.c.h.b16 %v426
        %v2487 = vunpack.c.l.b16 %v427
        %v2488 = vunpack.c.h.b16 %v427
        %v2489 = vunpack.c.l.b16 %v428
        %v2490 = vunpack.c.h.b16 %v428
        %v2491 = vunpack.c.l.b16 %v429
        %v2492 = vunpack.c.h.b16 %v429
        %v2493 = vunpack.c.l.b16 %v430
        %v2494 = vunpack.c.h.b16 %v430
        %v2495 = vunpack.c.l.b16 %v431
        %v2496 = vunpack.c.h.b16 %v431
        %v2497 = vunpack.c.l.b16 %v432
        %v2498 = vunpack.c.h.b16 %v432
        %v2499 = vunpack.c.l.b16 %v433
        %v2500 = vunpack.c.h.b16 %v433
        %v2501 = vunpack.c.l.b16 %v434
        %v2502 = vunpack.c.h.b16 %v434
        %v2503 = vunpack.c.l.b16 %v435
        %v2504 = vunpack.c.h.b16 %v435
        %v2505 = vunpack.c.l.b16 %v436
        %v2506 = vunpack.c.h.b16 %v436
        %v2507 = vunpack.c.l.b16 %v437
        %v2508 = vunpack.c.h.b16 %v437
        %v2509 = vunpack.c.l.b16 %v438
        %v2510 = vunpack.c.h.b16 %v438
        %v2511 = vunpack.c.l.b16 %v439
        %v2512 = vunpack.c.h.b16 %v439
        %v2513 = vunpack.c.l.b16 %v440
        %v2514 = vunpack.c.h.b16 %v440
        %v2515 = vunpack.c.l.b16 %v441
        %v2516 = vunpack.c.h.b16 %v441
        %v2517 = vunpack.c.l.b16 %v442
        %v2518 = vunpack.c.h.b16 %v442
        %v2519 = vunpack.c.l.b16 %v443
        %v2520 = vunpack.c.h.b16 %v443
        %v2521 = vunpack.c.l.b16 %v444
        %v2522 = vunpack.c.h.b16 %v444
        %v2523 = vunpack.c.l.b16 %v445
        %v2524 = vunpack.c.h.b16 %v445
        %v2525 = vunpack.c.l.b16 %v446
        %v2526 = vunpack.c.h.b16 %v446
        %v2527 = vunpack.c.l.b16 %v447
        %v2528 = vunpack.c.h.b16 %v447
        %v2529 = vunpack.c.l.b16 %v448
        %v2530 = vunpack.c.h.b16 %v448
        %v2531 = vunpack.c.l.b16 %v449
        %v2532 = vunpack.c.h.b16 %v449
        %v2533 = vunpack.c.l.b16 %v450
        %v2534 = vunpack.c.h.b16 %v450
        %v2535 = vunpack.c.l.b16 %v451
        %v2536 = vunpack.c.h.b16 %v451
        %v2537 = vunpack.c.l.b16 %v452
        %v2538 = vunpack.c.h.b16 %v452
        %v2539 = vunpack.c.l.b16 %v453
        %v2540 = vunpack.c.h.b16 %v453
        %v2541 = vunpack.c.l.b16 %v454
        %v2542 = vunpack.c.h.b16 %v454
        %v2543 = vunpack.c.l.b16 %v455
        %v2544 = vunpack.c.h.b16 %v455
        %v2545 = vunpack.c.l.b16 %v456
        %v2546 = vunpack.c.h.b16 %v456
        %v2547 = vunpack.c.l.b16 %v457
        %v2548 = vunpack.c.h.b16 %v457
        %v2549 = vunpack.c.l.b16 %v458
        %v2550 = vunpack.c.h.b16 %v458
        %v2551 = vunpack.c.l.b16 %v459
        %v2552 = vunpack.c.h.b16 %v459
        %v2553 = vunpack.c.l.b16 %v460
        %v2554 = vunpack.c.h.b16 %v460
        %v2555 = vunpack.c.l.b16 %v461
        %v2556 = vunpack.c.h.b16 %v461
        %v2557 = vunpack.c.l.b16 %v462
        %v2558 = vunpack.c.h.b16 %v462
        %v2559 = vunpack.c.l.b16 %v463
        %v2560 = vunpack.c.h.b16 %v463
        %v2561 = vunpack.c.l.b16 %v464
        %v2562 = vunpack.c.h.b16 %v464
        %v2563 = vunpack.c.l.b16 %v465
        %v2564 = vunpack.c.h.b16 %v465
        %v2565 = vunpack.c.l.b16 %v466
        %v2566 = vunpack.c.h.b16 %v466
        %v2567 = vunpack.c.l.b16 %v467
        %v2568 = vunpack.c.h.b16 %v467
        %v2569 = vunpack.c.l.b16 %v468
        %v2570 = vunpack.c.h.b16 %v468
        %v2571 = vunpack.c.l.b16 %v469
        %v2572 = vunpack.c.h.b16 %v469
        %v2573 = vunpack.c.l.b16 %v470
        %v2574 = vunpack.c.h.b16 %v470
        %v2575 = vunpack.c.l.b16 %v471
        %v2576 = vunpack.c.h.b16 %v471
        %v2577 = vunpack.c.l.b16 %v472
        %v2578 = vunpack.c.h.b16 %v472
        %v2579 = vunpack.c.l.b16 %v473
        %v2580 = vunpack.c.h.b16 %v473
        %v2581 = vunpack.c.l.b16 %v474
        %v2582 = vunpack.c.h.b16 %v474
        %v2583 = vunpack.c.l.b16 %v475
        %v2584 = vunpack.c.h.b16 %v475
        %v2585 = vunpack.c.l.b16 %v476
        %v2586 = vunpack.c.h.b16 %v476
        %v2587 = vunpack.c.l.b16 %v477
        %v2588 = vunpack.c.h.b16 %v477
        %v2589 = vunpack.c.l.b16 %v478
        %v2590 = vunpack.c.h.b16 %v478
        %v2591 = vunpack.c.l.b16 %v479
        %v2592 = vunpack.c.h.b16 %v479
        %v2593 = vunpack.c.l.b16 %v480
        %v2594 = vunpack.c.h.b16 %v480
        %v2595 = vunpack.c.l.b16 %v481
        %v2596 = vunpack.c.h.b16 %v481
        %v2597 = vunpack.c.l.b16 %v482
        %v2598 = vunpack.c.h.b16 %v482
        %v2599 = vunpack.c.l.b16 %v483
        %v2600 = vunpack.c.h.b16 %v483
        %v2601 = vunpack.c.l.b16 %v484
        %v2602 = vunpack.c.h.b16 %v484
        %v2603 = vunpack.c.l.b16 %v485
        %v2604 = vunpack.c.h.b16 %v485
        %v2605 = vunpack.c.l.b16 %v486
        %v2606 = vunpack.c.h.b16 %v486
        %v2607 = vunpack.c.l.b16 %v487
        %v2608 = vunpack.c.h.b16 %v487
        %v2609 = vunpack.c.l.b16 %v488
        %v2610 = vunpack.c.h.b16 %v488
        %v2611 = vunpack.c.l.b16 %v489
        %v2612 = vunpack.c.h.b16 %v489
        %v2613 = vunpack.c.l.b16 %v490
        %v2614 = vunpack.c.h.b16 %v490
        %v2615 = vunpack.c.l.b16 %v491
        %v2616 = vunpack.c.h.b16 %v491
        %v2617 = vunpack.c.l.b16 %v492
        %v2618 = vunpack.c.h.b16 %v492
        %v2619 = vunpack.c.l.b16 %v493
        %v2620 = vunpack.c.h.b16 %v493
        %v2621 = vunpack.c.l.b16 %v494
        %v2622 = vunpack.c.h.b16 %v494
        %v2623 = vunpack.c.l.b16 %v495
        %v2624 = vunpack.c.h.b16 %v495
        %v2625 = vunpack.c.l.b16 %v496
        %v2626 = vunpack.c.h.b16 %v496
        %v2627 = vunpack.c.l.b16 %v497
        %v2628 = vunpack.c.h.b16 %v497
        %v2629 = vunpack.c.l.b16 %v498
        %v2630 = vunpack.c.h.b16 %v498
        %v2631 = vunpack.c.l.b16 %v499
        %v2632 = vunpack.c.h.b16 %v499
        %v2633 = vunpack.c.l.b16 %v500
        %v2634 = vunpack.c.h.b16 %v500
        %v2635 = vunpack.c.l.b16 %v501
        %v2636 = vunpack.c.h.b16 %v501
        %v2637 = vunpack.c.l.b16 %v502
        %v2638 = vunpack.c.h.b16 %v502
        %v2639 = vunpack.c.l.b16 %v503
        %v2640 = vunpack.c.h.b16 %v503
        %v2641 = vunpack.c.l.b16 %v504
        %v2642 = vunpack.c.h.b16 %v504
        %v2643 = vunpack.c.l.b16 %v505
        %v2644 = vunpack.c.h.b16 %v505
        %v2645 = vunpack.c.l.b16 %v506
        %v2646 = vunpack.c.h.b16 %v506
        %v2647 = vunpack.c.l.b16 %v507
        %v2648 = vunpack.c.h.b16 %v507
        %v2649 = vunpack.c.l.b16 %v508
        %v2650 = vunpack.c.h.b16 %v508
        %v2651 = vunpack.c.l.b16 %v509
        %v2652 = vunpack.c.h.b16 %v509
        %v2653 = vunpack.c.l.b16 %v510
        %v2654 = vunpack.c.h.b16 %v510
        %v2655 = vunpack.c.l.b16 %v511
        %v2656 = vunpack.c.h.b16 %v511
        %v2657 = vunpack.c.l.b16 %v512
        %v2658 = vunpack.c.h.b16 %v512
        %v2659 = vunpack.c.l.b16 %v513
        %v2660 = vunpack.c.h.b16 %v513
        %v2661 = vunpack.c.l.b16 %v514
        %v2662 = vunpack.c.h.b16 %v514
        %v2663 = vunpack.c.l.b16 %v515
        %v2664 = vunpack.c.h.b16 %v515
        %v2665 = vunpack.c.l.b16 %v516
        %v2666 = vunpack.c.h.b16 %v516
        %v2667 = vunpack.c.l.b16 %v517
        %v2668 = vunpack.c.h.b16 %v517
        %v2669 = vunpack.c.l.b16 %v518
        %v2670 = vunpack.c.h.b16 %v518
        %v2671 = vunpack.c.l.b16 %v519
        %v2672 = vunpack.c.h.b16 %v519
        %v2673 = vunpack.c.l.b16 %v520
        %v2674 = vunpack.c.h.b16 %v520
        %v2675 = vunpack.c.l.b16 %v521
        %v2676 = vunpack.c.h.b16 %v521
        %v2677 = vunpack.c.l.b16 %v522
        %v2678 = vunpack.c.h.b16 %v522
        %v2679 = vunpack.c.l.b16 %v523
        %v2680 = vunpack.c.h.b16 %v523
        %v2681 = vunpack.c.l.b16 %v524
        %v2682 = vunpack.c.h.b16 %v524
        %v2683 = vunpack.c.l.b16 %v525
        %v2684 = vunpack.c.h.b16 %v525
        %v2685 = vunpack.c.l.b16 %v526
        %v2686 = vunpack.c.h.b16 %v526
        %v2687 = vunpack.c.l.b16 %v527
        %v2688 = vunpack.c.h.b16 %v527
        %v2689 = vunpack.c.l.b16 %v528
        %v2690 = vunpack.c.h.b16 %v528
        %v2691 = vunpack.c.l.b16 %v529
        %v2692 = vunpack.c.h.b16 %v529
        %v2693 = vunpack.c.l.b16 %v530
        %v2694 = vunpack.c.h.b16 %v530
        %v2695 = vunpack.c.l.b16 %v531
        %v2696 = vunpack.c.h.b16 %v531
        %v2697 = vunpack.c.l.b16 %v532
        %v2698 = vunpack.c.h.b16 %v532
        %v2699 = vunpack.c.l.b16 %v533
        %v2700 = vunpack.c.h.b16 %v533
        %v2701 = vunpack.c.l.b16 %v534
        %v2702 = vunpack.c.h.b16 %v534
        %v2703 = vunpack.c.l.b16 %v535
        %v2704 = vunpack.c.h.b16 %v535
        %v2705 = vunpack.c.l.b16 %v536
        %v2706 = vunpack.c.h.b16 %v536
        %v2707 = vunpack.c.l.b16 %v537
        %v2708 = vunpack.c.h.b16 %v537
        %v2709 = vunpack.c.l.b16 %v538
        %v2710 = vunpack.c.h.b16 %v538
        %v2711 = vunpack.c.l.b16 %v539
        %v2712 = vunpack.c.h.b16 %v539
        %v2713 = vunpack.c.l.b16 %v540
        %v2714 = vunpack.c.h.b16 %v540
        %v2715 = vunpack.c.l.b16 %v541
        %v2716 = vunpack.c.h.b16 %v541
        %v2717 = vunpack.c.l.b16 %v542
        %v2718 = vunpack.c.h.b16 %v542
        %v2719 = vunpack.c.l.b16 %v543
        %v2720 = vunpack.c.h.b16 %v543
        %v2721 = vunpack.c.l.b16 %v544
        %v2722 = vunpack.c.h.b16 %v544
        %v2723 = vunpack.c.l.b16 %v545
        %v2724 = vunpack.c.h.b16 %v545
        %v2725 = vunpack.c.l.b16 %v546
        %v2726 = vunpack.c.h.b16 %v546
        %v2727 = vunpack.c.l.b16 %v547
        %v2728 = vunpack.c.h.b16 %v547
        %v2729 = vunpack.c.l.b16 %v548
        %v2730 = vunpack.c.h.b16 %v548
        %v2731 = vunpack.c.l.b16 %v549
        %v2732 = vunpack.c.h.b16 %v549
        %v2733 = vunpack.c.l.b16 %v550
        %v2734 = vunpack.c.h.b16 %v550
        %v2735 = vunpack.c.l.b16 %v551
        %v2736 = vunpack.c.h.b16 %v551
        %v2737 = vunpack.c.l.b16 %v552
        %v2738 = vunpack.c.h.b16 %v552
        %v2739 = vunpack.c.l.b16 %v553
        %v2740 = vunpack.c.h.b16 %v553
        %v2741 = vunpack.c.l.b16 %v554
        %v2742 = vunpack.c.h.b16 %v554
        %v2743 = vunpack.c.l.b16 %v555
        %v2744 = vunpack.c.h.b16 %v555
        %v2745 = vunpack.c.l.b16 %v556
        %v2746 = vunpack.c.h.b16 %v556
        %v2747 = vunpack.c.l.b16 %v557
        %v2748 = vunpack.c.h.b16 %v557
        %v2749 = vunpack.c.l.b16 %v558
        %v2750 = vunpack.c.h.b16 %v558
        %v2751 = vunpack.c.l.b16 %v559
        %v2752 = vunpack.c.h.b16 %v559
        %v2753 = vunpack.c.l.b16 %v560
        %v2754 = vunpack.c.h.b16 %v560
        %v2755 = vunpack.c.l.b16 %v561
        %v2756 = vunpack.c.h.b16 %v561
        %v2757 = vunpack.c.l.b16 %v562
        %v2758 = vunpack.c.h.b16 %v562
        %v2759 = vunpack.c.l.b16 %v563
        %v2760 = vunpack.c.h.b16 %v563
        %v2761 = vunpack.c.l.b16 %v564
        %v2762 = vunpack.c.h.b16 %v564
        %v2763 = vunpack.c.l.b16 %v565
        %v2764 = vunpack.c.h.b16 %v565
        %v2765 = vunpack.c.l.b16 %v566
        %v2766 = vunpack.c.h.b16 %v566
        %v2767 = vunpack.c.l.b16 %v567
        %v2768 = vunpack.c.h.b16 %v567
        %v2769 = vunpack.c.l.b16 %v568
        %v2770 = vunpack.c.h.b16 %v568
        %v2771 = vunpack.c.l.b16 %v569
        %v2772 = vunpack.c.h.b16 %v569
        %v2773 = vunpack.c.l.b16 %v570
        %v2774 = vunpack.c.h.b16 %v570
        %v2775 = vunpack.c.l.b16 %v571
        %v2776 = vunpack.c.h.b16 %v571
        %v2777 = vunpack.c.l.b16 %v572
        %v2778 = vunpack.c.h.b16 %v572
        %v2779 = vunpack.c.l.b16 %v573
        %v2780 = vunpack.c.h.b16 %v573
        %v2781 = vunpack.c.l.b16 %v574
        %v2782 = vunpack.c.h.b16 %v574
        %v2783 = vunpack.c.l.b16 %v575
        %v2784 = vunpack.c.h.b16 %v575
        %v2785 = vunpack.c.l.b16 %v576
        %v2786 = vunpack.c.h.b16 %v576
        %v2787 = vunpack.c.l.b16 %v577
        %v2788 = vunpack.c.h.b16 %v577
        %v2789 = vunpack.c.l.b16 %v578
        %v2790 = vunpack.c.h.b16 %v578
        %v2791 = vunpack.c.l.b16 %v579
        %v2792 = vunpack.c.h.b16 %v579
        %v2793 = vunpack.c.l.b16 %v580
        %v2794 = vunpack.c.h.b16 %v580
        %v2795 = vunpack.c.l.b16 %v581
        %v2796 = vunpack.c.h.b16 %v581
        %v2797 = vunpack.c.l.b16 %v582
        %v2798 = vunpack.c.h.b16 %v582
        %v2799 = vunpack.c.l.b16 %v583
        %v2800 = vunpack.c.h.b16 %v583
        %v2801 = vunpack.c.l.b16 %v584
        %v2802 = vunpack.c.h.b16 %v584
        %v2803 = vunpack.c.l.b16 %v585
        %v2804 = vunpack.c.h.b16 %v585
        %v2805 = vunpack.c.l.b16 %v586
        %v2806 = vunpack.c.h.b16 %v586
        %v2807 = vunpack.c.l.b16 %v587
        %v2808 = vunpack.c.h.b16 %v587
        %v2809 = vunpack.c.l.b16 %v588
        %v2810 = vunpack.c.h.b16 %v588
        %v2811 = vunpack.c.l.b16 %v589
        %v2812 = vunpack.c.h.b16 %v589
        %v2813 = vunpack.c.l.b16 %v590
        %v2814 = vunpack.c.h.b16 %v590
        %v2815 = vunpack.c.l.b16 %v591
        %v2816 = vunpack.c.h.b16 %v591
        %v2817 = vunpack.c.l.b16 %v592
        %v2818 = vunpack.c.h.b16 %v592
        %v2819 = vunpack.c.l.b16 %v593
        %v2820 = vunpack.c.h.b16 %v593
        %v2821 = vunpack.c.l.b16 %v594
        %v2822 = vunpack.c.h.b16 %v594
        %v2823 = vunpack.c.l.b16 %v595
        %v2824 = vunpack.c.h.b16 %v595
        %v2825 = vunpack.c.l.b16 %v596
        %v2826 = vunpack.c.h.b16 %v596
        %v2827 = vunpack.c.l.b16 %v597
        %v2828 = vunpack.c.h.b16 %v597
        %v2829 = vunpack.c.l.b16 %v598
        %v2830 = vunpack.c.h.b16 %v598
        %v2831 = vunpack.c.l.b16 %v599
        %v2832 = vunpack.c.h.b16 %v599
        %v2833 = vunpack.c.l.b16 %v600
        %v2834 = vunpack.c.h.b16 %v600
        %v2835 = vunpack.c.l.b16 %v601
        %v2836 = vunpack.c.h.b16 %v601
        %v2837 = vunpack.c.l.b16 %v602
        %v2838 = vunpack.c.h.b16 %v602
        %v2839 = vunpack.c.l.b16 %v603
        %v2840 = vunpack.c.h.b16 %v603
        %v2841 = vunpack.c.l.b16 %v604
        %v2842 = vunpack.c.h.b16 %v604
        %v2843 = vunpack.c.l.b16 %v605
        %v2844 = vunpack.c.h.b16 %v605
        %v2845 = vunpack.c.l.b16 %v606
        %v2846 = vunpack.c.h.b16 %v606
        %v2847 = vunpack.c.l.b16 %v607
        %v2848 = vunpack.c.h.b16 %v607
        %v2849 = vunpack.c.l.b16 %v608
        %v2850 = vunpack.c.h.b16 %v608
        %v2851 = vunpack.c.l.b16 %v609
        %v2852 = vunpack.c.h.b16 %v609
        %v2853 = vunpack.c.l.b16 %v610
        %v2854 = vunpack.c.h.b16 %v610
        %v2855 = vunpack.c.l.b16 %v611
        %v2856 = vunpack.c.h.b16 %v611
        %v2857 = vunpack.c.l.b16 %v612
        %v2858 = vunpack.c.h.b16 %v612
        %v2859 = vunpack.c.l.b16 %v613
        %v2860 = vunpack.c.h.b16 %v613
        %v2861 = vunpack.c.l.b16 %v614
        %v2862 = vunpack.c.h.b16 %v614
        %v2863 = vunpack.c.l.b16 %v615
        %v2864 = vunpack.c.h.b16 %v615
        %v2865 = vunpack.c.l.b16 %v616
        %v2866 = vunpack.c.h.b16 %v616
        %v2867 = vunpack.c.l.b16 %v617
        %v2868 = vunpack.c.h.b16 %v617
        %v2869 = vunpack.c.l.b16 %v618
        %v2870 = vunpack.c.h.b16 %v618
        %v2871 = vunpack.c.l.b16 %v619
        %v2872 = vunpack.c.h.b16 %v619
        %v2873 = vunpack.c.l.b16 %v620
        %v2874 = vunpack.c.h.b16 %v620
        %v2875 = vunpack.c.l.b16 %v621
        %v2876 = vunpack.c.h.b16 %v621
        %v2877 = vunpack.c.l.b16 %v622
        %v2878 = vunpack.c.h.b16 %v622
        %v2879 = vunpack.c.l.b16 %v623
        %v2880 = vunpack.c.h.b16 %v623
        %v2881 = vunpack.c.l.b16 %v624
        %v2882 = vunpack.c.h.b16 %v624
        %v2883 = vunpack.c.l.b16 %v625
        %v2884 = vunpack.c.h.b16 %v625
        %v2885 = vunpack.c.l.b16 %v626
        %v2886 = vunpack.c.h.b16 %v626
        %v2887 = vunpack.c.l.b16 %v627
        %v2888 = vunpack.c.h.b16 %v627
        %v2889 = vunpack.c.l.b16 %v628
        %v2890 = vunpack.c.h.b16 %v628
        %v2891 = vunpack.c.l.b16 %v629
        %v2892 = vunpack.c.h.b16 %v629
        %v2893 = vunpack.c.l.b16 %v630
        %v2894 = vunpack.c.h.b16 %v630
        %v2895 = vunpack.c.l.b16 %v631
        %v2896 = vunpack.c.h.b16 %v631
        %v2897 = vunpack.c.l.b16 %v632
        %v2898 = vunpack.c.h.b16 %v632
        %v2899 = vunpack.c.l.b16 %v633
        %v2900 = vunpack.c.h.b16 %v633
        %v2901 = vunpack.c.l.b16 %v634
        %v2902 = vunpack.c.h.b16 %v634
        %v2903 = vunpack.c.l.b16 %v635
        %v2904 = vunpack.c.h.b16 %v635
        %v2905 = vunpack.c.l.b16 %v636
        %v2906 = vunpack.c.h.b16 %v636
        %v2907 = vunpack.c.l.b16 %v637
        %v2908 = vunpack.c.h.b16 %v637
        %v2909 = vunpack.c.l.b16 %v638
        %v2910 = vunpack.c.h.b16 %v638
        %v2911 = vunpack.c.l.b16 %v639
        %v2912 = vunpack.c.h.b16 %v639
        %v2913 = vunpack.c.l.b16 %v640
        %v2914 = vunpack.c.h.b16 %v640
        %v2915 = vunpack.c.l.b16 %v641
        %v2916 = vunpack.c.h.b16 %v641
        %v2917 = vunpack.c.l.b16 %v642
        %v2918 = vunpack.c.h.b16 %v642
        %v2919 = vunpack.c.l.b16 %v643
        %v2920 = vunpack.c.h.b16 %v643
        %v2921 = vunpack.c.l.b16 %v644
        %v2922 = vunpack.c.h.b16 %v644
        %v2923 = vunpack.c.l.b16 %v645
        %v2924 = vunpack.c.h.b16 %v645
        %v2925 = vunpack.c.l.b16 %v646
        %v2926 = vunpack.c.h.b16 %v646
        %v2927 = vunpack.c.l.b16 %v647
        %v2928 = vunpack.c.h.b16 %v647
        %v2929 = vunpack.c.l.b16 %v648
        %v2930 = vunpack.c.h.b16 %v648
        %v2931 = vunpack.c.l.b16 %v649
        %v2932 = vunpack.c.h.b16 %v649
        %v2933 = vunpack.c.l.b16 %v650
        %v2934 = vunpack.c.h.b16 %v650
        %v2935 = vunpack.c.l.b16 %v651
        %v2936 = vunpack.c.h.b16 %v651
        %v2937 = vunpack.c.l.b16 %v652
        %v2938 = vunpack.c.h.b16 %v652
        %v2939 = vunpack.c.l.b16 %v653
        %v2940 = vunpack.c.h.b16 %v653
        %v2941 = vunpack.c.l.b16 %v654
        %v2942 = vunpack.c.h.b16 %v654
        %v2943 = vunpack.c.l.b16 %v655
        %v2944 = vunpack.c.h.b16 %v655
        %v2945 = vunpack.c.l.b16 %v656
        %v2946 = vunpack.c.h.b16 %v656
        %v2947 = vunpack.c.l.b16 %v657
        %v2948 = vunpack.c.h.b16 %v657
        %v2949 = vunpack.c.l.b16 %v658
        %v2950 = vunpack.c.h.b16 %v658
        %v2951 = vunpack.c.l.b16 %v659
        %v2952 = vunpack.c.h.b16 %v659
        %v2953 = vunpack.c.l.b16 %v660
        %v2954 = vunpack.c.h.b16 %v660
        %v2955 = vunpack.c.l.b16 %v661
        %v2956 = vunpack.c.h.b16 %v661
        %v2957 = vunpack.c.l.b16 %v662
        %v2958 = vunpack.c.h.b16 %v662
        %v2959 = vunpack.c.l.b16 %v663
        %v2960 = vunpack.c.h.b16 %v663
        %v2961 = vunpack.c.l.b16 %v664
        %v2962 = vunpack.c.h.b16 %v664
        %v2963 = vunpack.c.l.b16 %v665
        %v2964 = vunpack.c.h.b16 %v665
        %v2965 = vunpack.c.l.b16 %v666
        %v2966 = vunpack.c.h.b16 %v666
        %v2967 = vunpack.c.l.b16 %v667
        %v2968 = vunpack.c.h.b16 %v667
        %v2969 = vunpack.c.l.b16 %v668
        %v2970 = vunpack.c.h.b16 %v668
        %v2971 = vunpack.c.l.b16 %v669
        %v2972 = vunpack.c.h.b16 %v669
        %v2973 = vunpack.c.l.b16 %v670
        %v2974 = vunpack.c.h.b16 %v670
        %v2975 = vunpack.c.l.b16 %v671
        %v2976 = vunpack.c.h.b16 %v671
        %v2977 = vunpack.c.l.b16 %v672
        %v2978 = vunpack.c.h.b16 %v672
        %v2979 = vunpack.c.l.b16 %v673
        %v2980 = vunpack.c.h.b16 %v673
        %v2981 = vunpack.c.l.b16 %v674
        %v2982 = vunpack.c.h.b16 %v674
        %v2983 = vunpack.c.l.b16 %v675
        %v2984 = vunpack.c.h.b16 %v675
        %v2985 = vunpack.c.l.b16 %v676
        %v2986 = vunpack.c.h.b16 %v676
        %v2987 = vunpack.c.l.b16 %v677
        %v2988 = vunpack.c.h.b16 %v677
        %v2989 = vunpack.c.l.b16 %v678
        %v2990 = vunpack.c.h.b16 %v678
        %v2991 = vunpack.c.l.b16 %v679
        %v2992 = vunpack.c.h.b16 %v679
        %v2993 = vunpack.c.l.b16 %v680
        %v2994 = vunpack.c.h.b16 %v680
        %v2995 = vunpack.c.l.b16 %v681
        %v2996 = vunpack.c.h.b16 %v681
        %v2997 = vunpack.c.l.b16 %v682
        %v2998 = vunpack.c.h.b16 %v682
        %v2999 = vunpack.c.l.b16 %v683
        %v3000 = vunpack.c.h.b16 %v683
        %v3001 = vunpack.c.l.b16 %v684
        %v3002 = vunpack.c.h.b16 %v684
        %v3003 = vunpack.c.l.b16 %v685
        %v3004 = vunpack.c.h.b16 %v685
        %v3005 = vunpack.c.l.b16 %v686
        %v3006 = vunpack.c.h.b16 %v686
        %v3007 = vunpack.c.l.b16 %v687
        %v3008 = vunpack.c.h.b16 %v687
        %v3009 = vunpack.c.l.b16 %v688
        %v3010 = vunpack.c.h.b16 %v688
        %v3011 = vunpack.c.l.b16 %v689
        %v3012 = vunpack.c.h.b16 %v689
        %v3013 = vunpack.c.l.b16 %v690
        %v3014 = vunpack.c.h.b16 %v690
        %v3015 = vunpack.c.l.b16 %v691
        %v3016 = vunpack.c.h.b16 %v691
        %v3017 = vunpack.c.l.b16 %v692
        %v3018 = vunpack.c.h.b16 %v692
        %v3019 = vunpack.c.l.b16 %v693
        %v3020 = vunpack.c.h.b16 %v693
        %v3021 = vunpack.c.l.b16 %v694
        %v3022 = vunpack.c.h.b16 %v694
        %v3023 = vunpack.c.l.b16 %v695
        %v3024 = vunpack.c.h.b16 %v695
        %v3025 = vunpack.c.l.b16 %v696
        %v3026 = vunpack.c.h.b16 %v696
        %v3027 = vunpack.c.l.b16 %v697
        %v3028 = vunpack.c.h.b16 %v697
        %v3029 = vunpack.c.l.b16 %v698
        %v3030 = vunpack.c.h.b16 %v698
        %v3031 = vunpack.c.l.b16 %v699
        %v3032 = vunpack.c.h.b16 %v699
        %v3033 = vunpack.c.l.b16 %v700
        %v3034 = vunpack.c.h.b16 %v700
        %v3035 = vunpack.c.l.b16 %v701
        %v3036 = vunpack.c.h.b16 %v701
        %v3037 = vunpack.c.l.b16 %v702
        %v3038 = vunpack.c.h.b16 %v702
        %v3039 = vunpack.c.l.b16 %v703
        %v3040 = vunpack.c.h.b16 %v703
        %v3041 = vunpack.c.l.b16 %v704
        %v3042 = vunpack.c.h.b16 %v704
        %v3043 = vunpack.c.l.b16 %v705
        %v3044 = vunpack.c.h.b16 %v705
        %v3045 = vunpack.c.l.b16 %v706
        %v3046 = vunpack.c.h.b16 %v706
        %v3047 = vunpack.c.l.b16 %v707
        %v3048 = vunpack.c.h.b16 %v707
        %v3049 = vunpack.c.l.b16 %v708
        %v3050 = vunpack.c.h.b16 %v708
        %v3051 = vunpack.c.l.b16 %v709
        %v3052 = vunpack.c.h.b16 %v709
        %v3053 = vunpack.c.l.b16 %v710
        %v3054 = vunpack.c.h.b16 %v710
        %v3055 = vunpack.c.l.b16 %v711
        %v3056 = vunpack.c.h.b16 %v711
        %v3057 = vunpack.c.l.b16 %v712
        %v3058 = vunpack.c.h.b16 %v712
        %v3059 = vunpack.c.l.b16 %v713
        %v3060 = vunpack.c.h.b16 %v713
        %v3061 = vunpack.c.l.b16 %v714
        %v3062 = vunpack.c.h.b16 %v714
        %v3063 = vunpack.c.l.b16 %v715
        %v3064 = vunpack.c.h.b16 %v715
        %v3065 = vunpack.c.l.b16 %v716
        %v3066 = vunpack.c.h.b16 %v716
        %v3067 = vunpack.c.l.b16 %v717
        %v3068 = vunpack.c.h.b16 %v717
        %v3069 = vunpack.c.l.b16 %v718
        %v3070 = vunpack.c.h.b16 %v718
        %v3071 = vunpack.c.l.b16 %v719
        %v3072 = vunpack.c.h.b16 %v719
        %v3073 = vunpack.c.l.b16 %v720
        %v3074 = vunpack.c.h.b16 %v720
        %v3075 = vunpack.c.l.b16 %v721
        %v3076 = vunpack.c.h.b16 %v721
        %v3077 = vunpack.c.l.b16 %v722
        %v3078 = vunpack.c.h.b16 %v722
        %v3079 = vunpack.c.l.b16 %v723
        %v3080 = vunpack.c.h.b16 %v723
        %v3081 = vunpack.c.l.b16 %v724
        %v3082 = vunpack.c.h.b16 %v724
        %v3083 = vunpack.c.l.b16 %v725
        %v3084 = vunpack.c.h.b16 %v725
        %v3085 = vunpack.c.l.b16 %v726
        %v3086 = vunpack.c.h.b16 %v726
        %v3087 = vunpack.c.l.b16 %v727
        %v3088 = vunpack.c.h.b16 %v727
        %v3089 = vunpack.c.l.b16 %v728
        %v3090 = vunpack.c.h.b16 %v728
        %v3091 = vunpack.c.l.b16 %v729
        %v3092 = vunpack.c.h.b16 %v729
        %v3093 = vunpack.c.l.b16 %v730
        %v3094 = vunpack.c.h.b16 %v730
        %v3095 = vunpack.c.l.b16 %v731
        %v3096 = vunpack.c.h.b16 %v731
        %v3097 = vunpack.c.l.b16 %v732
        %v3098 = vunpack.c.h.b16 %v732
        %v3099 = vunpack.c.l.b16 %v733
        %v3100 = vunpack.c.h.b16 %v733
        %v3101 = vunpack.c.l.b16 %v734
        %v3102 = vunpack.c.h.b16 %v734
        %v3103 = vunpack.c.l.b16 %v735
        %v3104 = vunpack.c.h.b16 %v735
        %v3105 = vunpack.c.l.b16 %v736
        %v3106 = vunpack.c.h.b16 %v736
        %v3107 = vunpack.c.l.b16 %v737
        %v3108 = vunpack.c.h.b16 %v737
        %v3109 = vunpack.c.l.b16 %v738
        %v3110 = vunpack.c.h.b16 %v738
        %v3111 = vunpack.c.l.b16 %v739
        %v3112 = vunpack.c.h.b16 %v739
        %v3113 = vunpack.c.l.b16 %v740
        %v3114 = vunpack.c.h.b16 %v740
        %v3115 = vunpack.c.l.b16 %v741
        %v3116 = vunpack.c.h.b16 %v741
        %v3117 = vunpack.c.l.b16 %v742
        %v3118 = vunpack.c.h.b16 %v742
        %v3119 = vunpack.c.l.b16 %v743
        %v3120 = vunpack.c.h.b16 %v743
        %v3121 = vunpack.c.l.b16 %v744
        %v3122 = vunpack.c.h.b16 %v744
        %v3123 = vunpack.c.l.b16 %v745
        %v3124 = vunpack.c.h.b16 %v745
        %v3125 = vunpack.c.l.b16 %v746
        %v3126 = vunpack.c.h.b16 %v746
        %v3127 = vunpack.c.l.b16 %v747
        %v3128 = vunpack.c.h.b16 %v747
        %v3129 = vunpack.c.l.b16 %v748
        %v3130 = vunpack.c.h.b16 %v748
        %v3131 = vunpack.c.l.b16 %v749
        %v3132 = vunpack.c.h.b16 %v749
        %v3133 = vunpack.c.l.b16 %v750
        %v3134 = vunpack.c.h.b16 %v750
        %v3135 = vunpack.c.l.b16 %v751
        %v3136 = vunpack.c.h.b16 %v751
        %v3137 = vunpack.c.l.b16 %v752
        %v3138 = vunpack.c.h.b16 %v752
        %v3139 = vunpack.c.l.b16 %v753
        %v3140 = vunpack.c.h.b16 %v753
        %v3141 = vunpack.c.l.b16 %v754
        %v3142 = vunpack.c.h.b16 %v754
        %v3143 = vunpack.c.l.b16 %v755
        %v3144 = vunpack.c.h.b16 %v755
        %v3145 = vunpack.c.l.b16 %v756
        %v3146 = vunpack.c.h.b16 %v756
        %v3147 = vunpack.c.l.b16 %v757
        %v3148 = vunpack.c.h.b16 %v757
        %v3149 = vunpack.c.l.b16 %v758
        %v3150 = vunpack.c.h.b16 %v758
        %v3151 = vunpack.c.l.b16 %v759
        %v3152 = vunpack.c.h.b16 %v759
        %v3153 = vunpack.c.l.b16 %v760
        %v3154 = vunpack.c.h.b16 %v760
        %v3155 = vunpack.c.l.b16 %v761
        %v3156 = vunpack.c.h.b16 %v761
        %v3157 = vunpack.c.l.b16 %v762
        %v3158 = vunpack.c.h.b16 %v762
        %v3159 = vunpack.c.l.b16 %v763
        %v3160 = vunpack.c.h.b16 %v763
        %v3161 = vunpack.c.l.b16 %v764
        %v3162 = vunpack.c.h.b16 %v764
        %v3163 = vunpack.c.l.b16 %v765
        %v3164 = vunpack.c.h.b16 %v765
        %v3165 = vunpack.c.l.b16 %v766
        %v3166 = vunpack.c.h.b16 %v766
        %v3167 = vunpack.c.l.b16 %v767
        %v3168 = vunpack.c.h.b16 %v767
        %v3169 = vunpack.c.l.b16 %v768
        %v3170 = vunpack.c.h.b16 %v768
        %v3171 = vunpack.c.l.b16 %v769
        %v3172 = vunpack.c.h.b16 %v769
        %v3173 = vunpack.c.l.b16 %v770
        %v3174 = vunpack.c.h.b16 %v770
        %v3175 = vunpack.c.l.b16 %v771
        %v3176 = vunpack.c.h.b16 %v771
        %v3177 = vunpack.c.l.b16 %v772
        %v3178 = vunpack.c.h.b16 %v772
        %v3179 = vunpack.c.l.b16 %v773
        %v3180 = vunpack.c.h.b16 %v773
        %v3181 = vunpack.c.l.b16 %v774
        %v3182 = vunpack.c.h.b16 %v774
        %v3183 = vunpack.c.l.b16 %v775
        %v3184 = vunpack.c.h.b16 %v775
        %v3185 = vunpack.c.l.b16 %v776
        %v3186 = vunpack.c.h.b16 %v776
        %v3187 = vunpack.c.l.b16 %v777
        %v3188 = vunpack.c.h.b16 %v777
        %v3189 = vunpack.c.l.b16 %v778
        %v3190 = vunpack.c.h.b16 %v778
        %v3191 = vunpack.c.l.b16 %v779
        %v3192 = vunpack.c.h.b16 %v779
        %v3193 = vunpack.c.l.b16 %v780
        %v3194 = vunpack.c.h.b16 %v780
        %v3195 = vunpack.c.l.b16 %v781
        %v3196 = vunpack.c.h.b16 %v781
        %v3197 = vunpack.c.l.b16 %v782
        %v3198 = vunpack.c.h.b16 %v782
        %v3199 = vunpack.c.l.b16 %v783
        %v3200 = vunpack.c.h.b16 %v783
        %v3201 = vunpack.c.l.b16 %v784
        %v3202 = vunpack.c.h.b16 %v784
        %v3203 = vunpack.c.l.b16 %v785
        %v3204 = vunpack.c.h.b16 %v785
        %v3205 = vunpack.c.l.b16 %v786
        %v3206 = vunpack.c.h.b16 %v786
        %v3207 = vunpack.c.l.b16 %v787
        %v3208 = vunpack.c.h.b16 %v787
        %v3209 = vunpack.c.l.b16 %v788
        %v3210 = vunpack.c.h.b16 %v788
        %v3211 = vunpack.c.l.b16 %v789
        %v3212 = vunpack.c.h.b16 %v789
        %v3213 = vunpack.c.l.b16 %v790
        %v3214 = vunpack.c.h.b16 %v790
        %v3215 = vunpack.c.l.b16 %v791
        %v3216 = vunpack.c.h.b16 %v791
        %v3217 = vunpack.c.l.b16 %v792
        %v3218 = vunpack.c.h.b16 %v792
        %v3219 = vunpack.c.l.b16 %v793
        %v3220 = vunpack.c.h.b16 %v793
        %v3221 = vunpack.c.l.b16 %v794
        %v3222 = vunpack.c.h.b16 %v794
        %v3223 = vunpack.c.l.b16 %v795
        %v3224 = vunpack.c.h.b16 %v795
        %v3225 = vunpack.c.l.b16 %v796
        %v3226 = vunpack.c.h.b16 %v796
        %v3227 = vunpack.c.l.b16 %v797
        %v3228 = vunpack.c.h.b16 %v797
        %v3229 = vunpack.c.l.b16 %v798
        %v3230 = vunpack.c.h.b16 %v798
        %v3231 = vunpack.c.l.b16 %v799
        %v3232 = vunpack.c.h.b16 %v799
        %v3233 = vunpack.c.l.b16 %v800
        %v3234 = vunpack.c.h.b16 %v800
        %v3235 = vunpack.c.l.b16 %v801
        %v3236 = vunpack.c.h.b16 %v801
        %v3237 = vunpack.c.l.b16 %v802
        %v3238 = vunpack.c.h.b16 %v802
        %v3239 = vunpack.c.l.b16 %v803
        %v3240 = vunpack.c.h.b16 %v803
        %v3241 = vunpack.c.l.b16 %v804
        %v3242 = vunpack.c.h.b16 %v804
        %v3243 = vunpack.c.l.b16 %v805
        %v3244 = vunpack.c.h.b16 %v805
        %v3245 = vunpack.c.l.b16 %v806
        %v3246 = vunpack.c.h.b16 %v806
        %v3247 = vunpack.c.l.b16 %v807
        %v3248 = vunpack.c.h.b16 %v807
        %v3249 = vunpack.c.l.b16 %v808
        %v3250 = vunpack.c.h.b16 %v808
        %v3251 = vunpack.c.l.b16 %v809
        %v3252 = vunpack.c.h.b16 %v809
        %v3253 = vunpack.c.l.b16 %v810
        %v3254 = vunpack.c.h.b16 %v810
        %v3255 = vunpack.c.l.b16 %v811
        %v3256 = vunpack.c.h.b16 %v811
        %v3257 = vunpack.c.l.b16 %v812
        %v3258 = vunpack.c.h.b16 %v812
        %v3259 = vunpack.c.l.b16 %v813
        %v3260 = vunpack.c.h.b16 %v813
        %v3261 = vunpack.c.l.b16 %v814
        %v3262 = vunpack.c.h.b16 %v814
        %v3263 = vunpack.c.l.b16 %v815
        %v3264 = vunpack.c.h.b16 %v815
        %v3265 = vunpack.c.l.b16 %v816
        %v3266 = vunpack.c.h.b16 %v816
        %v3267 = vunpack.c.l.b16 %v817
        %v3268 = vunpack.c.h.b16 %v817
        %v3269 = vunpack.c.l.b16 %v818
        %v3270 = vunpack.c.h.b16 %v818
        %v3271 = vunpack.c.l.b16 %v819
        %v3272 = vunpack.c.h.b16 %v819
        %v3273 = vunpack.c.l.b16 %v820
        %v3274 = vunpack.c.h.b16 %v820
        %v3275 = vunpack.c.l.b16 %v821
        %v3276 = vunpack.c.h.b16 %v821
        %v3277 = vunpack.c.l.b16 %v822
        %v3278 = vunpack.c.h.b16 %v822
        %v3279 = vunpack.c.l.b16 %v823
        %v3280 = vunpack.c.h.b16 %v823
        %v3281 = vunpack.c.l.b16 %v824
        %v3282 = vunpack.c.h.b16 %v824
        %v3283 = vunpack.c.l.b16 %v825
        %v3284 = vunpack.c.h.b16 %v825
        %v3285 = vunpack.c.l.b16 %v826
        %v3286 = vunpack.c.h.b16 %v826
        %v3287 = vunpack.c.l.b16 %v827
        %v3288 = vunpack.c.h.b16 %v827
        %v3289 = vunpack.c.l.b16 %v828
        %v3290 = vunpack.c.h.b16 %v828
        %v3291 = vunpack.c.l.b16 %v829
        %v3292 = vunpack.c.h.b16 %v829
        %v3293 = vunpack.c.l.b16 %v830
        %v3294 = vunpack.c.h.b16 %v830
        %v3295 = vunpack.c.l.b16 %v831
        %v3296 = vunpack.c.h.b16 %v831
        %v3297 = vunpack.c.l.b16 %v832
        %v3298 = vunpack.c.h.b16 %v832
        %v3299 = vunpack.c.l.b16 %v833
        %v3300 = vunpack.c.h.b16 %v833
        %v3301 = vunpack.c.l.b16 %v834
        %v3302 = vunpack.c.h.b16 %v834
        %v3303 = vunpack.c.l.b16 %v835
        %v3304 = vunpack.c.h.b16 %v835
        %v3305 = vunpack.c.l.b16 %v836
        %v3306 = vunpack.c.h.b16 %v836
        %v3307 = vunpack.c.l.b16 %v837
        %v3308 = vunpack.c.h.b16 %v837
        %v3309 = vunpack.c.l.b16 %v838
        %v3310 = vunpack.c.h.b16 %v838
        %v3311 = vunpack.c.l.b16 %v839
        %v3312 = vunpack.c.h.b16 %v839
        %v3313 = vunpack.c.l.b16 %v840
        %v3314 = vunpack.c.h.b16 %v840
        %v3315 = vunpack.c.l.b16 %v841
        %v3316 = vunpack.c.h.b16 %v841
        %v3317 = vunpack.c.l.b16 %v842
        %v3318 = vunpack.c.h.b16 %v842
        %v3319 = vunpack.c.l.b16 %v843
        %v3320 = vunpack.c.h.b16 %v843
        %v3321 = vunpack.c.l.b16 %v844
        %v3322 = vunpack.c.h.b16 %v844
        %v3323 = vunpack.c.l.b16 %v845
        %v3324 = vunpack.c.h.b16 %v845
        %v3325 = vunpack.c.l.b16 %v846
        %v3326 = vunpack.c.h.b16 %v846
        %v3327 = vunpack.c.l.b16 %v847
        %v3328 = vunpack.c.h.b16 %v847
        %v3329 = vunpack.c.l.b16 %v848
        %v3330 = vunpack.c.h.b16 %v848
        %v3331 = vunpack.c.l.b16 %v849
        %v3332 = vunpack.c.h.b16 %v849
        %v3333 = vunpack.c.l.b16 %v850
        %v3334 = vunpack.c.h.b16 %v850
        %v3335 = vunpack.c.l.b16 %v851
        %v3336 = vunpack.c.h.b16 %v851
        %v3337 = vunpack.c.l.b16 %v852
        %v3338 = vunpack.c.h.b16 %v852
        %v3339 = vunpack.c.l.b16 %v853
        %v3340 = vunpack.c.h.b16 %v853
        %v3341 = vunpack.c.l.b16 %v854
        %v3342 = vunpack.c.h.b16 %v854
        %v3343 = vunpack.c.l.b16 %v855
        %v3344 = vunpack.c.h.b16 %v855
        %v3345 = vunpack.c.l.b16 %v856
        %v3346 = vunpack.c.h.b16 %v856
        %v3347 = vunpack.c.l.b16 %v857
        %v3348 = vunpack.c.h.b16 %v857
        %v3349 = vunpack.c.l.b16 %v858
        %v3350 = vunpack.c.h.b16 %v858
        %v3351 = vunpack.c.l.b16 %v859
        %v3352 = vunpack.c.h.b16 %v859
        %v3353 = vunpack.c.l.b16 %v860
        %v3354 = vunpack.c.h.b16 %v860
        %v3355 = vunpack.c.l.b16 %v861
        %v3356 = vunpack.c.h.b16 %v861
        %v3357 = vunpack.c.l.b16 %v862
        %v3358 = vunpack.c.h.b16 %v862
        %v3359 = vunpack.c.l.b16 %v863
        %v3360 = vunpack.c.h.b16 %v863
        %v3361 = vunpack.c.l.b16 %v864
        %v3362 = vunpack.c.h.b16 %v864
        %v3363 = vunpack.c.l.b16 %v865
        %v3364 = vunpack.c.h.b16 %v865
        %v3365 = vunpack.c.l.b16 %v866
        %v3366 = vunpack.c.h.b16 %v866
        %v3367 = vunpack.c.l.b16 %v867
        %v3368 = vunpack.c.h.b16 %v867
        %v3369 = vunpack.c.l.b16 %v868
        %v3370 = vunpack.c.h.b16 %v868
        %v3371 = vunpack.c.l.b16 %v869
        %v3372 = vunpack.c.h.b16 %v869
        %v3373 = vunpack.c.l.b16 %v870
        %v3374 = vunpack.c.h.b16 %v870
        %v3375 = vunpack.c.l.b16 %v871
        %v3376 = vunpack.c.h.b16 %v871
        %v3377 = vunpack.c.l.b16 %v872
        %v3378 = vunpack.c.h.b16 %v872
        %v3379 = vunpack.c.l.b16 %v873
        %v3380 = vunpack.c.h.b16 %v873
        %v3381 = vunpack.c.l.b16 %v874
        %v3382 = vunpack.c.h.b16 %v874
        %v3383 = vunpack.c.l.b16 %v875
        %v3384 = vunpack.c.h.b16 %v875
        %v3385 = vunpack.c.l.b16 %v876
        %v3386 = vunpack.c.h.b16 %v876
        %v3387 = vunpack.c.l.b16 %v877
        %v3388 = vunpack.c.h.b16 %v877
        %v3389 = vunpack.c.l.b16 %v878
        %v3390 = vunpack.c.h.b16 %v878
        %v3391 = vunpack.c.l.b16 %v879
        %v3392 = vunpack.c.h.b16 %v879
        %v3393 = vunpack.c.l.b16 %v880
        %v3394 = vunpack.c.h.b16 %v880
        %v3395 = vunpack.c.l.b16 %v881
        %v3396 = vunpack.c.h.b16 %v881
        %v3397 = vunpack.c.l.b16 %v882
        %v3398 = vunpack.c.h.b16 %v882
        %v3399 = vunpack.c.l.b16 %v883
        %v3400 = vunpack.c.h.b16 %v883
        %v3401 = vunpack.c.l.b16 %v884
        %v3402 = vunpack.c.h.b16 %v884
        %v3403 = vunpack.c.l.b16 %v885
        %v3404 = vunpack.c.h.b16 %v885
        %v3405 = vunpack.c.l.b16 %v886
        %v3406 = vunpack.c.h.b16 %v886
        %v3407 = vunpack.c.l.b16 %v887
        %v3408 = vunpack.c.h.b16 %v887
        %v3409 = vunpack.c.l.b16 %v888
        %v3410 = vunpack.c.h.b16 %v888
        %v3411 = vunpack.c.l.b16 %v889
        %v3412 = vunpack.c.h.b16 %v889
        %v3413 = vunpack.c.l.b16 %v890
        %v3414 = vunpack.c.h.b16 %v890
        %v3415 = vunpack.c.l.b16 %v891
        %v3416 = vunpack.c.h.b16 %v891
        %v3417 = vunpack.c.l.b16 %v892
        %v3418 = vunpack.c.h.b16 %v892
        %v3419 = vunpack.c.l.b16 %v893
        %v3420 = vunpack.c.h.b16 %v893
        %v3421 = vunpack.c.l.b16 %v894
        %v3422 = vunpack.c.h.b16 %v894
        %v3423 = vunpack.c.l.b16 %v895
        %v3424 = vunpack.c.h.b16 %v895
        %v3425 = vunpack.c.l.b16 %v896
        %v3426 = vunpack.c.h.b16 %v896
        %v3427 = vunpack.c.l.b16 %v897
        %v3428 = vunpack.c.h.b16 %v897
        %v3429 = vunpack.c.l.b16 %v898
        %v3430 = vunpack.c.h.b16 %v898
        %v3431 = vunpack.c.l.b16 %v899
        %v3432 = vunpack.c.h.b16 %v899
        %v3433 = vunpack.c.l.b16 %v900
        %v3434 = vunpack.c.h.b16 %v900
        %v3435 = vunpack.c.l.b16 %v901
        %v3436 = vunpack.c.h.b16 %v901
        %v3437 = vunpack.c.l.b16 %v902
        %v3438 = vunpack.c.h.b16 %v902
        %v3439 = vunpack.c.l.b16 %v903
        %v3440 = vunpack.c.h.b16 %v903
        %v3441 = vunpack.c.l.b16 %v904
        %v3442 = vunpack.c.h.b16 %v904
        %v3443 = vunpack.c.l.b16 %v905
        %v3444 = vunpack.c.h.b16 %v905
        %v3445 = vunpack.c.l.b16 %v906
        %v3446 = vunpack.c.h.b16 %v906
        %v3447 = vunpack.c.l.b16 %v907
        %v3448 = vunpack.c.h.b16 %v907
        %v3449 = vunpack.c.l.b16 %v908
        %v3450 = vunpack.c.h.b16 %v908
        %v3451 = vunpack.c.l.b16 %v909
        %v3452 = vunpack.c.h.b16 %v909
        %v3453 = vunpack.c.l.b16 %v910
        %v3454 = vunpack.c.h.b16 %v910
        %v3455 = vunpack.c.l.b16 %v911
        %v3456 = vunpack.c.h.b16 %v911
        %v3457 = vunpack.c.l.b16 %v912
        %v3458 = vunpack.c.h.b16 %v912
        %v3459 = vunpack.c.l.b16 %v913
        %v3460 = vunpack.c.h.b16 %v913
        %v3461 = vunpack.c.l.b16 %v914
        %v3462 = vunpack.c.h.b16 %v914
        %v3463 = vunpack.c.l.b16 %v915
        %v3464 = vunpack.c.h.b16 %v915
        %v3465 = vunpack.c.l.b16 %v916
        %v3466 = vunpack.c.h.b16 %v916
        %v3467 = vunpack.c.l.b16 %v917
        %v3468 = vunpack.c.h.b16 %v917
        %v3469 = vunpack.c.l.b16 %v918
        %v3470 = vunpack.c.h.b16 %v918
        %v3471 = vunpack.c.l.b16 %v919
        %v3472 = vunpack.c.h.b16 %v919
        %v3473 = vunpack.c.l.b16 %v920
        %v3474 = vunpack.c.h.b16 %v920
        %v3475 = vunpack.c.l.b16 %v921
        %v3476 = vunpack.c.h.b16 %v921
        %v3477 = vunpack.c.l.b16 %v922
        %v3478 = vunpack.c.h.b16 %v922
        %v3479 = vunpack.c.l.b16 %v923
        %v3480 = vunpack.c.h.b16 %v923
        %v3481 = vunpack.c.l.b16 %v924
        %v3482 = vunpack.c.h.b16 %v924
        %v3483 = vunpack.c.l.b16 %v925
        %v3484 = vunpack.c.h.b16 %v925
        %v3485 = vunpack.c.l.b16 %v926
        %v3486 = vunpack.c.h.b16 %v926
        %v3487 = vunpack.c.l.b16 %v927
        %v3488 = vunpack.c.h.b16 %v927
        %v3489 = vunpack.c.l.b16 %v928
        %v3490 = vunpack.c.h.b16 %v928
        %v3491 = vunpack.c.l.b16 %v929
        %v3492 = vunpack.c.h.b16 %v929
        %v3493 = vunpack.c.l.b16 %v930
        %v3494 = vunpack.c.h.b16 %v930
        %v3495 = vunpack.c.l.b16 %v931
        %v3496 = vunpack.c.h.b16 %v931
        %v3497 = vunpack.c.l.b16 %v932
        %v3498 = vunpack.c.h.b16 %v932
        %v3499 = vunpack.c.l.b16 %v933
        %v3500 = vunpack.c.h.b16 %v933
        %v3501 = vunpack.c.l.b16 %v934
        %v3502 = vunpack.c.h.b16 %v934
        %v3503 = vunpack.c.l.b16 %v935
        %v3504 = vunpack.c.h.b16 %v935
        %v3505 = vunpack.c.l.b16 %v936
        %v3506 = vunpack.c.h.b16 %v936
        %v3507 = vunpack.c.l.b16 %v937
        %v3508 = vunpack.c.h.b16 %v937
        %v3509 = vunpack.c.l.b16 %v938
        %v3510 = vunpack.c.h.b16 %v938
        %v3511 = vunpack.c.l.b16 %v939
        %v3512 = vunpack.c.h.b16 %v939
        %v3513 = vunpack.c.l.b16 %v940
        %v3514 = vunpack.c.h.b16 %v940
        %v3515 = vunpack.c.l.b16 %v941
        %v3516 = vunpack.c.h.b16 %v941
        %v3517 = vunpack.c.l.b16 %v942
        %v3518 = vunpack.c.h.b16 %v942
        %v3519 = vunpack.c.l.b16 %v943
        %v3520 = vunpack.c.h.b16 %v943
        %v3521 = vunpack.c.l.b16 %v944
        %v3522 = vunpack.c.h.b16 %v944
        %v3523 = vunpack.c.l.b16 %v945
        %v3524 = vunpack.c.h.b16 %v945
        %v3525 = vunpack.c.l.b16 %v946
        %v3526 = vunpack.c.h.b16 %v946
        %v3527 = vunpack.c.l.b16 %v947
        %v3528 = vunpack.c.h.b16 %v947
        %v3529 = vunpack.c.l.b16 %v948
        %v3530 = vunpack.c.h.b16 %v948
        %v3531 = vunpack.c.l.b16 %v949
        %v3532 = vunpack.c.h.b16 %v949
        %v3533 = vunpack.c.l.b16 %v950
        %v3534 = vunpack.c.h.b16 %v950
        %v3535 = vunpack.c.l.b16 %v951
        %v3536 = vunpack.c.h.b16 %v951
        %v3537 = vunpack.c.l.b16 %v952
        %v3538 = vunpack.c.h.b16 %v952
        %v3539 = vunpack.c.l.b16 %v953
        %v3540 = vunpack.c.h.b16 %v953
        %v3541 = vunpack.c.l.b16 %v954
        %v3542 = vunpack.c.h.b16 %v954
        %v3543 = vunpack.c.l.b16 %v955
        %v3544 = vunpack.c.h.b16 %v955
        %v3545 = vunpack.c.l.b16 %v956
        %v3546 = vunpack.c.h.b16 %v956
        %v3547 = vunpack.c.l.b16 %v957
        %v3548 = vunpack.c.h.b16 %v957
        %v3549 = vunpack.c.l.b16 %v958
        %v3550 = vunpack.c.h.b16 %v958
        %v3551 = vunpack.c.l.b16 %v959
        %v3552 = vunpack.c.h.b16 %v959
        %v3553 = vunpack.c.l.b16 %v960
        %v3554 = vunpack.c.h.b16 %v960
        %v3555 = vunpack.c.l.b16 %v961
        %v3556 = vunpack.c.h.b16 %v961
        %v3557 = vunpack.c.l.b16 %v962
        %v3558 = vunpack.c.h.b16 %v962
        %v3559 = vunpack.c.l.b16 %v963
        %v3560 = vunpack.c.h.b16 %v963
        %v3561 = vunpack.c.l.b16 %v964
        %v3562 = vunpack.c.h.b16 %v964
        %v3563 = vunpack.c.l.b16 %v965
        %v3564 = vunpack.c.h.b16 %v965
        %v3565 = vunpack.c.l.b16 %v966
        %v3566 = vunpack.c.h.b16 %v966
        %v3567 = vunpack.c.l.b16 %v967
        %v3568 = vunpack.c.h.b16 %v967
        %v3569 = vunpack.c.l.b16 %v968
        %v3570 = vunpack.c.h.b16 %v968
        %v3571 = vunpack.c.l.b16 %v969
        %v3572 = vunpack.c.h.b16 %v969
        %v3573 = vunpack.c.l.b16 %v970
        %v3574 = vunpack.c.h.b16 %v970
        %v3575 = vunpack.c.l.b16 %v971
        %v3576 = vunpack.c.h.b16 %v971
        %v3577 = vunpack.c.l.b16 %v972
        %v3578 = vunpack.c.h.b16 %v972
        %v3579 = vunpack.c.l.b16 %v973
        %v3580 = vunpack.c.h.b16 %v973
        %v3581 = vunpack.c.l.b16 %v974
        %v3582 = vunpack.c.h.b16 %v974
        %v3583 = vunpack.c.l.b16 %v975
        %v3584 = vunpack.c.h.b16 %v975
        %v3585 = vunpack.c.l.b16 %v976
        %v3586 = vunpack.c.h.b16 %v976
        %v3587 = vunpack.c.l.b16 %v977
        %v3588 = vunpack.c.h.b16 %v977
        %v3589 = vunpack.c.l.b16 %v978
        %v3590 = vunpack.c.h.b16 %v978
        %v3591 = vunpack.c.l.b16 %v979
        %v3592 = vunpack.c.h.b16 %v979
        %v3593 = vunpack.c.l.b16 %v980
        %v3594 = vunpack.c.h.b16 %v980
        %v3595 = vunpack.c.l.b16 %v981
        %v3596 = vunpack.c.h.b16 %v981
        %v3597 = vunpack.c.l.b16 %v982
        %v3598 = vunpack.c.h.b16 %v982
        %v3599 = vunpack.c.l.b16 %v983
        %v3600 = vunpack.c.h.b16 %v983
        %v3601 = vunpack.c.l.b16 %v984
        %v3602 = vunpack.c.h.b16 %v984
        %v3603 = vunpack.c.l.b16 %v985
        %v3604 = vunpack.c.h.b16 %v985
        %v3605 = vunpack.c.l.b16 %v986
        %v3606 = vunpack.c.h.b16 %v986
        %v3607 = vunpack.c.l.b16 %v987
        %v3608 = vunpack.c.h.b16 %v987
        %v3609 = vunpack.c.l.b16 %v988
        %v3610 = vunpack.c.h.b16 %v988
        %v3611 = vunpack.c.l.b16 %v989
        %v3612 = vunpack.c.h.b16 %v989
        %v3613 = vunpack.c.l.b16 %v990
        %v3614 = vunpack.c.h.b16 %v990
        %v3615 = vunpack.c.l.b16 %v991
        %v3616 = vunpack.c.h.b16 %v991
        %v3617 = vunpack.c.l.b16 %v992
        %v3618 = vunpack.c.h.b16 %v992
        %v3619 = vunpack.c.l.b16 %v993
        %v3620 = vunpack.c.h.b16 %v993
        %v3621 = vunpack.c.l.b16 %v994
        %v3622 = vunpack.c.h.b16 %v994
        %v3623 = vunpack.c.l.b16 %v995
        %v3624 = vunpack.c.h.b16 %v995
        %v3625 = vunpack.c.l.b16 %v996
        %v3626 = vunpack.c.h.b16 %v996
        %v3627 = vunpack.c.l.b16 %v997
        %v3628 = vunpack.c.h.b16 %v997
        %v3629 = vunpack.c.l.b16 %v998
        %v3630 = vunpack.c.h.b16 %v998
        %v3631 = vunpack.c.l.b16 %v999
        %v3632 = vunpack.c.h.b16 %v999
        %v3633 = vunpack.c.l.b16 %v1000
        %v3634 = vunpack.c.h.b16 %v1000
        %v3635 = vunpack.c.l.b16 %v1001
        %v3636 = vunpack.c.h.b16 %v1001
        %v3637 = vunpack.c.l.b16 %v1002
        %v3638 = vunpack.c.h.b16 %v1002
        %v3639 = vunpack.c.l.b16 %v1003
        %v3640 = vunpack.c.h.b16 %v1003
        %v3641 = vunpack.c.l.b16 %v1004
        %v3642 = vunpack.c.h.b16 %v1004
        %v3643 = vunpack.c.l.b16 %v1005
        %v3644 = vunpack.c.h.b16 %v1005
        %v3645 = vunpack.c.l.b16 %v1006
        %v3646 = vunpack.c.h.b16 %v1006
        %v3647 = vunpack.c.l.b16 %v1007
        %v3648 = vunpack.c.h.b16 %v1007
        %v3649 = vunpack.c.l.b16 %v1008
        %v3650 = vunpack.c.h.b16 %v1008
        %v3651 = vunpack.c.l.b16 %v1009
        %v3652 = vunpack.c.h.b16 %v1009
        %v3653 = vunpack.c.l.b16 %v1010
        %v3654 = vunpack.c.h.b16 %v1010
        %v3655 = vunpack.c.l.b16 %v1011
        %v3656 = vunpack.c.h.b16 %v1011
        %v3657 = vunpack.c.l.b16 %v1012
        %v3658 = vunpack.c.h.b16 %v1012
        %v3659 = vunpack.c.l.b16 %v1013
        %v3660 = vunpack.c.h.b16 %v1013
        %v3661 = vunpack.c.l.b16 %v1014
        %v3662 = vunpack.c.h.b16 %v1014
        %v3663 = vunpack.c.l.b16 %v1015
        %v3664 = vunpack.c.h.b16 %v1015
        %v3665 = vunpack.c.l.b16 %v1016
        %v3666 = vunpack.c.h.b16 %v1016
        %v3667 = vunpack.c.l.b16 %v1017
        %v3668 = vunpack.c.h.b16 %v1017
        %v3669 = vunpack.c.l.b16 %v1018
        %v3670 = vunpack.c.h.b16 %v1018
        %v3671 = vunpack.c.l.b16 %v1019
        %v3672 = vunpack.c.h.b16 %v1019
        %v3673 = vunpack.c.l.b16 %v1020
        %v3674 = vunpack.c.h.b16 %v1020
        %v3675 = vunpack.c.l.b16 %v1021
        %v3676 = vunpack.c.h.b16 %v1021
        %v3677 = vunpack.c.l.b16 %v1022
        %v3678 = vunpack.c.h.b16 %v1022
        %v3679 = vunpack.c.l.b16 %v1023
        %v3680 = vunpack.c.h.b16 %v1023
        %v3681 = vunpack.c.l.b16 %v1024
        %v3682 = vunpack.c.h.b16 %v1024
        %v3683 = vunpack.c.l.b16 %v1025
        %v3684 = vunpack.c.h.b16 %v1025
        %v3685 = vunpack.c.l.b16 %v1026
        %v3686 = vunpack.c.h.b16 %v1026
        %v3687 = vunpack.c.l.b16 %v1027
        %v3688 = vunpack.c.h.b16 %v1027
        %v3689 = vunpack.c.l.b16 %v1028
        %v3690 = vunpack.c.h.b16 %v1028
        %v3691 = vunpack.c.l.b16 %v1029
        %v3692 = vunpack.c.h.b16 %v1029
        %v3693 = vunpack.c.l.b16 %v1030
        %v3694 = vunpack.c.h.b16 %v1030
        %v3695 = vunpack.c.l.b16 %v1031
        %v3696 = vunpack.c.h.b16 %v1031
        %v3697 = vunpack.c.l.b16 %v1032
        %v3698 = vunpack.c.h.b16 %v1032
        %v3699 = vunpack.c.l.b16 %v1033
        %v3700 = vunpack.c.h.b16 %v1033
        %v3701 = vunpack.c.l.b16 %v1034
        %v3702 = vunpack.c.h.b16 %v1034
        %v3703 = vunpack.c.l.b16 %v1035
        %v3704 = vunpack.c.h.b16 %v1035
        %v3705 = vunpack.c.l.b16 %v1036
        %v3706 = vunpack.c.h.b16 %v1036
        %v3707 = vunpack.c.l.b16 %v1037
        %v3708 = vunpack.c.h.b16 %v1037
        %v3709 = vunpack.c.l.b16 %v1038
        %v3710 = vunpack.c.h.b16 %v1038
        %v3711 = vunpack.c.l.b16 %v1039
        %v3712 = vunpack.c.h.b16 %v1039
        %v3713 = vunpack.c.l.b16 %v1040
        %v3714 = vunpack.c.h.b16 %v1040
        %v3715 = vunpack.c.l.b16 %v1041
        %v3716 = vunpack.c.h.b16 %v1041
        %v3717 = vunpack.c.l.b16 %v1042
        %v3718 = vunpack.c.h.b16 %v1042
        %v3719 = vunpack.c.l.b16 %v1043
        %v3720 = vunpack.c.h.b16 %v1043
        %v3721 = vunpack.c.l.b16 %v1044
        %v3722 = vunpack.c.h.b16 %v1044
        %v3723 = vunpack.c.l.b16 %v1045
        %v3724 = vunpack.c.h.b16 %v1045
        %v3725 = vunpack.c.l.b16 %v1046
        %v3726 = vunpack.c.h.b16 %v1046
        %v3727 = vunpack.c.l.b16 %v1047
        %v3728 = vunpack.c.h.b16 %v1047
        %v3729 = vunpack.c.l.b16 %v1048
        %v3730 = vunpack.c.h.b16 %v1048
        %v3731 = vunpack.c.l.b16 %v1049
        %v3732 = vunpack.c.h.b16 %v1049
        %v3733 = vunpack.c.l.b16 %v1050
        %v3734 = vunpack.c.h.b16 %v1050
        %v3735 = vunpack.c.l.b16 %v1051
        %v3736 = vunpack.c.h.b16 %v1051
        %v3737 = vunpack.c.l.b16 %v1052
        %v3738 = vunpack.c.h.b16 %v1052
        %v3739 = vunpack.c.l.b16 %v1053
        %v3740 = vunpack.c.h.b16 %v1053
        %v3741 = vunpack.c.l.b16 %v1054
        %v3742 = vunpack.c.h.b16 %v1054
        %v3743 = vunpack.c.l.b16 %v1055
        %v3744 = vunpack.c.h.b16 %v1055
        %v3745 = vunpack.c.l.b16 %v1056
        %v3746 = vunpack.c.h.b16 %v1056
        %v3747 = vunpack.c.l.b16 %v1057
        %v3748 = vunpack.c.h.b16 %v1057
        %v3749 = vunpack.c.l.b16 %v1058
        %v3750 = vunpack.c.h.b16 %v1058
        %v3751 = vunpack.c.l.b16 %v1059
        %v3752 = vunpack.c.h.b16 %v1059
        %v3753 = vunpack.c.l.b16 %v1060
        %v3754 = vunpack.c.h.b16 %v1060
        %v3755 = vunpack.c.l.b16 %v1061
        %v3756 = vunpack.c.h.b16 %v1061
        %v3757 = vunpack.c.l.b16 %v1062
        %v3758 = vunpack.c.h.b16 %v1062
        %v3759 = vunpack.c.l.b16 %v1063
        %v3760 = vunpack.c.h.b16 %v1063
        %v3761 = vunpack.c.l.b16 %v1064
        %v3762 = vunpack.c.h.b16 %v1064
        %v3763 = vunpack.c.l.b16 %v1065
        %v3764 = vunpack.c.h.b16 %v1065
        %v3765 = vunpack.c.l.b16 %v1066
        %v3766 = vunpack.c.h.b16 %v1066
        %v3767 = vunpack.c.l.b16 %v1067
        %v3768 = vunpack.c.h.b16 %v1067
        %v3769 = vunpack.c.l.b16 %v1068
        %v3770 = vunpack.c.h.b16 %v1068
        %v3771 = vunpack.c.l.b16 %v1069
        %v3772 = vunpack.c.h.b16 %v1069
        %v3773 = vunpack.c.l.b16 %v1070
        %v3774 = vunpack.c.h.b16 %v1070
        %v3775 = vunpack.c.l.b16 %v1071
        %v3776 = vunpack.c.h.b16 %v1071
        %v3777 = vunpack.c.l.b16 %v1072
        %v3778 = vunpack.c.h.b16 %v1072
        %v3779 = vunpack.c.l.b16 %v1073
        %v3780 = vunpack.c.h.b16 %v1073
        %v3781 = vunpack.c.l.b16 %v1074
        %v3782 = vunpack.c.h.b16 %v1074
        %v3783 = vunpack.c.l.b16 %v1075
        %v3784 = vunpack.c.h.b16 %v1075
        %v3785 = vunpack.c.l.b16 %v1076
        %v3786 = vunpack.c.h.b16 %v1076
        %v3787 = vunpack.c.l.b16 %v1077
        %v3788 = vunpack.c.h.b16 %v1077
        %v3789 = vunpack.c.l.b16 %v1078
        %v3790 = vunpack.c.h.b16 %v1078
        %v3791 = vunpack.c.l.b16 %v1079
        %v3792 = vunpack.c.h.b16 %v1079
        %v3793 = vunpack.c.l.b16 %v1080
        %v3794 = vunpack.c.h.b16 %v1080
        %v3795 = vunpack.c.l.b16 %v1081
        %v3796 = vunpack.c.h.b16 %v1081
        %v3797 = vunpack.c.l.b16 %v1082
        %v3798 = vunpack.c.h.b16 %v1082
        %v3799 = vunpack.c.l.b16 %v1083
        %v3800 = vunpack.c.h.b16 %v1083
        %v3801 = vunpack.c.l.b16 %v1084
        %v3802 = vunpack.c.h.b16 %v1084
        %v3803 = vunpack.c.l.b16 %v1085
        %v3804 = vunpack.c.h.b16 %v1085
        %v3805 = vunpack.c.l.b16 %v1086
        %v3806 = vunpack.c.h.b16 %v1086
        %v3807 = vunpack.c.l.b16 %v1087
        %v3808 = vunpack.c.h.b16 %v1087
        %v3809 = vunpack.c.l.b16 %v1088
        %v3810 = vunpack.c.h.b16 %v1088
        %v3811 = vunpack.c.l.b16 %v1089
        %v3812 = vunpack.c.h.b16 %v1089
        %v3813 = vunpack.c.l.b16 %v1090
        %v3814 = vunpack.c.h.b16 %v1090
        %v3815 = vunpack.c.l.b16 %v1091
        %v3816 = vunpack.c.h.b16 %v1091
        %v3817 = vunpack.c.l.b16 %v1092
        %v3818 = vunpack.c.h.b16 %v1092
        %v3819 = vunpack.c.l.b16 %v1093
        %v3820 = vunpack.c.h.b16 %v1093
        %v3821 = vunpack.c.l.b16 %v1094
        %v3822 = vunpack.c.h.b16 %v1094
        %v3823 = vunpack.c.l.b16 %v1095
        %v3824 = vunpack.c.h.b16 %v1095
        %v3825 = vunpack.c.l.b16 %v1096
        %v3826 = vunpack.c.h.b16 %v1096
        %v3827 = vunpack.c.l.b16 %v1097
        %v3828 = vunpack.c.h.b16 %v1097
        %v3829 = vunpack.c.l.b16 %v1098
        %v3830 = vunpack.c.h.b16 %v1098
        %v3831 = vunpack.c.l.b16 %v1099
        %v3832 = vunpack.c.h.b16 %v1099
        %v3833 = vunpack.c.l.b16 %v1100
        %v3834 = vunpack.c.h.b16 %v1100
        %v3835 = vunpack.c.l.b16 %v1101
        %v3836 = vunpack.c.h.b16 %v1101
        %v3837 = vunpack.c.l.b16 %v1102
        %v3838 = vunpack.c.h.b16 %v1102
        %v3839 = vunpack.c.l.b16 %v1103
        %v3840 = vunpack.c.h.b16 %v1103
        %v3841 = vunpack.c.l.b16 %v1104
        %v3842 = vunpack.c.h.b16 %v1104
        %v3843 = vunpack.c.l.b16 %v1105
        %v3844 = vunpack.c.h.b16 %v1105
        %v3845 = vunpack.c.l.b16 %v1106
        %v3846 = vunpack.c.h.b16 %v1106
        %v3847 = vunpack.c.l.b16 %v1107
        %v3848 = vunpack.c.h.b16 %v1107
        %v3849 = vunpack.c.l.b16 %v1108
        %v3850 = vunpack.c.h.b16 %v1108
        %v3851 = vunpack.c.l.b16 %v1109
        %v3852 = vunpack.c.h.b16 %v1109
        %v3853 = vunpack.c.l.b16 %v1110
        %v3854 = vunpack.c.h.b16 %v1110
        %v3855 = vunpack.c.l.b16 %v1111
        %v3856 = vunpack.c.h.b16 %v1111
        %v3857 = vunpack.c.l.b16 %v1112
        %v3858 = vunpack.c.h.b16 %v1112
        %v3859 = vunpack.c.l.b16 %v1113
        %v3860 = vunpack.c.h.b16 %v1113
        %v3861 = vunpack.c.l.b16 %v1114
        %v3862 = vunpack.c.h.b16 %v1114
        %v3863 = vunpack.c.l.b16 %v1115
        %v3864 = vunpack.c.h.b16 %v1115
        %v3865 = vunpack.c.l.b16 %v1116
        %v3866 = vunpack.c.h.b16 %v1116
        %v3867 = vunpack.c.l.b16 %v1117
        %v3868 = vunpack.c.h.b16 %v1117
        %v3869 = vunpack.c.l.b16 %v1118
        %v3870 = vunpack.c.h.b16 %v1118
        %v3871 = vunpack.c.l.b16 %v1119
        %v3872 = vunpack.c.h.b16 %v1119
        %v3873 = vunpack.c.l.b16 %v1120
        %v3874 = vunpack.c.h.b16 %v1120
        %v3875 = vunpack.c.l.b16 %v1121
        %v3876 = vunpack.c.h.b16 %v1121
        %v3877 = vunpack.c.l.b16 %v1122
        %v3878 = vunpack.c.h.b16 %v1122
        %v3879 = vunpack.c.l.b16 %v1123
        %v3880 = vunpack.c.h.b16 %v1123
        %v3881 = vunpack.c.l.b16 %v1124
        %v3882 = vunpack.c.h.b16 %v1124
        %v3883 = vunpack.c.l.b16 %v1125
        %v3884 = vunpack.c.h.b16 %v1125
        %v3885 = vunpack.c.l.b16 %v1126
        %v3886 = vunpack.c.h.b16 %v1126
        %v3887 = vunpack.c.l.b16 %v1127
        %v3888 = vunpack.c.h.b16 %v1127
        %v3889 = vunpack.c.l.b16 %v1128
        %v3890 = vunpack.c.h.b16 %v1128
        %v3891 = vunpack.c.l.b16 %v1129
        %v3892 = vunpack.c.h.b16 %v1129
        %v3893 = vunpack.c.l.b16 %v1130
        %v3894 = vunpack.c.h.b16 %v1130
        %v3895 = vunpack.c.l.b16 %v1131
        %v3896 = vunpack.c.h.b16 %v1131
        %v3897 = vunpack.c.l.b16 %v1132
        %v3898 = vunpack.c.h.b16 %v1132
        %v3899 = vunpack.c.l.b16 %v1133
        %v3900 = vunpack.c.h.b16 %v1133
        %v3901 = vunpack.c.l.b16 %v1134
        %v3902 = vunpack.c.h.b16 %v1134
        %v3903 = vunpack.c.l.b16 %v1135
        %v3904 = vunpack.c.h.b16 %v1135
        %v3905 = vunpack.c.l.b16 %v1136
        %v3906 = vunpack.c.h.b16 %v1136
        %v3907 = vunpack.c.l.b16 %v1137
        %v3908 = vunpack.c.h.b16 %v1137
        %v3909 = vunpack.c.l.b16 %v1138
        %v3910 = vunpack.c.h.b16 %v1138
        %v3911 = vunpack.c.l.b16 %v1139
        %v3912 = vunpack.c.h.b16 %v1139
        %v3913 = vunpack.c.l.b16 %v1140
        %v3914 = vunpack.c.h.b16 %v1140
        %v3915 = vunpack.c.l.b16 %v1141
        %v3916 = vunpack.c.h.b16 %v1141
        %v3917 = vunpack.c.l.b16 %v1142
        %v3918 = vunpack.c.h.b16 %v1142
        %v3919 = vunpack.c.l.b16 %v1143
        %v3920 = vunpack.c.h.b16 %v1143
        %v3921 = vunpack.c.l.b16 %v1144
        %v3922 = vunpack.c.h.b16 %v1144
        %v3923 = vunpack.c.l.b16 %v1145
        %v3924 = vunpack.c.h.b16 %v1145
        %v3925 = vunpack.c.l.b16 %v1146
        %v3926 = vunpack.c.h.b16 %v1146
        %v3927 = vunpack.c.l.b16 %v1147
        %v3928 = vunpack.c.h.b16 %v1147
        %v3929 = vunpack.c.l.b16 %v1148
        %v3930 = vunpack.c.h.b16 %v1148
        %v3931 = vunpack.c.l.b16 %v1149
        %v3932 = vunpack.c.h.b16 %v1149
        %v3933 = vunpack.c.l.b16 %v1150
        %v3934 = vunpack.c.h.b16 %v1150
        %v3935 = vunpack.c.l.b16 %v1151
        %v3936 = vunpack.c.h.b16 %v1151
        %v3937 = vunpack.c.l.b16 %v1152
        %v3938 = vunpack.c.h.b16 %v1152
        %v3939 = vunpack.c.l.b16 %v1153
        %v3940 = vunpack.c.h.b16 %v1153
        %v3941 = vunpack.c.l.b16 %v1154
        %v3942 = vunpack.c.h.b16 %v1154
        %v3943 = vunpack.c.l.b16 %v1155
        %v3944 = vunpack.c.h.b16 %v1155
        %v3945 = vunpack.c.l.b16 %v1156
        %v3946 = vunpack.c.h.b16 %v1156
        %v3947 = vunpack.c.l.b16 %v1157
        %v3948 = vunpack.c.h.b16 %v1157
        %v3949 = vunpack.c.l.b16 %v1158
        %v3950 = vunpack.c.h.b16 %v1158
        %v3951 = vunpack.c.l.b16 %v1159
        %v3952 = vunpack.c.h.b16 %v1159
        %v3953 = vunpack.c.l.b16 %v1160
        %v3954 = vunpack.c.h.b16 %v1160
        %v3955 = vunpack.c.l.b16 %v1161
        %v3956 = vunpack.c.h.b16 %v1161
        %v3957 = vunpack.c.l.b16 %v1162
        %v3958 = vunpack.c.h.b16 %v1162
        %v3959 = vunpack.c.l.b16 %v1163
        %v3960 = vunpack.c.h.b16 %v1163
        %v3961 = vunpack.c.l.b16 %v1164
        %v3962 = vunpack.c.h.b16 %v1164
        %v3963 = vunpack.c.l.b16 %v1165
        %v3964 = vunpack.c.h.b16 %v1165
        %v3965 = vunpack.c.l.b16 %v1166
        %v3966 = vunpack.c.h.b16 %v1166
        %v3967 = vunpack.c.l.b16 %v1167
        %v3968 = vunpack.c.h.b16 %v1167
        %v3969 = vunpack.c.l.b16 %v1168
        %v3970 = vunpack.c.h.b16 %v1168
        %v3971 = vunpack.c.l.b16 %v1169
        %v3972 = vunpack.c.h.b16 %v1169
        %v3973 = vunpack.c.l.b16 %v1170
        %v3974 = vunpack.c.h.b16 %v1170
        %v3975 = vunpack.c.l.b16 %v1171
        %v3976 = vunpack.c.h.b16 %v1171
        %v3977 = vunpack.c.l.b16 %v1172
        %v3978 = vunpack.c.h.b16 %v1172
        %v3979 = vunpack.c.l.b16 %v1173
        %v3980 = vunpack.c.h.b16 %v1173
        %v3981 = vunpack.c.l.b16 %v1174
        %v3982 = vunpack.c.h.b16 %v1174
        %v3983 = vunpack.c.l.b16 %v1175
        %v3984 = vunpack.c.h.b16 %v1175
        %v3985 = vunpack.c.l.b16 %v1176
        %v3986 = vunpack.c.h.b16 %v1176
        %v3987 = vunpack.c.l.b16 %v1177
        %v3988 = vunpack.c.h.b16 %v1177
        %v3989 = vunpack.c.l.b16 %v1178
        %v3990 = vunpack.c.h.b16 %v1178
        %v3991 = vunpack.c.l.b16 %v1179
        %v3992 = vunpack.c.h.b16 %v1179
        %v3993 = vunpack.c.l.b16 %v1180
        %v3994 = vunpack.c.h.b16 %v1180
        %v3995 = vpack.c.b16 %v2205, %v2203
        %v3996 = vpack.c.b16 %v2206, %v2204
        %v3997 = vpack.c.b16 %v2209, %v2207
        %v3998 = vpack.c.b16 %v2210, %v2208
        %v3999 = vpack.c.b16 %v2213, %v2211
        %v4000 = vpack.c.b16 %v2214, %v2212
        %v4001 = vpack.c.b16 %v2217, %v2215
        %v4002 = vpack.c.b16 %v2218, %v2216
        %v4003 = vpack.c.b16 %v2221, %v2219
        %v4004 = vpack.c.b16 %v2222, %v2220
        %v4005 = vpack.c.b16 %v2225, %v2223
        %v4006 = vpack.c.b16 %v2226, %v2224
        %v4007 = vpack.c.b16 %v2229, %v2227
        %v4008 = vpack.c.b16 %v2230, %v2228
        %v4009 = vpack.c.b16 %v2233, %v2231
        %v4010 = vpack.c.b16 %v2234, %v2232
        %v4011 = vpack.c.b16 %v2237, %v2235
        %v4012 = vpack.c.b16 %v2238, %v2236
        %v4013 = vpack.c.b16 %v2241, %v2239
        %v4014 = vpack.c.b16 %v2242, %v2240
        %v4015 = vpack.c.b16 %v2245, %v2243
        %v4016 = vpack.c.b16 %v2246, %v2244
        %v4017 = vpack.c.b16 %v2249, %v2247
        %v4018 = vpack.c.b16 %v2250, %v2248
        %v4019 = vpack.c.b16 %v2253, %v2251
        %v4020 = vpack.c.b16 %v2254, %v2252
        %v4021 = vpack.c.b16 %v2257, %v2255
        %v4022 = vpack.c.b16 %v2258, %v2256
        %v4023 = vpack.c.b16 %v2261, %v2259
        %v4024 = vpack.c.b16 %v2262, %v2260
        %v4025 = vpack.c.b16 %v2265, %v2263
        %v4026 = vpack.c.b16 %v2266, %v2264
        %v4027 = vpack.c.b16 %v2269, %v2267
        %v4028 = vpack.c.b16 %v2270, %v2268
        %v4029 = vpack.c.b16 %v2273, %v2271
        %v4030 = vpack.c.b16 %v2274, %v2272
        %v4031 = vpack.c.b16 %v2277, %v2275
        %v4032 = vpack.c.b16 %v2278, %v2276
        %v4033 = vpack.c.b16 %v2281, %v2279
        %v4034 = vpack.c.b16 %v2282, %v2280
        %v4035 = vpack.c.b16 %v2285, %v2283
        %v4036 = vpack.c.b16 %v2286, %v2284
        %v4037 = vpack.c.b16 %v2289, %v2287
        %v4038 = vpack.c.b16 %v2290, %v2288
        %v4039 = vpack.c.b16 %v2293, %v2291
        %v4040 = vpack.c.b16 %v2294, %v2292
        %v4041 = vpack.c.b16 %v2297, %v2295
        %v4042 = vpack.c.b16 %v2298, %v2296
        %v4043 = vpack.c.b16 %v2301, %v2299
        %v4044 = vpack.c.b16 %v2302, %v2300
        %v4045 = vpack.c.b16 %v2305, %v2303
        %v4046 = vpack.c.b16 %v2306, %v2304
        %v4047 = vpack.c.b16 %v2309, %v2307
        %v4048 = vpack.c.b16 %v2310, %v2308
        %v4049 = vpack.c.b16 %v2313, %v2311
        %v4050 = vpack.c.b16 %v2314, %v2312
        %v4051 = vpack.c.b16 %v2317, %v2315
        %v4052 = vpack.c.b16 %v2318, %v2316
        %v4053 = vpack.c.b16 %v2321, %v2319
        %v4054 = vpack.c.b16 %v2322, %v2320
        %v4055 = vpack.c.b16 %v2325, %v2323
        %v4056 = vpack.c.b16 %v2326, %v2324
        %v4057 = vpack.c.b16 %v2329, %v2327
        %v4058 = vpack.c.b16 %v2330, %v2328
        %v4059 = vpack.c.b16 %v2333, %v2331
        %v4060 = vpack.c.b16 %v2334, %v2332
        %v4061 = vpack.c.b16 %v2337, %v2335
        %v4062 = vpack.c.b16 %v2338, %v2336
        %v4063 = vpack.c.b16 %v2341, %v2339
        %v4064 = vpack.c.b16 %v2342, %v2340
        %v4065 = vpack.c.b16 %v2345, %v2343
        %v4066 = vpack.c.b16 %v2346, %v2344
        %v4067 = vpack.c.b16 %v2349, %v2347
        %v4068 = vpack.c.b16 %v2350, %v2348
        %v4069 = vpack.c.b16 %v2353, %v2351
        %v4070 = vpack.c.b16 %v2354, %v2352
        %v4071 = vpack.c.b16 %v2357, %v2355
        %v4072 = vpack.c.b16 %v2358, %v2356
        %v4073 = vpack.c.b16 %v2361, %v2359
        %v4074 = vpack.c.b16 %v2362, %v2360
        %v4075 = vpack.c.b16 %v2365, %v2363
        %v4076 = vpack.c.b16 %v2366, %v2364
        %v4077 = vpack.c.b16 %v2369, %v2367
        %v4078 = vpack.c.b16 %v2370, %v2368
        %v4079 = vpack.c.b16 %v2373, %v2371
        %v4080 = vpack.c.b16 %v2374, %v2372
        %v4081 = vpack.c.b16 %v2377, %v2375
        %v4082 = vpack.c.b16 %v2378, %v2376
        %v4083 = vpack.c.b16 %v2381, %v2379
        %v4084 = vpack.c.b16 %v2382, %v2380
        %v4085 = vpack.c.b16 %v2385, %v2383
        %v4086 = vpack.c.b16 %v2386, %v2384
        %v4087 = vpack.c.b16 %v2389, %v2387
        %v4088 = vpack.c.b16 %v2390, %v2388
        %v4089 = vpack.c.b16 %v2393, %v2391
        %v4090 = vpack.c.b16 %v2394, %v2392
        %v4091 = vpack.c.b16 %v2397, %v2395
        %v4092 = vpack.c.b16 %v2398, %v2396
        %v4093 = vpack.c.b16 %v2401, %v2399
        %v4094 = vpack.c.b16 %v2402, %v2400
        %v4095 = vpack.c.b16 %v2405, %v2403
        %v4096 = vpack.c.b16 %v2406, %v2404
        %v4097 = vpack.c.b16 %v2409, %v2407
        %v4098 = vpack.c.b16 %v2410, %v2408
        %v4099 = vpack.c.b16 %v2413, %v2411
        %v4100 = vpack.c.b16 %v2414, %v2412
        %v4101 = vpack.c.b16 %v2417, %v2415
        %v4102 = vpack.c.b16 %v2418, %v2416
        %v4103 = vpack.c.b16 %v2421, %v2419
        %v4104 = vpack.c.b16 %v2422, %v2420
        %v4105 = vpack.c.b16 %v2425, %v2423
        %v4106 = vpack.c.b16 %v2426, %v2424
        %v4107 = vpack.c.b16 %v2429, %v2427
        %v4108 = vpack.c.b16 %v2430, %v2428
        %v4109 = vpack.c.b16 %v2433, %v2431
        %v4110 = vpack.c.b16 %v2434, %v2432
        %v4111 = vpack.c.b16 %v2437, %v2435
        %v4112 = vpack.c.b16 %v2438, %v2436
        %v4113 = vpack.c.b16 %v2441, %v2439
        %v4114 = vpack.c.b16 %v2442, %v2440
        %v4115 = vpack.c.b16 %v2445, %v2443
        %v4116 = vpack.c.b16 %v2446, %v2444
        %v4117 = vpack.c.b16 %v2449, %v2447
        %v4118 = vpack.c.b16 %v2450, %v2448
        %v4119 = vpack.c.b16 %v2453, %v2451
        %v4120 = vpack.c.b16 %v2454, %v2452
        %v4121 = vpack.c.b16 %v2457, %v2455
        %v4122 = vpack.c.b16 %v2458, %v2456
        %v4123 = vpack.c.b16 %v2461, %v2459
        %v4124 = vpack.c.b16 %v2462, %v2460
        %v4125 = vpack.c.b16 %v2465, %v2463
        %v4126 = vpack.c.b16 %v2466, %v2464
        %v4127 = vpack.c.b16 %v2469, %v2467
        %v4128 = vpack.c.b16 %v2470, %v2468
        %v4129 = vpack.c.b16 %v2473, %v2471
        %v4130 = vpack.c.b16 %v2474, %v2472
        %v4131 = vpack.c.b16 %v2477, %v2475
        %v4132 = vpack.c.b16 %v2478, %v2476
        %v4133 = vpack.c.b16 %v2481, %v2479
        %v4134 = vpack.c.b16 %v2482, %v2480
        %v4135 = vpack.c.b16 %v2485, %v2483
        %v4136 = vpack.c.b16 %v2486, %v2484
        %v4137 = vpack.c.b16 %v2489, %v2487
        %v4138 = vpack.c.b16 %v2490, %v2488
        %v4139 = vpack.c.b16 %v2493, %v2491
        %v4140 = vpack.c.b16 %v2494, %v2492
        %v4141 = vpack.c.b16 %v2497, %v2495
        %v4142 = vpack.c.b16 %v2498, %v2496
        %v4143 = vpack.c.b16 %v2501, %v2499
        %v4144 = vpack.c.b16 %v2502, %v2500
        %v4145 = vpack.c.b16 %v2505, %v2503
        %v4146 = vpack.c.b16 %v2506, %v2504
        %v4147 = vpack.c.b16 %v2509, %v2507
        %v4148 = vpack.c.b16 %v2510, %v2508
        %v4149 = vpack.c.b16 %v2513, %v2511
        %v4150 = vpack.c.b16 %v2514, %v2512
        %v4151 = vpack.c.b16 %v2517, %v2515
        %v4152 = vpack.c.b16 %v2518, %v2516
        %v4153 = vpack.c.b16 %v2521, %v2519
        %v4154 = vpack.c.b16 %v2522, %v2520
        %v4155 = vpack.c.b16 %v2525, %v2523
        %v4156 = vpack.c.b16 %v2526, %v2524
        %v4157 = vpack.c.b16 %v2529, %v2527
        %v4158 = vpack.c.b16 %v2530, %v2528
        %v4159 = vpack.c.b16 %v2533, %v2531
        %v4160 = vpack.c.b16 %v2534, %v2532
        %v4161 = vpack.c.b16 %v2537, %v2535
        %v4162 = vpack.c.b16 %v2538, %v2536
        %v4163 = vpack.c.b16 %v2541, %v2539
        %v4164 = vpack.c.b16 %v2542, %v2540
        %v4165 = vpack.c.b16 %v2545, %v2543
        %v4166 = vpack.c.b16 %v2546, %v2544
        %v4167 = vpack.c.b16 %v2549, %v2547
        %v4168 = vpack.c.b16 %v2550, %v2548
        %v4169 = vpack.c.b16 %v2553, %v2551
        %v4170 = vpack.c.b16 %v2554, %v2552
        %v4171 = vpack.c.b16 %v2557, %v2555
        %v4172 = vpack.c.b16 %v2558, %v2556
        %v4173 = vpack.c.b16 %v2561, %v2559
        %v4174 = vpack.c.b16 %v2562, %v2560
        %v4175 = vpack.c.b16 %v2565, %v2563
        %v4176 = vpack.c.b16 %v2566, %v2564
        %v4177 = vpack.c.b16 %v2569, %v2567
        %v4178 = vpack.c.b16 %v2570, %v2568
        %v4179 = vpack.c.b16 %v2573, %v2571
        %v4180 = vpack.c.b16 %v2574, %v2572
        %v4181 = vpack.c.b16 %v2577, %v2575
        %v4182 = vpack.c.b16 %v2578, %v2576
        %v4183 = vpack.c.b16 %v2581, %v2579
        %v4184 = vpack.c.b16 %v2582, %v2580
        %v4185 = vpack.c.b16 %v2585, %v2583
        %v4186 = vpack.c.b16 %v2586, %v2584
        %v4187 = vpack.c.b16 %v2589, %v2587
        %v4188 = vpack.c.b16 %v2590, %v2588
        %v4189 = vpack.c.b16 %v2593, %v2591
        %v4190 = vpack.c.b16 %v2594, %v2592
        %v4191 = vpack.c.b16 %v2597, %v2595
        %v4192 = vpack.c.b16 %v2598, %v2596
        %v4193 = vpack.c.b16 %v2601, %v2599
        %v4194 = vpack.c.b16 %v2602, %v2600
        %v4195 = vpack.c.b16 %v2605, %v2603
        %v4196 = vpack.c.b16 %v2606, %v2604
        %v4197 = vpack.c.b16 %v2609, %v2607
        %v4198 = vpack.c.b16 %v2610, %v2608
        %v4199 = vpack.c.b16 %v2613, %v2611
        %v4200 = vpack.c.b16 %v2614, %v2612
        %v4201 = vpack.c.b16 %v2617, %v2615
        %v4202 = vpack.c.b16 %v2618, %v2616
        %v4203 = vpack.c.b16 %v2621, %v2619
        %v4204 = vpack.c.b16 %v2622, %v2620
        %v4205 = vpack.c.b16 %v2625, %v2623
        %v4206 = vpack.c.b16 %v2626, %v2624
        %v4207 = vpack.c.b16 %v2629, %v2627
        %v4208 = vpack.c.b16 %v2630, %v2628
        %v4209 = vpack.c.b16 %v2633, %v2631
        %v4210 = vpack.c.b16 %v2634, %v2632
        %v4211 = vpack.c.b16 %v2637, %v2635
        %v4212 = vpack.c.b16 %v2638, %v2636
        %v4213 = vpack.c.b16 %v2641, %v2639
        %v4214 = vpack.c.b16 %v2642, %v2640
        %v4215 = vpack.c.b16 %v2645, %v2643
        %v4216 = vpack.c.b16 %v2646, %v2644
        %v4217 = vpack.c.b16 %v2649, %v2647
        %v4218 = vpack.c.b16 %v2650, %v2648
        %v4219 = vpack.c.b16 %v2653, %v2651
        %v4220 = vpack.c.b16 %v2654, %v2652
        %v4221 = vpack.c.b16 %v2657, %v2655
        %v4222 = vpack.c.b16 %v2658, %v2656
        %v4223 = vpack.c.b16 %v2661, %v2659
        %v4224 = vpack.c.b16 %v2662, %v2660
        %v4225 = vpack.c.b16 %v2665, %v2663
        %v4226 = vpack.c.b16 %v2666, %v2664
        %v4227 = vpack.c.b16 %v2669, %v2667
        %v4228 = vpack.c.b16 %v2670, %v2668
        %v4229 = vpack.c.b16 %v2673, %v2671
        %v4230 = vpack.c.b16 %v2674, %v2672
        %v4231 = vpack.c.b16 %v2677, %v2675
        %v4232 = vpack.c.b16 %v2678, %v2676
        %v4233 = vpack.c.b16 %v2681, %v2679
        %v4234 = vpack.c.b16 %v2682, %v2680
        %v4235 = vpack.c.b16 %v2685, %v2683
        %v4236 = vpack.c.b16 %v2686, %v2684
        %v4237 = vpack.c.b16 %v2689, %v2687
        %v4238 = vpack.c.b16 %v2690, %v2688
        %v4239 = vpack.c.b16 %v2693, %v2691
        %v4240 = vpack.c.b16 %v2694, %v2692
        %v4241 = vpack.c.b16 %v2697, %v2695
        %v4242 = vpack.c.b16 %v2698, %v2696
        %v4243 = vpack.c.b16 %v2701, %v2699
        %v4244 = vpack.c.b16 %v2702, %v2700
        %v4245 = vpack.c.b16 %v2705, %v2703
        %v4246 = vpack.c.b16 %v2706, %v2704
        %v4247 = vpack.c.b16 %v2709, %v2707
        %v4248 = vpack.c.b16 %v2710, %v2708
        %v4249 = vpack.c.b16 %v2713, %v2711
        %v4250 = vpack.c.b16 %v2714, %v2712
        %v4251 = vpack.c.b16 %v2717, %v2715
        %v4252 = vpack.c.b16 %v2718, %v2716
        %v4253 = vpack.c.b16 %v2721, %v2719
        %v4254 = vpack.c.b16 %v2722, %v2720
        %v4255 = vpack.c.b16 %v2725, %v2723
        %v4256 = vpack.c.b16 %v2726, %v2724
        %v4257 = vpack.c.b16 %v2729, %v2727
        %v4258 = vpack.c.b16 %v2730, %v2728
        %v4259 = vpack.c.b16 %v2733, %v2731
        %v4260 = vpack.c.b16 %v2734, %v2732
        %v4261 = vpack.c.b16 %v2737, %v2735
        %v4262 = vpack.c.b16 %v2738, %v2736
        %v4263 = vpack.c.b16 %v2741, %v2739
        %v4264 = vpack.c.b16 %v2742, %v2740
        %v4265 = vpack.c.b16 %v2745, %v2743
        %v4266 = vpack.c.b16 %v2746, %v2744
        %v4267 = vpack.c.b16 %v2749, %v2747
        %v4268 = vpack.c.b16 %v2750, %v2748
        %v4269 = vpack.c.b16 %v2753, %v2751
        %v4270 = vpack.c.b16 %v2754, %v2752
        %v4271 = vpack.c.b16 %v2757, %v2755
        %v4272 = vpack.c.b16 %v2758, %v2756
        %v4273 = vpack.c.b16 %v2761, %v2759
        %v4274 = vpack.c.b16 %v2762, %v2760
        %v4275 = vpack.c.b16 %v2765, %v2763
        %v4276 = vpack.c.b16 %v2766, %v2764
        %v4277 = vpack.c.b16 %v2769, %v2767
        %v4278 = vpack.c.b16 %v2770, %v2768
        %v4279 = vpack.c.b16 %v2773, %v2771
        %v4280 = vpack.c.b16 %v2774, %v2772
        %v4281 = vpack.c.b16 %v2777, %v2775
        %v4282 = vpack.c.b16 %v2778, %v2776
        %v4283 = vpack.c.b16 %v2781, %v2779
        %v4284 = vpack.c.b16 %v2782, %v2780
        %v4285 = vpack.c.b16 %v2785, %v2783
        %v4286 = vpack.c.b16 %v2786, %v2784
        %v4287 = vpack.c.b16 %v2789, %v2787
        %v4288 = vpack.c.b16 %v2790, %v2788
        %v4289 = vpack.c.b16 %v2793, %v2791
        %v4290 = vpack.c.b16 %v2794, %v2792
        %v4291 = vpack.c.b16 %v2797, %v2795
        %v4292 = vpack.c.b16 %v2798, %v2796
        %v4293 = vpack.c.b16 %v2801, %v2799
        %v4294 = vpack.c.b16 %v2802, %v2800
        %v4295 = vpack.c.b16 %v2805, %v2803
        %v4296 = vpack.c.b16 %v2806, %v2804
        %v4297 = vpack.c.b16 %v2809, %v2807
        %v4298 = vpack.c.b16 %v2810, %v2808
        %v4299 = vpack.c.b16 %v2813, %v2811
        %v4300 = vpack.c.b16 %v2814, %v2812
        %v4301 = vpack.c.b16 %v2817, %v2815
        %v4302 = vpack.c.b16 %v2818, %v2816
        %v4303 = vpack.c.b16 %v2821, %v2819
        %v4304 = vpack.c.b16 %v2822, %v2820
        %v4305 = vpack.c.b16 %v2825, %v2823
        %v4306 = vpack.c.b16 %v2826, %v2824
        %v4307 = vpack.c.b16 %v2829, %v2827
        %v4308 = vpack.c.b16 %v2830, %v2828
        %v4309 = vpack.c.b16 %v2833, %v2831
        %v4310 = vpack.c.b16 %v2834, %v2832
        %v4311 = vpack.c.b16 %v2837, %v2835
        %v4312 = vpack.c.b16 %v2838, %v2836
        %v4313 = vpack.c.b16 %v2841, %v2839
        %v4314 = vpack.c.b16 %v2842, %v2840
        %v4315 = vpack.c.b16 %v2845, %v2843
        %v4316 = vpack.c.b16 %v2846, %v2844
        %v4317 = vpack.c.b16 %v2849, %v2847
        %v4318 = vpack.c.b16 %v2850, %v2848
        %v4319 = vpack.c.b16 %v2853, %v2851
        %v4320 = vpack.c.b16 %v2854, %v2852
        %v4321 = vpack.c.b16 %v2857, %v2855
        %v4322 = vpack.c.b16 %v2858, %v2856
        %v4323 = vpack.c.b16 %v2861, %v2859
        %v4324 = vpack.c.b16 %v2862, %v2860
        %v4325 = vpack.c.b16 %v2865, %v2863
        %v4326 = vpack.c.b16 %v2866, %v2864
        %v4327 = vpack.c.b16 %v2869, %v2867
        %v4328 = vpack.c.b16 %v2870, %v2868
        %v4329 = vpack.c.b16 %v2873, %v2871
        %v4330 = vpack.c.b16 %v2874, %v2872
        %v4331 = vpack.c.b16 %v2877, %v2875
        %v4332 = vpack.c.b16 %v2878, %v2876
        %v4333 = vpack.c.b16 %v2881, %v2879
        %v4334 = vpack.c.b16 %v2882, %v2880
        %v4335 = vpack.c.b16 %v2885, %v2883
        %v4336 = vpack.c.b16 %v2886, %v2884
        %v4337 = vpack.c.b16 %v2889, %v2887
        %v4338 = vpack.c.b16 %v2890, %v2888
        %v4339 = vpack.c.b16 %v2893, %v2891
        %v4340 = vpack.c.b16 %v2894, %v2892
        %v4341 = vpack.c.b16 %v2897, %v2895
        %v4342 = vpack.c.b16 %v2898, %v2896
        %v4343 = vpack.c.b16 %v2901, %v2899
        %v4344 = vpack.c.b16 %v2902, %v2900
        %v4345 = vpack.c.b16 %v2905, %v2903
        %v4346 = vpack.c.b16 %v2906, %v2904
        %v4347 = vpack.c.b16 %v2909, %v2907
        %v4348 = vpack.c.b16 %v2910, %v2908
        %v4349 = vpack.c.b16 %v2913, %v2911
        %v4350 = vpack.c.b16 %v2914, %v2912
        %v4351 = vpack.c.b16 %v2917, %v2915
        %v4352 = vpack.c.b16 %v2918, %v2916
        %v4353 = vpack.c.b16 %v2921, %v2919
        %v4354 = vpack.c.b16 %v2922, %v2920
        %v4355 = vpack.c.b16 %v2925, %v2923
        %v4356 = vpack.c.b16 %v2926, %v2924
        %v4357 = vpack.c.b16 %v2929, %v2927
        %v4358 = vpack.c.b16 %v2930, %v2928
        %v4359 = vpack.c.b16 %v2933, %v2931
        %v4360 = vpack.c.b16 %v2934, %v2932
        %v4361 = vpack.c.b16 %v2937, %v2935
        %v4362 = vpack.c.b16 %v2938, %v2936
        %v4363 = vpack.c.b16 %v2941, %v2939
        %v4364 = vpack.c.b16 %v2942, %v2940
        %v4365 = vpack.c.b16 %v2945, %v2943
        %v4366 = vpack.c.b16 %v2946, %v2944
        %v4367 = vpack.c.b16 %v2949, %v2947
        %v4368 = vpack.c.b16 %v2950, %v2948
        %v4369 = vpack.c.b16 %v2953, %v2951
        %v4370 = vpack.c.b16 %v2954, %v2952
        %v4371 = vpack.c.b16 %v2957, %v2955
        %v4372 = vpack.c.b16 %v2958, %v2956
        %v4373 = vpack.c.b16 %v2961, %v2959
        %v4374 = vpack.c.b16 %v2962, %v2960
        %v4375 = vpack.c.b16 %v2965, %v2963
        %v4376 = vpack.c.b16 %v2966, %v2964
        %v4377 = vpack.c.b16 %v2969, %v2967
        %v4378 = vpack.c.b16 %v2970, %v2968
        %v4379 = vpack.c.b16 %v2973, %v2971
        %v4380 = vpack.c.b16 %v2974, %v2972
        %v4381 = vpack.c.b16 %v2977, %v2975
        %v4382 = vpack.c.b16 %v2978, %v2976
        %v4383 = vpack.c.b16 %v2981, %v2979
        %v4384 = vpack.c.b16 %v2982, %v2980
        %v4385 = vpack.c.b16 %v2985, %v2983
        %v4386 = vpack.c.b16 %v2986, %v2984
        %v4387 = vpack.c.b16 %v2989, %v2987
        %v4388 = vpack.c.b16 %v2990, %v2988
        %v4389 = vpack.c.b16 %v2993, %v2991
        %v4390 = vpack.c.b16 %v2994, %v2992
        %v4391 = vpack.c.b16 %v2997, %v2995
        %v4392 = vpack.c.b16 %v2998, %v2996
        %v4393 = vpack.c.b16 %v3001, %v2999
        %v4394 = vpack.c.b16 %v3002, %v3000
        %v4395 = vpack.c.b16 %v3005, %v3003
        %v4396 = vpack.c.b16 %v3006, %v3004
        %v4397 = vpack.c.b16 %v3009, %v3007
        %v4398 = vpack.c.b16 %v3010, %v3008
        %v4399 = vpack.c.b16 %v3013, %v3011
        %v4400 = vpack.c.b16 %v3014, %v3012
        %v4401 = vpack.c.b16 %v3017, %v3015
        %v4402 = vpack.c.b16 %v3018, %v3016
        %v4403 = vpack.c.b16 %v3021, %v3019
        %v4404 = vpack.c.b16 %v3022, %v3020
        %v4405 = vpack.c.b16 %v3025, %v3023
        %v4406 = vpack.c.b16 %v3026, %v3024
        %v4407 = vpack.c.b16 %v3029, %v3027
        %v4408 = vpack.c.b16 %v3030, %v3028
        %v4409 = vpack.c.b16 %v3033, %v3031
        %v4410 = vpack.c.b16 %v3034, %v3032
        %v4411 = vpack.c.b16 %v3037, %v3035
        %v4412 = vpack.c.b16 %v3038, %v3036
        %v4413 = vpack.c.b16 %v3041, %v3039
        %v4414 = vpack.c.b16 %v3042, %v3040
        %v4415 = vpack.c.b16 %v3045, %v3043
        %v4416 = vpack.c.b16 %v3046, %v3044
        %v4417 = vpack.c.b16 %v3049, %v3047
        %v4418 = vpack.c.b16 %v3050, %v3048
        %v4419 = vpack.c.b16 %v3053, %v3051
        %v4420 = vpack.c.b16 %v3054, %v3052
        %v4421 = vpack.c.b16 %v3057, %v3055
        %v4422 = vpack.c.b16 %v3058, %v3056
        %v4423 = vpack.c.b16 %v3061, %v3059
        %v4424 = vpack.c.b16 %v3062, %v3060
        %v4425 = vpack.c.b16 %v3065, %v3063
        %v4426 = vpack.c.b16 %v3066, %v3064
        %v4427 = vpack.c.b16 %v3069, %v3067
        %v4428 = vpack.c.b16 %v3070, %v3068
        %v4429 = vpack.c.b16 %v3073, %v3071
        %v4430 = vpack.c.b16 %v3074, %v3072
        %v4431 = vpack.c.b16 %v3077, %v3075
        %v4432 = vpack.c.b16 %v3078, %v3076
        %v4433 = vpack.c.b16 %v3081, %v3079
        %v4434 = vpack.c.b16 %v3082, %v3080
        %v4435 = vpack.c.b16 %v3085, %v3083
        %v4436 = vpack.c.b16 %v3086, %v3084
        %v4437 = vpack.c.b16 %v3089, %v3087
        %v4438 = vpack.c.b16 %v3090, %v3088
        %v4439 = vpack.c.b16 %v3093, %v3091
        %v4440 = vpack.c.b16 %v3094, %v3092
        %v4441 = vpack.c.b16 %v3097, %v3095
        %v4442 = vpack.c.b16 %v3098, %v3096
        %v4443 = vpack.c.b16 %v3101, %v3099
        %v4444 = vpack.c.b16 %v3102, %v3100
        %v4445 = vpack.c.b16 %v3105, %v3103
        %v4446 = vpack.c.b16 %v3106, %v3104
        %v4447 = vpack.c.b16 %v3109, %v3107
        %v4448 = vpack.c.b16 %v3110, %v3108
        %v4449 = vpack.c.b16 %v3113, %v3111
        %v4450 = vpack.c.b16 %v3114, %v3112
        %v4451 = vpack.c.b16 %v3117, %v3115
        %v4452 = vpack.c.b16 %v3118, %v3116
        %v4453 = vpack.c.b16 %v3121, %v3119
        %v4454 = vpack.c.b16 %v3122, %v3120
        %v4455 = vpack.c.b16 %v3125, %v3123
        %v4456 = vpack.c.b16 %v3126, %v3124
        %v4457 = vpack.c.b16 %v3129, %v3127
        %v4458 = vpack.c.b16 %v3130, %v3128
        %v4459 = vpack.c.b16 %v3133, %v3131
        %v4460 = vpack.c.b16 %v3134, %v3132
        %v4461 = vpack.c.b16 %v3137, %v3135
        %v4462 = vpack.c.b16 %v3138, %v3136
        %v4463 = vpack.c.b16 %v3141, %v3139
        %v4464 = vpack.c.b16 %v3142, %v3140
        %v4465 = vpack.c.b16 %v3145, %v3143
        %v4466 = vpack.c.b16 %v3146, %v3144
        %v4467 = vpack.c.b16 %v3149, %v3147
        %v4468 = vpack.c.b16 %v3150, %v3148
        %v4469 = vpack.c.b16 %v3153, %v3151
        %v4470 = vpack.c.b16 %v3154, %v3152
        %v4471 = vpack.c.b16 %v3157, %v3155
        %v4472 = vpack.c.b16 %v3158, %v3156
        %v4473 = vpack.c.b16 %v3161, %v3159
        %v4474 = vpack.c.b16 %v3162, %v3160
        %v4475 = vpack.c.b16 %v3165, %v3163
        %v4476 = vpack.c.b16 %v3166, %v3164
        %v4477 = vpack.c.b16 %v3169, %v3167
        %v4478 = vpack.c.b16 %v3170, %v3168
        %v4479 = vpack.c.b16 %v3173, %v3171
        %v4480 = vpack.c.b16 %v3174, %v3172
        %v4481 = vpack.c.b16 %v3177, %v3175
        %v4482 = vpack.c.b16 %v3178, %v3176
        %v4483 = vpack.c.b16 %v3181, %v3179
        %v4484 = vpack.c.b16 %v3182, %v3180
        %v4485 = vpack.c.b16 %v3185, %v3183
        %v4486 = vpack.c.b16 %v3186, %v3184
        %v4487 = vpack.c.b16 %v3189, %v3187
        %v4488 = vpack.c.b16 %v3190, %v3188
        %v4489 = vpack.c.b16 %v3193, %v3191
        %v4490 = vpack.c.b16 %v3194, %v3192
        %v4491 = vpack.c.b16 %v3197, %v3195
        %v4492 = vpack.c.b16 %v3198, %v3196
        %v4493 = vpack.c.b16 %v3201, %v3199
        %v4494 = vpack.c.b16 %v3202, %v3200
        %v4495 = vpack.c.b16 %v3205, %v3203
        %v4496 = vpack.c.b16 %v3206, %v3204
        %v4497 = vpack.c.b16 %v3209, %v3207
        %v4498 = vpack.c.b16 %v3210, %v3208
        %v4499 = vpack.c.b16 %v3213, %v3211
        %v4500 = vpack.c.b16 %v3214, %v3212
        %v4501 = vpack.c.b16 %v3217, %v3215
        %v4502 = vpack.c.b16 %v3218, %v3216
        %v4503 = vpack.c.b16 %v3221, %v3219
        %v4504 = vpack.c.b16 %v3222, %v3220
        %v4505 = vpack.c.b16 %v3225, %v3223
        %v4506 = vpack.c.b16 %v3226, %v3224
        %v4507 = vpack.c.b16 %v3229, %v3227
        %v4508 = vpack.c.b16 %v3230, %v3228
        %v4509 = vpack.c.b16 %v3233, %v3231
        %v4510 = vpack.c.b16 %v3234, %v3232
        %v4511 = vpack.c.b16 %v3237, %v3235
        %v4512 = vpack.c.b16 %v3238, %v3236
        %v4513 = vpack.c.b16 %v3241, %v3239
        %v4514 = vpack.c.b16 %v3242, %v3240
        %v4515 = vpack.c.b16 %v3245, %v3243
        %v4516 = vpack.c.b16 %v3246, %v3244
        %v4517 = vpack.c.b16 %v3249, %v3247
        %v4518 = vpack.c.b16 %v3250, %v3248
        %v4519 = vpack.c.b16 %v3253, %v3251
        %v4520 = vpack.c.b16 %v3254, %v3252
        %v4521 = vpack.c.b16 %v3257, %v3255
        %v4522 = vpack.c.b16 %v3258, %v3256
        %v4523 = vpack.c.b16 %v3261, %v3259
        %v4524 = vpack.c.b16 %v3262, %v3260
        %v4525 = vpack.c.b16 %v3265, %v3263
        %v4526 = vpack.c.b16 %v3266, %v3264
        %v4527 = vpack.c.b16 %v3269, %v3267
        %v4528 = vpack.c.b16 %v3270, %v3268
        %v4529 = vpack.c.b16 %v3273, %v3271
        %v4530 = vpack.c.b16 %v3274, %v3272
        %v4531 = vpack.c.b16 %v3277, %v3275
        %v4532 = vpack.c.b16 %v3278, %v3276
        %v4533 = vpack.c.b16 %v3281, %v3279
        %v4534 = vpack.c.b16 %v3282, %v3280
        %v4535 = vpack.c.b16 %v3285, %v3283
        %v4536 = vpack.c.b16 %v3286, %v3284
        %v4537 = vpack.c.b16 %v3289, %v3287
        %v4538 = vpack.c.b16 %v3290, %v3288
        %v4539 = vpack.c.b16 %v3293, %v3291
        %v4540 = vpack.c.b16 %v3294, %v3292
        %v4541 = vpack.c.b16 %v3297, %v3295
        %v4542 = vpack.c.b16 %v3298, %v3296
        %v4543 = vpack.c.b16 %v3301, %v3299
        %v4544 = vpack.c.b16 %v3302, %v3300
        %v4545 = vpack.c.b16 %v3305, %v3303
        %v4546 = vpack.c.b16 %v3306, %v3304
        %v4547 = vpack.c.b16 %v3309, %v3307
        %v4548 = vpack.c.b16 %v3310, %v3308
        %v4549 = vpack.c.b16 %v3313, %v3311
        %v4550 = vpack.c.b16 %v3314, %v3312
        %v4551 = vpack.c.b16 %v3317, %v3315
        %v4552 = vpack.c.b16 %v3318, %v3316
        %v4553 = vpack.c.b16 %v3321, %v3319
        %v4554 = vpack.c.b16 %v3322, %v3320
        %v4555 = vpack.c.b16 %v3325, %v3323
        %v4556 = vpack.c.b16 %v3326, %v3324
        %v4557 = vpack.c.b16 %v3329, %v3327
        %v4558 = vpack.c.b16 %v3330, %v3328
        %v4559 = vpack.c.b16 %v3333, %v3331
        %v4560 = vpack.c.b16 %v3334, %v3332
        %v4561 = vpack.c.b16 %v3337, %v3335
        %v4562 = vpack.c.b16 %v3338, %v3336
        %v4563 = vpack.c.b16 %v3341, %v3339
        %v4564 = vpack.c.b16 %v3342, %v3340
        %v4565 = vpack.c.b16 %v3345, %v3343
        %v4566 = vpack.c.b16 %v3346, %v3344
        %v4567 = vpack.c.b16 %v3349, %v3347
        %v4568 = vpack.c.b16 %v3350, %v3348
        %v4569 = vpack.c.b16 %v3353, %v3351
        %v4570 = vpack.c.b16 %v3354, %v3352
        %v4571 = vpack.c.b16 %v3357, %v3355
        %v4572 = vpack.c.b16 %v3358, %v3356
        %v4573 = vpack.c.b16 %v3361, %v3359
        %v4574 = vpack.c.b16 %v3362, %v3360
        %v4575 = vpack.c.b16 %v3365, %v3363
        %v4576 = vpack.c.b16 %v3366, %v3364
        %v4577 = vpack.c.b16 %v3369, %v3367
        %v4578 = vpack.c.b16 %v3370, %v3368
        %v4579 = vpack.c.b16 %v3373, %v3371
        %v4580 = vpack.c.b16 %v3374, %v3372
        %v4581 = vpack.c.b16 %v3377, %v3375
        %v4582 = vpack.c.b16 %v3378, %v3376
        %v4583 = vpack.c.b16 %v3381, %v3379
        %v4584 = vpack.c.b16 %v3382, %v3380
        %v4585 = vpack.c.b16 %v3385, %v3383
        %v4586 = vpack.c.b16 %v3386, %v3384
        %v4587 = vpack.c.b16 %v3389, %v3387
        %v4588 = vpack.c.b16 %v3390, %v3388
        %v4589 = vpack.c.b16 %v3393, %v3391
        %v4590 = vpack.c.b16 %v3394, %v3392
        %v4591 = vpack.c.b16 %v3397, %v3395
        %v4592 = vpack.c.b16 %v3398, %v3396
        %v4593 = vpack.c.b16 %v3401, %v3399
        %v4594 = vpack.c.b16 %v3402, %v3400
        %v4595 = vpack.c.b16 %v3405, %v3403
        %v4596 = vpack.c.b16 %v3406, %v3404
        %v4597 = vpack.c.b16 %v3409, %v3407
        %v4598 = vpack.c.b16 %v3410, %v3408
        %v4599 = vpack.c.b16 %v3413, %v3411
        %v4600 = vpack.c.b16 %v3414, %v3412
        %v4601 = vpack.c.b16 %v3417, %v3415
        %v4602 = vpack.c.b16 %v3418, %v3416
        %v4603 = vpack.c.b16 %v3421, %v3419
        %v4604 = vpack.c.b16 %v3422, %v3420
        %v4605 = vpack.c.b16 %v3425, %v3423
        %v4606 = vpack.c.b16 %v3426, %v3424
        %v4607 = vpack.c.b16 %v3429, %v3427
        %v4608 = vpack.c.b16 %v3430, %v3428
        %v4609 = vpack.c.b16 %v3433, %v3431
        %v4610 = vpack.c.b16 %v3434, %v3432
        %v4611 = vpack.c.b16 %v3437, %v3435
        %v4612 = vpack.c.b16 %v3438, %v3436
        %v4613 = vpack.c.b16 %v3441, %v3439
        %v4614 = vpack.c.b16 %v3442, %v3440
        %v4615 = vpack.c.b16 %v3445, %v3443
        %v4616 = vpack.c.b16 %v3446, %v3444
        %v4617 = vpack.c.b16 %v3449, %v3447
        %v4618 = vpack.c.b16 %v3450, %v3448
        %v4619 = vpack.c.b16 %v3453, %v3451
        %v4620 = vpack.c.b16 %v3454, %v3452
        %v4621 = vpack.c.b16 %v3457, %v3455
        %v4622 = vpack.c.b16 %v3458, %v3456
        %v4623 = vpack.c.b16 %v3461, %v3459
        %v4624 = vpack.c.b16 %v3462, %v3460
        %v4625 = vpack.c.b16 %v3465, %v3463
        %v4626 = vpack.c.b16 %v3466, %v3464
        %v4627 = vpack.c.b16 %v3469, %v3467
        %v4628 = vpack.c.b16 %v3470, %v3468
        %v4629 = vpack.c.b16 %v3473, %v3471
        %v4630 = vpack.c.b16 %v3474, %v3472
        %v4631 = vpack.c.b16 %v3477, %v3475
        %v4632 = vpack.c.b16 %v3478, %v3476
        %v4633 = vpack.c.b16 %v3481, %v3479
        %v4634 = vpack.c.b16 %v3482, %v3480
        %v4635 = vpack.c.b16 %v3485, %v3483
        %v4636 = vpack.c.b16 %v3486, %v3484
        %v4637 = vpack.c.b16 %v3489, %v3487
        %v4638 = vpack.c.b16 %v3490, %v3488
        %v4639 = vpack.c.b16 %v3493, %v3491
        %v4640 = vpack.c.b16 %v3494, %v3492
        %v4641 = vpack.c.b16 %v3497, %v3495
        %v4642 = vpack.c.b16 %v3498, %v3496
        %v4643 = vpack.c.b16 %v3501, %v3499
        %v4644 = vpack.c.b16 %v3502, %v3500
        %v4645 = vpack.c.b16 %v3505, %v3503
        %v4646 = vpack.c.b16 %v3506, %v3504
        %v4647 = vpack.c.b16 %v3509, %v3507
        %v4648 = vpack.c.b16 %v3510, %v3508
        %v4649 = vpack.c.b16 %v3513, %v3511
        %v4650 = vpack.c.b16 %v3514, %v3512
        %v4651 = vpack.c.b16 %v3517, %v3515
        %v4652 = vpack.c.b16 %v3518, %v3516
        %v4653 = vpack.c.b16 %v3521, %v3519
        %v4654 = vpack.c.b16 %v3522, %v3520
        %v4655 = vpack.c.b16 %v3525, %v3523
        %v4656 = vpack.c.b16 %v3526, %v3524
        %v4657 = vpack.c.b16 %v3529, %v3527
        %v4658 = vpack.c.b16 %v3530, %v3528
        %v4659 = vpack.c.b16 %v3533, %v3531
        %v4660 = vpack.c.b16 %v3534, %v3532
        %v4661 = vpack.c.b16 %v3537, %v3535
        %v4662 = vpack.c.b16 %v3538, %v3536
        %v4663 = vpack.c.b16 %v3541, %v3539
        %v4664 = vpack.c.b16 %v3542, %v3540
        %v4665 = vpack.c.b16 %v3545, %v3543
        %v4666 = vpack.c.b16 %v3546, %v3544
        %v4667 = vpack.c.b16 %v3549, %v3547
        %v4668 = vpack.c.b16 %v3550, %v3548
        %v4669 = vpack.c.b16 %v3553, %v3551
        %v4670 = vpack.c.b16 %v3554, %v3552
        %v4671 = vpack.c.b16 %v3557, %v3555
        %v4672 = vpack.c.b16 %v3558, %v3556
        %v4673 = vpack.c.b16 %v3561, %v3559
        %v4674 = vpack.c.b16 %v3562, %v3560
        %v4675 = vpack.c.b16 %v3565, %v3563
        %v4676 = vpack.c.b16 %v3566, %v3564
        %v4677 = vpack.c.b16 %v3569, %v3567
        %v4678 = vpack.c.b16 %v3570, %v3568
        %v4679 = vpack.c.b16 %v3573, %v3571
        %v4680 = vpack.c.b16 %v3574, %v3572
        %v4681 = vpack.c.b16 %v3577, %v3575
        %v4682 = vpack.c.b16 %v3578, %v3576
        %v4683 = vpack.c.b16 %v3581, %v3579
        %v4684 = vpack.c.b16 %v3582, %v3580
        %v4685 = vpack.c.b16 %v3585, %v3583
        %v4686 = vpack.c.b16 %v3586, %v3584
        %v4687 = vpack.c.b16 %v3589, %v3587
        %v4688 = vpack.c.b16 %v3590, %v3588
        %v4689 = vpack.c.b16 %v3593, %v3591
        %v4690 = vpack.c.b16 %v3594, %v3592
        %v4691 = vpack.c.b16 %v3597, %v3595
        %v4692 = vpack.c.b16 %v3598, %v3596
        %v4693 = vpack.c.b16 %v3601, %v3599
        %v4694 = vpack.c.b16 %v3602, %v3600
        %v4695 = vpack.c.b16 %v3605, %v3603
        %v4696 = vpack.c.b16 %v3606, %v3604
        %v4697 = vpack.c.b16 %v3609, %v3607
        %v4698 = vpack.c.b16 %v3610, %v3608
        %v4699 = vpack.c.b16 %v3613, %v3611
        %v4700 = vpack.c.b16 %v3614, %v3612
        %v4701 = vpack.c.b16 %v3617, %v3615
        %v4702 = vpack.c.b16 %v3618, %v3616
        %v4703 = vpack.c.b16 %v3621, %v3619
        %v4704 = vpack.c.b16 %v3622, %v3620
        %v4705 = vpack.c.b16 %v3625, %v3623
        %v4706 = vpack.c.b16 %v3626, %v3624
        %v4707 = vpack.c.b16 %v3629, %v3627
        %v4708 = vpack.c.b16 %v3630, %v3628
        %v4709 = vpack.c.b16 %v3633, %v3631
        %v4710 = vpack.c.b16 %v3634, %v3632
        %v4711 = vpack.c.b16 %v3637, %v3635
        %v4712 = vpack.c.b16 %v3638, %v3636
        %v4713 = vpack.c.b16 %v3641, %v3639
        %v4714 = vpack.c.b16 %v3642, %v3640
        %v4715 = vpack.c.b16 %v3645, %v3643
        %v4716 = vpack.c.b16 %v3646, %v3644
        %v4717 = vpack.c.b16 %v3649, %v3647
        %v4718 = vpack.c.b16 %v3650, %v3648
        %v4719 = vpack.c.b16 %v3653, %v3651
        %v4720 = vpack.c.b16 %v3654, %v3652
        %v4721 = vpack.c.b16 %v3657, %v3655
        %v4722 = vpack.c.b16 %v3658, %v3656
        %v4723 = vpack.c.b16 %v3661, %v3659
        %v4724 = vpack.c.b16 %v3662, %v3660
        %v4725 = vpack.c.b16 %v3665, %v3663
        %v4726 = vpack.c.b16 %v3666, %v3664
        %v4727 = vpack.c.b16 %v3669, %v3667
        %v4728 = vpack.c.b16 %v3670, %v3668
        %v4729 = vpack.c.b16 %v3673, %v3671
        %v4730 = vpack.c.b16 %v3674, %v3672
        %v4731 = vpack.c.b16 %v3677, %v3675
        %v4732 = vpack.c.b16 %v3678, %v3676
        %v4733 = vpack.c.b16 %v3681, %v3679
        %v4734 = vpack.c.b16 %v3682, %v3680
        %v4735 = vpack.c.b16 %v3685, %v3683
        %v4736 = vpack.c.b16 %v3686, %v3684
        %v4737 = vpack.c.b16 %v3689, %v3687
        %v4738 = vpack.c.b16 %v3690, %v3688
        %v4739 = vpack.c.b16 %v3693, %v3691
        %v4740 = vpack.c.b16 %v3694, %v3692
        %v4741 = vpack.c.b16 %v3697, %v3695
        %v4742 = vpack.c.b16 %v3698, %v3696
        %v4743 = vpack.c.b16 %v3701, %v3699
        %v4744 = vpack.c.b16 %v3702, %v3700
        %v4745 = vpack.c.b16 %v3705, %v3703
        %v4746 = vpack.c.b16 %v3706, %v3704
        %v4747 = vpack.c.b16 %v3709, %v3707
        %v4748 = vpack.c.b16 %v3710, %v3708
        %v4749 = vpack.c.b16 %v3713, %v3711
        %v4750 = vpack.c.b16 %v3714, %v3712
        %v4751 = vpack.c.b16 %v3717, %v3715
        %v4752 = vpack.c.b16 %v3718, %v3716
        %v4753 = vpack.c.b16 %v3721, %v3719
        %v4754 = vpack.c.b16 %v3722, %v3720
        %v4755 = vpack.c.b16 %v3725, %v3723
        %v4756 = vpack.c.b16 %v3726, %v3724
        %v4757 = vpack.c.b16 %v3729, %v3727
        %v4758 = vpack.c.b16 %v3730, %v3728
        %v4759 = vpack.c.b16 %v3733, %v3731
        %v4760 = vpack.c.b16 %v3734, %v3732
        %v4761 = vpack.c.b16 %v3737, %v3735
        %v4762 = vpack.c.b16 %v3738, %v3736
        %v4763 = vpack.c.b16 %v3741, %v3739
        %v4764 = vpack.c.b16 %v3742, %v3740
        %v4765 = vpack.c.b16 %v3745, %v3743
        %v4766 = vpack.c.b16 %v3746, %v3744
        %v4767 = vpack.c.b16 %v3749, %v3747
        %v4768 = vpack.c.b16 %v3750, %v3748
        %v4769 = vpack.c.b16 %v3753, %v3751
        %v4770 = vpack.c.b16 %v3754, %v3752
        %v4771 = vpack.c.b16 %v3757, %v3755
        %v4772 = vpack.c.b16 %v3758, %v3756
        %v4773 = vpack.c.b16 %v3761, %v3759
        %v4774 = vpack.c.b16 %v3762, %v3760
        %v4775 = vpack.c.b16 %v3765, %v3763
        %v4776 = vpack.c.b16 %v3766, %v3764
        %v4777 = vpack.c.b16 %v3769, %v3767
        %v4778 = vpack.c.b16 %v3770, %v3768
        %v4779 = vpack.c.b16 %v3773, %v3771
        %v4780 = vpack.c.b16 %v3774, %v3772
        %v4781 = vpack.c.b16 %v3777, %v3775
        %v4782 = vpack.c.b16 %v3778, %v3776
        %v4783 = vpack.c.b16 %v3781, %v3779
        %v4784 = vpack.c.b16 %v3782, %v3780
        %v4785 = vpack.c.b16 %v3785, %v3783
        %v4786 = vpack.c.b16 %v3786, %v3784
        %v4787 = vpack.c.b16 %v3789, %v3787
        %v4788 = vpack.c.b16 %v3790, %v3788
        %v4789 = vpack.c.b16 %v3793, %v3791
        %v4790 = vpack.c.b16 %v3794, %v3792
        %v4791 = vpack.c.b16 %v3797, %v3795
        %v4792 = vpack.c.b16 %v3798, %v3796
        %v4793 = vpack.c.b16 %v3801, %v3799
        %v4794 = vpack.c.b16 %v3802, %v3800
        %v4795 = vpack.c.b16 %v3805, %v3803
        %v4796 = vpack.c.b16 %v3806, %v3804
        %v4797 = vpack.c.b16 %v3809, %v3807
        %v4798 = vpack.c.b16 %v3810, %v3808
        %v4799 = vpack.c.b16 %v3813, %v3811
        %v4800 = vpack.c.b16 %v3814, %v3812
        %v4801 = vpack.c.b16 %v3817, %v3815
        %v4802 = vpack.c.b16 %v3818, %v3816
        %v4803 = vpack.c.b16 %v3821, %v3819
        %v4804 = vpack.c.b16 %v3822, %v3820
        %v4805 = vpack.c.b16 %v3825, %v3823
        %v4806 = vpack.c.b16 %v3826, %v3824
        %v4807 = vpack.c.b16 %v3829, %v3827
        %v4808 = vpack.c.b16 %v3830, %v3828
        %v4809 = vpack.c.b16 %v3833, %v3831
        %v4810 = vpack.c.b16 %v3834, %v3832
        %v4811 = vpack.c.b16 %v3837, %v3835
        %v4812 = vpack.c.b16 %v3838, %v3836
        %v4813 = vpack.c.b16 %v3841, %v3839
        %v4814 = vpack.c.b16 %v3842, %v3840
        %v4815 = vpack.c.b16 %v3845, %v3843
        %v4816 = vpack.c.b16 %v3846, %v3844
        %v4817 = vpack.c.b16 %v3849, %v3847
        %v4818 = vpack.c.b16 %v3850, %v3848
        %v4819 = vpack.c.b16 %v3853, %v3851
        %v4820 = vpack.c.b16 %v3854, %v3852
        %v4821 = vpack.c.b16 %v3857, %v3855
        %v4822 = vpack.c.b16 %v3858, %v3856
        %v4823 = vpack.c.b16 %v3861, %v3859
        %v4824 = vpack.c.b16 %v3862, %v3860
        %v4825 = vpack.c.b16 %v3865, %v3863
        %v4826 = vpack.c.b16 %v3866, %v3864
        %v4827 = vpack.c.b16 %v3869, %v3867
        %v4828 = vpack.c.b16 %v3870, %v3868
        %v4829 = vpack.c.b16 %v3873, %v3871
        %v4830 = vpack.c.b16 %v3874, %v3872
        %v4831 = vpack.c.b16 %v3877, %v3875
        %v4832 = vpack.c.b16 %v3878, %v3876
        %v4833 = vpack.c.b16 %v3881, %v3879
        %v4834 = vpack.c.b16 %v3882, %v3880
        %v4835 = vpack.c.b16 %v3885, %v3883
        %v4836 = vpack.c.b16 %v3886, %v3884
        %v4837 = vpack.c.b16 %v3889, %v3887
        %v4838 = vpack.c.b16 %v3890, %v3888
        %v4839 = vpack.c.b16 %v3893, %v3891
        %v4840 = vpack.c.b16 %v3894, %v3892
        %v4841 = vpack.c.b16 %v3897, %v3895
        %v4842 = vpack.c.b16 %v3898, %v3896
        %v4843 = vpack.c.b16 %v3901, %v3899
        %v4844 = vpack.c.b16 %v3902, %v3900
        %v4845 = vpack.c.b16 %v3905, %v3903
        %v4846 = vpack.c.b16 %v3906, %v3904
        %v4847 = vpack.c.b16 %v3909, %v3907
        %v4848 = vpack.c.b16 %v3910, %v3908
        %v4849 = vpack.c.b16 %v3913, %v3911
        %v4850 = vpack.c.b16 %v3914, %v3912
        %v4851 = vpack.c.b16 %v3917, %v3915
        %v4852 = vpack.c.b16 %v3918, %v3916
        %v4853 = vpack.c.b16 %v3921, %v3919
        %v4854 = vpack.c.b16 %v3922, %v3920
        %v4855 = vpack.c.b16 %v3925, %v3923
        %v4856 = vpack.c.b16 %v3926, %v3924
        %v4857 = vpack.c.b16 %v3929, %v3927
        %v4858 = vpack.c.b16 %v3930, %v3928
        %v4859 = vpack.c.b16 %v3933, %v3931
        %v4860 = vpack.c.b16 %v3934, %v3932
        %v4861 = vpack.c.b16 %v3937, %v3935
        %v4862 = vpack.c.b16 %v3938, %v3936
        %v4863 = vpack.c.b16 %v3941, %v3939
        %v4864 = vpack.c.b16 %v3942, %v3940
        %v4865 = vpack.c.b16 %v3945, %v3943
        %v4866 = vpack.c.b16 %v3946, %v3944
        %v4867 = vpack.c.b16 %v3949, %v3947
        %v4868 = vpack.c.b16 %v3950, %v3948
        %v4869 = vpack.c.b16 %v3953, %v3951
        %v4870 = vpack.c.b16 %v3954, %v3952
        %v4871 = vpack.c.b16 %v3957, %v3955
        %v4872 = vpack.c.b16 %v3958, %v3956
        %v4873 = vpack.c.b16 %v3961, %v3959
        %v4874 = vpack.c.b16 %v3962, %v3960
        %v4875 = vpack.c.b16 %v3965, %v3963
        %v4876 = vpack.c.b16 %v3966, %v3964
        %v4877 = vpack.c.b16 %v3969, %v3967
        %v4878 = vpack.c.b16 %v3970, %v3968
        %v4879 = vpack.c.b16 %v3973, %v3971
        %v4880 = vpack.c.b16 %v3974, %v3972
        %v4881 = vpack.c.b16 %v3977, %v3975
        %v4882 = vpack.c.b16 %v3978, %v3976
        %v4883 = vpack.c.b16 %v3981, %v3979
        %v4884 = vpack.c.b16 %v3982, %v3980
        %v4885 = vpack.c.b16 %v3985, %v3983
        %v4886 = vpack.c.b16 %v3986, %v3984
        %v4887 = vpack.c.b16 %v3989, %v3987
        %v4888 = vpack.c.b16 %v3990, %v3988
        %v4889 = vpack.c.b16 %v3993, %v3991
        %v4890 = vpack.c.b16 %v3994, %v3992
        %5787 = vmatpush.bf16.msra.mxu0 %v4009
        %5788 = vmatpush.bf16.msra.mxu0 %v4007
        %5789 = vmatpush.bf16.msra.mxu0 %v4005
        %5790 = vmatpush.bf16.msra.mxu0 %v4003
        %5791 = vmatpush.bf16.msra.mxu0 %v4001
        %5792 = vmatpush.bf16.msra.mxu0 %v3999
        %5793 = vmatpush.bf16.msra.mxu0 %v3997
        %5794 = vmatpush.bf16.msra.mxu0 %v3995
        %5795 = vmatmul.bf16.gmra.mxu0 %v1183
        %v5796 = vpop.f32.mrf.mxu0
        %v5797 = vadd.f32 0.0, %v5796
        %v5798 = vpop.f32.mrf.mxu0
        %5799 = vdwg.mxu0
        %5800 = vmatpush.bf16.msra.mxu0 %v4025
        %5801 = vmatpush.bf16.msra.mxu0 %v4023
        %5802 = vmatpush.bf16.msra.mxu0 %v4021
        %5803 = vmatpush.bf16.msra.mxu0 %v4019
        %5804 = vmatpush.bf16.msra.mxu0 %v4017
        %5805 = vmatpush.bf16.msra.mxu0 %v4015
        %5806 = vmatpush.bf16.msra.mxu0 %v4013
        %5807 = vmatpush.bf16.msra.mxu0 %v4011
        %5808 = vmatmul.bf16.gmra.mxu0 %v1184
        %v5809 = vpop.f32.mrf.mxu0
        %v5810 = vadd.f32 %v5797, %v5809
        %v5811 = vpop.f32.mrf.mxu0
        %5812 = vdwg.mxu0
        %5813 = vmatpush.bf16.msra.mxu0 %v4041
        %5814 = vmatpush.bf16.msra.mxu0 %v4039
        %5815 = vmatpush.bf16.msra.mxu0 %v4037
        %5816 = vmatpush.bf16.msra.mxu0 %v4035
        %5817 = vmatpush.bf16.msra.mxu0 %v4033
        %5818 = vmatpush.bf16.msra.mxu0 %v4031
        %5819 = vmatpush.bf16.msra.mxu0 %v4029
        %5820 = vmatpush.bf16.msra.mxu0 %v4027
        %5821 = vmatmul.bf16.gmra.mxu0 %v1185
        %v5822 = vpop.f32.mrf.mxu0
        %v5823 = vadd.f32 %v5810, %v5822
        %v5824 = vpop.f32.mrf.mxu0
        %5825 = vdwg.mxu0
        %5826 = vmatpush.bf16.msra.mxu0 %v4057
        %5827 = vmatpush.bf16.msra.mxu0 %v4055
        %5828 = vmatpush.bf16.msra.mxu0 %v4053
        %5829 = vmatpush.bf16.msra.mxu0 %v4051
        %5830 = vmatpush.bf16.msra.mxu0 %v4049
        %5831 = vmatpush.bf16.msra.mxu0 %v4047
        %5832 = vmatpush.bf16.msra.mxu0 %v4045
        %5833 = vmatpush.bf16.msra.mxu0 %v4043
        %5834 = vmatmul.bf16.gmra.mxu0 %v1186
        %v5835 = vpop.f32.mrf.mxu0
        %v5836 = vadd.f32 %v5823, %v5835
        %v5837 = vpop.f32.mrf.mxu0
        %5838 = vdwg.mxu0
        %5839 = vmatpush.bf16.msra.mxu0 %v4073
        %5840 = vmatpush.bf16.msra.mxu0 %v4071
        %5841 = vmatpush.bf16.msra.mxu0 %v4069
        %5842 = vmatpush.bf16.msra.mxu0 %v4067
        %5843 = vmatpush.bf16.msra.mxu0 %v4065
        %5844 = vmatpush.bf16.msra.mxu0 %v4063
        %5845 = vmatpush.bf16.msra.mxu0 %v4061
        %5846 = vmatpush.bf16.msra.mxu0 %v4059
        %5847 = vmatmul.bf16.gmra.mxu0 %v1187
        %v5848 = vpop.f32.mrf.mxu0
        %v5849 = vadd.f32 %v5836, %v5848
        %v5850 = vpop.f32.mrf.mxu0
        %5851 = vdwg.mxu0
        %5852 = vmatpush.bf16.msra.mxu0 %v4089
        %5853 = vmatpush.bf16.msra.mxu0 %v4087
        %5854 = vmatpush.bf16.msra.mxu0 %v4085
        %5855 = vmatpush.bf16.msra.mxu0 %v4083
        %5856 = vmatpush.bf16.msra.mxu0 %v4081
        %5857 = vmatpush.bf16.msra.mxu0 %v4079
        %5858 = vmatpush.bf16.msra.mxu0 %v4077
        %5859 = vmatpush.bf16.msra.mxu0 %v4075
        %5860 = vmatmul.bf16.gmra.mxu0 %v1188
        %v5861 = vpop.f32.mrf.mxu0
        %v5862 = vadd.f32 %v5849, %v5861
        %v5863 = vpop.f32.mrf.mxu0
        %5864 = vdwg.mxu0
        %5865 = vmatpush.bf16.msra.mxu0 %v4105
        %5866 = vmatpush.bf16.msra.mxu0 %v4103
        %5867 = vmatpush.bf16.msra.mxu0 %v4101
        %5868 = vmatpush.bf16.msra.mxu0 %v4099
        %5869 = vmatpush.bf16.msra.mxu0 %v4097
        %5870 = vmatpush.bf16.msra.mxu0 %v4095
        %5871 = vmatpush.bf16.msra.mxu0 %v4093
        %5872 = vmatpush.bf16.msra.mxu0 %v4091
        %5873 = vmatmul.bf16.gmra.mxu0 %v1189
        %v5874 = vpop.f32.mrf.mxu0
        %v5875 = vadd.f32 %v5862, %v5874
        %v5876 = vpop.f32.mrf.mxu0
        %5877 = vdwg.mxu0
        %5878 = vmatpush.bf16.msra.mxu0 %v4121
        %5879 = vmatpush.bf16.msra.mxu0 %v4119
        %5880 = vmatpush.bf16.msra.mxu0 %v4117
        %5881 = vmatpush.bf16.msra.mxu0 %v4115
        %5882 = vmatpush.bf16.msra.mxu0 %v4113
        %5883 = vmatpush.bf16.msra.mxu0 %v4111
        %5884 = vmatpush.bf16.msra.mxu0 %v4109
        %5885 = vmatpush.bf16.msra.mxu0 %v4107
        %5886 = vmatmul.bf16.gmra.mxu0 %v1190
        %v5887 = vpop.f32.mrf.mxu0
        %v5888 = vadd.f32 %v5875, %v5887
        %v5889 = vpop.f32.mrf.mxu0
        %5890 = vdwg.mxu0
        %5891 = vmatpush.bf16.msra.mxu0 %v4137
        %5892 = vmatpush.bf16.msra.mxu0 %v4135
        %5893 = vmatpush.bf16.msra.mxu0 %v4133
        %5894 = vmatpush.bf16.msra.mxu0 %v4131
        %5895 = vmatpush.bf16.msra.mxu0 %v4129
        %5896 = vmatpush.bf16.msra.mxu0 %v4127
        %5897 = vmatpush.bf16.msra.mxu0 %v4125
        %5898 = vmatpush.bf16.msra.mxu0 %v4123
        %5899 = vmatmul.bf16.gmra.mxu0 %v1193
        %v5900 = vpop.f32.mrf.mxu0
        %v5901 = vadd.f32 %v5888, %v5900
        %v5902 = vpop.f32.mrf.mxu0
        %5903 = vdwg.mxu0
        %5904 = vmatpush.bf16.msra.mxu0 %v4153
        %5905 = vmatpush.bf16.msra.mxu0 %v4151
        %5906 = vmatpush.bf16.msra.mxu0 %v4149
        %5907 = vmatpush.bf16.msra.mxu0 %v4147
        %5908 = vmatpush.bf16.msra.mxu0 %v4145
        %5909 = vmatpush.bf16.msra.mxu0 %v4143
        %5910 = vmatpush.bf16.msra.mxu0 %v4141
        %5911 = vmatpush.bf16.msra.mxu0 %v4139
        %5912 = vmatmul.bf16.gmra.mxu0 %v1194
        %v5913 = vpop.f32.mrf.mxu0
        %v5914 = vadd.f32 %v5901, %v5913
        %v5915 = vpop.f32.mrf.mxu0
        %5916 = vdwg.mxu0
        %5917 = vmatpush.bf16.msra.mxu0 %v4169
        %5918 = vmatpush.bf16.msra.mxu0 %v4167
        %5919 = vmatpush.bf16.msra.mxu0 %v4165
        %5920 = vmatpush.bf16.msra.mxu0 %v4163
        %5921 = vmatpush.bf16.msra.mxu0 %v4161
        %5922 = vmatpush.bf16.msra.mxu0 %v4159
        %5923 = vmatpush.bf16.msra.mxu0 %v4157
        %5924 = vmatpush.bf16.msra.mxu0 %v4155
        %5925 = vmatmul.bf16.gmra.mxu0 %v1195
        %v5926 = vpop.f32.mrf.mxu0
        %v5927 = vadd.f32 %v5914, %v5926
        %v5928 = vpop.f32.mrf.mxu0
        %5929 = vdwg.mxu0
        %5930 = vmatpush.bf16.msra.mxu0 %v4185
        %5931 = vmatpush.bf16.msra.mxu0 %v4183
        %5932 = vmatpush.bf16.msra.mxu0 %v4181
        %5933 = vmatpush.bf16.msra.mxu0 %v4179
        %5934 = vmatpush.bf16.msra.mxu0 %v4177
        %5935 = vmatpush.bf16.msra.mxu0 %v4175
        %5936 = vmatpush.bf16.msra.mxu0 %v4173
        %5937 = vmatpush.bf16.msra.mxu0 %v4171
        %5938 = vmatmul.bf16.gmra.mxu0 %v1196
        %v5939 = vpop.f32.mrf.mxu0
        %v5940 = vadd.f32 %v5927, %v5939
        %v5941 = vpop.f32.mrf.mxu0
        %5942 = vdwg.mxu0
        %5943 = vmatpush.bf16.msra.mxu0 %v4201
        %5944 = vmatpush.bf16.msra.mxu0 %v4199
        %5945 = vmatpush.bf16.msra.mxu0 %v4197
        %5946 = vmatpush.bf16.msra.mxu0 %v4195
        %5947 = vmatpush.bf16.msra.mxu0 %v4193
        %5948 = vmatpush.bf16.msra.mxu0 %v4191
        %5949 = vmatpush.bf16.msra.mxu0 %v4189
        %5950 = vmatpush.bf16.msra.mxu0 %v4187
        %5951 = vmatmul.bf16.gmra.mxu0 %v1197
        %v5952 = vpop.f32.mrf.mxu0
        %v5953 = vadd.f32 %v5940, %v5952
        %v5954 = vpop.f32.mrf.mxu0
        %5955 = vdwg.mxu0
        %5956 = vmatpush.bf16.msra.mxu0 %v4217
        %5957 = vmatpush.bf16.msra.mxu0 %v4215
        %5958 = vmatpush.bf16.msra.mxu0 %v4213
        %5959 = vmatpush.bf16.msra.mxu0 %v4211
        %5960 = vmatpush.bf16.msra.mxu0 %v4209
        %5961 = vmatpush.bf16.msra.mxu0 %v4207
        %5962 = vmatpush.bf16.msra.mxu0 %v4205
        %5963 = vmatpush.bf16.msra.mxu0 %v4203
        %5964 = vmatmul.bf16.gmra.mxu0 %v1198
        %v5965 = vpop.f32.mrf.mxu0
        %v5966 = vadd.f32 %v5953, %v5965
        %v5967 = vpop.f32.mrf.mxu0
        %5968 = vdwg.mxu0
        %5969 = vmatpush.bf16.msra.mxu0 %v4233
        %5970 = vmatpush.bf16.msra.mxu0 %v4231
        %5971 = vmatpush.bf16.msra.mxu0 %v4229
        %5972 = vmatpush.bf16.msra.mxu0 %v4227
        %5973 = vmatpush.bf16.msra.mxu0 %v4225
        %5974 = vmatpush.bf16.msra.mxu0 %v4223
        %5975 = vmatpush.bf16.msra.mxu0 %v4221
        %5976 = vmatpush.bf16.msra.mxu0 %v4219
        %5977 = vmatmul.bf16.gmra.mxu0 %v1199
        %v5978 = vpop.f32.mrf.mxu0
        %v5979 = vadd.f32 %v5966, %v5978
        %v5980 = vpop.f32.mrf.mxu0
        %5981 = vdwg.mxu0
        %5982 = vmatpush.bf16.msra.mxu0 %v4249
        %5983 = vmatpush.bf16.msra.mxu0 %v4247
        %5984 = vmatpush.bf16.msra.mxu0 %v4245
        %5985 = vmatpush.bf16.msra.mxu0 %v4243
        %5986 = vmatpush.bf16.msra.mxu0 %v4241
        %5987 = vmatpush.bf16.msra.mxu0 %v4239
        %5988 = vmatpush.bf16.msra.mxu0 %v4237
        %5989 = vmatpush.bf16.msra.mxu0 %v4235
        %5990 = vmatmul.bf16.gmra.mxu0 %v1200
        %v5991 = vpop.f32.mrf.mxu0
        %v5992 = vadd.f32 %v5979, %v5991
        %v5993 = vpop.f32.mrf.mxu0
        %5994 = vdwg.mxu0
        %5995 = vmatpush.bf16.msra.mxu0 %v4265
        %5996 = vmatpush.bf16.msra.mxu0 %v4263
        %5997 = vmatpush.bf16.msra.mxu0 %v4261
        %5998 = vmatpush.bf16.msra.mxu0 %v4259
        %5999 = vmatpush.bf16.msra.mxu0 %v4257
        %6000 = vmatpush.bf16.msra.mxu0 %v4255
        %6001 = vmatpush.bf16.msra.mxu0 %v4253
        %6002 = vmatpush.bf16.msra.mxu0 %v4251
        %6003 = vmatmul.bf16.gmra.mxu0 %v1203
        %v6004 = vpop.f32.mrf.mxu0
        %v6005 = vadd.f32 %v5992, %v6004
        %v6006 = vpop.f32.mrf.mxu0
        %6007 = vdwg.mxu0
        %6008 = vmatpush.bf16.msra.mxu0 %v4281
        %6009 = vmatpush.bf16.msra.mxu0 %v4279
        %6010 = vmatpush.bf16.msra.mxu0 %v4277
        %6011 = vmatpush.bf16.msra.mxu0 %v4275
        %6012 = vmatpush.bf16.msra.mxu0 %v4273
        %6013 = vmatpush.bf16.msra.mxu0 %v4271
        %6014 = vmatpush.bf16.msra.mxu0 %v4269
        %6015 = vmatpush.bf16.msra.mxu0 %v4267
        %6016 = vmatmul.bf16.gmra.mxu0 %v1204
        %v6017 = vpop.f32.mrf.mxu0
        %v6018 = vadd.f32 %v6005, %v6017
        %v6019 = vpop.f32.mrf.mxu0
        %6020 = vdwg.mxu0
        %6021 = vmatpush.bf16.msra.mxu0 %v4297
        %6022 = vmatpush.bf16.msra.mxu0 %v4295
        %6023 = vmatpush.bf16.msra.mxu0 %v4293
        %6024 = vmatpush.bf16.msra.mxu0 %v4291
        %6025 = vmatpush.bf16.msra.mxu0 %v4289
        %6026 = vmatpush.bf16.msra.mxu0 %v4287
        %6027 = vmatpush.bf16.msra.mxu0 %v4285
        %6028 = vmatpush.bf16.msra.mxu0 %v4283
        %6029 = vmatmul.bf16.gmra.mxu0 %v1205
        %v6030 = vpop.f32.mrf.mxu0
        %v6031 = vadd.f32 %v6018, %v6030
        %v6032 = vpop.f32.mrf.mxu0
        %6033 = vdwg.mxu0
        %6034 = vmatpush.bf16.msra.mxu0 %v4313
        %6035 = vmatpush.bf16.msra.mxu0 %v4311
        %6036 = vmatpush.bf16.msra.mxu0 %v4309
        %6037 = vmatpush.bf16.msra.mxu0 %v4307
        %6038 = vmatpush.bf16.msra.mxu0 %v4305
        %6039 = vmatpush.bf16.msra.mxu0 %v4303
        %6040 = vmatpush.bf16.msra.mxu0 %v4301
        %6041 = vmatpush.bf16.msra.mxu0 %v4299
        %6042 = vmatmul.bf16.gmra.mxu0 %v1206
        %v6043 = vpop.f32.mrf.mxu0
        %v6044 = vadd.f32 %v6031, %v6043
        %v6045 = vpop.f32.mrf.mxu0
        %6046 = vdwg.mxu0
        %6047 = vmatpush.bf16.msra.mxu0 %v4329
        %6048 = vmatpush.bf16.msra.mxu0 %v4327
        %6049 = vmatpush.bf16.msra.mxu0 %v4325
        %6050 = vmatpush.bf16.msra.mxu0 %v4323
        %6051 = vmatpush.bf16.msra.mxu0 %v4321
        %6052 = vmatpush.bf16.msra.mxu0 %v4319
        %6053 = vmatpush.bf16.msra.mxu0 %v4317
        %6054 = vmatpush.bf16.msra.mxu0 %v4315
        %6055 = vmatmul.bf16.gmra.mxu0 %v1207
        %v6056 = vpop.f32.mrf.mxu0
        %v6057 = vadd.f32 %v6044, %v6056
        %v6058 = vpop.f32.mrf.mxu0
        %6059 = vdwg.mxu0
        %6060 = vmatpush.bf16.msra.mxu0 %v4345
        %6061 = vmatpush.bf16.msra.mxu0 %v4343
        %6062 = vmatpush.bf16.msra.mxu0 %v4341
        %6063 = vmatpush.bf16.msra.mxu0 %v4339
        %6064 = vmatpush.bf16.msra.mxu0 %v4337
        %6065 = vmatpush.bf16.msra.mxu0 %v4335
        %6066 = vmatpush.bf16.msra.mxu0 %v4333
        %6067 = vmatpush.bf16.msra.mxu0 %v4331
        %6068 = vmatmul.bf16.gmra.mxu0 %v1208
        %v6069 = vpop.f32.mrf.mxu0
        %v6070 = vadd.f32 %v6057, %v6069
        %v6071 = vpop.f32.mrf.mxu0
        %6072 = vdwg.mxu0
        %6073 = vmatpush.bf16.msra.mxu0 %v4361
        %6074 = vmatpush.bf16.msra.mxu0 %v4359
        %6075 = vmatpush.bf16.msra.mxu0 %v4357
        %6076 = vmatpush.bf16.msra.mxu0 %v4355
        %6077 = vmatpush.bf16.msra.mxu0 %v4353
        %6078 = vmatpush.bf16.msra.mxu0 %v4351
        %6079 = vmatpush.bf16.msra.mxu0 %v4349
        %6080 = vmatpush.bf16.msra.mxu0 %v4347
        %6081 = vmatmul.bf16.gmra.mxu0 %v1209
        %v6082 = vpop.f32.mrf.mxu0
        %v6083 = vadd.f32 %v6070, %v6082
        %v6084 = vpop.f32.mrf.mxu0
        %6085 = vdwg.mxu0
        %6086 = vmatpush.bf16.msra.mxu0 %v4377
        %6087 = vmatpush.bf16.msra.mxu0 %v4375
        %6088 = vmatpush.bf16.msra.mxu0 %v4373
        %6089 = vmatpush.bf16.msra.mxu0 %v4371
        %6090 = vmatpush.bf16.msra.mxu0 %v4369
        %6091 = vmatpush.bf16.msra.mxu0 %v4367
        %6092 = vmatpush.bf16.msra.mxu0 %v4365
        %6093 = vmatpush.bf16.msra.mxu0 %v4363
        %6094 = vmatmul.bf16.gmra.mxu0 %v1210
        %v6095 = vpop.f32.mrf.mxu0
        %v6096 = vadd.f32 %v6083, %v6095
        %v6097 = vpop.f32.mrf.mxu0
        %6098 = vdwg.mxu0
        %6099 = vmatpush.bf16.msra.mxu0 %v4393
        %6100 = vmatpush.bf16.msra.mxu0 %v4391
        %6101 = vmatpush.bf16.msra.mxu0 %v4389
        %6102 = vmatpush.bf16.msra.mxu0 %v4387
        %6103 = vmatpush.bf16.msra.mxu0 %v4385
        %6104 = vmatpush.bf16.msra.mxu0 %v4383
        %6105 = vmatpush.bf16.msra.mxu0 %v4381
        %6106 = vmatpush.bf16.msra.mxu0 %v4379
        %6107 = vmatmul.bf16.gmra.mxu0 %v1213
        %v6108 = vpop.f32.mrf.mxu0
        %v6109 = vadd.f32 %v6096, %v6108
        %v6110 = vpop.f32.mrf.mxu0
        %6111 = vdwg.mxu0
        %6112 = vmatpush.bf16.msra.mxu0 %v4409
        %6113 = vmatpush.bf16.msra.mxu0 %v4407
        %6114 = vmatpush.bf16.msra.mxu0 %v4405
        %6115 = vmatpush.bf16.msra.mxu0 %v4403
        %6116 = vmatpush.bf16.msra.mxu0 %v4401
        %6117 = vmatpush.bf16.msra.mxu0 %v4399
        %6118 = vmatpush.bf16.msra.mxu0 %v4397
        %6119 = vmatpush.bf16.msra.mxu0 %v4395
        %6120 = vmatmul.bf16.gmra.mxu0 %v1214
        %v6121 = vpop.f32.mrf.mxu0
        %v6122 = vadd.f32 %v6109, %v6121
        %v6123 = vpop.f32.mrf.mxu0
        %6124 = vdwg.mxu0
        %6125 = vmatpush.bf16.msra.mxu0 %v4425
        %6126 = vmatpush.bf16.msra.mxu0 %v4423
        %6127 = vmatpush.bf16.msra.mxu0 %v4421
        %6128 = vmatpush.bf16.msra.mxu0 %v4419
        %6129 = vmatpush.bf16.msra.mxu0 %v4417
        %6130 = vmatpush.bf16.msra.mxu0 %v4415
        %6131 = vmatpush.bf16.msra.mxu0 %v4413
        %6132 = vmatpush.bf16.msra.mxu0 %v4411
        %6133 = vmatmul.bf16.gmra.mxu0 %v1215
        %v6134 = vpop.f32.mrf.mxu0
        %v6135 = vadd.f32 %v6122, %v6134
        %v6136 = vpop.f32.mrf.mxu0
        %6137 = vdwg.mxu0
        %6138 = vmatpush.bf16.msra.mxu0 %v4441
        %6139 = vmatpush.bf16.msra.mxu0 %v4439
        %6140 = vmatpush.bf16.msra.mxu0 %v4437
        %6141 = vmatpush.bf16.msra.mxu0 %v4435
        %6142 = vmatpush.bf16.msra.mxu0 %v4433
        %6143 = vmatpush.bf16.msra.mxu0 %v4431
        %6144 = vmatpush.bf16.msra.mxu0 %v4429
        %6145 = vmatpush.bf16.msra.mxu0 %v4427
        %6146 = vmatmul.bf16.gmra.mxu0 %v1216
        %v6147 = vpop.f32.mrf.mxu0
        %v6148 = vadd.f32 %v6135, %v6147
        %v6149 = vpop.f32.mrf.mxu0
        %6150 = vdwg.mxu0
        %6151 = vmatpush.bf16.msra.mxu0 %v4457
        %6152 = vmatpush.bf16.msra.mxu0 %v4455
        %6153 = vmatpush.bf16.msra.mxu0 %v4453
        %6154 = vmatpush.bf16.msra.mxu0 %v4451
        %6155 = vmatpush.bf16.msra.mxu0 %v4449
        %6156 = vmatpush.bf16.msra.mxu0 %v4447
        %6157 = vmatpush.bf16.msra.mxu0 %v4445
        %6158 = vmatpush.bf16.msra.mxu0 %v4443
        %6159 = vmatmul.bf16.gmra.mxu0 %v1217
        %v6160 = vpop.f32.mrf.mxu0
        %v6161 = vadd.f32 %v6148, %v6160
        %v6162 = vpop.f32.mrf.mxu0
        %6163 = vdwg.mxu0
        %6164 = vmatpush.bf16.msra.mxu0 %v4473
        %6165 = vmatpush.bf16.msra.mxu0 %v4471
        %6166 = vmatpush.bf16.msra.mxu0 %v4469
        %6167 = vmatpush.bf16.msra.mxu0 %v4467
        %6168 = vmatpush.bf16.msra.mxu0 %v4465
        %6169 = vmatpush.bf16.msra.mxu0 %v4463
        %6170 = vmatpush.bf16.msra.mxu0 %v4461
        %6171 = vmatpush.bf16.msra.mxu0 %v4459
        %6172 = vmatmul.bf16.gmra.mxu0 %v1218
        %v6173 = vpop.f32.mrf.mxu0
        %v6174 = vadd.f32 %v6161, %v6173
        %v6175 = vpop.f32.mrf.mxu0
        %6176 = vdwg.mxu0
        %6177 = vmatpush.bf16.msra.mxu0 %v4489
        %6178 = vmatpush.bf16.msra.mxu0 %v4487
        %6179 = vmatpush.bf16.msra.mxu0 %v4485
        %6180 = vmatpush.bf16.msra.mxu0 %v4483
        %6181 = vmatpush.bf16.msra.mxu0 %v4481
        %6182 = vmatpush.bf16.msra.mxu0 %v4479
        %6183 = vmatpush.bf16.msra.mxu0 %v4477
        %6184 = vmatpush.bf16.msra.mxu0 %v4475
        %6185 = vmatmul.bf16.gmra.mxu0 %v1219
        %v6186 = vpop.f32.mrf.mxu0
        %v6187 = vadd.f32 %v6174, %v6186
        %v6188 = vpop.f32.mrf.mxu0
        %6189 = vdwg.mxu0
        %6190 = vmatpush.bf16.msra.mxu0 %v4505
        %6191 = vmatpush.bf16.msra.mxu0 %v4503
        %6192 = vmatpush.bf16.msra.mxu0 %v4501
        %6193 = vmatpush.bf16.msra.mxu0 %v4499
        %6194 = vmatpush.bf16.msra.mxu0 %v4497
        %6195 = vmatpush.bf16.msra.mxu0 %v4495
        %6196 = vmatpush.bf16.msra.mxu0 %v4493
        %6197 = vmatpush.bf16.msra.mxu0 %v4491
        %6198 = vmatmul.bf16.gmra.mxu0 %v1220
        %v6199 = vpop.f32.mrf.mxu0
        %v6200 = vadd.f32 %v6187, %v6199
        %v6201 = vpop.f32.mrf.mxu0
        %6202 = vdwg.mxu0
        %6203 = vmatpush.bf16.msra.mxu0 %v4521
        %6204 = vmatpush.bf16.msra.mxu0 %v4519
        %6205 = vmatpush.bf16.msra.mxu0 %v4517
        %6206 = vmatpush.bf16.msra.mxu0 %v4515
        %6207 = vmatpush.bf16.msra.mxu0 %v4513
        %6208 = vmatpush.bf16.msra.mxu0 %v4511
        %6209 = vmatpush.bf16.msra.mxu0 %v4509
        %6210 = vmatpush.bf16.msra.mxu0 %v4507
        %6211 = vmatmul.bf16.gmra.mxu0 %v1223
        %v6212 = vpop.f32.mrf.mxu0
        %v6213 = vadd.f32 %v6200, %v6212
        %v6214 = vpop.f32.mrf.mxu0
        %6215 = vdwg.mxu0
        %6216 = vmatpush.bf16.msra.mxu0 %v4537
        %6217 = vmatpush.bf16.msra.mxu0 %v4535
        %6218 = vmatpush.bf16.msra.mxu0 %v4533
        %6219 = vmatpush.bf16.msra.mxu0 %v4531
        %6220 = vmatpush.bf16.msra.mxu0 %v4529
        %6221 = vmatpush.bf16.msra.mxu0 %v4527
        %6222 = vmatpush.bf16.msra.mxu0 %v4525
        %6223 = vmatpush.bf16.msra.mxu0 %v4523
        %6224 = vmatmul.bf16.gmra.mxu0 %v1224
        %v6225 = vpop.f32.mrf.mxu0
        %v6226 = vadd.f32 %v6213, %v6225
        %v6227 = vpop.f32.mrf.mxu0
        %6228 = vdwg.mxu0
        %6229 = vmatpush.bf16.msra.mxu0 %v4553
        %6230 = vmatpush.bf16.msra.mxu0 %v4551
        %6231 = vmatpush.bf16.msra.mxu0 %v4549
        %6232 = vmatpush.bf16.msra.mxu0 %v4547
        %6233 = vmatpush.bf16.msra.mxu0 %v4545
        %6234 = vmatpush.bf16.msra.mxu0 %v4543
        %6235 = vmatpush.bf16.msra.mxu0 %v4541
        %6236 = vmatpush.bf16.msra.mxu0 %v4539
        %6237 = vmatmul.bf16.gmra.mxu0 %v1225
        %v6238 = vpop.f32.mrf.mxu0
        %v6239 = vadd.f32 %v6226, %v6238
        %v6240 = vpop.f32.mrf.mxu0
        %6241 = vdwg.mxu0
        %6242 = vmatpush.bf16.msra.mxu0 %v4569
        %6243 = vmatpush.bf16.msra.mxu0 %v4567
        %6244 = vmatpush.bf16.msra.mxu0 %v4565
        %6245 = vmatpush.bf16.msra.mxu0 %v4563
        %6246 = vmatpush.bf16.msra.mxu0 %v4561
        %6247 = vmatpush.bf16.msra.mxu0 %v4559
        %6248 = vmatpush.bf16.msra.mxu0 %v4557
        %6249 = vmatpush.bf16.msra.mxu0 %v4555
        %6250 = vmatmul.bf16.gmra.mxu0 %v1226
        %v6251 = vpop.f32.mrf.mxu0
        %v6252 = vadd.f32 %v6239, %v6251
        %v6253 = vpop.f32.mrf.mxu0
        %6254 = vdwg.mxu0
        %6255 = vmatpush.bf16.msra.mxu0 %v4585
        %6256 = vmatpush.bf16.msra.mxu0 %v4583
        %6257 = vmatpush.bf16.msra.mxu0 %v4581
        %6258 = vmatpush.bf16.msra.mxu0 %v4579
        %6259 = vmatpush.bf16.msra.mxu0 %v4577
        %6260 = vmatpush.bf16.msra.mxu0 %v4575
        %6261 = vmatpush.bf16.msra.mxu0 %v4573
        %6262 = vmatpush.bf16.msra.mxu0 %v4571
        %6263 = vmatmul.bf16.gmra.mxu0 %v1227
        %v6264 = vpop.f32.mrf.mxu0
        %v6265 = vadd.f32 %v6252, %v6264
        %v6266 = vpop.f32.mrf.mxu0
        %6267 = vdwg.mxu0
        %6268 = vmatpush.bf16.msra.mxu0 %v4601
        %6269 = vmatpush.bf16.msra.mxu0 %v4599
        %6270 = vmatpush.bf16.msra.mxu0 %v4597
        %6271 = vmatpush.bf16.msra.mxu0 %v4595
        %6272 = vmatpush.bf16.msra.mxu0 %v4593
        %6273 = vmatpush.bf16.msra.mxu0 %v4591
        %6274 = vmatpush.bf16.msra.mxu0 %v4589
        %6275 = vmatpush.bf16.msra.mxu0 %v4587
        %6276 = vmatmul.bf16.gmra.mxu0 %v1228
        %v6277 = vpop.f32.mrf.mxu0
        %v6278 = vadd.f32 %v6265, %v6277
        %v6279 = vpop.f32.mrf.mxu0
        %6280 = vdwg.mxu0
        %6281 = vmatpush.bf16.msra.mxu0 %v4617
        %6282 = vmatpush.bf16.msra.mxu0 %v4615
        %6283 = vmatpush.bf16.msra.mxu0 %v4613
        %6284 = vmatpush.bf16.msra.mxu0 %v4611
        %6285 = vmatpush.bf16.msra.mxu0 %v4609
        %6286 = vmatpush.bf16.msra.mxu0 %v4607
        %6287 = vmatpush.bf16.msra.mxu0 %v4605
        %6288 = vmatpush.bf16.msra.mxu0 %v4603
        %6289 = vmatmul.bf16.gmra.mxu0 %v1229
        %v6290 = vpop.f32.mrf.mxu0
        %v6291 = vadd.f32 %v6278, %v6290
        %v6292 = vpop.f32.mrf.mxu0
        %6293 = vdwg.mxu0
        %6294 = vmatpush.bf16.msra.mxu0 %v4633
        %6295 = vmatpush.bf16.msra.mxu0 %v4631
        %6296 = vmatpush.bf16.msra.mxu0 %v4629
        %6297 = vmatpush.bf16.msra.mxu0 %v4627
        %6298 = vmatpush.bf16.msra.mxu0 %v4625
        %6299 = vmatpush.bf16.msra.mxu0 %v4623
        %6300 = vmatpush.bf16.msra.mxu0 %v4621
        %6301 = vmatpush.bf16.msra.mxu0 %v4619
        %6302 = vmatmul.bf16.gmra.mxu0 %v1230
        %v6303 = vpop.f32.mrf.mxu0
        %v6304 = vadd.f32 %v6291, %v6303
        %v6305 = vpop.f32.mrf.mxu0
        %6306 = vdwg.mxu0
        %6307 = vmatpush.bf16.msra.mxu0 %v4649
        %6308 = vmatpush.bf16.msra.mxu0 %v4647
        %6309 = vmatpush.bf16.msra.mxu0 %v4645
        %6310 = vmatpush.bf16.msra.mxu0 %v4643
        %6311 = vmatpush.bf16.msra.mxu0 %v4641
        %6312 = vmatpush.bf16.msra.mxu0 %v4639
        %6313 = vmatpush.bf16.msra.mxu0 %v4637
        %6314 = vmatpush.bf16.msra.mxu0 %v4635
        %6315 = vmatmul.bf16.gmra.mxu0 %v1233
        %v6316 = vpop.f32.mrf.mxu0
        %v6317 = vadd.f32 %v6304, %v6316
        %v6318 = vpop.f32.mrf.mxu0
        %6319 = vdwg.mxu0
        %6320 = vmatpush.bf16.msra.mxu0 %v4665
        %6321 = vmatpush.bf16.msra.mxu0 %v4663
        %6322 = vmatpush.bf16.msra.mxu0 %v4661
        %6323 = vmatpush.bf16.msra.mxu0 %v4659
        %6324 = vmatpush.bf16.msra.mxu0 %v4657
        %6325 = vmatpush.bf16.msra.mxu0 %v4655
        %6326 = vmatpush.bf16.msra.mxu0 %v4653
        %6327 = vmatpush.bf16.msra.mxu0 %v4651
        %6328 = vmatmul.bf16.gmra.mxu0 %v1234
        %v6329 = vpop.f32.mrf.mxu0
        %v6330 = vadd.f32 %v6317, %v6329
        %v6331 = vpop.f32.mrf.mxu0
        %6332 = vdwg.mxu0
        %6333 = vmatpush.bf16.msra.mxu0 %v4681
        %6334 = vmatpush.bf16.msra.mxu0 %v4679
        %6335 = vmatpush.bf16.msra.mxu0 %v4677
        %6336 = vmatpush.bf16.msra.mxu0 %v4675
        %6337 = vmatpush.bf16.msra.mxu0 %v4673
        %6338 = vmatpush.bf16.msra.mxu0 %v4671
        %6339 = vmatpush.bf16.msra.mxu0 %v4669
        %6340 = vmatpush.bf16.msra.mxu0 %v4667
        %6341 = vmatmul.bf16.gmra.mxu0 %v1235
        %v6342 = vpop.f32.mrf.mxu0
        %v6343 = vadd.f32 %v6330, %v6342
        %v6344 = vpop.f32.mrf.mxu0
        %6345 = vdwg.mxu0
        %6346 = vmatpush.bf16.msra.mxu0 %v4697
        %6347 = vmatpush.bf16.msra.mxu0 %v4695
        %6348 = vmatpush.bf16.msra.mxu0 %v4693
        %6349 = vmatpush.bf16.msra.mxu0 %v4691
        %6350 = vmatpush.bf16.msra.mxu0 %v4689
        %6351 = vmatpush.bf16.msra.mxu0 %v4687
        %6352 = vmatpush.bf16.msra.mxu0 %v4685
        %6353 = vmatpush.bf16.msra.mxu0 %v4683
        %6354 = vmatmul.bf16.gmra.mxu0 %v1236
        %v6355 = vpop.f32.mrf.mxu0
        %v6356 = vadd.f32 %v6343, %v6355
        %v6357 = vpop.f32.mrf.mxu0
        %6358 = vdwg.mxu0
        %6359 = vmatpush.bf16.msra.mxu0 %v4713
        %6360 = vmatpush.bf16.msra.mxu0 %v4711
        %6361 = vmatpush.bf16.msra.mxu0 %v4709
        %6362 = vmatpush.bf16.msra.mxu0 %v4707
        %6363 = vmatpush.bf16.msra.mxu0 %v4705
        %6364 = vmatpush.bf16.msra.mxu0 %v4703
        %6365 = vmatpush.bf16.msra.mxu0 %v4701
        %6366 = vmatpush.bf16.msra.mxu0 %v4699
        %6367 = vmatmul.bf16.gmra.mxu0 %v1237
        %v6368 = vpop.f32.mrf.mxu0
        %v6369 = vadd.f32 %v6356, %v6368
        %v6370 = vpop.f32.mrf.mxu0
        %6371 = vdwg.mxu0
        %6372 = vmatpush.bf16.msra.mxu0 %v4729
        %6373 = vmatpush.bf16.msra.mxu0 %v4727
        %6374 = vmatpush.bf16.msra.mxu0 %v4725
        %6375 = vmatpush.bf16.msra.mxu0 %v4723
        %6376 = vmatpush.bf16.msra.mxu0 %v4721
        %6377 = vmatpush.bf16.msra.mxu0 %v4719
        %6378 = vmatpush.bf16.msra.mxu0 %v4717
        %6379 = vmatpush.bf16.msra.mxu0 %v4715
        %6380 = vmatmul.bf16.gmra.mxu0 %v1238
        %v6381 = vpop.f32.mrf.mxu0
        %v6382 = vadd.f32 %v6369, %v6381
        %v6383 = vpop.f32.mrf.mxu0
        %6384 = vdwg.mxu0
        %6385 = vmatpush.bf16.msra.mxu0 %v4745
        %6386 = vmatpush.bf16.msra.mxu0 %v4743
        %6387 = vmatpush.bf16.msra.mxu0 %v4741
        %6388 = vmatpush.bf16.msra.mxu0 %v4739
        %6389 = vmatpush.bf16.msra.mxu0 %v4737
        %6390 = vmatpush.bf16.msra.mxu0 %v4735
        %6391 = vmatpush.bf16.msra.mxu0 %v4733
        %6392 = vmatpush.bf16.msra.mxu0 %v4731
        %6393 = vmatmul.bf16.gmra.mxu0 %v1239
        %v6394 = vpop.f32.mrf.mxu0
        %v6395 = vadd.f32 %v6382, %v6394
        %v6396 = vpop.f32.mrf.mxu0
        %6397 = vdwg.mxu0
        %6398 = vmatpush.bf16.msra.mxu0 %v4761
        %6399 = vmatpush.bf16.msra.mxu0 %v4759
        %6400 = vmatpush.bf16.msra.mxu0 %v4757
        %6401 = vmatpush.bf16.msra.mxu0 %v4755
        %6402 = vmatpush.bf16.msra.mxu0 %v4753
        %6403 = vmatpush.bf16.msra.mxu0 %v4751
        %6404 = vmatpush.bf16.msra.mxu0 %v4749
        %6405 = vmatpush.bf16.msra.mxu0 %v4747
        %6406 = vmatmul.bf16.gmra.mxu0 %v1240
        %v6407 = vpop.f32.mrf.mxu0
        %v6408 = vadd.f32 %v6395, %v6407
        %v6409 = vpop.f32.mrf.mxu0
        %6410 = vdwg.mxu0
        %6411 = vmatpush.bf16.msra.mxu0 %v4777
        %6412 = vmatpush.bf16.msra.mxu0 %v4775
        %6413 = vmatpush.bf16.msra.mxu0 %v4773
        %6414 = vmatpush.bf16.msra.mxu0 %v4771
        %6415 = vmatpush.bf16.msra.mxu0 %v4769
        %6416 = vmatpush.bf16.msra.mxu0 %v4767
        %6417 = vmatpush.bf16.msra.mxu0 %v4765
        %6418 = vmatpush.bf16.msra.mxu0 %v4763
        %6419 = vmatmul.bf16.gmra.mxu0 %v1243
        %v6420 = vpop.f32.mrf.mxu0
        %v6421 = vadd.f32 %v6408, %v6420
        %v6422 = vpop.f32.mrf.mxu0
        %6423 = vdwg.mxu0
        %6424 = vmatpush.bf16.msra.mxu0 %v4793
        %6425 = vmatpush.bf16.msra.mxu0 %v4791
        %6426 = vmatpush.bf16.msra.mxu0 %v4789
        %6427 = vmatpush.bf16.msra.mxu0 %v4787
        %6428 = vmatpush.bf16.msra.mxu0 %v4785
        %6429 = vmatpush.bf16.msra.mxu0 %v4783
        %6430 = vmatpush.bf16.msra.mxu0 %v4781
        %6431 = vmatpush.bf16.msra.mxu0 %v4779
        %6432 = vmatmul.bf16.gmra.mxu0 %v1244
        %v6433 = vpop.f32.mrf.mxu0
        %v6434 = vadd.f32 %v6421, %v6433
        %v6435 = vpop.f32.mrf.mxu0
        %6436 = vdwg.mxu0
        %6437 = vmatpush.bf16.msra.mxu0 %v4809
        %6438 = vmatpush.bf16.msra.mxu0 %v4807
        %6439 = vmatpush.bf16.msra.mxu0 %v4805
        %6440 = vmatpush.bf16.msra.mxu0 %v4803
        %6441 = vmatpush.bf16.msra.mxu0 %v4801
        %6442 = vmatpush.bf16.msra.mxu0 %v4799
        %6443 = vmatpush.bf16.msra.mxu0 %v4797
        %6444 = vmatpush.bf16.msra.mxu0 %v4795
        %6445 = vmatmul.bf16.gmra.mxu0 %v1245
        %v6446 = vpop.f32.mrf.mxu0
        %v6447 = vadd.f32 %v6434, %v6446
        %v6448 = vpop.f32.mrf.mxu0
        %6449 = vdwg.mxu0
        %6450 = vmatpush.bf16.msra.mxu0 %v4825
        %6451 = vmatpush.bf16.msra.mxu0 %v4823
        %6452 = vmatpush.bf16.msra.mxu0 %v4821
        %6453 = vmatpush.bf16.msra.mxu0 %v4819
        %6454 = vmatpush.bf16.msra.mxu0 %v4817
        %6455 = vmatpush.bf16.msra.mxu0 %v4815
        %6456 = vmatpush.bf16.msra.mxu0 %v4813
        %6457 = vmatpush.bf16.msra.mxu0 %v4811
        %6458 = vmatmul.bf16.gmra.mxu0 %v1246
        %v6459 = vpop.f32.mrf.mxu0
        %v6460 = vadd.f32 %v6447, %v6459
        %v6461 = vpop.f32.mrf.mxu0
        %6462 = vdwg.mxu0
        %6463 = vmatpush.bf16.msra.mxu0 %v4841
        %6464 = vmatpush.bf16.msra.mxu0 %v4839
        %6465 = vmatpush.bf16.msra.mxu0 %v4837
        %6466 = vmatpush.bf16.msra.mxu0 %v4835
        %6467 = vmatpush.bf16.msra.mxu0 %v4833
        %6468 = vmatpush.bf16.msra.mxu0 %v4831
        %6469 = vmatpush.bf16.msra.mxu0 %v4829
        %6470 = vmatpush.bf16.msra.mxu0 %v4827
        %6471 = vmatmul.bf16.gmra.mxu0 %v1247
        %v6472 = vpop.f32.mrf.mxu0
        %v6473 = vadd.f32 %v6460, %v6472
        %v6474 = vpop.f32.mrf.mxu0
        %6475 = vdwg.mxu0
        %6476 = vmatpush.bf16.msra.mxu0 %v4857
        %6477 = vmatpush.bf16.msra.mxu0 %v4855
        %6478 = vmatpush.bf16.msra.mxu0 %v4853
        %6479 = vmatpush.bf16.msra.mxu0 %v4851
        %6480 = vmatpush.bf16.msra.mxu0 %v4849
        %6481 = vmatpush.bf16.msra.mxu0 %v4847
        %6482 = vmatpush.bf16.msra.mxu0 %v4845
        %6483 = vmatpush.bf16.msra.mxu0 %v4843
        %6484 = vmatmul.bf16.gmra.mxu0 %v1248
        %v6485 = vpop.f32.mrf.mxu0
        %v6486 = vadd.f32 %v6473, %v6485
        %v6487 = vpop.f32.mrf.mxu0
        %6488 = vdwg.mxu0
        %6489 = vmatpush.bf16.msra.mxu0 %v4873
        %6490 = vmatpush.bf16.msra.mxu0 %v4871
        %6491 = vmatpush.bf16.msra.mxu0 %v4869
        %6492 = vmatpush.bf16.msra.mxu0 %v4867
        %6493 = vmatpush.bf16.msra.mxu0 %v4865
        %6494 = vmatpush.bf16.msra.mxu0 %v4863
        %6495 = vmatpush.bf16.msra.mxu0 %v4861
        %6496 = vmatpush.bf16.msra.mxu0 %v4859
        %6497 = vmatmul.bf16.gmra.mxu0 %v1249
        %v6498 = vpop.f32.mrf.mxu0
        %v6499 = vadd.f32 %v6486, %v6498
        %v6500 = vpop.f32.mrf.mxu0
        %6501 = vdwg.mxu0
        %6502 = vmatpush.bf16.msra.mxu0 %v4889
        %6503 = vmatpush.bf16.msra.mxu0 %v4887
        %6504 = vmatpush.bf16.msra.mxu0 %v4885
        %6505 = vmatpush.bf16.msra.mxu0 %v4883
        %6506 = vmatpush.bf16.msra.mxu0 %v4881
        %6507 = vmatpush.bf16.msra.mxu0 %v4879
        %6508 = vmatpush.bf16.msra.mxu0 %v4877
        %6509 = vmatpush.bf16.msra.mxu0 %v4875
        %6510 = vmatmul.bf16.gmra.mxu0 %v1250
        %v6511 = vpop.f32.mrf.mxu0
        %v6512 = vadd.f32 %v6499, %v6511
        %v6513 = vpop.f32.mrf.mxu0
        %6514 = vdwg.mxu0
        %6515 = vmatpush.bf16.msra.mxu0 %v4010
        %6516 = vmatpush.bf16.msra.mxu0 %v4008
        %6517 = vmatpush.bf16.msra.mxu0 %v4006
        %6518 = vmatpush.bf16.msra.mxu0 %v4004
        %6519 = vmatpush.bf16.msra.mxu0 %v4002
        %6520 = vmatpush.bf16.msra.mxu0 %v4000
        %6521 = vmatpush.bf16.msra.mxu0 %v3998
        %6522 = vmatpush.bf16.msra.mxu0 %v3996
        %6523 = vmatmul.bf16.gmra.mxu0 %v1183
        %v6524 = vpop.f32.mrf.mxu0
        %v6525 = vadd.f32 0.0, %v6524
        %v6526 = vpop.f32.mrf.mxu0
        %6527 = vdwg.mxu0
        %6528 = vmatpush.bf16.msra.mxu0 %v4026
        %6529 = vmatpush.bf16.msra.mxu0 %v4024
        %6530 = vmatpush.bf16.msra.mxu0 %v4022
        %6531 = vmatpush.bf16.msra.mxu0 %v4020
        %6532 = vmatpush.bf16.msra.mxu0 %v4018
        %6533 = vmatpush.bf16.msra.mxu0 %v4016
        %6534 = vmatpush.bf16.msra.mxu0 %v4014
        %6535 = vmatpush.bf16.msra.mxu0 %v4012
        %6536 = vmatmul.bf16.gmra.mxu0 %v1184
        %v6537 = vpop.f32.mrf.mxu0
        %v6538 = vadd.f32 %v6525, %v6537
        %v6539 = vpop.f32.mrf.mxu0
        %6540 = vdwg.mxu0
        %6541 = vmatpush.bf16.msra.mxu0 %v4042
        %6542 = vmatpush.bf16.msra.mxu0 %v4040
        %6543 = vmatpush.bf16.msra.mxu0 %v4038
        %6544 = vmatpush.bf16.msra.mxu0 %v4036
        %6545 = vmatpush.bf16.msra.mxu0 %v4034
        %6546 = vmatpush.bf16.msra.mxu0 %v4032
        %6547 = vmatpush.bf16.msra.mxu0 %v4030
        %6548 = vmatpush.bf16.msra.mxu0 %v4028
        %6549 = vmatmul.bf16.gmra.mxu0 %v1185
        %v6550 = vpop.f32.mrf.mxu0
        %v6551 = vadd.f32 %v6538, %v6550
        %v6552 = vpop.f32.mrf.mxu0
        %6553 = vdwg.mxu0
        %6554 = vmatpush.bf16.msra.mxu0 %v4058
        %6555 = vmatpush.bf16.msra.mxu0 %v4056
        %6556 = vmatpush.bf16.msra.mxu0 %v4054
        %6557 = vmatpush.bf16.msra.mxu0 %v4052
        %6558 = vmatpush.bf16.msra.mxu0 %v4050
        %6559 = vmatpush.bf16.msra.mxu0 %v4048
        %6560 = vmatpush.bf16.msra.mxu0 %v4046
        %6561 = vmatpush.bf16.msra.mxu0 %v4044
        %6562 = vmatmul.bf16.gmra.mxu0 %v1186
        %v6563 = vpop.f32.mrf.mxu0
        %v6564 = vadd.f32 %v6551, %v6563
        %v6565 = vpop.f32.mrf.mxu0
        %6566 = vdwg.mxu0
        %6567 = vmatpush.bf16.msra.mxu0 %v4074
        %6568 = vmatpush.bf16.msra.mxu0 %v4072
        %6569 = vmatpush.bf16.msra.mxu0 %v4070
        %6570 = vmatpush.bf16.msra.mxu0 %v4068
        %6571 = vmatpush.bf16.msra.mxu0 %v4066
        %6572 = vmatpush.bf16.msra.mxu0 %v4064
        %6573 = vmatpush.bf16.msra.mxu0 %v4062
        %6574 = vmatpush.bf16.msra.mxu0 %v4060
        %6575 = vmatmul.bf16.gmra.mxu0 %v1187
        %v6576 = vpop.f32.mrf.mxu0
        %v6577 = vadd.f32 %v6564, %v6576
        %v6578 = vpop.f32.mrf.mxu0
        %6579 = vdwg.mxu0
        %6580 = vmatpush.bf16.msra.mxu0 %v4090
        %6581 = vmatpush.bf16.msra.mxu0 %v4088
        %6582 = vmatpush.bf16.msra.mxu0 %v4086
        %6583 = vmatpush.bf16.msra.mxu0 %v4084
        %6584 = vmatpush.bf16.msra.mxu0 %v4082
        %6585 = vmatpush.bf16.msra.mxu0 %v4080
        %6586 = vmatpush.bf16.msra.mxu0 %v4078
        %6587 = vmatpush.bf16.msra.mxu0 %v4076
        %6588 = vmatmul.bf16.gmra.mxu0 %v1188
        %v6589 = vpop.f32.mrf.mxu0
        %v6590 = vadd.f32 %v6577, %v6589
        %v6591 = vpop.f32.mrf.mxu0
        %6592 = vdwg.mxu0
        %6593 = vmatpush.bf16.msra.mxu0 %v4106
        %6594 = vmatpush.bf16.msra.mxu0 %v4104
        %6595 = vmatpush.bf16.msra.mxu0 %v4102
        %6596 = vmatpush.bf16.msra.mxu0 %v4100
        %6597 = vmatpush.bf16.msra.mxu0 %v4098
        %6598 = vmatpush.bf16.msra.mxu0 %v4096
        %6599 = vmatpush.bf16.msra.mxu0 %v4094
        %6600 = vmatpush.bf16.msra.mxu0 %v4092
        %6601 = vmatmul.bf16.gmra.mxu0 %v1189
        %v6602 = vpop.f32.mrf.mxu0
        %v6603 = vadd.f32 %v6590, %v6602
        %v6604 = vpop.f32.mrf.mxu0
        %6605 = vdwg.mxu0
        %6606 = vmatpush.bf16.msra.mxu0 %v4122
        %6607 = vmatpush.bf16.msra.mxu0 %v4120
        %6608 = vmatpush.bf16.msra.mxu0 %v4118
        %6609 = vmatpush.bf16.msra.mxu0 %v4116
        %6610 = vmatpush.bf16.msra.mxu0 %v4114
        %6611 = vmatpush.bf16.msra.mxu0 %v4112
        %6612 = vmatpush.bf16.msra.mxu0 %v4110
        %6613 = vmatpush.bf16.msra.mxu0 %v4108
        %6614 = vmatmul.bf16.gmra.mxu0 %v1190
        %v6615 = vpop.f32.mrf.mxu0
        %v6616 = vadd.f32 %v6603, %v6615
        %v6617 = vpop.f32.mrf.mxu0
        %6618 = vdwg.mxu0
        %6619 = vmatpush.bf16.msra.mxu0 %v4138
        %6620 = vmatpush.bf16.msra.mxu0 %v4136
        %6621 = vmatpush.bf16.msra.mxu0 %v4134
        %6622 = vmatpush.bf16.msra.mxu0 %v4132
        %6623 = vmatpush.bf16.msra.mxu0 %v4130
        %6624 = vmatpush.bf16.msra.mxu0 %v4128
        %6625 = vmatpush.bf16.msra.mxu0 %v4126
        %6626 = vmatpush.bf16.msra.mxu0 %v4124
        %6627 = vmatmul.bf16.gmra.mxu0 %v1193
        %v6628 = vpop.f32.mrf.mxu0
        %v6629 = vadd.f32 %v6616, %v6628
        %v6630 = vpop.f32.mrf.mxu0
        %6631 = vdwg.mxu0
        %6632 = vmatpush.bf16.msra.mxu0 %v4154
        %6633 = vmatpush.bf16.msra.mxu0 %v4152
        %6634 = vmatpush.bf16.msra.mxu0 %v4150
        %6635 = vmatpush.bf16.msra.mxu0 %v4148
        %6636 = vmatpush.bf16.msra.mxu0 %v4146
        %6637 = vmatpush.bf16.msra.mxu0 %v4144
        %6638 = vmatpush.bf16.msra.mxu0 %v4142
        %6639 = vmatpush.bf16.msra.mxu0 %v4140
        %6640 = vmatmul.bf16.gmra.mxu0 %v1194
        %v6641 = vpop.f32.mrf.mxu0
        %v6642 = vadd.f32 %v6629, %v6641
        %v6643 = vpop.f32.mrf.mxu0
        %6644 = vdwg.mxu0
        %6645 = vmatpush.bf16.msra.mxu0 %v4170
        %6646 = vmatpush.bf16.msra.mxu0 %v4168
        %6647 = vmatpush.bf16.msra.mxu0 %v4166
        %6648 = vmatpush.bf16.msra.mxu0 %v4164
        %6649 = vmatpush.bf16.msra.mxu0 %v4162
        %6650 = vmatpush.bf16.msra.mxu0 %v4160
        %6651 = vmatpush.bf16.msra.mxu0 %v4158
        %6652 = vmatpush.bf16.msra.mxu0 %v4156
        %6653 = vmatmul.bf16.gmra.mxu0 %v1195
        %v6654 = vpop.f32.mrf.mxu0
        %v6655 = vadd.f32 %v6642, %v6654
        %v6656 = vpop.f32.mrf.mxu0
        %6657 = vdwg.mxu0
        %6658 = vmatpush.bf16.msra.mxu0 %v4186
        %6659 = vmatpush.bf16.msra.mxu0 %v4184
        %6660 = vmatpush.bf16.msra.mxu0 %v4182
        %6661 = vmatpush.bf16.msra.mxu0 %v4180
        %6662 = vmatpush.bf16.msra.mxu0 %v4178
        %6663 = vmatpush.bf16.msra.mxu0 %v4176
        %6664 = vmatpush.bf16.msra.mxu0 %v4174
        %6665 = vmatpush.bf16.msra.mxu0 %v4172
        %6666 = vmatmul.bf16.gmra.mxu0 %v1196
        %v6667 = vpop.f32.mrf.mxu0
        %v6668 = vadd.f32 %v6655, %v6667
        %v6669 = vpop.f32.mrf.mxu0
        %6670 = vdwg.mxu0
        %6671 = vmatpush.bf16.msra.mxu0 %v4202
        %6672 = vmatpush.bf16.msra.mxu0 %v4200
        %6673 = vmatpush.bf16.msra.mxu0 %v4198
        %6674 = vmatpush.bf16.msra.mxu0 %v4196
        %6675 = vmatpush.bf16.msra.mxu0 %v4194
        %6676 = vmatpush.bf16.msra.mxu0 %v4192
        %6677 = vmatpush.bf16.msra.mxu0 %v4190
        %6678 = vmatpush.bf16.msra.mxu0 %v4188
        %6679 = vmatmul.bf16.gmra.mxu0 %v1197
        %v6680 = vpop.f32.mrf.mxu0
        %v6681 = vadd.f32 %v6668, %v6680
        %v6682 = vpop.f32.mrf.mxu0
        %6683 = vdwg.mxu0
        %6684 = vmatpush.bf16.msra.mxu0 %v4218
        %6685 = vmatpush.bf16.msra.mxu0 %v4216
        %6686 = vmatpush.bf16.msra.mxu0 %v4214
        %6687 = vmatpush.bf16.msra.mxu0 %v4212
        %6688 = vmatpush.bf16.msra.mxu0 %v4210
        %6689 = vmatpush.bf16.msra.mxu0 %v4208
        %6690 = vmatpush.bf16.msra.mxu0 %v4206
        %6691 = vmatpush.bf16.msra.mxu0 %v4204
        %6692 = vmatmul.bf16.gmra.mxu0 %v1198
        %v6693 = vpop.f32.mrf.mxu0
        %v6694 = vadd.f32 %v6681, %v6693
        %v6695 = vpop.f32.mrf.mxu0
        %6696 = vdwg.mxu0
        %6697 = vmatpush.bf16.msra.mxu0 %v4234
        %6698 = vmatpush.bf16.msra.mxu0 %v4232
        %6699 = vmatpush.bf16.msra.mxu0 %v4230
        %6700 = vmatpush.bf16.msra.mxu0 %v4228
        %6701 = vmatpush.bf16.msra.mxu0 %v4226
        %6702 = vmatpush.bf16.msra.mxu0 %v4224
        %6703 = vmatpush.bf16.msra.mxu0 %v4222
        %6704 = vmatpush.bf16.msra.mxu0 %v4220
        %6705 = vmatmul.bf16.gmra.mxu0 %v1199
        %v6706 = vpop.f32.mrf.mxu0
        %v6707 = vadd.f32 %v6694, %v6706
        %v6708 = vpop.f32.mrf.mxu0
        %6709 = vdwg.mxu0
        %6710 = vmatpush.bf16.msra.mxu0 %v4250
        %6711 = vmatpush.bf16.msra.mxu0 %v4248
        %6712 = vmatpush.bf16.msra.mxu0 %v4246
        %6713 = vmatpush.bf16.msra.mxu0 %v4244
        %6714 = vmatpush.bf16.msra.mxu0 %v4242
        %6715 = vmatpush.bf16.msra.mxu0 %v4240
        %6716 = vmatpush.bf16.msra.mxu0 %v4238
        %6717 = vmatpush.bf16.msra.mxu0 %v4236
        %6718 = vmatmul.bf16.gmra.mxu0 %v1200
        %v6719 = vpop.f32.mrf.mxu0
        %v6720 = vadd.f32 %v6707, %v6719
        %v6721 = vpop.f32.mrf.mxu0
        %6722 = vdwg.mxu0
        %6723 = vmatpush.bf16.msra.mxu0 %v4266
        %6724 = vmatpush.bf16.msra.mxu0 %v4264
        %6725 = vmatpush.bf16.msra.mxu0 %v4262
        %6726 = vmatpush.bf16.msra.mxu0 %v4260
        %6727 = vmatpush.bf16.msra.mxu0 %v4258
        %6728 = vmatpush.bf16.msra.mxu0 %v4256
        %6729 = vmatpush.bf16.msra.mxu0 %v4254
        %6730 = vmatpush.bf16.msra.mxu0 %v4252
        %6731 = vmatmul.bf16.gmra.mxu0 %v1203
        %v6732 = vpop.f32.mrf.mxu0
        %v6733 = vadd.f32 %v6720, %v6732
        %v6734 = vpop.f32.mrf.mxu0
        %6735 = vdwg.mxu0
        %6736 = vmatpush.bf16.msra.mxu0 %v4282
        %6737 = vmatpush.bf16.msra.mxu0 %v4280
        %6738 = vmatpush.bf16.msra.mxu0 %v4278
        %6739 = vmatpush.bf16.msra.mxu0 %v4276
        %6740 = vmatpush.bf16.msra.mxu0 %v4274
        %6741 = vmatpush.bf16.msra.mxu0 %v4272
        %6742 = vmatpush.bf16.msra.mxu0 %v4270
        %6743 = vmatpush.bf16.msra.mxu0 %v4268
        %6744 = vmatmul.bf16.gmra.mxu0 %v1204
        %v6745 = vpop.f32.mrf.mxu0
        %v6746 = vadd.f32 %v6733, %v6745
        %v6747 = vpop.f32.mrf.mxu0
        %6748 = vdwg.mxu0
        %6749 = vmatpush.bf16.msra.mxu0 %v4298
        %6750 = vmatpush.bf16.msra.mxu0 %v4296
        %6751 = vmatpush.bf16.msra.mxu0 %v4294
        %6752 = vmatpush.bf16.msra.mxu0 %v4292
        %6753 = vmatpush.bf16.msra.mxu0 %v4290
        %6754 = vmatpush.bf16.msra.mxu0 %v4288
        %6755 = vmatpush.bf16.msra.mxu0 %v4286
        %6756 = vmatpush.bf16.msra.mxu0 %v4284
        %6757 = vmatmul.bf16.gmra.mxu0 %v1205
        %v6758 = vpop.f32.mrf.mxu0
        %v6759 = vadd.f32 %v6746, %v6758
        %v6760 = vpop.f32.mrf.mxu0
        %6761 = vdwg.mxu0
        %6762 = vmatpush.bf16.msra.mxu0 %v4314
        %6763 = vmatpush.bf16.msra.mxu0 %v4312
        %6764 = vmatpush.bf16.msra.mxu0 %v4310
        %6765 = vmatpush.bf16.msra.mxu0 %v4308
        %6766 = vmatpush.bf16.msra.mxu0 %v4306
        %6767 = vmatpush.bf16.msra.mxu0 %v4304
        %6768 = vmatpush.bf16.msra.mxu0 %v4302
        %6769 = vmatpush.bf16.msra.mxu0 %v4300
        %6770 = vmatmul.bf16.gmra.mxu0 %v1206
        %v6771 = vpop.f32.mrf.mxu0
        %v6772 = vadd.f32 %v6759, %v6771
        %v6773 = vpop.f32.mrf.mxu0
        %6774 = vdwg.mxu0
        %6775 = vmatpush.bf16.msra.mxu0 %v4330
        %6776 = vmatpush.bf16.msra.mxu0 %v4328
        %6777 = vmatpush.bf16.msra.mxu0 %v4326
        %6778 = vmatpush.bf16.msra.mxu0 %v4324
        %6779 = vmatpush.bf16.msra.mxu0 %v4322
        %6780 = vmatpush.bf16.msra.mxu0 %v4320
        %6781 = vmatpush.bf16.msra.mxu0 %v4318
        %6782 = vmatpush.bf16.msra.mxu0 %v4316
        %6783 = vmatmul.bf16.gmra.mxu0 %v1207
        %v6784 = vpop.f32.mrf.mxu0
        %v6785 = vadd.f32 %v6772, %v6784
        %v6786 = vpop.f32.mrf.mxu0
        %6787 = vdwg.mxu0
        %6788 = vmatpush.bf16.msra.mxu0 %v4346
        %6789 = vmatpush.bf16.msra.mxu0 %v4344
        %6790 = vmatpush.bf16.msra.mxu0 %v4342
        %6791 = vmatpush.bf16.msra.mxu0 %v4340
        %6792 = vmatpush.bf16.msra.mxu0 %v4338
        %6793 = vmatpush.bf16.msra.mxu0 %v4336
        %6794 = vmatpush.bf16.msra.mxu0 %v4334
        %6795 = vmatpush.bf16.msra.mxu0 %v4332
        %6796 = vmatmul.bf16.gmra.mxu0 %v1208
        %v6797 = vpop.f32.mrf.mxu0
        %v6798 = vadd.f32 %v6785, %v6797
        %v6799 = vpop.f32.mrf.mxu0
        %6800 = vdwg.mxu0
        %6801 = vmatpush.bf16.msra.mxu0 %v4362
        %6802 = vmatpush.bf16.msra.mxu0 %v4360
        %6803 = vmatpush.bf16.msra.mxu0 %v4358
        %6804 = vmatpush.bf16.msra.mxu0 %v4356
        %6805 = vmatpush.bf16.msra.mxu0 %v4354
        %6806 = vmatpush.bf16.msra.mxu0 %v4352
        %6807 = vmatpush.bf16.msra.mxu0 %v4350
        %6808 = vmatpush.bf16.msra.mxu0 %v4348
        %6809 = vmatmul.bf16.gmra.mxu0 %v1209
        %v6810 = vpop.f32.mrf.mxu0
        %v6811 = vadd.f32 %v6798, %v6810
        %v6812 = vpop.f32.mrf.mxu0
        %6813 = vdwg.mxu0
        %6814 = vmatpush.bf16.msra.mxu0 %v4378
        %6815 = vmatpush.bf16.msra.mxu0 %v4376
        %6816 = vmatpush.bf16.msra.mxu0 %v4374
        %6817 = vmatpush.bf16.msra.mxu0 %v4372
        %6818 = vmatpush.bf16.msra.mxu0 %v4370
        %6819 = vmatpush.bf16.msra.mxu0 %v4368
        %6820 = vmatpush.bf16.msra.mxu0 %v4366
        %6821 = vmatpush.bf16.msra.mxu0 %v4364
        %6822 = vmatmul.bf16.gmra.mxu0 %v1210
        %v6823 = vpop.f32.mrf.mxu0
        %v6824 = vadd.f32 %v6811, %v6823
        %v6825 = vpop.f32.mrf.mxu0
        %6826 = vdwg.mxu0
        %6827 = vmatpush.bf16.msra.mxu0 %v4394
        %6828 = vmatpush.bf16.msra.mxu0 %v4392
        %6829 = vmatpush.bf16.msra.mxu0 %v4390
        %6830 = vmatpush.bf16.msra.mxu0 %v4388
        %6831 = vmatpush.bf16.msra.mxu0 %v4386
        %6832 = vmatpush.bf16.msra.mxu0 %v4384
        %6833 = vmatpush.bf16.msra.mxu0 %v4382
        %6834 = vmatpush.bf16.msra.mxu0 %v4380
        %6835 = vmatmul.bf16.gmra.mxu0 %v1213
        %v6836 = vpop.f32.mrf.mxu0
        %v6837 = vadd.f32 %v6824, %v6836
        %v6838 = vpop.f32.mrf.mxu0
        %6839 = vdwg.mxu0
        %6840 = vmatpush.bf16.msra.mxu0 %v4410
        %6841 = vmatpush.bf16.msra.mxu0 %v4408
        %6842 = vmatpush.bf16.msra.mxu0 %v4406
        %6843 = vmatpush.bf16.msra.mxu0 %v4404
        %6844 = vmatpush.bf16.msra.mxu0 %v4402
        %6845 = vmatpush.bf16.msra.mxu0 %v4400
        %6846 = vmatpush.bf16.msra.mxu0 %v4398
        %6847 = vmatpush.bf16.msra.mxu0 %v4396
        %6848 = vmatmul.bf16.gmra.mxu0 %v1214
        %v6849 = vpop.f32.mrf.mxu0
        %v6850 = vadd.f32 %v6837, %v6849
        %v6851 = vpop.f32.mrf.mxu0
        %6852 = vdwg.mxu0
        %6853 = vmatpush.bf16.msra.mxu0 %v4426
        %6854 = vmatpush.bf16.msra.mxu0 %v4424
        %6855 = vmatpush.bf16.msra.mxu0 %v4422
        %6856 = vmatpush.bf16.msra.mxu0 %v4420
        %6857 = vmatpush.bf16.msra.mxu0 %v4418
        %6858 = vmatpush.bf16.msra.mxu0 %v4416
        %6859 = vmatpush.bf16.msra.mxu0 %v4414
        %6860 = vmatpush.bf16.msra.mxu0 %v4412
        %6861 = vmatmul.bf16.gmra.mxu0 %v1215
        %v6862 = vpop.f32.mrf.mxu0
        %v6863 = vadd.f32 %v6850, %v6862
        %v6864 = vpop.f32.mrf.mxu0
        %6865 = vdwg.mxu0
        %6866 = vmatpush.bf16.msra.mxu0 %v4442
        %6867 = vmatpush.bf16.msra.mxu0 %v4440
        %6868 = vmatpush.bf16.msra.mxu0 %v4438
        %6869 = vmatpush.bf16.msra.mxu0 %v4436
        %6870 = vmatpush.bf16.msra.mxu0 %v4434
        %6871 = vmatpush.bf16.msra.mxu0 %v4432
        %6872 = vmatpush.bf16.msra.mxu0 %v4430
        %6873 = vmatpush.bf16.msra.mxu0 %v4428
        %6874 = vmatmul.bf16.gmra.mxu0 %v1216
        %v6875 = vpop.f32.mrf.mxu0
        %v6876 = vadd.f32 %v6863, %v6875
        %v6877 = vpop.f32.mrf.mxu0
        %6878 = vdwg.mxu0
        %6879 = vmatpush.bf16.msra.mxu0 %v4458
        %6880 = vmatpush.bf16.msra.mxu0 %v4456
        %6881 = vmatpush.bf16.msra.mxu0 %v4454
        %6882 = vmatpush.bf16.msra.mxu0 %v4452
        %6883 = vmatpush.bf16.msra.mxu0 %v4450
        %6884 = vmatpush.bf16.msra.mxu0 %v4448
        %6885 = vmatpush.bf16.msra.mxu0 %v4446
        %6886 = vmatpush.bf16.msra.mxu0 %v4444
        %6887 = vmatmul.bf16.gmra.mxu0 %v1217
        %v6888 = vpop.f32.mrf.mxu0
        %v6889 = vadd.f32 %v6876, %v6888
        %v6890 = vpop.f32.mrf.mxu0
        %6891 = vdwg.mxu0
        %6892 = vmatpush.bf16.msra.mxu0 %v4474
        %6893 = vmatpush.bf16.msra.mxu0 %v4472
        %6894 = vmatpush.bf16.msra.mxu0 %v4470
        %6895 = vmatpush.bf16.msra.mxu0 %v4468
        %6896 = vmatpush.bf16.msra.mxu0 %v4466
        %6897 = vmatpush.bf16.msra.mxu0 %v4464
        %6898 = vmatpush.bf16.msra.mxu0 %v4462
        %6899 = vmatpush.bf16.msra.mxu0 %v4460
        %6900 = vmatmul.bf16.gmra.mxu0 %v1218
        %v6901 = vpop.f32.mrf.mxu0
        %v6902 = vadd.f32 %v6889, %v6901
        %v6903 = vpop.f32.mrf.mxu0
        %6904 = vdwg.mxu0
        %6905 = vmatpush.bf16.msra.mxu0 %v4490
        %6906 = vmatpush.bf16.msra.mxu0 %v4488
        %6907 = vmatpush.bf16.msra.mxu0 %v4486
        %6908 = vmatpush.bf16.msra.mxu0 %v4484
        %6909 = vmatpush.bf16.msra.mxu0 %v4482
        %6910 = vmatpush.bf16.msra.mxu0 %v4480
        %6911 = vmatpush.bf16.msra.mxu0 %v4478
        %6912 = vmatpush.bf16.msra.mxu0 %v4476
        %6913 = vmatmul.bf16.gmra.mxu0 %v1219
        %v6914 = vpop.f32.mrf.mxu0
        %v6915 = vadd.f32 %v6902, %v6914
        %v6916 = vpop.f32.mrf.mxu0
        %6917 = vdwg.mxu0
        %6918 = vmatpush.bf16.msra.mxu0 %v4506
        %6919 = vmatpush.bf16.msra.mxu0 %v4504
        %6920 = vmatpush.bf16.msra.mxu0 %v4502
        %6921 = vmatpush.bf16.msra.mxu0 %v4500
        %6922 = vmatpush.bf16.msra.mxu0 %v4498
        %6923 = vmatpush.bf16.msra.mxu0 %v4496
        %6924 = vmatpush.bf16.msra.mxu0 %v4494
        %6925 = vmatpush.bf16.msra.mxu0 %v4492
        %6926 = vmatmul.bf16.gmra.mxu0 %v1220
        %v6927 = vpop.f32.mrf.mxu0
        %v6928 = vadd.f32 %v6915, %v6927
        %v6929 = vpop.f32.mrf.mxu0
        %6930 = vdwg.mxu0
        %6931 = vmatpush.bf16.msra.mxu0 %v4522
        %6932 = vmatpush.bf16.msra.mxu0 %v4520
        %6933 = vmatpush.bf16.msra.mxu0 %v4518
        %6934 = vmatpush.bf16.msra.mxu0 %v4516
        %6935 = vmatpush.bf16.msra.mxu0 %v4514
        %6936 = vmatpush.bf16.msra.mxu0 %v4512
        %6937 = vmatpush.bf16.msra.mxu0 %v4510
        %6938 = vmatpush.bf16.msra.mxu0 %v4508
        %6939 = vmatmul.bf16.gmra.mxu0 %v1223
        %v6940 = vpop.f32.mrf.mxu0
        %v6941 = vadd.f32 %v6928, %v6940
        %v6942 = vpop.f32.mrf.mxu0
        %6943 = vdwg.mxu0
        %6944 = vmatpush.bf16.msra.mxu0 %v4538
        %6945 = vmatpush.bf16.msra.mxu0 %v4536
        %6946 = vmatpush.bf16.msra.mxu0 %v4534
        %6947 = vmatpush.bf16.msra.mxu0 %v4532
        %6948 = vmatpush.bf16.msra.mxu0 %v4530
        %6949 = vmatpush.bf16.msra.mxu0 %v4528
        %6950 = vmatpush.bf16.msra.mxu0 %v4526
        %6951 = vmatpush.bf16.msra.mxu0 %v4524
        %6952 = vmatmul.bf16.gmra.mxu0 %v1224
        %v6953 = vpop.f32.mrf.mxu0
        %v6954 = vadd.f32 %v6941, %v6953
        %v6955 = vpop.f32.mrf.mxu0
        %6956 = vdwg.mxu0
        %6957 = vmatpush.bf16.msra.mxu0 %v4554
        %6958 = vmatpush.bf16.msra.mxu0 %v4552
        %6959 = vmatpush.bf16.msra.mxu0 %v4550
        %6960 = vmatpush.bf16.msra.mxu0 %v4548
        %6961 = vmatpush.bf16.msra.mxu0 %v4546
        %6962 = vmatpush.bf16.msra.mxu0 %v4544
        %6963 = vmatpush.bf16.msra.mxu0 %v4542
        %6964 = vmatpush.bf16.msra.mxu0 %v4540
        %6965 = vmatmul.bf16.gmra.mxu0 %v1225
        %v6966 = vpop.f32.mrf.mxu0
        %v6967 = vadd.f32 %v6954, %v6966
        %v6968 = vpop.f32.mrf.mxu0
        %6969 = vdwg.mxu0
        %6970 = vmatpush.bf16.msra.mxu0 %v4570
        %6971 = vmatpush.bf16.msra.mxu0 %v4568
        %6972 = vmatpush.bf16.msra.mxu0 %v4566
        %6973 = vmatpush.bf16.msra.mxu0 %v4564
        %6974 = vmatpush.bf16.msra.mxu0 %v4562
        %6975 = vmatpush.bf16.msra.mxu0 %v4560
        %6976 = vmatpush.bf16.msra.mxu0 %v4558
        %6977 = vmatpush.bf16.msra.mxu0 %v4556
        %6978 = vmatmul.bf16.gmra.mxu0 %v1226
        %v6979 = vpop.f32.mrf.mxu0
        %v6980 = vadd.f32 %v6967, %v6979
        %v6981 = vpop.f32.mrf.mxu0
        %6982 = vdwg.mxu0
        %6983 = vmatpush.bf16.msra.mxu0 %v4586
        %6984 = vmatpush.bf16.msra.mxu0 %v4584
        %6985 = vmatpush.bf16.msra.mxu0 %v4582
        %6986 = vmatpush.bf16.msra.mxu0 %v4580
        %6987 = vmatpush.bf16.msra.mxu0 %v4578
        %6988 = vmatpush.bf16.msra.mxu0 %v4576
        %6989 = vmatpush.bf16.msra.mxu0 %v4574
        %6990 = vmatpush.bf16.msra.mxu0 %v4572
        %6991 = vmatmul.bf16.gmra.mxu0 %v1227
        %v6992 = vpop.f32.mrf.mxu0
        %v6993 = vadd.f32 %v6980, %v6992
        %v6994 = vpop.f32.mrf.mxu0
        %6995 = vdwg.mxu0
        %6996 = vmatpush.bf16.msra.mxu0 %v4602
        %6997 = vmatpush.bf16.msra.mxu0 %v4600
        %6998 = vmatpush.bf16.msra.mxu0 %v4598
        %6999 = vmatpush.bf16.msra.mxu0 %v4596
        %7000 = vmatpush.bf16.msra.mxu0 %v4594
        %7001 = vmatpush.bf16.msra.mxu0 %v4592
        %7002 = vmatpush.bf16.msra.mxu0 %v4590
        %7003 = vmatpush.bf16.msra.mxu0 %v4588
        %7004 = vmatmul.bf16.gmra.mxu0 %v1228
        %v7005 = vpop.f32.mrf.mxu0
        %v7006 = vadd.f32 %v6993, %v7005
        %v7007 = vpop.f32.mrf.mxu0
        %7008 = vdwg.mxu0
        %7009 = vmatpush.bf16.msra.mxu0 %v4618
        %7010 = vmatpush.bf16.msra.mxu0 %v4616
        %7011 = vmatpush.bf16.msra.mxu0 %v4614
        %7012 = vmatpush.bf16.msra.mxu0 %v4612
        %7013 = vmatpush.bf16.msra.mxu0 %v4610
        %7014 = vmatpush.bf16.msra.mxu0 %v4608
        %7015 = vmatpush.bf16.msra.mxu0 %v4606
        %7016 = vmatpush.bf16.msra.mxu0 %v4604
        %7017 = vmatmul.bf16.gmra.mxu0 %v1229
        %v7018 = vpop.f32.mrf.mxu0
        %v7019 = vadd.f32 %v7006, %v7018
        %v7020 = vpop.f32.mrf.mxu0
        %7021 = vdwg.mxu0
        %7022 = vmatpush.bf16.msra.mxu0 %v4634
        %7023 = vmatpush.bf16.msra.mxu0 %v4632
        %7024 = vmatpush.bf16.msra.mxu0 %v4630
        %7025 = vmatpush.bf16.msra.mxu0 %v4628
        %7026 = vmatpush.bf16.msra.mxu0 %v4626
        %7027 = vmatpush.bf16.msra.mxu0 %v4624
        %7028 = vmatpush.bf16.msra.mxu0 %v4622
        %7029 = vmatpush.bf16.msra.mxu0 %v4620
        %7030 = vmatmul.bf16.gmra.mxu0 %v1230
        %v7031 = vpop.f32.mrf.mxu0
        %v7032 = vadd.f32 %v7019, %v7031
        %v7033 = vpop.f32.mrf.mxu0
        %7034 = vdwg.mxu0
        %7035 = vmatpush.bf16.msra.mxu0 %v4650
        %7036 = vmatpush.bf16.msra.mxu0 %v4648
        %7037 = vmatpush.bf16.msra.mxu0 %v4646
        %7038 = vmatpush.bf16.msra.mxu0 %v4644
        %7039 = vmatpush.bf16.msra.mxu0 %v4642
        %7040 = vmatpush.bf16.msra.mxu0 %v4640
        %7041 = vmatpush.bf16.msra.mxu0 %v4638
        %7042 = vmatpush.bf16.msra.mxu0 %v4636
        %7043 = vmatmul.bf16.gmra.mxu0 %v1233
        %v7044 = vpop.f32.mrf.mxu0
        %v7045 = vadd.f32 %v7032, %v7044
        %v7046 = vpop.f32.mrf.mxu0
        %7047 = vdwg.mxu0
        %7048 = vmatpush.bf16.msra.mxu0 %v4666
        %7049 = vmatpush.bf16.msra.mxu0 %v4664
        %7050 = vmatpush.bf16.msra.mxu0 %v4662
        %7051 = vmatpush.bf16.msra.mxu0 %v4660
        %7052 = vmatpush.bf16.msra.mxu0 %v4658
        %7053 = vmatpush.bf16.msra.mxu0 %v4656
        %7054 = vmatpush.bf16.msra.mxu0 %v4654
        %7055 = vmatpush.bf16.msra.mxu0 %v4652
        %7056 = vmatmul.bf16.gmra.mxu0 %v1234
        %v7057 = vpop.f32.mrf.mxu0
        %v7058 = vadd.f32 %v7045, %v7057
        %v7059 = vpop.f32.mrf.mxu0
        %7060 = vdwg.mxu0
        %7061 = vmatpush.bf16.msra.mxu0 %v4682
        %7062 = vmatpush.bf16.msra.mxu0 %v4680
        %7063 = vmatpush.bf16.msra.mxu0 %v4678
        %7064 = vmatpush.bf16.msra.mxu0 %v4676
        %7065 = vmatpush.bf16.msra.mxu0 %v4674
        %7066 = vmatpush.bf16.msra.mxu0 %v4672
        %7067 = vmatpush.bf16.msra.mxu0 %v4670
        %7068 = vmatpush.bf16.msra.mxu0 %v4668
        %7069 = vmatmul.bf16.gmra.mxu0 %v1235
        %v7070 = vpop.f32.mrf.mxu0
        %v7071 = vadd.f32 %v7058, %v7070
        %v7072 = vpop.f32.mrf.mxu0
        %7073 = vdwg.mxu0
        %7074 = vmatpush.bf16.msra.mxu0 %v4698
        %7075 = vmatpush.bf16.msra.mxu0 %v4696
        %7076 = vmatpush.bf16.msra.mxu0 %v4694
        %7077 = vmatpush.bf16.msra.mxu0 %v4692
        %7078 = vmatpush.bf16.msra.mxu0 %v4690
        %7079 = vmatpush.bf16.msra.mxu0 %v4688
        %7080 = vmatpush.bf16.msra.mxu0 %v4686
        %7081 = vmatpush.bf16.msra.mxu0 %v4684
        %7082 = vmatmul.bf16.gmra.mxu0 %v1236
        %v7083 = vpop.f32.mrf.mxu0
        %v7084 = vadd.f32 %v7071, %v7083
        %v7085 = vpop.f32.mrf.mxu0
        %7086 = vdwg.mxu0
        %7087 = vmatpush.bf16.msra.mxu0 %v4714
        %7088 = vmatpush.bf16.msra.mxu0 %v4712
        %7089 = vmatpush.bf16.msra.mxu0 %v4710
        %7090 = vmatpush.bf16.msra.mxu0 %v4708
        %7091 = vmatpush.bf16.msra.mxu0 %v4706
        %7092 = vmatpush.bf16.msra.mxu0 %v4704
        %7093 = vmatpush.bf16.msra.mxu0 %v4702
        %7094 = vmatpush.bf16.msra.mxu0 %v4700
        %7095 = vmatmul.bf16.gmra.mxu0 %v1237
        %v7096 = vpop.f32.mrf.mxu0
        %v7097 = vadd.f32 %v7084, %v7096
        %v7098 = vpop.f32.mrf.mxu0
        %7099 = vdwg.mxu0
        %7100 = vmatpush.bf16.msra.mxu0 %v4730
        %7101 = vmatpush.bf16.msra.mxu0 %v4728
        %7102 = vmatpush.bf16.msra.mxu0 %v4726
        %7103 = vmatpush.bf16.msra.mxu0 %v4724
        %7104 = vmatpush.bf16.msra.mxu0 %v4722
        %7105 = vmatpush.bf16.msra.mxu0 %v4720
        %7106 = vmatpush.bf16.msra.mxu0 %v4718
        %7107 = vmatpush.bf16.msra.mxu0 %v4716
        %7108 = vmatmul.bf16.gmra.mxu0 %v1238
        %v7109 = vpop.f32.mrf.mxu0
        %v7110 = vadd.f32 %v7097, %v7109
        %v7111 = vpop.f32.mrf.mxu0
        %7112 = vdwg.mxu0
        %7113 = vmatpush.bf16.msra.mxu0 %v4746
        %7114 = vmatpush.bf16.msra.mxu0 %v4744
        %7115 = vmatpush.bf16.msra.mxu0 %v4742
        %7116 = vmatpush.bf16.msra.mxu0 %v4740
        %7117 = vmatpush.bf16.msra.mxu0 %v4738
        %7118 = vmatpush.bf16.msra.mxu0 %v4736
        %7119 = vmatpush.bf16.msra.mxu0 %v4734
        %7120 = vmatpush.bf16.msra.mxu0 %v4732
        %7121 = vmatmul.bf16.gmra.mxu0 %v1239
        %v7122 = vpop.f32.mrf.mxu0
        %v7123 = vadd.f32 %v7110, %v7122
        %v7124 = vpop.f32.mrf.mxu0
        %7125 = vdwg.mxu0
        %7126 = vmatpush.bf16.msra.mxu0 %v4762
        %7127 = vmatpush.bf16.msra.mxu0 %v4760
        %7128 = vmatpush.bf16.msra.mxu0 %v4758
        %7129 = vmatpush.bf16.msra.mxu0 %v4756
        %7130 = vmatpush.bf16.msra.mxu0 %v4754
        %7131 = vmatpush.bf16.msra.mxu0 %v4752
        %7132 = vmatpush.bf16.msra.mxu0 %v4750
        %7133 = vmatpush.bf16.msra.mxu0 %v4748
        %7134 = vmatmul.bf16.gmra.mxu0 %v1240
        %v7135 = vpop.f32.mrf.mxu0
        %v7136 = vadd.f32 %v7123, %v7135
        %v7137 = vpop.f32.mrf.mxu0
        %7138 = vdwg.mxu0
        %7139 = vmatpush.bf16.msra.mxu0 %v4778
        %7140 = vmatpush.bf16.msra.mxu0 %v4776
        %7141 = vmatpush.bf16.msra.mxu0 %v4774
        %7142 = vmatpush.bf16.msra.mxu0 %v4772
        %7143 = vmatpush.bf16.msra.mxu0 %v4770
        %7144 = vmatpush.bf16.msra.mxu0 %v4768
        %7145 = vmatpush.bf16.msra.mxu0 %v4766
        %7146 = vmatpush.bf16.msra.mxu0 %v4764
        %7147 = vmatmul.bf16.gmra.mxu0 %v1243
        %v7148 = vpop.f32.mrf.mxu0
        %v7149 = vadd.f32 %v7136, %v7148
        %v7150 = vpop.f32.mrf.mxu0
        %7151 = vdwg.mxu0
        %7152 = vmatpush.bf16.msra.mxu0 %v4794
        %7153 = vmatpush.bf16.msra.mxu0 %v4792
        %7154 = vmatpush.bf16.msra.mxu0 %v4790
        %7155 = vmatpush.bf16.msra.mxu0 %v4788
        %7156 = vmatpush.bf16.msra.mxu0 %v4786
        %7157 = vmatpush.bf16.msra.mxu0 %v4784
        %7158 = vmatpush.bf16.msra.mxu0 %v4782
        %7159 = vmatpush.bf16.msra.mxu0 %v4780
        %7160 = vmatmul.bf16.gmra.mxu0 %v1244
        %v7161 = vpop.f32.mrf.mxu0
        %v7162 = vadd.f32 %v7149, %v7161
        %v7163 = vpop.f32.mrf.mxu0
        %7164 = vdwg.mxu0
        %7165 = vmatpush.bf16.msra.mxu0 %v4810
        %7166 = vmatpush.bf16.msra.mxu0 %v4808
        %7167 = vmatpush.bf16.msra.mxu0 %v4806
        %7168 = vmatpush.bf16.msra.mxu0 %v4804
        %7169 = vmatpush.bf16.msra.mxu0 %v4802
        %7170 = vmatpush.bf16.msra.mxu0 %v4800
        %7171 = vmatpush.bf16.msra.mxu0 %v4798
        %7172 = vmatpush.bf16.msra.mxu0 %v4796
        %7173 = vmatmul.bf16.gmra.mxu0 %v1245
        %v7174 = vpop.f32.mrf.mxu0
        %v7175 = vadd.f32 %v7162, %v7174
        %v7176 = vpop.f32.mrf.mxu0
        %7177 = vdwg.mxu0
        %7178 = vmatpush.bf16.msra.mxu0 %v4826
        %7179 = vmatpush.bf16.msra.mxu0 %v4824
        %7180 = vmatpush.bf16.msra.mxu0 %v4822
        %7181 = vmatpush.bf16.msra.mxu0 %v4820
        %7182 = vmatpush.bf16.msra.mxu0 %v4818
        %7183 = vmatpush.bf16.msra.mxu0 %v4816
        %7184 = vmatpush.bf16.msra.mxu0 %v4814
        %7185 = vmatpush.bf16.msra.mxu0 %v4812
        %7186 = vmatmul.bf16.gmra.mxu0 %v1246
        %v7187 = vpop.f32.mrf.mxu0
        %v7188 = vadd.f32 %v7175, %v7187
        %v7189 = vpop.f32.mrf.mxu0
        %7190 = vdwg.mxu0
        %7191 = vmatpush.bf16.msra.mxu0 %v4842
        %7192 = vmatpush.bf16.msra.mxu0 %v4840
        %7193 = vmatpush.bf16.msra.mxu0 %v4838
        %7194 = vmatpush.bf16.msra.mxu0 %v4836
        %7195 = vmatpush.bf16.msra.mxu0 %v4834
        %7196 = vmatpush.bf16.msra.mxu0 %v4832
        %7197 = vmatpush.bf16.msra.mxu0 %v4830
        %7198 = vmatpush.bf16.msra.mxu0 %v4828
        %7199 = vmatmul.bf16.gmra.mxu0 %v1247
        %v7200 = vpop.f32.mrf.mxu0
        %v7201 = vadd.f32 %v7188, %v7200
        %v7202 = vpop.f32.mrf.mxu0
        %7203 = vdwg.mxu0
        %7204 = vmatpush.bf16.msra.mxu0 %v4858
        %7205 = vmatpush.bf16.msra.mxu0 %v4856
        %7206 = vmatpush.bf16.msra.mxu0 %v4854
        %7207 = vmatpush.bf16.msra.mxu0 %v4852
        %7208 = vmatpush.bf16.msra.mxu0 %v4850
        %7209 = vmatpush.bf16.msra.mxu0 %v4848
        %7210 = vmatpush.bf16.msra.mxu0 %v4846
        %7211 = vmatpush.bf16.msra.mxu0 %v4844
        %7212 = vmatmul.bf16.gmra.mxu0 %v1248
        %v7213 = vpop.f32.mrf.mxu0
        %v7214 = vadd.f32 %v7201, %v7213
        %v7215 = vpop.f32.mrf.mxu0
        %7216 = vdwg.mxu0
        %7217 = vmatpush.bf16.msra.mxu0 %v4874
        %7218 = vmatpush.bf16.msra.mxu0 %v4872
        %7219 = vmatpush.bf16.msra.mxu0 %v4870
        %7220 = vmatpush.bf16.msra.mxu0 %v4868
        %7221 = vmatpush.bf16.msra.mxu0 %v4866
        %7222 = vmatpush.bf16.msra.mxu0 %v4864
        %7223 = vmatpush.bf16.msra.mxu0 %v4862
        %7224 = vmatpush.bf16.msra.mxu0 %v4860
        %7225 = vmatmul.bf16.gmra.mxu0 %v1249
        %v7226 = vpop.f32.mrf.mxu0
        %v7227 = vadd.f32 %v7214, %v7226
        %v7228 = vpop.f32.mrf.mxu0
        %7229 = vdwg.mxu0
        %7230 = vmatpush.bf16.msra.mxu0 %v4890
        %7231 = vmatpush.bf16.msra.mxu0 %v4888
        %7232 = vmatpush.bf16.msra.mxu0 %v4886
        %7233 = vmatpush.bf16.msra.mxu0 %v4884
        %7234 = vmatpush.bf16.msra.mxu0 %v4882
        %7235 = vmatpush.bf16.msra.mxu0 %v4880
        %7236 = vmatpush.bf16.msra.mxu0 %v4878
        %7237 = vmatpush.bf16.msra.mxu0 %v4876
        %7238 = vmatmul.bf16.gmra.mxu0 %v1250
        %v7239 = vpop.f32.mrf.mxu0
        %v7240 = vadd.f32 %v7227, %v7239
        %v7241 = vpop.f32.mrf.mxu0
        %7242 = vdwg.mxu0
        %v7245 = vrot.slane %v7240, 6
        %vm7246 = vcmask 1041408
        %v7247 = vsel %vm7246, %v6512, %v7245
        %v7249 = vadd.f32 %v277, %v7247
        %7250 = vst [vmem:[#allocation2] sm:$0xf] %v7249
        %p7251 = scmp.eq.s32.totalorder %s25, 6
        // Predicated region
        $region45: #{ppo_generator_forward.6} parent=31 // pred_check
          %p7252 = pneg %p7251
        $region46: #{ppo_generator_forward.6} parent=31 // pred_check_branch
          %7254 = sbr.rel (%p7252) target = $region48
        $region47: #{ppo_generator_forward.6} parent=31 // pred_region
          %v7255 = vld [vmem:[#allocation2] sm:$0xf]
          %v7256 = vld [vmem:[%s225] sm:$0x3]
          %v7258 = vperm.slane %v7256, 0
          %v7259 = vperm.slane %v7256, 1
          %v7260 = vrot.slane %v7259, 6
          %v7261 = vsel %vm7246, %v7258, %v7260
          %v7263 = vadd.f32 %v7255, %v7261
          %v7264 = vmax.f32 %v7263, 0.0
          %7265 = vst [vmem:[%s270] sm:$0xf] %v7264
        $region48: #{ppo_generator_forward.6} parent=31 // pred_fallthru
          _
        %s7266 = smul.u32 2, %s24
        %p7267 = scmp.lt.s32.totalorder %s7266, 3
        %s7268 = scalar_select %p7267, %s7266, 3
        %s7269 = smul.addr %s7268, 2
        %s7270 = scalar_lea.vmem %s3, %s7269
        // Predicated region
        $region49: #{ppo_generator_forward.6} parent=31 // pred_check
          %p7271 = pneg %p130
        $region50: #{ppo_generator_forward.6} parent=31 // pred_check_branch
          %7273 = sbr.rel (%p7271) target = $region52
        $region51: #{ppo_generator_forward.6} parent=31 // pred_region
          %s7274 = smul.u32 2, %s24
        $region52: #{ppo_generator_forward.6} parent=31 // pred_fallthru
          _
      $region32: #{ppo_generator_forward.6} parent=5 // pred_fallthru
        _
      %p7275 = scmp.le.s32.totalorder 2, %s15
      // Predicated region
      $region53: #{ppo_generator_forward.6} parent=5 // pred_check
        %p7276 = pneg %p7275
      $region54: #{ppo_generator_forward.6} parent=5 // pred_check_branch
        %7278 = sbr.rel (%p7276) target = $region56
      $region55: #{ppo_generator_forward.6} parent=5 // pred_region
        %s7279 = ssub.s32 %s15, 2
        // Predicated region
        $region57: #{ppo_generator_forward.6} parent=55 // pred_check
          %p7280 = pneg %p136
        $region58: #{ppo_generator_forward.6} parent=55 // pred_check_branch
          %7282 = sbr.rel (%p7280) target = $region60
        $region59: #{ppo_generator_forward.6} parent=55 // pred_region
          %s7283 = smul.u32 2, %s26
          %p7284 = scmp.lt.s32.totalorder %s7283, 3
          %s7285 = scalar_select %p7284, %s7283, 3
          %s7286 = smul.addr %s7285, 2
          %s7287 = scalar_lea.vmem %s3, %s7286
        $region60: #{ppo_generator_forward.6} parent=55 // pred_fallthru
          _
      $region56: #{ppo_generator_forward.6} parent=5 // pred_fallthru
        _
    $region6: #{ppo_generator_forward.6} parent=1 // loop_footer
      %s19 = sadd.s32 1, %s15
    $region7: #{ppo_generator_forward.6} parent=1 // loop_footer_branch
      %14 = sbr.rel target = $region3
    $region8: #{ppo_generator_forward.6} parent=1 // loop_exit
      _
    %7288 = vsyncpa [#allocation4], 1
    %s7289 = scalar_lea.sflag [#allocation4], 1
    %7290 = vsyncpa %s7289, 1
    %7291 = vsyncpa [#allocation6], 1
    %s7292 = scalar_lea.sflag [#allocation6], 1
    %7293 = vsyncpa %s7292, 1

</llo_original>
